<compile_context>
chip_gen: v7x
topology: tpu7x:2x2x1
jax: 0.10.0
libtpu: 0.0.40
codegen_flags: <defaults>
</compile_context>

<pallas_src>
import functools

import jax
import jax.numpy as jnp
from jax.experimental import pallas as pl
from jax.experimental.pallas import tpu as pltpu

SELU_ALPHA = 1.6732632423543772
SELU_SCALE = 1.0507009873554805


def _selu(x):
    return SELU_SCALE * jnp.where(
        x > 0, x, SELU_ALPHA * (jnp.exp(jnp.minimum(x, 0.0)) - 1.0)
    )


def _ceil8(v):
    return (v + 7) // 8 * 8


def residual_block_kernel(
    x3_ref,   # (R_in, (W+2)*Cin)      zero-padded input, rows = (n, padded-h) folded
    t1_ref,   # (2, (W+2)*Cin, W*Cout) conv1 Toeplitz blocks, one per kh tap
    b1_ref,   # (1, W*Cout)            conv1 bias, tiled over W
    s_ref,    # (1, W*Cout)            folded BN scale, tiled over W
    t_ref,    # (1, W*Cout)            folded BN shift, tiled over W
    t2_ref,   # (6, W*Cout, Wp*Cout)   conv2 Toeplitz blocks, index = kh_tap*3 + phase
    td_ref,   # (3, (W+2)*Cin, Wp*Cout) downsample Toeplitz blocks, index = phase
    bo_ref,   # (1, Wp*Cout)           (b2 + bd) tiled over Wp
    o_ref,    # (R_out, Wp*Cout)       pooled rows (wrapper drops pad/garbage rows)
    *, R_act, R_out,
):
    hi = jax.lax.Precision.HIGHEST

    x3 = x3_ref[...]
    x_lo = x3[0:R_act, :]          # folded rows r     (conv1 kh tap 0)
    x_hi = x3[1:R_act + 1, :]      # folded rows r + 1 (conv1 kh tap 1, downsample)

    # ---- conv1 (kernel (2,3), padding (1,1)) as two MXU matmuls
    y1 = (
        jnp.dot(x_lo, t1_ref[0], preferred_element_type=jnp.float32, precision=hi)
        + jnp.dot(x_hi, t1_ref[1], preferred_element_type=jnp.float32, precision=hi)
        + b1_ref[...]
    )                                               # (R_act, W*Cout)

    # ---- bn2 (eval-mode, folded) + SELU (f32 on VPU/EUP)
    act = _selu(y1 * s_ref[...] + t_ref[...])

    a_lo = act[0:R_out, :]
    a_hi = act[1:R_out + 1, :]
    x_id = x_hi[0:R_out, :]        # identity rows for conv_downsample

    # ---- conv2 (kernel (2,3), padding (0,1)) + conv_downsample (kernel (1,3),
    #      padding (0,1)); output columns are pool-phase major.
    def phase(p):
        return (
            jnp.dot(a_lo, t2_ref[p], preferred_element_type=jnp.float32, precision=hi)
            + jnp.dot(a_hi, t2_ref[3 + p], preferred_element_type=jnp.float32,
                      precision=hi)
            + jnp.dot(x_id, td_ref[p], preferred_element_type=jnp.float32,
                      precision=hi)
        )

    # ---- MaxPool2d((1,3)): elementwise max of the three phase slabs; the shared
    #      bias (b2 + bd) commutes with max, so it is added once afterwards.
    m = jnp.maximum(jnp.maximum(phase(0), phase(1)), phase(2)) + bo_ref[...]
    o_ref[...] = m                 # single dense full-block store


def _toeplitz(wk, in_w, out_cols, shift):
    """Block-Toeplitz matrix realizing a width-3 conv along W as a matmul.

    wk: (kw, C_in, C_out) taps. Returns (in_w*C_in, len(out_cols)*C_out) with
    entry[(wi, ci), (o, co)] = wk[wi - out_cols[o] - shift, ci, co] when that tap
    index lies in [0, kw), else 0.
    """
    kw, cin, cout = wk.shape
    wi = jnp.arange(in_w)[:, None]
    oc = jnp.asarray(out_cols)[None, :]
    d = wi - oc - shift
    valid = (d >= 0) & (d < kw)
    g = wk[jnp.clip(d, 0, kw - 1)]                   # (in_w, n_out, cin, cout)
    g = jnp.where(valid[:, :, None, None], g, 0.0)
    g = jnp.transpose(g, (0, 2, 1, 3))               # (in_w, cin, n_out, cout)
    return g.reshape(in_w * cin, oc.shape[1] * cout)


def residual_block_forward(x_nchw, params, eps=1e-5):
    """x_nchw: (N, Cin, H, W) float32, PyTorch layout. Returns (N, Cout, H, W // 3)."""
    N, Cin, H, W = x_nchw.shape
    Cout = params["w1"].shape[0]
    Wp = (W - 3) // 3 + 1
    Hp2, Wp2 = H + 2, W + 2

    R_valid = N * Hp2              # folded (batch, padded-H) rows carrying real data
    R_out = _ceil8(R_valid)        # rows the kernel computes / stores (8-aligned)
    R_act = R_out + 1              # conv1-activation rows consumed by conv2
    R_in = _ceil8(R_act + 1)       # rows of the folded, padded input

    # input: NCHW -> NHWC -> zero-pad H,W by 1 -> fold (N, H+2) rows, (W+2, Cin) lanes
    x = jnp.transpose(x_nchw, (0, 2, 3, 1))
    xp = jnp.pad(x, ((0, 0), (1, 1), (1, 1), (0, 0)))
    x3 = jnp.pad(xp.reshape(R_valid, Wp2 * Cin), ((0, R_in - R_valid), (0, 0)))

    # weights -> block-Toeplitz matrices (conv-as-matmul); conv2 / downsample output
    # columns are permuted pool-phase major so the MaxPool is 3 dense slabs.
    w1t = jnp.transpose(params["w1"], (2, 3, 1, 0))      # (2, 3, Cin, Cout)
    w2t = jnp.transpose(params["w2"], (2, 3, 1, 0))      # (2, 3, Cout, Cout)
    wdt = jnp.transpose(params["wd"], (2, 3, 1, 0))[0]   # (3, Cin, Cout)

    full_cols = jnp.arange(W)
    phase_cols = [3 * jnp.arange(Wp) + p for p in range(3)]
    T1 = jnp.stack([_toeplitz(w1t[dh], Wp2, full_cols, 0) for dh in range(2)])
    T2 = jnp.stack([_toeplitz(w2t[dh], W, phase_cols[p], -1)
                    for dh in range(2) for p in range(3)])
    Td = jnp.stack([_toeplitz(wdt, Wp2, phase_cols[p], 0) for p in range(3)])

    s_vec = params["bn_gamma"] / jnp.sqrt(params["bn_var"] + eps)
    t_vec = params["bn_beta"] - params["bn_mean"] * s_vec
    b1_row = jnp.tile(params["b1"], W)[None, :]
    s_row = jnp.tile(s_vec, W)[None, :]
    t_row = jnp.tile(t_vec, W)[None, :]
    bo_row = jnp.tile(params["b2"] + params["bd"], Wp)[None, :]

    kernel = functools.partial(residual_block_kernel, R_act=R_act, R_out=R_out)

    def full_spec(shape):
        nd = len(shape)
        return pl.BlockSpec(shape, lambda i, _nd=nd: (0,) * _nd)

    m = pl.pallas_call(
        kernel,
        out_shape=jax.ShapeDtypeStruct((R_out, Wp * Cout), jnp.float32),
        grid_spec=pltpu.PrefetchScalarGridSpec(
            num_scalar_prefetch=0,
            grid=(1,),   # whole batch in one invocation: no per-step pipeline overhead
            in_specs=[
                full_spec(x3.shape),
                full_spec(T1.shape),
                full_spec(b1_row.shape),
                full_spec(s_row.shape),
                full_spec(t_row.shape),
                full_spec(T2.shape),
                full_spec(Td.shape),
                full_spec(bo_row.shape),
            ],
            out_specs=full_spec((R_out, Wp * Cout)),
        ),
        compiler_params=pltpu.CompilerParams(dimension_semantics=("arbitrary",)),
    )(x3, T1, b1_row, s_row, t_row, T2, Td, bo_row)

    # drop padded-H / alignment garbage rows, un-fold, back to NCHW (layout plumbing)
    pooled = m[:R_valid].reshape(N, Hp2, Wp, Cout)[:, :H]
    return jnp.transpose(pooled, (0, 3, 1, 2))


# ---------------- pure-JAX reference (mirrors the PyTorch forward) ----------------
def residual_block_reference(x, params, eps=1e-5):
    def conv(y, w, b, pad):
        o = jax.lax.conv_general_dilated(
            y, w, (1, 1),
            ((pad[0], pad[0]), (pad[1], pad[1])),
            dimension_numbers=("NCHW", "OIHW", "NCHW"),
            precision=jax.lax.Precision.HIGHEST,
        )
        return o + b[None, :, None, None]

    out = conv(x, params["w1"], params["b1"], (1, 1))              # conv1(x)
    s = params["bn_gamma"] / jnp.sqrt(params["bn_var"] + eps)
    out = (out - params["bn_mean"][None, :, None, None]) * s[None, :, None, None] \
        + params["bn_beta"][None, :, None, None]                   # bn2 (eval)
    out = _selu(out)                                               # selu
    out = conv(out, params["w2"], params["b2"], (0, 1))            # conv2
    identity = conv(x, params["wd"], params["bd"], (0, 1))         # conv_downsample
    out = out + identity
    out = jax.lax.reduce_window(                                   # MaxPool2d((1,3))
        out, -jnp.inf, jax.lax.max, (1, 1, 1, 3), (1, 1, 1, 3), "VALID"
    )
    return out


if __name__ == "__main__":
    key = jax.random.PRNGKey(0)
    N, Cin, Cout, H, W = 2, 4, 8, 16, 18     # nb_filts = [4, 8]; W=18 -> pooled W=6
    ks = jax.random.split(key, 11)

    params = {
        "w1": 0.1 * jax.random.normal(ks[0], (Cout, Cin, 2, 3), jnp.float32),
        "b1": 0.1 * jax.random.normal(ks[1], (Cout,), jnp.float32),
        "w2": 0.1 * jax.random.normal(ks[2], (Cout, Cout, 2, 3), jnp.float32),
        "b2": 0.1 * jax.random.normal(ks[3], (Cout,), jnp.float32),
        "wd": 0.1 * jax.random.normal(ks[4], (Cout, Cin, 1, 3), jnp.float32),
        "bd": 0.1 * jax.random.normal(ks[5], (Cout,), jnp.float32),
        "bn_gamma": 1.0 + 0.1 * jax.random.normal(ks[6], (Cout,), jnp.float32),
        "bn_beta": 0.1 * jax.random.normal(ks[7], (Cout,), jnp.float32),
        "bn_mean": 0.1 * jax.random.normal(ks[8], (Cout,), jnp.float32),
        "bn_var": jnp.abs(1.0 + 0.1 * jax.random.normal(ks[9], (Cout,), jnp.float32)),
    }
    x = jax.random.normal(ks[10], (N, Cin, H, W), jnp.float32)

    out = residual_block_forward(x, params)
    jax.block_until_ready(out)

    ref = residual_block_reference(x, params)
    assert out.shape == ref.shape, (out.shape, ref.shape)
    max_err = float(jnp.max(jnp.abs(out - ref)))
    assert jnp.allclose(out, ref, atol=2e-3, rtol=2e-3), max_err

    print("KERNEL_OK")
</pallas_src>

<mosaic_0001>
module attributes {stable_mosaic.version = 11 : i64} {
  func.func @residual_block_kernel(%arg0: i32, %arg1: memref<48x80xf32, #tpu.memory_space<vmem>>, %arg2: memref<2x80x144xf32, #tpu.memory_space<vmem>>, %arg3: memref<1x144xf32, #tpu.memory_space<vmem>>, %arg4: memref<1x144xf32, #tpu.memory_space<vmem>>, %arg5: memref<1x144xf32, #tpu.memory_space<vmem>>, %arg6: memref<6x144x48xf32, #tpu.memory_space<vmem>>, %arg7: memref<3x80x48xf32, #tpu.memory_space<vmem>>, %arg8: memref<1x48xf32, #tpu.memory_space<vmem>>, %arg9: memref<40x48xf32, #tpu.memory_space<vmem>>) attributes {dimension_semantics = [#tpu.dimension_semantics<arbitrary>], iteration_bounds = array<i64: 1>, scalar_prefetch = 0 : i64, scratch_operands = 0 : i64, tpu.core_type = #tpu.core_type<tc>, window_params = [{pipeline_mode = #tpu.pipeline_mode<synchronous>, transform_indices = @transform_0, window_bounds = array<i64: 48, 80>}, {pipeline_mode = #tpu.pipeline_mode<synchronous>, transform_indices = @transform_1, window_bounds = array<i64: 2, 80, 144>}, {pipeline_mode = #tpu.pipeline_mode<synchronous>, transform_indices = @transform_2, window_bounds = array<i64: 1, 144>}, {pipeline_mode = #tpu.pipeline_mode<synchronous>, transform_indices = @transform_3, window_bounds = array<i64: 1, 144>}, {pipeline_mode = #tpu.pipeline_mode<synchronous>, transform_indices = @transform_4, window_bounds = array<i64: 1, 144>}, {pipeline_mode = #tpu.pipeline_mode<synchronous>, transform_indices = @transform_5, window_bounds = array<i64: 6, 144, 48>}, {pipeline_mode = #tpu.pipeline_mode<synchronous>, transform_indices = @transform_6, window_bounds = array<i64: 3, 80, 48>}, {pipeline_mode = #tpu.pipeline_mode<synchronous>, transform_indices = @transform_7, window_bounds = array<i64: 1, 48>}, {pipeline_mode = #tpu.pipeline_mode<synchronous>, transform_indices = @transform_8, window_bounds = array<i64: 40, 48>}]} {
    %c0 = arith.constant 0 : index
    %c0_0 = arith.constant 0 : index
    %0 = vector.load %arg1[%c0, %c0_0] : memref<48x80xf32, #tpu.memory_space<vmem>>, vector<48x80xf32>
    %1 = vector.extract_strided_slice %0 {offsets = [0, 0], sizes = [41, 80], strides = [1, 1]} : vector<48x80xf32> to vector<41x80xf32>
    %2 = vector.extract_strided_slice %0 {offsets = [1, 0], sizes = [41, 80], strides = [1, 1]} : vector<48x80xf32> to vector<41x80xf32>
    %c0_1 = arith.constant 0 : index
    %c0_2 = arith.constant 0 : index
    %c0_3 = arith.constant 0 : index
    %3 = vector.load %arg2[%c0_1, %c0_2, %c0_3] : memref<2x80x144xf32, #tpu.memory_space<vmem>>, vector<1x80x144xf32>
    %4 = vector.shape_cast %3 : vector<1x80x144xf32> to vector<80x144xf32>
    %cst = arith.constant dense<0.000000e+00> : vector<41x144xf32>
    %5 = tpu.matmul %1, %4, %cst {dimension_numbers = #tpu.dot_dimension_numbers<[1], [0], [0], [1], [0, 0, 1, 1], [], []>, precision = #tpu.contract_precision<fp32>} : vector<41x80xf32>, vector<80x144xf32>, vector<41x144xf32> -> vector<41x144xf32>
    %c1 = arith.constant 1 : index
    %c0_4 = arith.constant 0 : index
    %c0_5 = arith.constant 0 : index
    %6 = vector.load %arg2[%c1, %c0_4, %c0_5] : memref<2x80x144xf32, #tpu.memory_space<vmem>>, vector<1x80x144xf32>
    %7 = vector.shape_cast %6 : vector<1x80x144xf32> to vector<80x144xf32>
    %cst_6 = arith.constant dense<0.000000e+00> : vector<41x144xf32>
    %8 = tpu.matmul %2, %7, %cst_6 {dimension_numbers = #tpu.dot_dimension_numbers<[1], [0], [0], [1], [0, 0, 1, 1], [], []>, precision = #tpu.contract_precision<fp32>} : vector<41x80xf32>, vector<80x144xf32>, vector<41x144xf32> -> vector<41x144xf32>
    %9 = arith.addf %5, %8 : vector<41x144xf32>
    %c0_7 = arith.constant 0 : index
    %c0_8 = arith.constant 0 : index
    %10 = vector.load %arg3[%c0_7, %c0_8] : memref<1x144xf32, #tpu.memory_space<vmem>>, vector<1x144xf32>
    %11 = vector.broadcast %10 : vector<1x144xf32> to vector<41x144xf32>
    %12 = arith.addf %9, %11 : vector<41x144xf32>
    %c0_9 = arith.constant 0 : index
    %c0_10 = arith.constant 0 : index
    %13 = vector.load %arg4[%c0_9, %c0_10] : memref<1x144xf32, #tpu.memory_space<vmem>>, vector<1x144xf32>
    %14 = vector.broadcast %13 : vector<1x144xf32> to vector<41x144xf32>
    %15 = arith.mulf %12, %14 : vector<41x144xf32>
    %c0_11 = arith.constant 0 : index
    %c0_12 = arith.constant 0 : index
    %16 = vector.load %arg5[%c0_11, %c0_12] : memref<1x144xf32, #tpu.memory_space<vmem>>, vector<1x144xf32>
    %17 = vector.broadcast %16 : vector<1x144xf32> to vector<41x144xf32>
    %18 = arith.addf %15, %17 : vector<41x144xf32>
    %cst_13 = arith.constant 0.000000e+00 : f32
    %19 = vector.broadcast %cst_13 : f32 to vector<41x144xf32>
    %20 = arith.cmpf ogt, %18, %19 : vector<41x144xf32>
    %cst_14 = arith.constant 0.000000e+00 : f32
    %21 = vector.broadcast %cst_14 : f32 to vector<41x144xf32>
    %22 = arith.minimumf %18, %21 : vector<41x144xf32>
    %23 = math.exp %22 : vector<41x144xf32>
    %cst_15 = arith.constant 1.000000e+00 : f32
    %24 = vector.broadcast %cst_15 : f32 to vector<41x144xf32>
    %25 = arith.subf %23, %24 : vector<41x144xf32>
    %cst_16 = arith.constant 1.67326319 : f32
    %26 = vector.broadcast %cst_16 : f32 to vector<41x144xf32>
    %27 = arith.mulf %26, %25 : vector<41x144xf32>
    %28 = arith.select %20, %18, %27 : vector<41x144xi1>, vector<41x144xf32>
    %cst_17 = arith.constant 1.05070102 : f32
    %29 = vector.broadcast %cst_17 : f32 to vector<41x144xf32>
    %30 = arith.mulf %29, %28 : vector<41x144xf32>
    %31 = vector.extract_strided_slice %30 {offsets = [0, 0], sizes = [40, 144], strides = [1, 1]} : vector<41x144xf32> to vector<40x144xf32>
    %32 = vector.extract_strided_slice %30 {offsets = [1, 0], sizes = [40, 144], strides = [1, 1]} : vector<41x144xf32> to vector<40x144xf32>
    %33 = vector.extract_strided_slice %2 {offsets = [0, 0], sizes = [40, 80], strides = [1, 1]} : vector<41x80xf32> to vector<40x80xf32>
    %c0_18 = arith.constant 0 : index
    %c0_19 = arith.constant 0 : index
    %c0_20 = arith.constant 0 : index
    %34 = vector.load %arg6[%c0_18, %c0_19, %c0_20] : memref<6x144x48xf32, #tpu.memory_space<vmem>>, vector<1x144x48xf32>
    %35 = vector.shape_cast %34 : vector<1x144x48xf32> to vector<144x48xf32>
    %cst_21 = arith.constant dense<0.000000e+00> : vector<40x48xf32>
    %36 = tpu.matmul %31, %35, %cst_21 {dimension_numbers = #tpu.dot_dimension_numbers<[1], [0], [0], [1], [0, 0, 1, 1], [], []>, precision = #tpu.contract_precision<fp32>} : vector<40x144xf32>, vector<144x48xf32>, vector<40x48xf32> -> vector<40x48xf32>
    %c3 = arith.constant 3 : index
    %c0_22 = arith.constant 0 : index
    %c0_23 = arith.constant 0 : index
    %37 = vector.load %arg6[%c3, %c0_22, %c0_23] : memref<6x144x48xf32, #tpu.memory_space<vmem>>, vector<1x144x48xf32>
    %38 = vector.shape_cast %37 : vector<1x144x48xf32> to vector<144x48xf32>
    %cst_24 = arith.constant dense<0.000000e+00> : vector<40x48xf32>
    %39 = tpu.matmul %32, %38, %cst_24 {dimension_numbers = #tpu.dot_dimension_numbers<[1], [0], [0], [1], [0, 0, 1, 1], [], []>, precision = #tpu.contract_precision<fp32>} : vector<40x144xf32>, vector<144x48xf32>, vector<40x48xf32> -> vector<40x48xf32>
    %40 = arith.addf %36, %39 : vector<40x48xf32>
    %c0_25 = arith.constant 0 : index
    %c0_26 = arith.constant 0 : index
    %c0_27 = arith.constant 0 : index
    %41 = vector.load %arg7[%c0_25, %c0_26, %c0_27] : memref<3x80x48xf32, #tpu.memory_space<vmem>>, vector<1x80x48xf32>
    %42 = vector.shape_cast %41 : vector<1x80x48xf32> to vector<80x48xf32>
    %cst_28 = arith.constant dense<0.000000e+00> : vector<40x48xf32>
    %43 = tpu.matmul %33, %42, %cst_28 {dimension_numbers = #tpu.dot_dimension_numbers<[1], [0], [0], [1], [0, 0, 1, 1], [], []>, precision = #tpu.contract_precision<fp32>} : vector<40x80xf32>, vector<80x48xf32>, vector<40x48xf32> -> vector<40x48xf32>
    %44 = arith.addf %40, %43 : vector<40x48xf32>
    %c1_29 = arith.constant 1 : index
    %c0_30 = arith.constant 0 : index
    %c0_31 = arith.constant 0 : index
    %45 = vector.load %arg6[%c1_29, %c0_30, %c0_31] : memref<6x144x48xf32, #tpu.memory_space<vmem>>, vector<1x144x48xf32>
    %46 = vector.shape_cast %45 : vector<1x144x48xf32> to vector<144x48xf32>
    %cst_32 = arith.constant dense<0.000000e+00> : vector<40x48xf32>
    %47 = tpu.matmul %31, %46, %cst_32 {dimension_numbers = #tpu.dot_dimension_numbers<[1], [0], [0], [1], [0, 0, 1, 1], [], []>, precision = #tpu.contract_precision<fp32>} : vector<40x144xf32>, vector<144x48xf32>, vector<40x48xf32> -> vector<40x48xf32>
    %c4 = arith.constant 4 : index
    %c0_33 = arith.constant 0 : index
    %c0_34 = arith.constant 0 : index
    %48 = vector.load %arg6[%c4, %c0_33, %c0_34] : memref<6x144x48xf32, #tpu.memory_space<vmem>>, vector<1x144x48xf32>
    %49 = vector.shape_cast %48 : vector<1x144x48xf32> to vector<144x48xf32>
    %cst_35 = arith.constant dense<0.000000e+00> : vector<40x48xf32>
    %50 = tpu.matmul %32, %49, %cst_35 {dimension_numbers = #tpu.dot_dimension_numbers<[1], [0], [0], [1], [0, 0, 1, 1], [], []>, precision = #tpu.contract_precision<fp32>} : vector<40x144xf32>, vector<144x48xf32>, vector<40x48xf32> -> vector<40x48xf32>
    %51 = arith.addf %47, %50 : vector<40x48xf32>
    %c1_36 = arith.constant 1 : index
    %c0_37 = arith.constant 0 : index
    %c0_38 = arith.constant 0 : index
    %52 = vector.load %arg7[%c1_36, %c0_37, %c0_38] : memref<3x80x48xf32, #tpu.memory_space<vmem>>, vector<1x80x48xf32>
    %53 = vector.shape_cast %52 : vector<1x80x48xf32> to vector<80x48xf32>
    %cst_39 = arith.constant dense<0.000000e+00> : vector<40x48xf32>
    %54 = tpu.matmul %33, %53, %cst_39 {dimension_numbers = #tpu.dot_dimension_numbers<[1], [0], [0], [1], [0, 0, 1, 1], [], []>, precision = #tpu.contract_precision<fp32>} : vector<40x80xf32>, vector<80x48xf32>, vector<40x48xf32> -> vector<40x48xf32>
    %55 = arith.addf %51, %54 : vector<40x48xf32>
    %56 = arith.maximumf %44, %55 : vector<40x48xf32>
    %c2 = arith.constant 2 : index
    %c0_40 = arith.constant 0 : index
    %c0_41 = arith.constant 0 : index
    %57 = vector.load %arg6[%c2, %c0_40, %c0_41] : memref<6x144x48xf32, #tpu.memory_space<vmem>>, vector<1x144x48xf32>
    %58 = vector.shape_cast %57 : vector<1x144x48xf32> to vector<144x48xf32>
    %cst_42 = arith.constant dense<0.000000e+00> : vector<40x48xf32>
    %59 = tpu.matmul %31, %58, %cst_42 {dimension_numbers = #tpu.dot_dimension_numbers<[1], [0], [0], [1], [0, 0, 1, 1], [], []>, precision = #tpu.contract_precision<fp32>} : vector<40x144xf32>, vector<144x48xf32>, vector<40x48xf32> -> vector<40x48xf32>
    %c5 = arith.constant 5 : index
    %c0_43 = arith.constant 0 : index
    %c0_44 = arith.constant 0 : index
    %60 = vector.load %arg6[%c5, %c0_43, %c0_44] : memref<6x144x48xf32, #tpu.memory_space<vmem>>, vector<1x144x48xf32>
    %61 = vector.shape_cast %60 : vector<1x144x48xf32> to vector<144x48xf32>
    %cst_45 = arith.constant dense<0.000000e+00> : vector<40x48xf32>
    %62 = tpu.matmul %32, %61, %cst_45 {dimension_numbers = #tpu.dot_dimension_numbers<[1], [0], [0], [1], [0, 0, 1, 1], [], []>, precision = #tpu.contract_precision<fp32>} : vector<40x144xf32>, vector<144x48xf32>, vector<40x48xf32> -> vector<40x48xf32>
    %63 = arith.addf %59, %62 : vector<40x48xf32>
    %c2_46 = arith.constant 2 : index
    %c0_47 = arith.constant 0 : index
    %c0_48 = arith.constant 0 : index
    %64 = vector.load %arg7[%c2_46, %c0_47, %c0_48] : memref<3x80x48xf32, #tpu.memory_space<vmem>>, vector<1x80x48xf32>
    %65 = vector.shape_cast %64 : vector<1x80x48xf32> to vector<80x48xf32>
    %cst_49 = arith.constant dense<0.000000e+00> : vector<40x48xf32>
    %66 = tpu.matmul %33, %65, %cst_49 {dimension_numbers = #tpu.dot_dimension_numbers<[1], [0], [0], [1], [0, 0, 1, 1], [], []>, precision = #tpu.contract_precision<fp32>} : vector<40x80xf32>, vector<80x48xf32>, vector<40x48xf32> -> vector<40x48xf32>
    %67 = arith.addf %63, %66 : vector<40x48xf32>
    %68 = arith.maximumf %56, %67 : vector<40x48xf32>
    %c0_50 = arith.constant 0 : index
    %c0_51 = arith.constant 0 : index
    %69 = vector.load %arg8[%c0_50, %c0_51] : memref<1x48xf32, #tpu.memory_space<vmem>>, vector<1x48xf32>
    %70 = vector.broadcast %69 : vector<1x48xf32> to vector<40x48xf32>
    %71 = arith.addf %68, %70 : vector<40x48xf32>
    %c0_52 = arith.constant 0 : index
    %c0_53 = arith.constant 0 : index
    %72 = vector.load %arg9[%c0_52, %c0_53] : memref<40x48xf32, #tpu.memory_space<vmem>>, vector<40x48xf32>
    tpu.vector_store %arg9[%c0_52, %c0_53], %71 {strides = array<i32>} : memref<40x48xf32, #tpu.memory_space<vmem>>, vector<40x48xf32>,
    return
  }
  func.func @transform_0(%arg0: i32) -> (i32, i32) {
    %c0_i32 = arith.constant 0 : i32
    %c0_i32_0 = arith.constant 0 : i32
    %c0_i32_1 = arith.constant 0 : i32
    return %c0_i32, %c0_i32_0 : i32, i32
  }
  func.func @transform_1(%arg0: i32) -> (i32, i32, i32) {
    %c0_i32 = arith.constant 0 : i32
    %c0_i32_0 = arith.constant 0 : i32
    %c0_i32_1 = arith.constant 0 : i32
    %c0_i32_2 = arith.constant 0 : i32
    return %c0_i32, %c0_i32_0, %c0_i32_1 : i32, i32, i32
  }
  func.func @transform_2(%arg0: i32) -> (i32, i32) {
    %c0_i32 = arith.constant 0 : i32
    %c0_i32_0 = arith.constant 0 : i32
    %c0_i32_1 = arith.constant 0 : i32
    return %c0_i32, %c0_i32_0 : i32, i32
  }
  func.func @transform_3(%arg0: i32) -> (i32, i32) {
    %c0_i32 = arith.constant 0 : i32
    %c0_i32_0 = arith.constant 0 : i32
    %c0_i32_1 = arith.constant 0 : i32
    return %c0_i32, %c0_i32_0 : i32, i32
  }
  func.func @transform_4(%arg0: i32) -> (i32, i32) {
    %c0_i32 = arith.constant 0 : i32
    %c0_i32_0 = arith.constant 0 : i32
    %c0_i32_1 = arith.constant 0 : i32
    return %c0_i32, %c0_i32_0 : i32, i32
  }
  func.func @transform_5(%arg0: i32) -> (i32, i32, i32) {
    %c0_i32 = arith.constant 0 : i32
    %c0_i32_0 = arith.constant 0 : i32
    %c0_i32_1 = arith.constant 0 : i32
    %c0_i32_2 = arith.constant 0 : i32
    return %c0_i32, %c0_i32_0, %c0_i32_1 : i32, i32, i32
  }
  func.func @transform_6(%arg0: i32) -> (i32, i32, i32) {
    %c0_i32 = arith.constant 0 : i32
    %c0_i32_0 = arith.constant 0 : i32
    %c0_i32_1 = arith.constant 0 : i32
    %c0_i32_2 = arith.constant 0 : i32
    return %c0_i32, %c0_i32_0, %c0_i32_1 : i32, i32, i32
  }
  func.func @transform_7(%arg0: i32) -> (i32, i32) {
    %c0_i32 = arith.constant 0 : i32
    %c0_i32_0 = arith.constant 0 : i32
    %c0_i32_1 = arith.constant 0 : i32
    return %c0_i32, %c0_i32_0 : i32, i32
  }
  func.func @transform_8(%arg0: i32) -> (i32, i32) {
    %c0_i32 = arith.constant 0 : i32
    %c0_i32_0 = arith.constant 0 : i32
    %c0_i32_1 = arith.constant 0 : i32
    return %c0_i32, %c0_i32_0 : i32, i32
  }
}

</mosaic_0001>

<llo_original>
// kernel: tpu_custom_call.1
$region0: #{tpu_custom_call.1}
  #allocation0 [shape = 'u32[]', space=smem, size = 0x4, offset = 0x4, fixed_abs, tag = 'smem constant byte address 0x4 - core index']
  #allocation1 [shape = 'u32[144,128]{1,0:T(1,128)}', space=vmem, size = 0x12000, scoped, tag = 'internal scratch']
  %s0 = inlined_call_operand.vmem [shape: f32[48,80], index: 0, kind: input, shape index: {}]
  %s1 = inlined_call_operand.vmem [shape: f32[2,80,144], index: 1, kind: input, shape index: {}]
  %s2 = inlined_call_operand.vmem [shape: f32[1,144], index: 2, kind: input, shape index: {}]
  %s3 = inlined_call_operand.vmem [shape: f32[1,144], index: 3, kind: input, shape index: {}]
  %s4 = inlined_call_operand.vmem [shape: f32[1,144], index: 4, kind: input, shape index: {}]
  %s5 = inlined_call_operand.vmem [shape: f32[6,144,48], index: 5, kind: input, shape index: {}]
  %s6 = inlined_call_operand.vmem [shape: f32[3,80,48], index: 6, kind: input, shape index: {}]
  %s7 = inlined_call_operand.vmem [shape: f32[1,48], index: 7, kind: input, shape index: {}]
  %s8 = inlined_call_operand.hbm [shape: f32[40,48], index: 8, kind: output, shape index: {}]
  %s9 = sld [smem:[#allocation0]]
  $region42: #{tpu_custom_call.1} parent=0
    _
  %s11 = ssub.s32 1, %s9
  %s12 = scalar_select 0, %s11, %s9
  $region1: #{tpu_custom_call.1} parent=0
    #allocation2 [shape = 'u8[20480]{0}', space=vmem, size = 0x5000, scoped, tag = 'output window, operand 0, single buffered']
    #allocation3 [shape = 's32[1]{0}', space=sflag, size = 0x4, scoped, tag = 'scoped memory for tpu_custom_call.1']
    %13 = vsyncpa [#allocation3], 0
    // Predicated region
    $region2: #{tpu_custom_call.1} parent=1 // pred_check
      _
    $region3: #{tpu_custom_call.1} parent=1 // pred_check_branch
      %15 = sbr.rel (0) target = $region5
    $region4: #{tpu_custom_call.1} parent=1 // pred_region
      _
    $region5: #{tpu_custom_call.1} parent=1 // pred_fallthru
      _
    // Predicated region
    $region6: #{tpu_custom_call.1} parent=1 // pred_check
      _
    $region7: #{tpu_custom_call.1} parent=1 // pred_check_branch
      %17 = sbr.rel (0) target = $region9
    $region8: #{tpu_custom_call.1} parent=1 // pred_region
      _
    $region9: #{tpu_custom_call.1} parent=1 // pred_fallthru
      _
    // Predicated region
    $region10: #{tpu_custom_call.1} parent=1 // pred_check
      _
    $region11: #{tpu_custom_call.1} parent=1 // pred_check_branch
      %19 = sbr.rel (0) target = $region13
    $region12: #{tpu_custom_call.1} parent=1 // pred_region
      _
    $region13: #{tpu_custom_call.1} parent=1 // pred_fallthru
      _
    // Predicated region
    $region14: #{tpu_custom_call.1} parent=1 // pred_check
      _
    $region15: #{tpu_custom_call.1} parent=1 // pred_check_branch
      %21 = sbr.rel (0) target = $region17
    $region16: #{tpu_custom_call.1} parent=1 // pred_region
      _
    $region17: #{tpu_custom_call.1} parent=1 // pred_fallthru
      _
    // Predicated region
    $region18: #{tpu_custom_call.1} parent=1 // pred_check
      _
    $region19: #{tpu_custom_call.1} parent=1 // pred_check_branch
      %23 = sbr.rel (0) target = $region21
    $region20: #{tpu_custom_call.1} parent=1 // pred_region
      _
    $region21: #{tpu_custom_call.1} parent=1 // pred_fallthru
      _
    // Predicated region
    $region22: #{tpu_custom_call.1} parent=1 // pred_check
      _
    $region23: #{tpu_custom_call.1} parent=1 // pred_check_branch
      %25 = sbr.rel (0) target = $region25
    $region24: #{tpu_custom_call.1} parent=1 // pred_region
      _
    $region25: #{tpu_custom_call.1} parent=1 // pred_fallthru
      _
    // Predicated region
    $region26: #{tpu_custom_call.1} parent=1 // pred_check
      _
    $region27: #{tpu_custom_call.1} parent=1 // pred_check_branch
      %27 = sbr.rel (0) target = $region29
    $region28: #{tpu_custom_call.1} parent=1 // pred_region
      _
    $region29: #{tpu_custom_call.1} parent=1 // pred_fallthru
      _
    // Predicated region
    $region30: #{tpu_custom_call.1} parent=1 // pred_check
      _
    $region31: #{tpu_custom_call.1} parent=1 // pred_check_branch
      %29 = sbr.rel (0) target = $region33
    $region32: #{tpu_custom_call.1} parent=1 // pred_region
      _
    $region33: #{tpu_custom_call.1} parent=1 // pred_fallthru
      _
    %v30 = vld [vmem:[%s0] sm:$0xff]
    %v31 = vld [vmem:[%s0 + $0x8] sm:$0xff]
    %v32 = vld [vmem:[%s0 + $0x10] sm:$0xff]
    %v33 = vld [vmem:[%s0 + $0x18] sm:$0xff]
    %v34 = vld [vmem:[%s0 + $0x20] sm:$0xff]
    %v35 = vld [vmem:[%s0 + $0x28] sm:$0xff]
    %v36 = vld [vmem:[%s1] sm:$0xff]
    %v37 = vld [vmem:[%s1 + $0x8] sm:$0xff]
    %v38 = vld [vmem:[%s1 + $0x10] sm:$0xff]
    %v39 = vld [vmem:[%s1 + $0x18] sm:$0xff]
    %v40 = vld [vmem:[%s1 + $0x20] sm:$0xff]
    %v41 = vld [vmem:[%s1 + $0x28] sm:$0xff]
    %v42 = vld [vmem:[%s1 + $0x30] sm:$0xff]
    %v43 = vld [vmem:[%s1 + $0x38] sm:$0xff]
    %v44 = vld [vmem:[%s1 + $0x40] sm:$0xff]
    %v45 = vld [vmem:[%s1 + $0x48] sm:$0xff]
    %v46 = vld [vmem:[%s1 + $0x50] sm:$0xff]
    %v47 = vld [vmem:[%s1 + $0x58] sm:$0xff]
    %v48 = vld [vmem:[%s1 + $0x60] sm:$0xff]
    %v49 = vld [vmem:[%s1 + $0x68] sm:$0xff]
    %v50 = vld [vmem:[%s1 + $0x70] sm:$0xff]
    %v51 = vld [vmem:[%s1 + $0x78] sm:$0xff]
    %v52 = vld [vmem:[%s1 + $0x80] sm:$0xff]
    %v53 = vld [vmem:[%s1 + $0x88] sm:$0xff]
    %v54 = vld [vmem:[%s1 + $0x90] sm:$0xff]
    %v55 = vld [vmem:[%s1 + $0x98] sm:$0xff]
    %s56 = scalar_lea.vmem %s1, 160
    %v57 = vld [vmem:[%s56] sm:$0xff]
    %v58 = vld [vmem:[%s56 + $0x8] sm:$0xff]
    %v59 = vld [vmem:[%s56 + $0x10] sm:$0xff]
    %v60 = vld [vmem:[%s56 + $0x18] sm:$0xff]
    %v61 = vld [vmem:[%s56 + $0x20] sm:$0xff]
    %v62 = vld [vmem:[%s56 + $0x28] sm:$0xff]
    %v63 = vld [vmem:[%s56 + $0x30] sm:$0xff]
    %v64 = vld [vmem:[%s56 + $0x38] sm:$0xff]
    %v65 = vld [vmem:[%s56 + $0x40] sm:$0xff]
    %v66 = vld [vmem:[%s56 + $0x48] sm:$0xff]
    %v67 = vld [vmem:[%s56 + $0x50] sm:$0xff]
    %v68 = vld [vmem:[%s56 + $0x58] sm:$0xff]
    %v69 = vld [vmem:[%s56 + $0x60] sm:$0xff]
    %v70 = vld [vmem:[%s56 + $0x68] sm:$0xff]
    %v71 = vld [vmem:[%s56 + $0x70] sm:$0xff]
    %v72 = vld [vmem:[%s56 + $0x78] sm:$0xff]
    %v73 = vld [vmem:[%s56 + $0x80] sm:$0xff]
    %v74 = vld [vmem:[%s56 + $0x88] sm:$0xff]
    %v75 = vld [vmem:[%s56 + $0x90] sm:$0xff]
    %v76 = vld [vmem:[%s56 + $0x98] sm:$0xff]
    %vm83 = vcmask 1046528
    %v84 = vrot.slane %v30, 1
    %v85 = vrot.slane %v31, 1
    %v86 = vsel %vm83, %v84, %v85
    %v87 = vrot.slane %v32, 1
    %v88 = vsel %vm83, %v85, %v87
    %v89 = vrot.slane %v33, 1
    %v90 = vsel %vm83, %v87, %v89
    %v91 = vrot.slane %v34, 1
    %v92 = vsel %vm83, %v89, %v91
    %v93 = vrot.slane %v35, 1
    %v94 = vsel %vm83, %v91, %v93
    %vm95 = vcmask 654336
    %v96 = vsel %vm95, %v86, 0
    %v98 = vsel %vm95, %v88, 0
    %v100 = vsel %vm95, %v90, 0
    %v102 = vsel %vm95, %v92, 0
    %v104 = vsel %vm95, %v94, 0
    %v106 = vsel %vm95, %v93, 0
    %v108 = vand.u32 %v58, 4294901760
    %109 = vmatprep.subr.mxu0 %v108
    %v110 = vand.u32 %v57, 4294901760
    %111 = vmatpush1.msra.mxu0 %v110
    %v112 = vand.u32 %v60, 4294901760
    %113 = vmatprep.subr.mxu0 %v112
    %v114 = vand.u32 %v59, 4294901760
    %115 = vmatpush1.msra.mxu0 %v114
    %v116 = vand.u32 %v62, 4294901760
    %117 = vmatprep.subr.mxu0 %v116
    %v118 = vand.u32 %v61, 4294901760
    %119 = vmatpush1.msra.mxu0 %v118
    %v120 = vand.u32 %v64, 4294901760
    %121 = vmatprep.subr.mxu0 %v120
    %v122 = vand.u32 %v63, 4294901760
    %123 = vmatpush1.msra.mxu0 %v122
    %v124 = vand.u32 %v66, 4294901760
    %125 = vmatprep.subr.mxu0 %v124
    %v126 = vand.u32 %v65, 4294901760
    %127 = vmatpush1.msra.mxu0 %v126
    %v128 = vand.u32 %v68, 4294901760
    %129 = vmatprep.subr.mxu0 %v128
    %v130 = vand.u32 %v67, 4294901760
    %131 = vmatpush1.msra.mxu0 %v130
    %v132 = vand.u32 %v70, 4294901760
    %133 = vmatprep.subr.mxu0 %v132
    %v134 = vand.u32 %v69, 4294901760
    %135 = vmatpush1.msra.mxu0 %v134
    %v136 = vand.u32 %v72, 4294901760
    %137 = vmatprep.subr.mxu0 %v136
    %v138 = vand.u32 %v71, 4294901760
    %139 = vmatpush1.msra.mxu0 %v138
    %v140 = vand.u32 %v74, 4294901760
    %141 = vmatprep.subr.mxu0 %v140
    %v142 = vand.u32 %v73, 4294901760
    %143 = vmatpush1.msra.mxu0 %v142
    %v144 = vand.u32 %v76, 4294901760
    %145 = vmatprep.subr.mxu0 %v144
    %v146 = vand.u32 %v75, 4294901760
    %147 = vmatpush1.msra.mxu0 %v146
    %148 = vmatprep.subr.mxu0 0.0
    %149 = vmatpush1.msra.mxu0 0.0
    %150 = vmatprep.subr.mxu0 0.0
    %151 = vmatpush1.msra.mxu0 0.0
    %152 = vmatprep.subr.mxu0 0.0
    %153 = vmatpush1.msra.mxu0 0.0
    %154 = vmatprep.subr.mxu0 0.0
    %155 = vmatpush1.msra.mxu0 0.0
    %156 = vmatprep.subr.mxu0 0.0
    %157 = vmatpush1.msra.mxu0 0.0
    %158 = vmatprep.subr.mxu0 0.0
    %159 = vmatpush1.msra.mxu0 0.0
    %160 = vmatprep.subr.mxu0 0.0
    %161 = vmatpush1.msra.mxu0 0.0
    %162 = vmatprep.subr.mxu0 0.0
    %163 = vmatpush1.msra.mxu0 0.0
    %164 = vmatprep.subr.mxu0 0.0
    %165 = vmatpush1.msra.mxu0 0.0
    %166 = vmatprep.subr.mxu0 0.0
    %167 = vmatpush1.msra.mxu0 0.0
    %168 = vmatprep.subr.mxu0 0.0
    %169 = vmatpush1.msra.mxu0 0.0
    %170 = vmatprep.subr.mxu0 0.0
    %171 = vmatpush1.msra.mxu0 0.0
    %172 = vmatprep.subr.mxu0 0.0
    %173 = vmatpush1.msra.mxu0 0.0
    %174 = vmatprep.subr.mxu0 0.0
    %175 = vmatpush1.msra.mxu0 0.0
    %176 = vmatprep.subr.mxu0 0.0
    %177 = vmatpush1.msra.mxu0 0.0
    %178 = vmatprep.subr.mxu0 0.0
    %179 = vmatpush1.msra.mxu0 0.0
    %180 = vmatprep.subr.mxu0 0.0
    %181 = vmatpush1.msra.mxu0 0.0
    %182 = vmatprep.subr.mxu0 0.0
    %183 = vmatpush1.msra.mxu0 0.0
    %184 = vmatprep.subr.mxu0 0.0
    %185 = vmatpush1.msra.mxu0 0.0
    %186 = vmatprep.subr.mxu0 0.0
    %187 = vmatpush1.msra.mxu0 0.0
    %188 = vmatprep.subr.mxu0 0.0
    %189 = vmatpush1.msra.mxu0 0.0
    %190 = vmatprep.subr.mxu0 0.0
    %191 = vmatpush1.msra.mxu0 0.0
    %192 = vmatprep.mubr.f32.mxu0 0.0
    %v193 = vand.u32 %v96, 4294901760
    %v194 = vsub.f32 %v96, %v193
    %v195 = vand.u32 %v194, 4294901760
    %v196 = vsub.f32 %v194, %v195
    %v197 = vand.u32 %v196, 4294901760
    %198 = vmatmul.mubr.f32.gmra.mrb[0].mxu0 %v197
    %v199 = vpop.f32.mrb[0].mxu0
    %v200 = vadd.f32 0.0, %v199
    %v201 = vpop.f32.mrb[0].mxu0
    %v202 = vadd.f32 0.0, %v201
    %203 = vmatprep.mubr.f32.mxu0 0.0
    %v204 = vand.u32 %v98, 4294901760
    %v205 = vsub.f32 %v98, %v204
    %v206 = vand.u32 %v205, 4294901760
    %v207 = vsub.f32 %v205, %v206
    %v208 = vand.u32 %v207, 4294901760
    %209 = vmatmul.mubr.f32.gmra.mrb[0].mxu0 %v208
    %v210 = vpop.f32.mrb[0].mxu0
    %v211 = vadd.f32 0.0, %v210
    %v212 = vpop.f32.mrb[0].mxu0
    %v213 = vadd.f32 0.0, %v212
    %214 = vmatprep.mubr.f32.mxu0 0.0
    %v215 = vand.u32 %v100, 4294901760
    %v216 = vsub.f32 %v100, %v215
    %v217 = vand.u32 %v216, 4294901760
    %v218 = vsub.f32 %v216, %v217
    %v219 = vand.u32 %v218, 4294901760
    %220 = vmatmul.mubr.f32.gmra.mrb[0].mxu0 %v219
    %v221 = vpop.f32.mrb[0].mxu0
    %v222 = vadd.f32 0.0, %v221
    %v223 = vpop.f32.mrb[0].mxu0
    %v224 = vadd.f32 0.0, %v223
    %225 = vmatprep.mubr.f32.mxu0 0.0
    %v226 = vand.u32 %v102, 4294901760
    %v227 = vsub.f32 %v102, %v226
    %v228 = vand.u32 %v227, 4294901760
    %v229 = vsub.f32 %v227, %v228
    %v230 = vand.u32 %v229, 4294901760
    %231 = vmatmul.mubr.f32.gmra.mrb[0].mxu0 %v230
    %v232 = vpop.f32.mrb[0].mxu0
    %v233 = vadd.f32 0.0, %v232
    %v234 = vpop.f32.mrb[0].mxu0
    %v235 = vadd.f32 0.0, %v234
    %236 = vmatprep.mubr.f32.mxu0 0.0
    %v237 = vand.u32 %v104, 4294901760
    %v238 = vsub.f32 %v104, %v237
    %v239 = vand.u32 %v238, 4294901760
    %v240 = vsub.f32 %v238, %v239
    %v241 = vand.u32 %v240, 4294901760
    %242 = vmatmul.mubr.f32.gmra.mrb[0].mxu0 %v241
    %v243 = vpop.f32.mrb[0].mxu0
    %v244 = vadd.f32 0.0, %v243
    %v245 = vpop.f32.mrb[0].mxu0
    %v246 = vadd.f32 0.0, %v245
    %247 = vmatprep.mubr.f32.mxu0 0.0
    %v248 = vand.u32 %v106, 4294901760
    %v249 = vsub.f32 %v106, %v248
    %v250 = vand.u32 %v249, 4294901760
    %v251 = vsub.f32 %v249, %v250
    %v252 = vand.u32 %v251, 4294901760
    %253 = vmatmul.mubr.f32.gmra.mrb[0].mxu0 %v252
    %v254 = vpop.f32.mrb[0].mxu0
    %v255 = vadd.f32 0.0, %v254
    %v256 = vpop.f32.mrb[0].mxu0
    %v257 = vadd.f32 0.0, %v256
    %258 = vdwg.mxu0
    %v259 = vand.u32 %v58, 4294901760
    %v260 = vsub.f32 %v58, %v259
    %v261 = vand.u32 %v260, 4294901760
    %v262 = vsub.f32 %v260, %v261
    %v263 = vand.u32 %v262, 4294901760
    %264 = vmatprep.subr.mxu0 %v263
    %v265 = vand.u32 %v57, 4294901760
    %v266 = vsub.f32 %v57, %v265
    %v267 = vand.u32 %v266, 4294901760
    %v268 = vsub.f32 %v266, %v267
    %v269 = vand.u32 %v268, 4294901760
    %270 = vmatpush1.msra.mxu0 %v269
    %v271 = vand.u32 %v60, 4294901760
    %v272 = vsub.f32 %v60, %v271
    %v273 = vand.u32 %v272, 4294901760
    %v274 = vsub.f32 %v272, %v273
    %v275 = vand.u32 %v274, 4294901760
    %276 = vmatprep.subr.mxu0 %v275
    %v277 = vand.u32 %v59, 4294901760
    %v278 = vsub.f32 %v59, %v277
    %v279 = vand.u32 %v278, 4294901760
    %v280 = vsub.f32 %v278, %v279
    %v281 = vand.u32 %v280, 4294901760
    %282 = vmatpush1.msra.mxu0 %v281
    %v283 = vand.u32 %v62, 4294901760
    %v284 = vsub.f32 %v62, %v283
    %v285 = vand.u32 %v284, 4294901760
    %v286 = vsub.f32 %v284, %v285
    %v287 = vand.u32 %v286, 4294901760
    %288 = vmatprep.subr.mxu0 %v287
    %v289 = vand.u32 %v61, 4294901760
    %v290 = vsub.f32 %v61, %v289
    %v291 = vand.u32 %v290, 4294901760
    %v292 = vsub.f32 %v290, %v291
    %v293 = vand.u32 %v292, 4294901760
    %294 = vmatpush1.msra.mxu0 %v293
    %v295 = vand.u32 %v64, 4294901760
    %v296 = vsub.f32 %v64, %v295
    %v297 = vand.u32 %v296, 4294901760
    %v298 = vsub.f32 %v296, %v297
    %v299 = vand.u32 %v298, 4294901760
    %300 = vmatprep.subr.mxu0 %v299
    %v301 = vand.u32 %v63, 4294901760
    %v302 = vsub.f32 %v63, %v301
    %v303 = vand.u32 %v302, 4294901760
    %v304 = vsub.f32 %v302, %v303
    %v305 = vand.u32 %v304, 4294901760
    %306 = vmatpush1.msra.mxu0 %v305
    %v307 = vand.u32 %v66, 4294901760
    %v308 = vsub.f32 %v66, %v307
    %v309 = vand.u32 %v308, 4294901760
    %v310 = vsub.f32 %v308, %v309
    %v311 = vand.u32 %v310, 4294901760
    %312 = vmatprep.subr.mxu0 %v311
    %v313 = vand.u32 %v65, 4294901760
    %v314 = vsub.f32 %v65, %v313
    %v315 = vand.u32 %v314, 4294901760
    %v316 = vsub.f32 %v314, %v315
    %v317 = vand.u32 %v316, 4294901760
    %318 = vmatpush1.msra.mxu0 %v317
    %v319 = vand.u32 %v68, 4294901760
    %v320 = vsub.f32 %v68, %v319
    %v321 = vand.u32 %v320, 4294901760
    %v322 = vsub.f32 %v320, %v321
    %v323 = vand.u32 %v322, 4294901760
    %324 = vmatprep.subr.mxu0 %v323
    %v325 = vand.u32 %v67, 4294901760
    %v326 = vsub.f32 %v67, %v325
    %v327 = vand.u32 %v326, 4294901760
    %v328 = vsub.f32 %v326, %v327
    %v329 = vand.u32 %v328, 4294901760
    %330 = vmatpush1.msra.mxu0 %v329
    %v331 = vand.u32 %v70, 4294901760
    %v332 = vsub.f32 %v70, %v331
    %v333 = vand.u32 %v332, 4294901760
    %v334 = vsub.f32 %v332, %v333
    %v335 = vand.u32 %v334, 4294901760
    %336 = vmatprep.subr.mxu0 %v335
    %v337 = vand.u32 %v69, 4294901760
    %v338 = vsub.f32 %v69, %v337
    %v339 = vand.u32 %v338, 4294901760
    %v340 = vsub.f32 %v338, %v339
    %v341 = vand.u32 %v340, 4294901760
    %342 = vmatpush1.msra.mxu0 %v341
    %v343 = vand.u32 %v72, 4294901760
    %v344 = vsub.f32 %v72, %v343
    %v345 = vand.u32 %v344, 4294901760
    %v346 = vsub.f32 %v344, %v345
    %v347 = vand.u32 %v346, 4294901760
    %348 = vmatprep.subr.mxu0 %v347
    %v349 = vand.u32 %v71, 4294901760
    %v350 = vsub.f32 %v71, %v349
    %v351 = vand.u32 %v350, 4294901760
    %v352 = vsub.f32 %v350, %v351
    %v353 = vand.u32 %v352, 4294901760
    %354 = vmatpush1.msra.mxu0 %v353
    %v355 = vand.u32 %v74, 4294901760
    %v356 = vsub.f32 %v74, %v355
    %v357 = vand.u32 %v356, 4294901760
    %v358 = vsub.f32 %v356, %v357
    %v359 = vand.u32 %v358, 4294901760
    %360 = vmatprep.subr.mxu0 %v359
    %v361 = vand.u32 %v73, 4294901760
    %v362 = vsub.f32 %v73, %v361
    %v363 = vand.u32 %v362, 4294901760
    %v364 = vsub.f32 %v362, %v363
    %v365 = vand.u32 %v364, 4294901760
    %366 = vmatpush1.msra.mxu0 %v365
    %v367 = vand.u32 %v76, 4294901760
    %v368 = vsub.f32 %v76, %v367
    %v369 = vand.u32 %v368, 4294901760
    %v370 = vsub.f32 %v368, %v369
    %v371 = vand.u32 %v370, 4294901760
    %372 = vmatprep.subr.mxu0 %v371
    %v373 = vand.u32 %v75, 4294901760
    %v374 = vsub.f32 %v75, %v373
    %v375 = vand.u32 %v374, 4294901760
    %v376 = vsub.f32 %v374, %v375
    %v377 = vand.u32 %v376, 4294901760
    %378 = vmatpush1.msra.mxu0 %v377
    %379 = vmatprep.subr.mxu0 0.0
    %380 = vmatpush1.msra.mxu0 0.0
    %381 = vmatprep.subr.mxu0 0.0
    %382 = vmatpush1.msra.mxu0 0.0
    %383 = vmatprep.subr.mxu0 0.0
    %384 = vmatpush1.msra.mxu0 0.0
    %385 = vmatprep.subr.mxu0 0.0
    %386 = vmatpush1.msra.mxu0 0.0
    %387 = vmatprep.subr.mxu0 0.0
    %388 = vmatpush1.msra.mxu0 0.0
    %389 = vmatprep.subr.mxu0 0.0
    %390 = vmatpush1.msra.mxu0 0.0
    %391 = vmatprep.subr.mxu0 0.0
    %392 = vmatpush1.msra.mxu0 0.0
    %393 = vmatprep.subr.mxu0 0.0
    %394 = vmatpush1.msra.mxu0 0.0
    %395 = vmatprep.subr.mxu0 0.0
    %396 = vmatpush1.msra.mxu0 0.0
    %397 = vmatprep.subr.mxu0 0.0
    %398 = vmatpush1.msra.mxu0 0.0
    %399 = vmatprep.subr.mxu0 0.0
    %400 = vmatpush1.msra.mxu0 0.0
    %401 = vmatprep.subr.mxu0 0.0
    %402 = vmatpush1.msra.mxu0 0.0
    %403 = vmatprep.subr.mxu0 0.0
    %404 = vmatpush1.msra.mxu0 0.0
    %405 = vmatprep.subr.mxu0 0.0
    %406 = vmatpush1.msra.mxu0 0.0
    %407 = vmatprep.subr.mxu0 0.0
    %408 = vmatpush1.msra.mxu0 0.0
    %409 = vmatprep.subr.mxu0 0.0
    %410 = vmatpush1.msra.mxu0 0.0
    %411 = vmatprep.subr.mxu0 0.0
    %412 = vmatpush1.msra.mxu0 0.0
    %413 = vmatprep.subr.mxu0 0.0
    %414 = vmatpush1.msra.mxu0 0.0
    %415 = vmatprep.subr.mxu0 0.0
    %416 = vmatpush1.msra.mxu0 0.0
    %417 = vmatprep.subr.mxu0 0.0
    %418 = vmatpush1.msra.mxu0 0.0
    %419 = vmatprep.subr.mxu0 0.0
    %420 = vmatpush1.msra.mxu0 0.0
    %421 = vmatprep.subr.mxu0 0.0
    %422 = vmatpush1.msra.mxu0 0.0
    %423 = vmatprep.mubr.f32.mxu0 0.0
    %v424 = vand.u32 %v96, 4294901760
    %425 = vmatmul.mubr.f32.gmra.mrb[0].mxu0 %v424
    %v426 = vpop.f32.mrb[0].mxu0
    %v427 = vadd.f32 %v200, %v426
    %v428 = vpop.f32.mrb[0].mxu0
    %v429 = vadd.f32 %v202, %v428
    %430 = vmatprep.mubr.f32.mxu0 0.0
    %v431 = vand.u32 %v98, 4294901760
    %432 = vmatmul.mubr.f32.gmra.mrb[0].mxu0 %v431
    %v433 = vpop.f32.mrb[0].mxu0
    %v434 = vadd.f32 %v211, %v433
    %v435 = vpop.f32.mrb[0].mxu0
    %v436 = vadd.f32 %v213, %v435
    %437 = vmatprep.mubr.f32.mxu0 0.0
    %v438 = vand.u32 %v100, 4294901760
    %439 = vmatmul.mubr.f32.gmra.mrb[0].mxu0 %v438
    %v440 = vpop.f32.mrb[0].mxu0
    %v441 = vadd.f32 %v222, %v440
    %v442 = vpop.f32.mrb[0].mxu0
    %v443 = vadd.f32 %v224, %v442
    %444 = vmatprep.mubr.f32.mxu0 0.0
    %v445 = vand.u32 %v102, 4294901760
    %446 = vmatmul.mubr.f32.gmra.mrb[0].mxu0 %v445
    %v447 = vpop.f32.mrb[0].mxu0
    %v448 = vadd.f32 %v233, %v447
    %v449 = vpop.f32.mrb[0].mxu0
    %v450 = vadd.f32 %v235, %v449
    %451 = vmatprep.mubr.f32.mxu0 0.0
    %v452 = vand.u32 %v104, 4294901760
    %453 = vmatmul.mubr.f32.gmra.mrb[0].mxu0 %v452
    %v454 = vpop.f32.mrb[0].mxu0
    %v455 = vadd.f32 %v244, %v454
    %v456 = vpop.f32.mrb[0].mxu0
    %v457 = vadd.f32 %v246, %v456
    %458 = vmatprep.mubr.f32.mxu0 0.0
    %v459 = vand.u32 %v106, 4294901760
    %460 = vmatmul.mubr.f32.gmra.mrb[0].mxu0 %v459
    %v461 = vpop.f32.mrb[0].mxu0
    %v462 = vadd.f32 %v255, %v461
    %v463 = vpop.f32.mrb[0].mxu0
    %v464 = vadd.f32 %v257, %v463
    %465 = vdwg.mxu0
    %v466 = vand.u32 %v58, 4294901760
    %v467 = vsub.f32 %v58, %v466
    %468 = vmatprep.subr.mxu0 %v467
    %v469 = vand.u32 %v57, 4294901760
    %v470 = vsub.f32 %v57, %v469
    %471 = vmatpush1.msra.mxu0 %v470
    %v472 = vand.u32 %v60, 4294901760
    %v473 = vsub.f32 %v60, %v472
    %474 = vmatprep.subr.mxu0 %v473
    %v475 = vand.u32 %v59, 4294901760
    %v476 = vsub.f32 %v59, %v475
    %477 = vmatpush1.msra.mxu0 %v476
    %v478 = vand.u32 %v62, 4294901760
    %v479 = vsub.f32 %v62, %v478
    %480 = vmatprep.subr.mxu0 %v479
    %v481 = vand.u32 %v61, 4294901760
    %v482 = vsub.f32 %v61, %v481
    %483 = vmatpush1.msra.mxu0 %v482
    %v484 = vand.u32 %v64, 4294901760
    %v485 = vsub.f32 %v64, %v484
    %486 = vmatprep.subr.mxu0 %v485
    %v487 = vand.u32 %v63, 4294901760
    %v488 = vsub.f32 %v63, %v487
    %489 = vmatpush1.msra.mxu0 %v488
    %v490 = vand.u32 %v66, 4294901760
    %v491 = vsub.f32 %v66, %v490
    %492 = vmatprep.subr.mxu0 %v491
    %v493 = vand.u32 %v65, 4294901760
    %v494 = vsub.f32 %v65, %v493
    %495 = vmatpush1.msra.mxu0 %v494
    %v496 = vand.u32 %v68, 4294901760
    %v497 = vsub.f32 %v68, %v496
    %498 = vmatprep.subr.mxu0 %v497
    %v499 = vand.u32 %v67, 4294901760
    %v500 = vsub.f32 %v67, %v499
    %501 = vmatpush1.msra.mxu0 %v500
    %v502 = vand.u32 %v70, 4294901760
    %v503 = vsub.f32 %v70, %v502
    %504 = vmatprep.subr.mxu0 %v503
    %v505 = vand.u32 %v69, 4294901760
    %v506 = vsub.f32 %v69, %v505
    %507 = vmatpush1.msra.mxu0 %v506
    %v508 = vand.u32 %v72, 4294901760
    %v509 = vsub.f32 %v72, %v508
    %510 = vmatprep.subr.mxu0 %v509
    %v511 = vand.u32 %v71, 4294901760
    %v512 = vsub.f32 %v71, %v511
    %513 = vmatpush1.msra.mxu0 %v512
    %v514 = vand.u32 %v74, 4294901760
    %v515 = vsub.f32 %v74, %v514
    %516 = vmatprep.subr.mxu0 %v515
    %v517 = vand.u32 %v73, 4294901760
    %v518 = vsub.f32 %v73, %v517
    %519 = vmatpush1.msra.mxu0 %v518
    %v520 = vand.u32 %v76, 4294901760
    %v521 = vsub.f32 %v76, %v520
    %522 = vmatprep.subr.mxu0 %v521
    %v523 = vand.u32 %v75, 4294901760
    %v524 = vsub.f32 %v75, %v523
    %525 = vmatpush1.msra.mxu0 %v524
    %526 = vmatprep.subr.mxu0 0.0
    %527 = vmatpush1.msra.mxu0 0.0
    %528 = vmatprep.subr.mxu0 0.0
    %529 = vmatpush1.msra.mxu0 0.0
    %530 = vmatprep.subr.mxu0 0.0
    %531 = vmatpush1.msra.mxu0 0.0
    %532 = vmatprep.subr.mxu0 0.0
    %533 = vmatpush1.msra.mxu0 0.0
    %534 = vmatprep.subr.mxu0 0.0
    %535 = vmatpush1.msra.mxu0 0.0
    %536 = vmatprep.subr.mxu0 0.0
    %537 = vmatpush1.msra.mxu0 0.0
    %538 = vmatprep.subr.mxu0 0.0
    %539 = vmatpush1.msra.mxu0 0.0
    %540 = vmatprep.subr.mxu0 0.0
    %541 = vmatpush1.msra.mxu0 0.0
    %542 = vmatprep.subr.mxu0 0.0
    %543 = vmatpush1.msra.mxu0 0.0
    %544 = vmatprep.subr.mxu0 0.0
    %545 = vmatpush1.msra.mxu0 0.0
    %546 = vmatprep.subr.mxu0 0.0
    %547 = vmatpush1.msra.mxu0 0.0
    %548 = vmatprep.subr.mxu0 0.0
    %549 = vmatpush1.msra.mxu0 0.0
    %550 = vmatprep.subr.mxu0 0.0
    %551 = vmatpush1.msra.mxu0 0.0
    %552 = vmatprep.subr.mxu0 0.0
    %553 = vmatpush1.msra.mxu0 0.0
    %554 = vmatprep.subr.mxu0 0.0
    %555 = vmatpush1.msra.mxu0 0.0
    %556 = vmatprep.subr.mxu0 0.0
    %557 = vmatpush1.msra.mxu0 0.0
    %558 = vmatprep.subr.mxu0 0.0
    %559 = vmatpush1.msra.mxu0 0.0
    %560 = vmatprep.subr.mxu0 0.0
    %561 = vmatpush1.msra.mxu0 0.0
    %562 = vmatprep.subr.mxu0 0.0
    %563 = vmatpush1.msra.mxu0 0.0
    %564 = vmatprep.subr.mxu0 0.0
    %565 = vmatpush1.msra.mxu0 0.0
    %566 = vmatprep.subr.mxu0 0.0
    %567 = vmatpush1.msra.mxu0 0.0
    %568 = vmatprep.subr.mxu0 0.0
    %569 = vmatpush1.msra.mxu0 0.0
    %570 = vmatprep.mubr.f32.mxu0 0.0
    %v571 = vand.u32 %v96, 4294901760
    %v572 = vsub.f32 %v96, %v571
    %573 = vmatmul.mubr.f32.gmra.mrb[0].mxu0 %v572
    %v574 = vpop.f32.mrb[0].mxu0
    %v575 = vadd.f32 %v427, %v574
    %v576 = vpop.f32.mrb[0].mxu0
    %v577 = vadd.f32 %v429, %v576
    %578 = vmatprep.mubr.f32.mxu0 0.0
    %v579 = vand.u32 %v98, 4294901760
    %v580 = vsub.f32 %v98, %v579
    %581 = vmatmul.mubr.f32.gmra.mrb[0].mxu0 %v580
    %v582 = vpop.f32.mrb[0].mxu0
    %v583 = vadd.f32 %v434, %v582
    %v584 = vpop.f32.mrb[0].mxu0
    %v585 = vadd.f32 %v436, %v584
    %586 = vmatprep.mubr.f32.mxu0 0.0
    %v587 = vand.u32 %v100, 4294901760
    %v588 = vsub.f32 %v100, %v587
    %589 = vmatmul.mubr.f32.gmra.mrb[0].mxu0 %v588
    %v590 = vpop.f32.mrb[0].mxu0
    %v591 = vadd.f32 %v441, %v590
    %v592 = vpop.f32.mrb[0].mxu0
    %v593 = vadd.f32 %v443, %v592
    %594 = vmatprep.mubr.f32.mxu0 0.0
    %v595 = vand.u32 %v102, 4294901760
    %v596 = vsub.f32 %v102, %v595
    %597 = vmatmul.mubr.f32.gmra.mrb[0].mxu0 %v596
    %v598 = vpop.f32.mrb[0].mxu0
    %v599 = vadd.f32 %v448, %v598
    %v600 = vpop.f32.mrb[0].mxu0
    %v601 = vadd.f32 %v450, %v600
    %602 = vmatprep.mubr.f32.mxu0 0.0
    %v603 = vand.u32 %v104, 4294901760
    %v604 = vsub.f32 %v104, %v603
    %605 = vmatmul.mubr.f32.gmra.mrb[0].mxu0 %v604
    %v606 = vpop.f32.mrb[0].mxu0
    %v607 = vadd.f32 %v455, %v606
    %v608 = vpop.f32.mrb[0].mxu0
    %v609 = vadd.f32 %v457, %v608
    %610 = vmatprep.mubr.f32.mxu0 0.0
    %v611 = vand.u32 %v106, 4294901760
    %v612 = vsub.f32 %v106, %v611
    %613 = vmatmul.mubr.f32.gmra.mrb[0].mxu0 %v612
    %v614 = vpop.f32.mrb[0].mxu0
    %v615 = vadd.f32 %v462, %v614
    %v616 = vpop.f32.mrb[0].mxu0
    %v617 = vadd.f32 %v464, %v616
    %618 = vdwg.mxu0
    %v619 = vand.u32 %v58, 4294901760
    %620 = vmatprep.subr.mxu0 %v619
    %v621 = vand.u32 %v57, 4294901760
    %622 = vmatpush1.msra.mxu0 %v621
    %v623 = vand.u32 %v60, 4294901760
    %624 = vmatprep.subr.mxu0 %v623
    %v625 = vand.u32 %v59, 4294901760
    %626 = vmatpush1.msra.mxu0 %v625
    %v627 = vand.u32 %v62, 4294901760
    %628 = vmatprep.subr.mxu0 %v627
    %v629 = vand.u32 %v61, 4294901760
    %630 = vmatpush1.msra.mxu0 %v629
    %v631 = vand.u32 %v64, 4294901760
    %632 = vmatprep.subr.mxu0 %v631
    %v633 = vand.u32 %v63, 4294901760
    %634 = vmatpush1.msra.mxu0 %v633
    %v635 = vand.u32 %v66, 4294901760
    %636 = vmatprep.subr.mxu0 %v635
    %v637 = vand.u32 %v65, 4294901760
    %638 = vmatpush1.msra.mxu0 %v637
    %v639 = vand.u32 %v68, 4294901760
    %640 = vmatprep.subr.mxu0 %v639
    %v641 = vand.u32 %v67, 4294901760
    %642 = vmatpush1.msra.mxu0 %v641
    %v643 = vand.u32 %v70, 4294901760
    %644 = vmatprep.subr.mxu0 %v643
    %v645 = vand.u32 %v69, 4294901760
    %646 = vmatpush1.msra.mxu0 %v645
    %v647 = vand.u32 %v72, 4294901760
    %648 = vmatprep.subr.mxu0 %v647
    %v649 = vand.u32 %v71, 4294901760
    %650 = vmatpush1.msra.mxu0 %v649
    %v651 = vand.u32 %v74, 4294901760
    %652 = vmatprep.subr.mxu0 %v651
    %v653 = vand.u32 %v73, 4294901760
    %654 = vmatpush1.msra.mxu0 %v653
    %v655 = vand.u32 %v76, 4294901760
    %656 = vmatprep.subr.mxu0 %v655
    %v657 = vand.u32 %v75, 4294901760
    %658 = vmatpush1.msra.mxu0 %v657
    %659 = vmatprep.subr.mxu0 0.0
    %660 = vmatpush1.msra.mxu0 0.0
    %661 = vmatprep.subr.mxu0 0.0
    %662 = vmatpush1.msra.mxu0 0.0
    %663 = vmatprep.subr.mxu0 0.0
    %664 = vmatpush1.msra.mxu0 0.0
    %665 = vmatprep.subr.mxu0 0.0
    %666 = vmatpush1.msra.mxu0 0.0
    %667 = vmatprep.subr.mxu0 0.0
    %668 = vmatpush1.msra.mxu0 0.0
    %669 = vmatprep.subr.mxu0 0.0
    %670 = vmatpush1.msra.mxu0 0.0
    %671 = vmatprep.subr.mxu0 0.0
    %672 = vmatpush1.msra.mxu0 0.0
    %673 = vmatprep.subr.mxu0 0.0
    %674 = vmatpush1.msra.mxu0 0.0
    %675 = vmatprep.subr.mxu0 0.0
    %676 = vmatpush1.msra.mxu0 0.0
    %677 = vmatprep.subr.mxu0 0.0
    %678 = vmatpush1.msra.mxu0 0.0
    %679 = vmatprep.subr.mxu0 0.0
    %680 = vmatpush1.msra.mxu0 0.0
    %681 = vmatprep.subr.mxu0 0.0
    %682 = vmatpush1.msra.mxu0 0.0
    %683 = vmatprep.subr.mxu0 0.0
    %684 = vmatpush1.msra.mxu0 0.0
    %685 = vmatprep.subr.mxu0 0.0
    %686 = vmatpush1.msra.mxu0 0.0
    %687 = vmatprep.subr.mxu0 0.0
    %688 = vmatpush1.msra.mxu0 0.0
    %689 = vmatprep.subr.mxu0 0.0
    %690 = vmatpush1.msra.mxu0 0.0
    %691 = vmatprep.subr.mxu0 0.0
    %692 = vmatpush1.msra.mxu0 0.0
    %693 = vmatprep.subr.mxu0 0.0
    %694 = vmatpush1.msra.mxu0 0.0
    %695 = vmatprep.subr.mxu0 0.0
    %696 = vmatpush1.msra.mxu0 0.0
    %697 = vmatprep.subr.mxu0 0.0
    %698 = vmatpush1.msra.mxu0 0.0
    %699 = vmatprep.subr.mxu0 0.0
    %700 = vmatpush1.msra.mxu0 0.0
    %701 = vmatprep.subr.mxu0 0.0
    %702 = vmatpush1.msra.mxu0 0.0
    %703 = vmatprep.mubr.f32.mxu0 0.0
    %v704 = vand.u32 %v96, 4294901760
    %v705 = vsub.f32 %v96, %v704
    %v706 = vand.u32 %v705, 4294901760
    %707 = vmatmul.mubr.f32.gmra.mrb[0].mxu0 %v706
    %v708 = vpop.f32.mrb[0].mxu0
    %v709 = vadd.f32 %v575, %v708
    %v710 = vpop.f32.mrb[0].mxu0
    %v711 = vadd.f32 %v577, %v710
    %712 = vmatprep.mubr.f32.mxu0 0.0
    %v713 = vand.u32 %v98, 4294901760
    %v714 = vsub.f32 %v98, %v713
    %v715 = vand.u32 %v714, 4294901760
    %716 = vmatmul.mubr.f32.gmra.mrb[0].mxu0 %v715
    %v717 = vpop.f32.mrb[0].mxu0
    %v718 = vadd.f32 %v583, %v717
    %v719 = vpop.f32.mrb[0].mxu0
    %v720 = vadd.f32 %v585, %v719
    %721 = vmatprep.mubr.f32.mxu0 0.0
    %v722 = vand.u32 %v100, 4294901760
    %v723 = vsub.f32 %v100, %v722
    %v724 = vand.u32 %v723, 4294901760
    %725 = vmatmul.mubr.f32.gmra.mrb[0].mxu0 %v724
    %v726 = vpop.f32.mrb[0].mxu0
    %v727 = vadd.f32 %v591, %v726
    %v728 = vpop.f32.mrb[0].mxu0
    %v729 = vadd.f32 %v593, %v728
    %730 = vmatprep.mubr.f32.mxu0 0.0
    %v731 = vand.u32 %v102, 4294901760
    %v732 = vsub.f32 %v102, %v731
    %v733 = vand.u32 %v732, 4294901760
    %734 = vmatmul.mubr.f32.gmra.mrb[0].mxu0 %v733
    %v735 = vpop.f32.mrb[0].mxu0
    %v736 = vadd.f32 %v599, %v735
    %v737 = vpop.f32.mrb[0].mxu0
    %v738 = vadd.f32 %v601, %v737
    %739 = vmatprep.mubr.f32.mxu0 0.0
    %v740 = vand.u32 %v104, 4294901760
    %v741 = vsub.f32 %v104, %v740
    %v742 = vand.u32 %v741, 4294901760
    %743 = vmatmul.mubr.f32.gmra.mrb[0].mxu0 %v742
    %v744 = vpop.f32.mrb[0].mxu0
    %v745 = vadd.f32 %v607, %v744
    %v746 = vpop.f32.mrb[0].mxu0
    %v747 = vadd.f32 %v609, %v746
    %748 = vmatprep.mubr.f32.mxu0 0.0
    %v749 = vand.u32 %v106, 4294901760
    %v750 = vsub.f32 %v106, %v749
    %v751 = vand.u32 %v750, 4294901760
    %752 = vmatmul.mubr.f32.gmra.mrb[0].mxu0 %v751
    %v753 = vpop.f32.mrb[0].mxu0
    %v754 = vadd.f32 %v615, %v753
    %v755 = vpop.f32.mrb[0].mxu0
    %v756 = vadd.f32 %v617, %v755
    %757 = vdwg.mxu0
    %v758 = vand.u32 %v58, 4294901760
    %v759 = vsub.f32 %v58, %v758
    %v760 = vand.u32 %v759, 4294901760
    %761 = vmatprep.subr.mxu0 %v760
    %v762 = vand.u32 %v57, 4294901760
    %v763 = vsub.f32 %v57, %v762
    %v764 = vand.u32 %v763, 4294901760
    %765 = vmatpush1.msra.mxu0 %v764
    %v766 = vand.u32 %v60, 4294901760
    %v767 = vsub.f32 %v60, %v766
    %v768 = vand.u32 %v767, 4294901760
    %769 = vmatprep.subr.mxu0 %v768
    %v770 = vand.u32 %v59, 4294901760
    %v771 = vsub.f32 %v59, %v770
    %v772 = vand.u32 %v771, 4294901760
    %773 = vmatpush1.msra.mxu0 %v772
    %v774 = vand.u32 %v62, 4294901760
    %v775 = vsub.f32 %v62, %v774
    %v776 = vand.u32 %v775, 4294901760
    %777 = vmatprep.subr.mxu0 %v776
    %v778 = vand.u32 %v61, 4294901760
    %v779 = vsub.f32 %v61, %v778
    %v780 = vand.u32 %v779, 4294901760
    %781 = vmatpush1.msra.mxu0 %v780
    %v782 = vand.u32 %v64, 4294901760
    %v783 = vsub.f32 %v64, %v782
    %v784 = vand.u32 %v783, 4294901760
    %785 = vmatprep.subr.mxu0 %v784
    %v786 = vand.u32 %v63, 4294901760
    %v787 = vsub.f32 %v63, %v786
    %v788 = vand.u32 %v787, 4294901760
    %789 = vmatpush1.msra.mxu0 %v788
    %v790 = vand.u32 %v66, 4294901760
    %v791 = vsub.f32 %v66, %v790
    %v792 = vand.u32 %v791, 4294901760
    %793 = vmatprep.subr.mxu0 %v792
    %v794 = vand.u32 %v65, 4294901760
    %v795 = vsub.f32 %v65, %v794
    %v796 = vand.u32 %v795, 4294901760
    %797 = vmatpush1.msra.mxu0 %v796
    %v798 = vand.u32 %v68, 4294901760
    %v799 = vsub.f32 %v68, %v798
    %v800 = vand.u32 %v799, 4294901760
    %801 = vmatprep.subr.mxu0 %v800
    %v802 = vand.u32 %v67, 4294901760
    %v803 = vsub.f32 %v67, %v802
    %v804 = vand.u32 %v803, 4294901760
    %805 = vmatpush1.msra.mxu0 %v804
    %v806 = vand.u32 %v70, 4294901760
    %v807 = vsub.f32 %v70, %v806
    %v808 = vand.u32 %v807, 4294901760
    %809 = vmatprep.subr.mxu0 %v808
    %v810 = vand.u32 %v69, 4294901760
    %v811 = vsub.f32 %v69, %v810
    %v812 = vand.u32 %v811, 4294901760
    %813 = vmatpush1.msra.mxu0 %v812
    %v814 = vand.u32 %v72, 4294901760
    %v815 = vsub.f32 %v72, %v814
    %v816 = vand.u32 %v815, 4294901760
    %817 = vmatprep.subr.mxu0 %v816
    %v818 = vand.u32 %v71, 4294901760
    %v819 = vsub.f32 %v71, %v818
    %v820 = vand.u32 %v819, 4294901760
    %821 = vmatpush1.msra.mxu0 %v820
    %v822 = vand.u32 %v74, 4294901760
    %v823 = vsub.f32 %v74, %v822
    %v824 = vand.u32 %v823, 4294901760
    %825 = vmatprep.subr.mxu0 %v824
    %v826 = vand.u32 %v73, 4294901760
    %v827 = vsub.f32 %v73, %v826
    %v828 = vand.u32 %v827, 4294901760
    %829 = vmatpush1.msra.mxu0 %v828
    %v830 = vand.u32 %v76, 4294901760
    %v831 = vsub.f32 %v76, %v830
    %v832 = vand.u32 %v831, 4294901760
    %833 = vmatprep.subr.mxu0 %v832
    %v834 = vand.u32 %v75, 4294901760
    %v835 = vsub.f32 %v75, %v834
    %v836 = vand.u32 %v835, 4294901760
    %837 = vmatpush1.msra.mxu0 %v836
    %838 = vmatprep.subr.mxu0 0.0
    %839 = vmatpush1.msra.mxu0 0.0
    %840 = vmatprep.subr.mxu0 0.0
    %841 = vmatpush1.msra.mxu0 0.0
    %842 = vmatprep.subr.mxu0 0.0
    %843 = vmatpush1.msra.mxu0 0.0
    %844 = vmatprep.subr.mxu0 0.0
    %845 = vmatpush1.msra.mxu0 0.0
    %846 = vmatprep.subr.mxu0 0.0
    %847 = vmatpush1.msra.mxu0 0.0
    %848 = vmatprep.subr.mxu0 0.0
    %849 = vmatpush1.msra.mxu0 0.0
    %850 = vmatprep.subr.mxu0 0.0
    %851 = vmatpush1.msra.mxu0 0.0
    %852 = vmatprep.subr.mxu0 0.0
    %853 = vmatpush1.msra.mxu0 0.0
    %854 = vmatprep.subr.mxu0 0.0
    %855 = vmatpush1.msra.mxu0 0.0
    %856 = vmatprep.subr.mxu0 0.0
    %857 = vmatpush1.msra.mxu0 0.0
    %858 = vmatprep.subr.mxu0 0.0
    %859 = vmatpush1.msra.mxu0 0.0
    %860 = vmatprep.subr.mxu0 0.0
    %861 = vmatpush1.msra.mxu0 0.0
    %862 = vmatprep.subr.mxu0 0.0
    %863 = vmatpush1.msra.mxu0 0.0
    %864 = vmatprep.subr.mxu0 0.0
    %865 = vmatpush1.msra.mxu0 0.0
    %866 = vmatprep.subr.mxu0 0.0
    %867 = vmatpush1.msra.mxu0 0.0
    %868 = vmatprep.subr.mxu0 0.0
    %869 = vmatpush1.msra.mxu0 0.0
    %870 = vmatprep.subr.mxu0 0.0
    %871 = vmatpush1.msra.mxu0 0.0
    %872 = vmatprep.subr.mxu0 0.0
    %873 = vmatpush1.msra.mxu0 0.0
    %874 = vmatprep.subr.mxu0 0.0
    %875 = vmatpush1.msra.mxu0 0.0
    %876 = vmatprep.subr.mxu0 0.0
    %877 = vmatpush1.msra.mxu0 0.0
    %878 = vmatprep.subr.mxu0 0.0
    %879 = vmatpush1.msra.mxu0 0.0
    %880 = vmatprep.subr.mxu0 0.0
    %881 = vmatpush1.msra.mxu0 0.0
    %882 = vmatprep.mubr.f32.mxu0 0.0
    %v883 = vand.u32 %v96, 4294901760
    %884 = vmatmul.mubr.f32.gmra.mrb[0].mxu0 %v883
    %v885 = vpop.f32.mrb[0].mxu0
    %v886 = vadd.f32 %v709, %v885
    %v887 = vpop.f32.mrb[0].mxu0
    %v888 = vadd.f32 %v711, %v887
    %889 = vmatprep.mubr.f32.mxu0 0.0
    %v890 = vand.u32 %v98, 4294901760
    %891 = vmatmul.mubr.f32.gmra.mrb[0].mxu0 %v890
    %v892 = vpop.f32.mrb[0].mxu0
    %v893 = vadd.f32 %v718, %v892
    %v894 = vpop.f32.mrb[0].mxu0
    %v895 = vadd.f32 %v720, %v894
    %896 = vmatprep.mubr.f32.mxu0 0.0
    %v897 = vand.u32 %v100, 4294901760
    %898 = vmatmul.mubr.f32.gmra.mrb[0].mxu0 %v897
    %v899 = vpop.f32.mrb[0].mxu0
    %v900 = vadd.f32 %v727, %v899
    %v901 = vpop.f32.mrb[0].mxu0
    %v902 = vadd.f32 %v729, %v901
    %903 = vmatprep.mubr.f32.mxu0 0.0
    %v904 = vand.u32 %v102, 4294901760
    %905 = vmatmul.mubr.f32.gmra.mrb[0].mxu0 %v904
    %v906 = vpop.f32.mrb[0].mxu0
    %v907 = vadd.f32 %v736, %v906
    %v908 = vpop.f32.mrb[0].mxu0
    %v909 = vadd.f32 %v738, %v908
    %910 = vmatprep.mubr.f32.mxu0 0.0
    %v911 = vand.u32 %v104, 4294901760
    %912 = vmatmul.mubr.f32.gmra.mrb[0].mxu0 %v911
    %v913 = vpop.f32.mrb[0].mxu0
    %v914 = vadd.f32 %v745, %v913
    %v915 = vpop.f32.mrb[0].mxu0
    %v916 = vadd.f32 %v747, %v915
    %917 = vmatprep.mubr.f32.mxu0 0.0
    %v918 = vand.u32 %v106, 4294901760
    %919 = vmatmul.mubr.f32.gmra.mrb[0].mxu0 %v918
    %v920 = vpop.f32.mrb[0].mxu0
    %v921 = vadd.f32 %v754, %v920
    %v922 = vpop.f32.mrb[0].mxu0
    %v923 = vadd.f32 %v756, %v922
    %924 = vdwg.mxu0
    %v925 = vand.u32 %v58, 4294901760
    %926 = vmatprep.subr.mxu0 %v925
    %v927 = vand.u32 %v57, 4294901760
    %928 = vmatpush1.msra.mxu0 %v927
    %v929 = vand.u32 %v60, 4294901760
    %930 = vmatprep.subr.mxu0 %v929
    %v931 = vand.u32 %v59, 4294901760
    %932 = vmatpush1.msra.mxu0 %v931
    %v933 = vand.u32 %v62, 4294901760
    %934 = vmatprep.subr.mxu0 %v933
    %v935 = vand.u32 %v61, 4294901760
    %936 = vmatpush1.msra.mxu0 %v935
    %v937 = vand.u32 %v64, 4294901760
    %938 = vmatprep.subr.mxu0 %v937
    %v939 = vand.u32 %v63, 4294901760
    %940 = vmatpush1.msra.mxu0 %v939
    %v941 = vand.u32 %v66, 4294901760
    %942 = vmatprep.subr.mxu0 %v941
    %v943 = vand.u32 %v65, 4294901760
    %944 = vmatpush1.msra.mxu0 %v943
    %v945 = vand.u32 %v68, 4294901760
    %946 = vmatprep.subr.mxu0 %v945
    %v947 = vand.u32 %v67, 4294901760
    %948 = vmatpush1.msra.mxu0 %v947
    %v949 = vand.u32 %v70, 4294901760
    %950 = vmatprep.subr.mxu0 %v949
    %v951 = vand.u32 %v69, 4294901760
    %952 = vmatpush1.msra.mxu0 %v951
    %v953 = vand.u32 %v72, 4294901760
    %954 = vmatprep.subr.mxu0 %v953
    %v955 = vand.u32 %v71, 4294901760
    %956 = vmatpush1.msra.mxu0 %v955
    %v957 = vand.u32 %v74, 4294901760
    %958 = vmatprep.subr.mxu0 %v957
    %v959 = vand.u32 %v73, 4294901760
    %960 = vmatpush1.msra.mxu0 %v959
    %v961 = vand.u32 %v76, 4294901760
    %962 = vmatprep.subr.mxu0 %v961
    %v963 = vand.u32 %v75, 4294901760
    %964 = vmatpush1.msra.mxu0 %v963
    %965 = vmatprep.subr.mxu0 0.0
    %966 = vmatpush1.msra.mxu0 0.0
    %967 = vmatprep.subr.mxu0 0.0
    %968 = vmatpush1.msra.mxu0 0.0
    %969 = vmatprep.subr.mxu0 0.0
    %970 = vmatpush1.msra.mxu0 0.0
    %971 = vmatprep.subr.mxu0 0.0
    %972 = vmatpush1.msra.mxu0 0.0
    %973 = vmatprep.subr.mxu0 0.0
    %974 = vmatpush1.msra.mxu0 0.0
    %975 = vmatprep.subr.mxu0 0.0
    %976 = vmatpush1.msra.mxu0 0.0
    %977 = vmatprep.subr.mxu0 0.0
    %978 = vmatpush1.msra.mxu0 0.0
    %979 = vmatprep.subr.mxu0 0.0
    %980 = vmatpush1.msra.mxu0 0.0
    %981 = vmatprep.subr.mxu0 0.0
    %982 = vmatpush1.msra.mxu0 0.0
    %983 = vmatprep.subr.mxu0 0.0
    %984 = vmatpush1.msra.mxu0 0.0
    %985 = vmatprep.subr.mxu0 0.0
    %986 = vmatpush1.msra.mxu0 0.0
    %987 = vmatprep.subr.mxu0 0.0
    %988 = vmatpush1.msra.mxu0 0.0
    %989 = vmatprep.subr.mxu0 0.0
    %990 = vmatpush1.msra.mxu0 0.0
    %991 = vmatprep.subr.mxu0 0.0
    %992 = vmatpush1.msra.mxu0 0.0
    %993 = vmatprep.subr.mxu0 0.0
    %994 = vmatpush1.msra.mxu0 0.0
    %995 = vmatprep.subr.mxu0 0.0
    %996 = vmatpush1.msra.mxu0 0.0
    %997 = vmatprep.subr.mxu0 0.0
    %998 = vmatpush1.msra.mxu0 0.0
    %999 = vmatprep.subr.mxu0 0.0
    %1000 = vmatpush1.msra.mxu0 0.0
    %1001 = vmatprep.subr.mxu0 0.0
    %1002 = vmatpush1.msra.mxu0 0.0
    %1003 = vmatprep.subr.mxu0 0.0
    %1004 = vmatpush1.msra.mxu0 0.0
    %1005 = vmatprep.subr.mxu0 0.0
    %1006 = vmatpush1.msra.mxu0 0.0
    %1007 = vmatprep.subr.mxu0 0.0
    %1008 = vmatpush1.msra.mxu0 0.0
    %1009 = vmatprep.mubr.f32.mxu0 0.0
    %v1010 = vand.u32 %v96, 4294901760
    %1011 = vmatmul.mubr.f32.gmra.mrb[0].mxu0 %v1010
    %v1012 = vpop.f32.mrb[0].mxu0
    %v1013 = vadd.f32 %v886, %v1012
    %v1014 = vpop.f32.mrb[0].mxu0
    %v1015 = vadd.f32 %v888, %v1014
    %1016 = vmatprep.mubr.f32.mxu0 0.0
    %v1017 = vand.u32 %v98, 4294901760
    %1018 = vmatmul.mubr.f32.gmra.mrb[0].mxu0 %v1017
    %v1019 = vpop.f32.mrb[0].mxu0
    %v1020 = vadd.f32 %v893, %v1019
    %v1021 = vpop.f32.mrb[0].mxu0
    %v1022 = vadd.f32 %v895, %v1021
    %1023 = vmatprep.mubr.f32.mxu0 0.0
    %v1024 = vand.u32 %v100, 4294901760
    %1025 = vmatmul.mubr.f32.gmra.mrb[0].mxu0 %v1024
    %v1026 = vpop.f32.mrb[0].mxu0
    %v1027 = vadd.f32 %v900, %v1026
    %v1028 = vpop.f32.mrb[0].mxu0
    %v1029 = vadd.f32 %v902, %v1028
    %1030 = vmatprep.mubr.f32.mxu0 0.0
    %v1031 = vand.u32 %v102, 4294901760
    %1032 = vmatmul.mubr.f32.gmra.mrb[0].mxu0 %v1031
    %v1033 = vpop.f32.mrb[0].mxu0
    %v1034 = vadd.f32 %v907, %v1033
    %v1035 = vpop.f32.mrb[0].mxu0
    %v1036 = vadd.f32 %v909, %v1035
    %1037 = vmatprep.mubr.f32.mxu0 0.0
    %v1038 = vand.u32 %v104, 4294901760
    %1039 = vmatmul.mubr.f32.gmra.mrb[0].mxu0 %v1038
    %v1040 = vpop.f32.mrb[0].mxu0
    %v1041 = vadd.f32 %v914, %v1040
    %v1042 = vpop.f32.mrb[0].mxu0
    %v1043 = vadd.f32 %v916, %v1042
    %1044 = vmatprep.mubr.f32.mxu0 0.0
    %v1045 = vand.u32 %v106, 4294901760
    %1046 = vmatmul.mubr.f32.gmra.mrb[0].mxu0 %v1045
    %v1047 = vpop.f32.mrb[0].mxu0
    %v1048 = vadd.f32 %v921, %v1047
    %v1049 = vpop.f32.mrb[0].mxu0
    %v1050 = vadd.f32 %v923, %v1049
    %1051 = vdwg.mxu0
    %v1052 = vsel %vm95, %v30, 0
    %v1054 = vsel %vm95, %v31, 0
    %v1056 = vsel %vm95, %v32, 0
    %v1058 = vsel %vm95, %v33, 0
    %v1060 = vsel %vm95, %v34, 0
    %v1062 = vsel %vm95, %v35, 0
    %v1064 = vand.u32 %v37, 4294901760
    %1065 = vmatprep.subr.mxu0 %v1064
    %v1066 = vand.u32 %v36, 4294901760
    %1067 = vmatpush1.msra.mxu0 %v1066
    %v1068 = vand.u32 %v39, 4294901760
    %1069 = vmatprep.subr.mxu0 %v1068
    %v1070 = vand.u32 %v38, 4294901760
    %1071 = vmatpush1.msra.mxu0 %v1070
    %v1072 = vand.u32 %v41, 4294901760
    %1073 = vmatprep.subr.mxu0 %v1072
    %v1074 = vand.u32 %v40, 4294901760
    %1075 = vmatpush1.msra.mxu0 %v1074
    %v1076 = vand.u32 %v43, 4294901760
    %1077 = vmatprep.subr.mxu0 %v1076
    %v1078 = vand.u32 %v42, 4294901760
    %1079 = vmatpush1.msra.mxu0 %v1078
    %v1080 = vand.u32 %v45, 4294901760
    %1081 = vmatprep.subr.mxu0 %v1080
    %v1082 = vand.u32 %v44, 4294901760
    %1083 = vmatpush1.msra.mxu0 %v1082
    %v1084 = vand.u32 %v47, 4294901760
    %1085 = vmatprep.subr.mxu0 %v1084
    %v1086 = vand.u32 %v46, 4294901760
    %1087 = vmatpush1.msra.mxu0 %v1086
    %v1088 = vand.u32 %v49, 4294901760
    %1089 = vmatprep.subr.mxu0 %v1088
    %v1090 = vand.u32 %v48, 4294901760
    %1091 = vmatpush1.msra.mxu0 %v1090
    %v1092 = vand.u32 %v51, 4294901760
    %1093 = vmatprep.subr.mxu0 %v1092
    %v1094 = vand.u32 %v50, 4294901760
    %1095 = vmatpush1.msra.mxu0 %v1094
    %v1096 = vand.u32 %v53, 4294901760
    %1097 = vmatprep.subr.mxu0 %v1096
    %v1098 = vand.u32 %v52, 4294901760
    %1099 = vmatpush1.msra.mxu0 %v1098
    %v1100 = vand.u32 %v55, 4294901760
    %1101 = vmatprep.subr.mxu0 %v1100
    %v1102 = vand.u32 %v54, 4294901760
    %1103 = vmatpush1.msra.mxu0 %v1102
    %1104 = vmatprep.subr.mxu0 0.0
    %1105 = vmatpush1.msra.mxu0 0.0
    %1106 = vmatprep.subr.mxu0 0.0
    %1107 = vmatpush1.msra.mxu0 0.0
    %1108 = vmatprep.subr.mxu0 0.0
    %1109 = vmatpush1.msra.mxu0 0.0
    %1110 = vmatprep.subr.mxu0 0.0
    %1111 = vmatpush1.msra.mxu0 0.0
    %1112 = vmatprep.subr.mxu0 0.0
    %1113 = vmatpush1.msra.mxu0 0.0
    %1114 = vmatprep.subr.mxu0 0.0
    %1115 = vmatpush1.msra.mxu0 0.0
    %1116 = vmatprep.subr.mxu0 0.0
    %1117 = vmatpush1.msra.mxu0 0.0
    %1118 = vmatprep.subr.mxu0 0.0
    %1119 = vmatpush1.msra.mxu0 0.0
    %1120 = vmatprep.subr.mxu0 0.0
    %1121 = vmatpush1.msra.mxu0 0.0
    %1122 = vmatprep.subr.mxu0 0.0
    %1123 = vmatpush1.msra.mxu0 0.0
    %1124 = vmatprep.subr.mxu0 0.0
    %1125 = vmatpush1.msra.mxu0 0.0
    %1126 = vmatprep.subr.mxu0 0.0
    %1127 = vmatpush1.msra.mxu0 0.0
    %1128 = vmatprep.subr.mxu0 0.0
    %1129 = vmatpush1.msra.mxu0 0.0
    %1130 = vmatprep.subr.mxu0 0.0
    %1131 = vmatpush1.msra.mxu0 0.0
    %1132 = vmatprep.subr.mxu0 0.0
    %1133 = vmatpush1.msra.mxu0 0.0
    %1134 = vmatprep.subr.mxu0 0.0
    %1135 = vmatpush1.msra.mxu0 0.0
    %1136 = vmatprep.subr.mxu0 0.0
    %1137 = vmatpush1.msra.mxu0 0.0
    %1138 = vmatprep.subr.mxu0 0.0
    %1139 = vmatpush1.msra.mxu0 0.0
    %1140 = vmatprep.subr.mxu0 0.0
    %1141 = vmatpush1.msra.mxu0 0.0
    %1142 = vmatprep.subr.mxu0 0.0
    %1143 = vmatpush1.msra.mxu0 0.0
    %1144 = vmatprep.subr.mxu0 0.0
    %1145 = vmatpush1.msra.mxu0 0.0
    %1146 = vmatprep.subr.mxu0 0.0
    %1147 = vmatpush1.msra.mxu0 0.0
    %1148 = vmatprep.mubr.f32.mxu0 0.0
    %v1149 = vand.u32 %v1052, 4294901760
    %v1150 = vsub.f32 %v1052, %v1149
    %v1151 = vand.u32 %v1150, 4294901760
    %v1152 = vsub.f32 %v1150, %v1151
    %v1153 = vand.u32 %v1152, 4294901760
    %1154 = vmatmul.mubr.f32.gmra.mrb[0].mxu0 %v1153
    %v1155 = vpop.f32.mrb[0].mxu0
    %v1156 = vadd.f32 %v1013, %v1155
    %v1157 = vpop.f32.mrb[0].mxu0
    %v1158 = vadd.f32 %v1015, %v1157
    %1159 = vmatprep.mubr.f32.mxu0 0.0
    %v1160 = vand.u32 %v1054, 4294901760
    %v1161 = vsub.f32 %v1054, %v1160
    %v1162 = vand.u32 %v1161, 4294901760
    %v1163 = vsub.f32 %v1161, %v1162
    %v1164 = vand.u32 %v1163, 4294901760
    %1165 = vmatmul.mubr.f32.gmra.mrb[0].mxu0 %v1164
    %v1166 = vpop.f32.mrb[0].mxu0
    %v1167 = vadd.f32 %v1020, %v1166
    %v1168 = vpop.f32.mrb[0].mxu0
    %v1169 = vadd.f32 %v1022, %v1168
    %1170 = vmatprep.mubr.f32.mxu0 0.0
    %v1171 = vand.u32 %v1056, 4294901760
    %v1172 = vsub.f32 %v1056, %v1171
    %v1173 = vand.u32 %v1172, 4294901760
    %v1174 = vsub.f32 %v1172, %v1173
    %v1175 = vand.u32 %v1174, 4294901760
    %1176 = vmatmul.mubr.f32.gmra.mrb[0].mxu0 %v1175
    %v1177 = vpop.f32.mrb[0].mxu0
    %v1178 = vadd.f32 %v1027, %v1177
    %v1179 = vpop.f32.mrb[0].mxu0
    %v1180 = vadd.f32 %v1029, %v1179
    %1181 = vmatprep.mubr.f32.mxu0 0.0
    %v1182 = vand.u32 %v1058, 4294901760
    %v1183 = vsub.f32 %v1058, %v1182
    %v1184 = vand.u32 %v1183, 4294901760
    %v1185 = vsub.f32 %v1183, %v1184
    %v1186 = vand.u32 %v1185, 4294901760
    %1187 = vmatmul.mubr.f32.gmra.mrb[0].mxu0 %v1186
    %v1188 = vpop.f32.mrb[0].mxu0
    %v1189 = vadd.f32 %v1034, %v1188
    %v1190 = vpop.f32.mrb[0].mxu0
    %v1191 = vadd.f32 %v1036, %v1190
    %1192 = vmatprep.mubr.f32.mxu0 0.0
    %v1193 = vand.u32 %v1060, 4294901760
    %v1194 = vsub.f32 %v1060, %v1193
    %v1195 = vand.u32 %v1194, 4294901760
    %v1196 = vsub.f32 %v1194, %v1195
    %v1197 = vand.u32 %v1196, 4294901760
    %1198 = vmatmul.mubr.f32.gmra.mrb[0].mxu0 %v1197
    %v1199 = vpop.f32.mrb[0].mxu0
    %v1200 = vadd.f32 %v1041, %v1199
    %v1201 = vpop.f32.mrb[0].mxu0
    %v1202 = vadd.f32 %v1043, %v1201
    %1203 = vmatprep.mubr.f32.mxu0 0.0
    %v1204 = vand.u32 %v1062, 4294901760
    %v1205 = vsub.f32 %v1062, %v1204
    %v1206 = vand.u32 %v1205, 4294901760
    %v1207 = vsub.f32 %v1205, %v1206
    %v1208 = vand.u32 %v1207, 4294901760
    %1209 = vmatmul.mubr.f32.gmra.mrb[0].mxu0 %v1208
    %v1210 = vpop.f32.mrb[0].mxu0
    %v1211 = vadd.f32 %v1048, %v1210
    %v1212 = vpop.f32.mrb[0].mxu0
    %v1213 = vadd.f32 %v1050, %v1212
    %1214 = vdwg.mxu0
    %v1215 = vand.u32 %v37, 4294901760
    %v1216 = vsub.f32 %v37, %v1215
    %v1217 = vand.u32 %v1216, 4294901760
    %v1218 = vsub.f32 %v1216, %v1217
    %v1219 = vand.u32 %v1218, 4294901760
    %1220 = vmatprep.subr.mxu0 %v1219
    %v1221 = vand.u32 %v36, 4294901760
    %v1222 = vsub.f32 %v36, %v1221
    %v1223 = vand.u32 %v1222, 4294901760
    %v1224 = vsub.f32 %v1222, %v1223
    %v1225 = vand.u32 %v1224, 4294901760
    %1226 = vmatpush1.msra.mxu0 %v1225
    %v1227 = vand.u32 %v39, 4294901760
    %v1228 = vsub.f32 %v39, %v1227
    %v1229 = vand.u32 %v1228, 4294901760
    %v1230 = vsub.f32 %v1228, %v1229
    %v1231 = vand.u32 %v1230, 4294901760
    %1232 = vmatprep.subr.mxu0 %v1231
    %v1233 = vand.u32 %v38, 4294901760
    %v1234 = vsub.f32 %v38, %v1233
    %v1235 = vand.u32 %v1234, 4294901760
    %v1236 = vsub.f32 %v1234, %v1235
    %v1237 = vand.u32 %v1236, 4294901760
    %1238 = vmatpush1.msra.mxu0 %v1237
    %v1239 = vand.u32 %v41, 4294901760
    %v1240 = vsub.f32 %v41, %v1239
    %v1241 = vand.u32 %v1240, 4294901760
    %v1242 = vsub.f32 %v1240, %v1241
    %v1243 = vand.u32 %v1242, 4294901760
    %1244 = vmatprep.subr.mxu0 %v1243
    %v1245 = vand.u32 %v40, 4294901760
    %v1246 = vsub.f32 %v40, %v1245
    %v1247 = vand.u32 %v1246, 4294901760
    %v1248 = vsub.f32 %v1246, %v1247
    %v1249 = vand.u32 %v1248, 4294901760
    %1250 = vmatpush1.msra.mxu0 %v1249
    %v1251 = vand.u32 %v43, 4294901760
    %v1252 = vsub.f32 %v43, %v1251
    %v1253 = vand.u32 %v1252, 4294901760
    %v1254 = vsub.f32 %v1252, %v1253
    %v1255 = vand.u32 %v1254, 4294901760
    %1256 = vmatprep.subr.mxu0 %v1255
    %v1257 = vand.u32 %v42, 4294901760
    %v1258 = vsub.f32 %v42, %v1257
    %v1259 = vand.u32 %v1258, 4294901760
    %v1260 = vsub.f32 %v1258, %v1259
    %v1261 = vand.u32 %v1260, 4294901760
    %1262 = vmatpush1.msra.mxu0 %v1261
    %v1263 = vand.u32 %v45, 4294901760
    %v1264 = vsub.f32 %v45, %v1263
    %v1265 = vand.u32 %v1264, 4294901760
    %v1266 = vsub.f32 %v1264, %v1265
    %v1267 = vand.u32 %v1266, 4294901760
    %1268 = vmatprep.subr.mxu0 %v1267
    %v1269 = vand.u32 %v44, 4294901760
    %v1270 = vsub.f32 %v44, %v1269
    %v1271 = vand.u32 %v1270, 4294901760
    %v1272 = vsub.f32 %v1270, %v1271
    %v1273 = vand.u32 %v1272, 4294901760
    %1274 = vmatpush1.msra.mxu0 %v1273
    %v1275 = vand.u32 %v47, 4294901760
    %v1276 = vsub.f32 %v47, %v1275
    %v1277 = vand.u32 %v1276, 4294901760
    %v1278 = vsub.f32 %v1276, %v1277
    %v1279 = vand.u32 %v1278, 4294901760
    %1280 = vmatprep.subr.mxu0 %v1279
    %v1281 = vand.u32 %v46, 4294901760
    %v1282 = vsub.f32 %v46, %v1281
    %v1283 = vand.u32 %v1282, 4294901760
    %v1284 = vsub.f32 %v1282, %v1283
    %v1285 = vand.u32 %v1284, 4294901760
    %1286 = vmatpush1.msra.mxu0 %v1285
    %v1287 = vand.u32 %v49, 4294901760
    %v1288 = vsub.f32 %v49, %v1287
    %v1289 = vand.u32 %v1288, 4294901760
    %v1290 = vsub.f32 %v1288, %v1289
    %v1291 = vand.u32 %v1290, 4294901760
    %1292 = vmatprep.subr.mxu0 %v1291
    %v1293 = vand.u32 %v48, 4294901760
    %v1294 = vsub.f32 %v48, %v1293
    %v1295 = vand.u32 %v1294, 4294901760
    %v1296 = vsub.f32 %v1294, %v1295
    %v1297 = vand.u32 %v1296, 4294901760
    %1298 = vmatpush1.msra.mxu0 %v1297
    %v1299 = vand.u32 %v51, 4294901760
    %v1300 = vsub.f32 %v51, %v1299
    %v1301 = vand.u32 %v1300, 4294901760
    %v1302 = vsub.f32 %v1300, %v1301
    %v1303 = vand.u32 %v1302, 4294901760
    %1304 = vmatprep.subr.mxu0 %v1303
    %v1305 = vand.u32 %v50, 4294901760
    %v1306 = vsub.f32 %v50, %v1305
    %v1307 = vand.u32 %v1306, 4294901760
    %v1308 = vsub.f32 %v1306, %v1307
    %v1309 = vand.u32 %v1308, 4294901760
    %1310 = vmatpush1.msra.mxu0 %v1309
    %v1311 = vand.u32 %v53, 4294901760
    %v1312 = vsub.f32 %v53, %v1311
    %v1313 = vand.u32 %v1312, 4294901760
    %v1314 = vsub.f32 %v1312, %v1313
    %v1315 = vand.u32 %v1314, 4294901760
    %1316 = vmatprep.subr.mxu0 %v1315
    %v1317 = vand.u32 %v52, 4294901760
    %v1318 = vsub.f32 %v52, %v1317
    %v1319 = vand.u32 %v1318, 4294901760
    %v1320 = vsub.f32 %v1318, %v1319
    %v1321 = vand.u32 %v1320, 4294901760
    %1322 = vmatpush1.msra.mxu0 %v1321
    %v1323 = vand.u32 %v55, 4294901760
    %v1324 = vsub.f32 %v55, %v1323
    %v1325 = vand.u32 %v1324, 4294901760
    %v1326 = vsub.f32 %v1324, %v1325
    %v1327 = vand.u32 %v1326, 4294901760
    %1328 = vmatprep.subr.mxu0 %v1327
    %v1329 = vand.u32 %v54, 4294901760
    %v1330 = vsub.f32 %v54, %v1329
    %v1331 = vand.u32 %v1330, 4294901760
    %v1332 = vsub.f32 %v1330, %v1331
    %v1333 = vand.u32 %v1332, 4294901760
    %1334 = vmatpush1.msra.mxu0 %v1333
    %1335 = vmatprep.subr.mxu0 0.0
    %1336 = vmatpush1.msra.mxu0 0.0
    %1337 = vmatprep.subr.mxu0 0.0
    %1338 = vmatpush1.msra.mxu0 0.0
    %1339 = vmatprep.subr.mxu0 0.0
    %1340 = vmatpush1.msra.mxu0 0.0
    %1341 = vmatprep.subr.mxu0 0.0
    %1342 = vmatpush1.msra.mxu0 0.0
    %1343 = vmatprep.subr.mxu0 0.0
    %1344 = vmatpush1.msra.mxu0 0.0
    %1345 = vmatprep.subr.mxu0 0.0
    %1346 = vmatpush1.msra.mxu0 0.0
    %1347 = vmatprep.subr.mxu0 0.0
    %1348 = vmatpush1.msra.mxu0 0.0
    %1349 = vmatprep.subr.mxu0 0.0
    %1350 = vmatpush1.msra.mxu0 0.0
    %1351 = vmatprep.subr.mxu0 0.0
    %1352 = vmatpush1.msra.mxu0 0.0
    %1353 = vmatprep.subr.mxu0 0.0
    %1354 = vmatpush1.msra.mxu0 0.0
    %1355 = vmatprep.subr.mxu0 0.0
    %1356 = vmatpush1.msra.mxu0 0.0
    %1357 = vmatprep.subr.mxu0 0.0
    %1358 = vmatpush1.msra.mxu0 0.0
    %1359 = vmatprep.subr.mxu0 0.0
    %1360 = vmatpush1.msra.mxu0 0.0
    %1361 = vmatprep.subr.mxu0 0.0
    %1362 = vmatpush1.msra.mxu0 0.0
    %1363 = vmatprep.subr.mxu0 0.0
    %1364 = vmatpush1.msra.mxu0 0.0
    %1365 = vmatprep.subr.mxu0 0.0
    %1366 = vmatpush1.msra.mxu0 0.0
    %1367 = vmatprep.subr.mxu0 0.0
    %1368 = vmatpush1.msra.mxu0 0.0
    %1369 = vmatprep.subr.mxu0 0.0
    %1370 = vmatpush1.msra.mxu0 0.0
    %1371 = vmatprep.subr.mxu0 0.0
    %1372 = vmatpush1.msra.mxu0 0.0
    %1373 = vmatprep.subr.mxu0 0.0
    %1374 = vmatpush1.msra.mxu0 0.0
    %1375 = vmatprep.subr.mxu0 0.0
    %1376 = vmatpush1.msra.mxu0 0.0
    %1377 = vmatprep.subr.mxu0 0.0
    %1378 = vmatpush1.msra.mxu0 0.0
    %1379 = vmatprep.mubr.f32.mxu0 0.0
    %v1380 = vand.u32 %v1052, 4294901760
    %1381 = vmatmul.mubr.f32.gmra.mrb[0].mxu0 %v1380
    %v1382 = vpop.f32.mrb[0].mxu0
    %v1383 = vadd.f32 %v1156, %v1382
    %v1384 = vpop.f32.mrb[0].mxu0
    %v1385 = vadd.f32 %v1158, %v1384
    %1386 = vmatprep.mubr.f32.mxu0 0.0
    %v1387 = vand.u32 %v1054, 4294901760
    %1388 = vmatmul.mubr.f32.gmra.mrb[0].mxu0 %v1387
    %v1389 = vpop.f32.mrb[0].mxu0
    %v1390 = vadd.f32 %v1167, %v1389
    %v1391 = vpop.f32.mrb[0].mxu0
    %v1392 = vadd.f32 %v1169, %v1391
    %1393 = vmatprep.mubr.f32.mxu0 0.0
    %v1394 = vand.u32 %v1056, 4294901760
    %1395 = vmatmul.mubr.f32.gmra.mrb[0].mxu0 %v1394
    %v1396 = vpop.f32.mrb[0].mxu0
    %v1397 = vadd.f32 %v1178, %v1396
    %v1398 = vpop.f32.mrb[0].mxu0
    %v1399 = vadd.f32 %v1180, %v1398
    %1400 = vmatprep.mubr.f32.mxu0 0.0
    %v1401 = vand.u32 %v1058, 4294901760
    %1402 = vmatmul.mubr.f32.gmra.mrb[0].mxu0 %v1401
    %v1403 = vpop.f32.mrb[0].mxu0
    %v1404 = vadd.f32 %v1189, %v1403
    %v1405 = vpop.f32.mrb[0].mxu0
    %v1406 = vadd.f32 %v1191, %v1405
    %1407 = vmatprep.mubr.f32.mxu0 0.0
    %v1408 = vand.u32 %v1060, 4294901760
    %1409 = vmatmul.mubr.f32.gmra.mrb[0].mxu0 %v1408
    %v1410 = vpop.f32.mrb[0].mxu0
    %v1411 = vadd.f32 %v1200, %v1410
    %v1412 = vpop.f32.mrb[0].mxu0
    %v1413 = vadd.f32 %v1202, %v1412
    %1414 = vmatprep.mubr.f32.mxu0 0.0
    %v1415 = vand.u32 %v1062, 4294901760
    %1416 = vmatmul.mubr.f32.gmra.mrb[0].mxu0 %v1415
    %v1417 = vpop.f32.mrb[0].mxu0
    %v1418 = vadd.f32 %v1211, %v1417
    %v1419 = vpop.f32.mrb[0].mxu0
    %v1420 = vadd.f32 %v1213, %v1419
    %1421 = vdwg.mxu0
    %v1422 = vand.u32 %v37, 4294901760
    %v1423 = vsub.f32 %v37, %v1422
    %1424 = vmatprep.subr.mxu0 %v1423
    %v1425 = vand.u32 %v36, 4294901760
    %v1426 = vsub.f32 %v36, %v1425
    %1427 = vmatpush1.msra.mxu0 %v1426
    %v1428 = vand.u32 %v39, 4294901760
    %v1429 = vsub.f32 %v39, %v1428
    %1430 = vmatprep.subr.mxu0 %v1429
    %v1431 = vand.u32 %v38, 4294901760
    %v1432 = vsub.f32 %v38, %v1431
    %1433 = vmatpush1.msra.mxu0 %v1432
    %v1434 = vand.u32 %v41, 4294901760
    %v1435 = vsub.f32 %v41, %v1434
    %1436 = vmatprep.subr.mxu0 %v1435
    %v1437 = vand.u32 %v40, 4294901760
    %v1438 = vsub.f32 %v40, %v1437
    %1439 = vmatpush1.msra.mxu0 %v1438
    %v1440 = vand.u32 %v43, 4294901760
    %v1441 = vsub.f32 %v43, %v1440
    %1442 = vmatprep.subr.mxu0 %v1441
    %v1443 = vand.u32 %v42, 4294901760
    %v1444 = vsub.f32 %v42, %v1443
    %1445 = vmatpush1.msra.mxu0 %v1444
    %v1446 = vand.u32 %v45, 4294901760
    %v1447 = vsub.f32 %v45, %v1446
    %1448 = vmatprep.subr.mxu0 %v1447
    %v1449 = vand.u32 %v44, 4294901760
    %v1450 = vsub.f32 %v44, %v1449
    %1451 = vmatpush1.msra.mxu0 %v1450
    %v1452 = vand.u32 %v47, 4294901760
    %v1453 = vsub.f32 %v47, %v1452
    %1454 = vmatprep.subr.mxu0 %v1453
    %v1455 = vand.u32 %v46, 4294901760
    %v1456 = vsub.f32 %v46, %v1455
    %1457 = vmatpush1.msra.mxu0 %v1456
    %v1458 = vand.u32 %v49, 4294901760
    %v1459 = vsub.f32 %v49, %v1458
    %1460 = vmatprep.subr.mxu0 %v1459
    %v1461 = vand.u32 %v48, 4294901760
    %v1462 = vsub.f32 %v48, %v1461
    %1463 = vmatpush1.msra.mxu0 %v1462
    %v1464 = vand.u32 %v51, 4294901760
    %v1465 = vsub.f32 %v51, %v1464
    %1466 = vmatprep.subr.mxu0 %v1465
    %v1467 = vand.u32 %v50, 4294901760
    %v1468 = vsub.f32 %v50, %v1467
    %1469 = vmatpush1.msra.mxu0 %v1468
    %v1470 = vand.u32 %v53, 4294901760
    %v1471 = vsub.f32 %v53, %v1470
    %1472 = vmatprep.subr.mxu0 %v1471
    %v1473 = vand.u32 %v52, 4294901760
    %v1474 = vsub.f32 %v52, %v1473
    %1475 = vmatpush1.msra.mxu0 %v1474
    %v1476 = vand.u32 %v55, 4294901760
    %v1477 = vsub.f32 %v55, %v1476
    %1478 = vmatprep.subr.mxu0 %v1477
    %v1479 = vand.u32 %v54, 4294901760
    %v1480 = vsub.f32 %v54, %v1479
    %1481 = vmatpush1.msra.mxu0 %v1480
    %1482 = vmatprep.subr.mxu0 0.0
    %1483 = vmatpush1.msra.mxu0 0.0
    %1484 = vmatprep.subr.mxu0 0.0
    %1485 = vmatpush1.msra.mxu0 0.0
    %1486 = vmatprep.subr.mxu0 0.0
    %1487 = vmatpush1.msra.mxu0 0.0
    %1488 = vmatprep.subr.mxu0 0.0
    %1489 = vmatpush1.msra.mxu0 0.0
    %1490 = vmatprep.subr.mxu0 0.0
    %1491 = vmatpush1.msra.mxu0 0.0
    %1492 = vmatprep.subr.mxu0 0.0
    %1493 = vmatpush1.msra.mxu0 0.0
    %1494 = vmatprep.subr.mxu0 0.0
    %1495 = vmatpush1.msra.mxu0 0.0
    %1496 = vmatprep.subr.mxu0 0.0
    %1497 = vmatpush1.msra.mxu0 0.0
    %1498 = vmatprep.subr.mxu0 0.0
    %1499 = vmatpush1.msra.mxu0 0.0
    %1500 = vmatprep.subr.mxu0 0.0
    %1501 = vmatpush1.msra.mxu0 0.0
    %1502 = vmatprep.subr.mxu0 0.0
    %1503 = vmatpush1.msra.mxu0 0.0
    %1504 = vmatprep.subr.mxu0 0.0
    %1505 = vmatpush1.msra.mxu0 0.0
    %1506 = vmatprep.subr.mxu0 0.0
    %1507 = vmatpush1.msra.mxu0 0.0
    %1508 = vmatprep.subr.mxu0 0.0
    %1509 = vmatpush1.msra.mxu0 0.0
    %1510 = vmatprep.subr.mxu0 0.0
    %1511 = vmatpush1.msra.mxu0 0.0
    %1512 = vmatprep.subr.mxu0 0.0
    %1513 = vmatpush1.msra.mxu0 0.0
    %1514 = vmatprep.subr.mxu0 0.0
    %1515 = vmatpush1.msra.mxu0 0.0
    %1516 = vmatprep.subr.mxu0 0.0
    %1517 = vmatpush1.msra.mxu0 0.0
    %1518 = vmatprep.subr.mxu0 0.0
    %1519 = vmatpush1.msra.mxu0 0.0
    %1520 = vmatprep.subr.mxu0 0.0
    %1521 = vmatpush1.msra.mxu0 0.0
    %1522 = vmatprep.subr.mxu0 0.0
    %1523 = vmatpush1.msra.mxu0 0.0
    %1524 = vmatprep.subr.mxu0 0.0
    %1525 = vmatpush1.msra.mxu0 0.0
    %1526 = vmatprep.mubr.f32.mxu0 0.0
    %v1527 = vand.u32 %v1052, 4294901760
    %v1528 = vsub.f32 %v1052, %v1527
    %1529 = vmatmul.mubr.f32.gmra.mrb[0].mxu0 %v1528
    %v1530 = vpop.f32.mrb[0].mxu0
    %v1531 = vadd.f32 %v1383, %v1530
    %v1532 = vpop.f32.mrb[0].mxu0
    %v1533 = vadd.f32 %v1385, %v1532
    %1534 = vmatprep.mubr.f32.mxu0 0.0
    %v1535 = vand.u32 %v1054, 4294901760
    %v1536 = vsub.f32 %v1054, %v1535
    %1537 = vmatmul.mubr.f32.gmra.mrb[0].mxu0 %v1536
    %v1538 = vpop.f32.mrb[0].mxu0
    %v1539 = vadd.f32 %v1390, %v1538
    %v1540 = vpop.f32.mrb[0].mxu0
    %v1541 = vadd.f32 %v1392, %v1540
    %1542 = vmatprep.mubr.f32.mxu0 0.0
    %v1543 = vand.u32 %v1056, 4294901760
    %v1544 = vsub.f32 %v1056, %v1543
    %1545 = vmatmul.mubr.f32.gmra.mrb[0].mxu0 %v1544
    %v1546 = vpop.f32.mrb[0].mxu0
    %v1547 = vadd.f32 %v1397, %v1546
    %v1548 = vpop.f32.mrb[0].mxu0
    %v1549 = vadd.f32 %v1399, %v1548
    %1550 = vmatprep.mubr.f32.mxu0 0.0
    %v1551 = vand.u32 %v1058, 4294901760
    %v1552 = vsub.f32 %v1058, %v1551
    %1553 = vmatmul.mubr.f32.gmra.mrb[0].mxu0 %v1552
    %v1554 = vpop.f32.mrb[0].mxu0
    %v1555 = vadd.f32 %v1404, %v1554
    %v1556 = vpop.f32.mrb[0].mxu0
    %v1557 = vadd.f32 %v1406, %v1556
    %1558 = vmatprep.mubr.f32.mxu0 0.0
    %v1559 = vand.u32 %v1060, 4294901760
    %v1560 = vsub.f32 %v1060, %v1559
    %1561 = vmatmul.mubr.f32.gmra.mrb[0].mxu0 %v1560
    %v1562 = vpop.f32.mrb[0].mxu0
    %v1563 = vadd.f32 %v1411, %v1562
    %v1564 = vpop.f32.mrb[0].mxu0
    %v1565 = vadd.f32 %v1413, %v1564
    %1566 = vmatprep.mubr.f32.mxu0 0.0
    %v1567 = vand.u32 %v1062, 4294901760
    %v1568 = vsub.f32 %v1062, %v1567
    %1569 = vmatmul.mubr.f32.gmra.mrb[0].mxu0 %v1568
    %v1570 = vpop.f32.mrb[0].mxu0
    %v1571 = vadd.f32 %v1418, %v1570
    %v1572 = vpop.f32.mrb[0].mxu0
    %v1573 = vadd.f32 %v1420, %v1572
    %1574 = vdwg.mxu0
    %v1575 = vand.u32 %v37, 4294901760
    %1576 = vmatprep.subr.mxu0 %v1575
    %v1577 = vand.u32 %v36, 4294901760
    %1578 = vmatpush1.msra.mxu0 %v1577
    %v1579 = vand.u32 %v39, 4294901760
    %1580 = vmatprep.subr.mxu0 %v1579
    %v1581 = vand.u32 %v38, 4294901760
    %1582 = vmatpush1.msra.mxu0 %v1581
    %v1583 = vand.u32 %v41, 4294901760
    %1584 = vmatprep.subr.mxu0 %v1583
    %v1585 = vand.u32 %v40, 4294901760
    %1586 = vmatpush1.msra.mxu0 %v1585
    %v1587 = vand.u32 %v43, 4294901760
    %1588 = vmatprep.subr.mxu0 %v1587
    %v1589 = vand.u32 %v42, 4294901760
    %1590 = vmatpush1.msra.mxu0 %v1589
    %v1591 = vand.u32 %v45, 4294901760
    %1592 = vmatprep.subr.mxu0 %v1591
    %v1593 = vand.u32 %v44, 4294901760
    %1594 = vmatpush1.msra.mxu0 %v1593
    %v1595 = vand.u32 %v47, 4294901760
    %1596 = vmatprep.subr.mxu0 %v1595
    %v1597 = vand.u32 %v46, 4294901760
    %1598 = vmatpush1.msra.mxu0 %v1597
    %v1599 = vand.u32 %v49, 4294901760
    %1600 = vmatprep.subr.mxu0 %v1599
    %v1601 = vand.u32 %v48, 4294901760
    %1602 = vmatpush1.msra.mxu0 %v1601
    %v1603 = vand.u32 %v51, 4294901760
    %1604 = vmatprep.subr.mxu0 %v1603
    %v1605 = vand.u32 %v50, 4294901760
    %1606 = vmatpush1.msra.mxu0 %v1605
    %v1607 = vand.u32 %v53, 4294901760
    %1608 = vmatprep.subr.mxu0 %v1607
    %v1609 = vand.u32 %v52, 4294901760
    %1610 = vmatpush1.msra.mxu0 %v1609
    %v1611 = vand.u32 %v55, 4294901760
    %1612 = vmatprep.subr.mxu0 %v1611
    %v1613 = vand.u32 %v54, 4294901760
    %1614 = vmatpush1.msra.mxu0 %v1613
    %1615 = vmatprep.subr.mxu0 0.0
    %1616 = vmatpush1.msra.mxu0 0.0
    %1617 = vmatprep.subr.mxu0 0.0
    %1618 = vmatpush1.msra.mxu0 0.0
    %1619 = vmatprep.subr.mxu0 0.0
    %1620 = vmatpush1.msra.mxu0 0.0
    %1621 = vmatprep.subr.mxu0 0.0
    %1622 = vmatpush1.msra.mxu0 0.0
    %1623 = vmatprep.subr.mxu0 0.0
    %1624 = vmatpush1.msra.mxu0 0.0
    %1625 = vmatprep.subr.mxu0 0.0
    %1626 = vmatpush1.msra.mxu0 0.0
    %1627 = vmatprep.subr.mxu0 0.0
    %1628 = vmatpush1.msra.mxu0 0.0
    %1629 = vmatprep.subr.mxu0 0.0
    %1630 = vmatpush1.msra.mxu0 0.0
    %1631 = vmatprep.subr.mxu0 0.0
    %1632 = vmatpush1.msra.mxu0 0.0
    %1633 = vmatprep.subr.mxu0 0.0
    %1634 = vmatpush1.msra.mxu0 0.0
    %1635 = vmatprep.subr.mxu0 0.0
    %1636 = vmatpush1.msra.mxu0 0.0
    %1637 = vmatprep.subr.mxu0 0.0
    %1638 = vmatpush1.msra.mxu0 0.0
    %1639 = vmatprep.subr.mxu0 0.0
    %1640 = vmatpush1.msra.mxu0 0.0
    %1641 = vmatprep.subr.mxu0 0.0
    %1642 = vmatpush1.msra.mxu0 0.0
    %1643 = vmatprep.subr.mxu0 0.0
    %1644 = vmatpush1.msra.mxu0 0.0
    %1645 = vmatprep.subr.mxu0 0.0
    %1646 = vmatpush1.msra.mxu0 0.0
    %1647 = vmatprep.subr.mxu0 0.0
    %1648 = vmatpush1.msra.mxu0 0.0
    %1649 = vmatprep.subr.mxu0 0.0
    %1650 = vmatpush1.msra.mxu0 0.0
    %1651 = vmatprep.subr.mxu0 0.0
    %1652 = vmatpush1.msra.mxu0 0.0
    %1653 = vmatprep.subr.mxu0 0.0
    %1654 = vmatpush1.msra.mxu0 0.0
    %1655 = vmatprep.subr.mxu0 0.0
    %1656 = vmatpush1.msra.mxu0 0.0
    %1657 = vmatprep.subr.mxu0 0.0
    %1658 = vmatpush1.msra.mxu0 0.0
    %1659 = vmatprep.mubr.f32.mxu0 0.0
    %v1660 = vand.u32 %v1052, 4294901760
    %v1661 = vsub.f32 %v1052, %v1660
    %v1662 = vand.u32 %v1661, 4294901760
    %1663 = vmatmul.mubr.f32.gmra.mrb[0].mxu0 %v1662
    %v1664 = vpop.f32.mrb[0].mxu0
    %v1665 = vadd.f32 %v1531, %v1664
    %v1666 = vpop.f32.mrb[0].mxu0
    %v1667 = vadd.f32 %v1533, %v1666
    %1668 = vmatprep.mubr.f32.mxu0 0.0
    %v1669 = vand.u32 %v1054, 4294901760
    %v1670 = vsub.f32 %v1054, %v1669
    %v1671 = vand.u32 %v1670, 4294901760
    %1672 = vmatmul.mubr.f32.gmra.mrb[0].mxu0 %v1671
    %v1673 = vpop.f32.mrb[0].mxu0
    %v1674 = vadd.f32 %v1539, %v1673
    %v1675 = vpop.f32.mrb[0].mxu0
    %v1676 = vadd.f32 %v1541, %v1675
    %1677 = vmatprep.mubr.f32.mxu0 0.0
    %v1678 = vand.u32 %v1056, 4294901760
    %v1679 = vsub.f32 %v1056, %v1678
    %v1680 = vand.u32 %v1679, 4294901760
    %1681 = vmatmul.mubr.f32.gmra.mrb[0].mxu0 %v1680
    %v1682 = vpop.f32.mrb[0].mxu0
    %v1683 = vadd.f32 %v1547, %v1682
    %v1684 = vpop.f32.mrb[0].mxu0
    %v1685 = vadd.f32 %v1549, %v1684
    %1686 = vmatprep.mubr.f32.mxu0 0.0
    %v1687 = vand.u32 %v1058, 4294901760
    %v1688 = vsub.f32 %v1058, %v1687
    %v1689 = vand.u32 %v1688, 4294901760
    %1690 = vmatmul.mubr.f32.gmra.mrb[0].mxu0 %v1689
    %v1691 = vpop.f32.mrb[0].mxu0
    %v1692 = vadd.f32 %v1555, %v1691
    %v1693 = vpop.f32.mrb[0].mxu0
    %v1694 = vadd.f32 %v1557, %v1693
    %1695 = vmatprep.mubr.f32.mxu0 0.0
    %v1696 = vand.u32 %v1060, 4294901760
    %v1697 = vsub.f32 %v1060, %v1696
    %v1698 = vand.u32 %v1697, 4294901760
    %1699 = vmatmul.mubr.f32.gmra.mrb[0].mxu0 %v1698
    %v1700 = vpop.f32.mrb[0].mxu0
    %v1701 = vadd.f32 %v1563, %v1700
    %v1702 = vpop.f32.mrb[0].mxu0
    %v1703 = vadd.f32 %v1565, %v1702
    %1704 = vmatprep.mubr.f32.mxu0 0.0
    %v1705 = vand.u32 %v1062, 4294901760
    %v1706 = vsub.f32 %v1062, %v1705
    %v1707 = vand.u32 %v1706, 4294901760
    %1708 = vmatmul.mubr.f32.gmra.mrb[0].mxu0 %v1707
    %v1709 = vpop.f32.mrb[0].mxu0
    %v1710 = vadd.f32 %v1571, %v1709
    %v1711 = vpop.f32.mrb[0].mxu0
    %v1712 = vadd.f32 %v1573, %v1711
    %1713 = vdwg.mxu0
    %v1714 = vand.u32 %v37, 4294901760
    %v1715 = vsub.f32 %v37, %v1714
    %v1716 = vand.u32 %v1715, 4294901760
    %1717 = vmatprep.subr.mxu0 %v1716
    %v1718 = vand.u32 %v36, 4294901760
    %v1719 = vsub.f32 %v36, %v1718
    %v1720 = vand.u32 %v1719, 4294901760
    %1721 = vmatpush1.msra.mxu0 %v1720
    %v1722 = vand.u32 %v39, 4294901760
    %v1723 = vsub.f32 %v39, %v1722
    %v1724 = vand.u32 %v1723, 4294901760
    %1725 = vmatprep.subr.mxu0 %v1724
    %v1726 = vand.u32 %v38, 4294901760
    %v1727 = vsub.f32 %v38, %v1726
    %v1728 = vand.u32 %v1727, 4294901760
    %1729 = vmatpush1.msra.mxu0 %v1728
    %v1730 = vand.u32 %v41, 4294901760
    %v1731 = vsub.f32 %v41, %v1730
    %v1732 = vand.u32 %v1731, 4294901760
    %1733 = vmatprep.subr.mxu0 %v1732
    %v1734 = vand.u32 %v40, 4294901760
    %v1735 = vsub.f32 %v40, %v1734
    %v1736 = vand.u32 %v1735, 4294901760
    %1737 = vmatpush1.msra.mxu0 %v1736
    %v1738 = vand.u32 %v43, 4294901760
    %v1739 = vsub.f32 %v43, %v1738
    %v1740 = vand.u32 %v1739, 4294901760
    %1741 = vmatprep.subr.mxu0 %v1740
    %v1742 = vand.u32 %v42, 4294901760
    %v1743 = vsub.f32 %v42, %v1742
    %v1744 = vand.u32 %v1743, 4294901760
    %1745 = vmatpush1.msra.mxu0 %v1744
    %v1746 = vand.u32 %v45, 4294901760
    %v1747 = vsub.f32 %v45, %v1746
    %v1748 = vand.u32 %v1747, 4294901760
    %1749 = vmatprep.subr.mxu0 %v1748
    %v1750 = vand.u32 %v44, 4294901760
    %v1751 = vsub.f32 %v44, %v1750
    %v1752 = vand.u32 %v1751, 4294901760
    %1753 = vmatpush1.msra.mxu0 %v1752
    %v1754 = vand.u32 %v47, 4294901760
    %v1755 = vsub.f32 %v47, %v1754
    %v1756 = vand.u32 %v1755, 4294901760
    %1757 = vmatprep.subr.mxu0 %v1756
    %v1758 = vand.u32 %v46, 4294901760
    %v1759 = vsub.f32 %v46, %v1758
    %v1760 = vand.u32 %v1759, 4294901760
    %1761 = vmatpush1.msra.mxu0 %v1760
    %v1762 = vand.u32 %v49, 4294901760
    %v1763 = vsub.f32 %v49, %v1762
    %v1764 = vand.u32 %v1763, 4294901760
    %1765 = vmatprep.subr.mxu0 %v1764
    %v1766 = vand.u32 %v48, 4294901760
    %v1767 = vsub.f32 %v48, %v1766
    %v1768 = vand.u32 %v1767, 4294901760
    %1769 = vmatpush1.msra.mxu0 %v1768
    %v1770 = vand.u32 %v51, 4294901760
    %v1771 = vsub.f32 %v51, %v1770
    %v1772 = vand.u32 %v1771, 4294901760
    %1773 = vmatprep.subr.mxu0 %v1772
    %v1774 = vand.u32 %v50, 4294901760
    %v1775 = vsub.f32 %v50, %v1774
    %v1776 = vand.u32 %v1775, 4294901760
    %1777 = vmatpush1.msra.mxu0 %v1776
    %v1778 = vand.u32 %v53, 4294901760
    %v1779 = vsub.f32 %v53, %v1778
    %v1780 = vand.u32 %v1779, 4294901760
    %1781 = vmatprep.subr.mxu0 %v1780
    %v1782 = vand.u32 %v52, 4294901760
    %v1783 = vsub.f32 %v52, %v1782
    %v1784 = vand.u32 %v1783, 4294901760
    %1785 = vmatpush1.msra.mxu0 %v1784
    %v1786 = vand.u32 %v55, 4294901760
    %v1787 = vsub.f32 %v55, %v1786
    %v1788 = vand.u32 %v1787, 4294901760
    %1789 = vmatprep.subr.mxu0 %v1788
    %v1790 = vand.u32 %v54, 4294901760
    %v1791 = vsub.f32 %v54, %v1790
    %v1792 = vand.u32 %v1791, 4294901760
    %1793 = vmatpush1.msra.mxu0 %v1792
    %1794 = vmatprep.subr.mxu0 0.0
    %1795 = vmatpush1.msra.mxu0 0.0
    %1796 = vmatprep.subr.mxu0 0.0
    %1797 = vmatpush1.msra.mxu0 0.0
    %1798 = vmatprep.subr.mxu0 0.0
    %1799 = vmatpush1.msra.mxu0 0.0
    %1800 = vmatprep.subr.mxu0 0.0
    %1801 = vmatpush1.msra.mxu0 0.0
    %1802 = vmatprep.subr.mxu0 0.0
    %1803 = vmatpush1.msra.mxu0 0.0
    %1804 = vmatprep.subr.mxu0 0.0
    %1805 = vmatpush1.msra.mxu0 0.0
    %1806 = vmatprep.subr.mxu0 0.0
    %1807 = vmatpush1.msra.mxu0 0.0
    %1808 = vmatprep.subr.mxu0 0.0
    %1809 = vmatpush1.msra.mxu0 0.0
    %1810 = vmatprep.subr.mxu0 0.0
    %1811 = vmatpush1.msra.mxu0 0.0
    %1812 = vmatprep.subr.mxu0 0.0
    %1813 = vmatpush1.msra.mxu0 0.0
    %1814 = vmatprep.subr.mxu0 0.0
    %1815 = vmatpush1.msra.mxu0 0.0
    %1816 = vmatprep.subr.mxu0 0.0
    %1817 = vmatpush1.msra.mxu0 0.0
    %1818 = vmatprep.subr.mxu0 0.0
    %1819 = vmatpush1.msra.mxu0 0.0
    %1820 = vmatprep.subr.mxu0 0.0
    %1821 = vmatpush1.msra.mxu0 0.0
    %1822 = vmatprep.subr.mxu0 0.0
    %1823 = vmatpush1.msra.mxu0 0.0
    %1824 = vmatprep.subr.mxu0 0.0
    %1825 = vmatpush1.msra.mxu0 0.0
    %1826 = vmatprep.subr.mxu0 0.0
    %1827 = vmatpush1.msra.mxu0 0.0
    %1828 = vmatprep.subr.mxu0 0.0
    %1829 = vmatpush1.msra.mxu0 0.0
    %1830 = vmatprep.subr.mxu0 0.0
    %1831 = vmatpush1.msra.mxu0 0.0
    %1832 = vmatprep.subr.mxu0 0.0
    %1833 = vmatpush1.msra.mxu0 0.0
    %1834 = vmatprep.subr.mxu0 0.0
    %1835 = vmatpush1.msra.mxu0 0.0
    %1836 = vmatprep.subr.mxu0 0.0
    %1837 = vmatpush1.msra.mxu0 0.0
    %1838 = vmatprep.mubr.f32.mxu0 0.0
    %v1839 = vand.u32 %v1052, 4294901760
    %1840 = vmatmul.mubr.f32.gmra.mrb[0].mxu0 %v1839
    %v1841 = vpop.f32.mrb[0].mxu0
    %v1842 = vadd.f32 %v1665, %v1841
    %v1843 = vpop.f32.mrb[0].mxu0
    %v1844 = vadd.f32 %v1667, %v1843
    %1845 = vmatprep.mubr.f32.mxu0 0.0
    %v1846 = vand.u32 %v1054, 4294901760
    %1847 = vmatmul.mubr.f32.gmra.mrb[0].mxu0 %v1846
    %v1848 = vpop.f32.mrb[0].mxu0
    %v1849 = vadd.f32 %v1674, %v1848
    %v1850 = vpop.f32.mrb[0].mxu0
    %v1851 = vadd.f32 %v1676, %v1850
    %1852 = vmatprep.mubr.f32.mxu0 0.0
    %v1853 = vand.u32 %v1056, 4294901760
    %1854 = vmatmul.mubr.f32.gmra.mrb[0].mxu0 %v1853
    %v1855 = vpop.f32.mrb[0].mxu0
    %v1856 = vadd.f32 %v1683, %v1855
    %v1857 = vpop.f32.mrb[0].mxu0
    %v1858 = vadd.f32 %v1685, %v1857
    %1859 = vmatprep.mubr.f32.mxu0 0.0
    %v1860 = vand.u32 %v1058, 4294901760
    %1861 = vmatmul.mubr.f32.gmra.mrb[0].mxu0 %v1860
    %v1862 = vpop.f32.mrb[0].mxu0
    %v1863 = vadd.f32 %v1692, %v1862
    %v1864 = vpop.f32.mrb[0].mxu0
    %v1865 = vadd.f32 %v1694, %v1864
    %1866 = vmatprep.mubr.f32.mxu0 0.0
    %v1867 = vand.u32 %v1060, 4294901760
    %1868 = vmatmul.mubr.f32.gmra.mrb[0].mxu0 %v1867
    %v1869 = vpop.f32.mrb[0].mxu0
    %v1870 = vadd.f32 %v1701, %v1869
    %v1871 = vpop.f32.mrb[0].mxu0
    %v1872 = vadd.f32 %v1703, %v1871
    %1873 = vmatprep.mubr.f32.mxu0 0.0
    %v1874 = vand.u32 %v1062, 4294901760
    %1875 = vmatmul.mubr.f32.gmra.mrb[0].mxu0 %v1874
    %v1876 = vpop.f32.mrb[0].mxu0
    %v1877 = vadd.f32 %v1710, %v1876
    %v1878 = vpop.f32.mrb[0].mxu0
    %v1879 = vadd.f32 %v1712, %v1878
    %1880 = vdwg.mxu0
    %v1881 = vand.u32 %v37, 4294901760
    %1882 = vmatprep.subr.mxu0 %v1881
    %v1883 = vand.u32 %v36, 4294901760
    %1884 = vmatpush1.msra.mxu0 %v1883
    %v1885 = vand.u32 %v39, 4294901760
    %1886 = vmatprep.subr.mxu0 %v1885
    %v1887 = vand.u32 %v38, 4294901760
    %1888 = vmatpush1.msra.mxu0 %v1887
    %v1889 = vand.u32 %v41, 4294901760
    %1890 = vmatprep.subr.mxu0 %v1889
    %v1891 = vand.u32 %v40, 4294901760
    %1892 = vmatpush1.msra.mxu0 %v1891
    %v1893 = vand.u32 %v43, 4294901760
    %1894 = vmatprep.subr.mxu0 %v1893
    %v1895 = vand.u32 %v42, 4294901760
    %1896 = vmatpush1.msra.mxu0 %v1895
    %v1897 = vand.u32 %v45, 4294901760
    %1898 = vmatprep.subr.mxu0 %v1897
    %v1899 = vand.u32 %v44, 4294901760
    %1900 = vmatpush1.msra.mxu0 %v1899
    %v1901 = vand.u32 %v47, 4294901760
    %1902 = vmatprep.subr.mxu0 %v1901
    %v1903 = vand.u32 %v46, 4294901760
    %1904 = vmatpush1.msra.mxu0 %v1903
    %v1905 = vand.u32 %v49, 4294901760
    %1906 = vmatprep.subr.mxu0 %v1905
    %v1907 = vand.u32 %v48, 4294901760
    %1908 = vmatpush1.msra.mxu0 %v1907
    %v1909 = vand.u32 %v51, 4294901760
    %1910 = vmatprep.subr.mxu0 %v1909
    %v1911 = vand.u32 %v50, 4294901760
    %1912 = vmatpush1.msra.mxu0 %v1911
    %v1913 = vand.u32 %v53, 4294901760
    %1914 = vmatprep.subr.mxu0 %v1913
    %v1915 = vand.u32 %v52, 4294901760
    %1916 = vmatpush1.msra.mxu0 %v1915
    %v1917 = vand.u32 %v55, 4294901760
    %1918 = vmatprep.subr.mxu0 %v1917
    %v1919 = vand.u32 %v54, 4294901760
    %1920 = vmatpush1.msra.mxu0 %v1919
    %1921 = vmatprep.subr.mxu0 0.0
    %1922 = vmatpush1.msra.mxu0 0.0
    %1923 = vmatprep.subr.mxu0 0.0
    %1924 = vmatpush1.msra.mxu0 0.0
    %1925 = vmatprep.subr.mxu0 0.0
    %1926 = vmatpush1.msra.mxu0 0.0
    %1927 = vmatprep.subr.mxu0 0.0
    %1928 = vmatpush1.msra.mxu0 0.0
    %1929 = vmatprep.subr.mxu0 0.0
    %1930 = vmatpush1.msra.mxu0 0.0
    %1931 = vmatprep.subr.mxu0 0.0
    %1932 = vmatpush1.msra.mxu0 0.0
    %1933 = vmatprep.subr.mxu0 0.0
    %1934 = vmatpush1.msra.mxu0 0.0
    %1935 = vmatprep.subr.mxu0 0.0
    %1936 = vmatpush1.msra.mxu0 0.0
    %1937 = vmatprep.subr.mxu0 0.0
    %1938 = vmatpush1.msra.mxu0 0.0
    %1939 = vmatprep.subr.mxu0 0.0
    %1940 = vmatpush1.msra.mxu0 0.0
    %1941 = vmatprep.subr.mxu0 0.0
    %1942 = vmatpush1.msra.mxu0 0.0
    %1943 = vmatprep.subr.mxu0 0.0
    %1944 = vmatpush1.msra.mxu0 0.0
    %1945 = vmatprep.subr.mxu0 0.0
    %1946 = vmatpush1.msra.mxu0 0.0
    %1947 = vmatprep.subr.mxu0 0.0
    %1948 = vmatpush1.msra.mxu0 0.0
    %1949 = vmatprep.subr.mxu0 0.0
    %1950 = vmatpush1.msra.mxu0 0.0
    %1951 = vmatprep.subr.mxu0 0.0
    %1952 = vmatpush1.msra.mxu0 0.0
    %1953 = vmatprep.subr.mxu0 0.0
    %1954 = vmatpush1.msra.mxu0 0.0
    %1955 = vmatprep.subr.mxu0 0.0
    %1956 = vmatpush1.msra.mxu0 0.0
    %1957 = vmatprep.subr.mxu0 0.0
    %1958 = vmatpush1.msra.mxu0 0.0
    %1959 = vmatprep.subr.mxu0 0.0
    %1960 = vmatpush1.msra.mxu0 0.0
    %1961 = vmatprep.subr.mxu0 0.0
    %1962 = vmatpush1.msra.mxu0 0.0
    %1963 = vmatprep.subr.mxu0 0.0
    %1964 = vmatpush1.msra.mxu0 0.0
    %1965 = vmatprep.mubr.f32.mxu0 0.0
    %v1966 = vand.u32 %v1052, 4294901760
    %1967 = vmatmul.mubr.f32.gmra.mrb[0].mxu0 %v1966
    %v1968 = vpop.f32.mrb[0].mxu0
    %v1969 = vadd.f32 %v1842, %v1968
    %v1970 = vpop.f32.mrb[0].mxu0
    %v1971 = vadd.f32 %v1844, %v1970
    %1972 = vmatprep.mubr.f32.mxu0 0.0
    %v1973 = vand.u32 %v1054, 4294901760
    %1974 = vmatmul.mubr.f32.gmra.mrb[0].mxu0 %v1973
    %v1975 = vpop.f32.mrb[0].mxu0
    %v1976 = vadd.f32 %v1849, %v1975
    %v1977 = vpop.f32.mrb[0].mxu0
    %v1978 = vadd.f32 %v1851, %v1977
    %1979 = vmatprep.mubr.f32.mxu0 0.0
    %v1980 = vand.u32 %v1056, 4294901760
    %1981 = vmatmul.mubr.f32.gmra.mrb[0].mxu0 %v1980
    %v1982 = vpop.f32.mrb[0].mxu0
    %v1983 = vadd.f32 %v1856, %v1982
    %v1984 = vpop.f32.mrb[0].mxu0
    %v1985 = vadd.f32 %v1858, %v1984
    %1986 = vmatprep.mubr.f32.mxu0 0.0
    %v1987 = vand.u32 %v1058, 4294901760
    %1988 = vmatmul.mubr.f32.gmra.mrb[0].mxu0 %v1987
    %v1989 = vpop.f32.mrb[0].mxu0
    %v1990 = vadd.f32 %v1863, %v1989
    %v1991 = vpop.f32.mrb[0].mxu0
    %v1992 = vadd.f32 %v1865, %v1991
    %1993 = vmatprep.mubr.f32.mxu0 0.0
    %v1994 = vand.u32 %v1060, 4294901760
    %1995 = vmatmul.mubr.f32.gmra.mrb[0].mxu0 %v1994
    %v1996 = vpop.f32.mrb[0].mxu0
    %v1997 = vadd.f32 %v1870, %v1996
    %v1998 = vpop.f32.mrb[0].mxu0
    %v1999 = vadd.f32 %v1872, %v1998
    %2000 = vmatprep.mubr.f32.mxu0 0.0
    %v2001 = vand.u32 %v1062, 4294901760
    %2002 = vmatmul.mubr.f32.gmra.mrb[0].mxu0 %v2001
    %v2003 = vpop.f32.mrb[0].mxu0
    %v2004 = vadd.f32 %v1877, %v2003
    %v2005 = vpop.f32.mrb[0].mxu0
    %v2006 = vadd.f32 %v1879, %v2005
    %2007 = vdwg.mxu0
    %v2008 = vld [vmem:[%s2] sm:$0x3]
    %v2010 = vlaneseq
    %v2011 = vshrl.u32 %v2010, 7
    %v2012 = vsub.s32 0, %v2011
    %v2013 = vrot.slane %v2008, %v2012
    %v2014 = vlaneseq
    %v2015 = vshrl.u32 %v2014, 7
    %v2016 = vsub.s32 1, %v2015
    %v2017 = vrot.slane %v2008, %v2016
    %v2020 = vadd.f32 %v1969, %v2013
    %v2021 = vadd.f32 %v1971, %v2017
    %v2022 = vadd.f32 %v1976, %v2013
    %v2023 = vadd.f32 %v1978, %v2017
    %v2024 = vadd.f32 %v1983, %v2013
    %v2025 = vadd.f32 %v1985, %v2017
    %v2026 = vadd.f32 %v1990, %v2013
    %v2027 = vadd.f32 %v1992, %v2017
    %v2028 = vadd.f32 %v1997, %v2013
    %v2029 = vadd.f32 %v1999, %v2017
    %v2030 = vadd.f32 %v2004, %v2013
    %v2031 = vadd.f32 %v2006, %v2017
    %v2032 = vld [vmem:[%s3] sm:$0x3]
    %v2034 = vlaneseq
    %v2035 = vshrl.u32 %v2034, 7
    %v2036 = vsub.s32 0, %v2035
    %v2037 = vrot.slane %v2032, %v2036
    %v2038 = vlaneseq
    %v2039 = vshrl.u32 %v2038, 7
    %v2040 = vsub.s32 1, %v2039
    %v2041 = vrot.slane %v2032, %v2040
    %v2044 = vmul.f32 %v2020, %v2037
    %v2045 = vmul.f32 %v2021, %v2041
    %v2046 = vmul.f32 %v2022, %v2037
    %v2047 = vmul.f32 %v2023, %v2041
    %v2048 = vmul.f32 %v2024, %v2037
    %v2049 = vmul.f32 %v2025, %v2041
    %v2050 = vmul.f32 %v2026, %v2037
    %v2051 = vmul.f32 %v2027, %v2041
    %v2052 = vmul.f32 %v2028, %v2037
    %v2053 = vmul.f32 %v2029, %v2041
    %v2054 = vmul.f32 %v2030, %v2037
    %v2055 = vmul.f32 %v2031, %v2041
    %v2056 = vld [vmem:[%s4] sm:$0x3]
    %v2058 = vlaneseq
    %v2059 = vshrl.u32 %v2058, 7
    %v2060 = vsub.s32 0, %v2059
    %v2061 = vrot.slane %v2056, %v2060
    %v2062 = vlaneseq
    %v2063 = vshrl.u32 %v2062, 7
    %v2064 = vsub.s32 1, %v2063
    %v2065 = vrot.slane %v2056, %v2064
    %v2068 = vadd.f32 %v2044, %v2061
    %v2069 = vadd.f32 %v2045, %v2065
    %v2070 = vadd.f32 %v2046, %v2061
    %v2071 = vadd.f32 %v2047, %v2065
    %v2072 = vadd.f32 %v2048, %v2061
    %v2073 = vadd.f32 %v2049, %v2065
    %v2074 = vadd.f32 %v2050, %v2061
    %v2075 = vadd.f32 %v2051, %v2065
    %v2076 = vadd.f32 %v2052, %v2061
    %v2077 = vadd.f32 %v2053, %v2065
    %v2078 = vadd.f32 %v2054, %v2061
    %v2079 = vadd.f32 %v2055, %v2065
    %vm2080 = vcmp.gt.f32.partialorder %v2068, 0.0
    %vm2081 = vcmp.gt.f32.partialorder %v2069, 0.0
    %vm2082 = vcmp.gt.f32.partialorder %v2070, 0.0
    %vm2083 = vcmp.gt.f32.partialorder %v2071, 0.0
    %vm2084 = vcmp.gt.f32.partialorder %v2072, 0.0
    %vm2085 = vcmp.gt.f32.partialorder %v2073, 0.0
    %vm2086 = vcmp.gt.f32.partialorder %v2074, 0.0
    %vm2087 = vcmp.gt.f32.partialorder %v2075, 0.0
    %vm2088 = vcmp.gt.f32.partialorder %v2076, 0.0
    %vm2089 = vcmp.gt.f32.partialorder %v2077, 0.0
    %vm2090 = vcmp.gt.f32.partialorder %v2078, 0.0
    %vm2091 = vcmp.gt.f32.partialorder %v2079, 0.0
    %v2092 = vmin.f32 %v2068, 0.0
    %v2093 = vmin.f32 %v2069, 0.0
    %v2094 = vmin.f32 %v2070, 0.0
    %v2095 = vmin.f32 %v2071, 0.0
    %v2096 = vmin.f32 %v2072, 0.0
    %v2097 = vmin.f32 %v2073, 0.0
    %v2098 = vmin.f32 %v2074, 0.0
    %v2099 = vmin.f32 %v2075, 0.0
    %v2100 = vmin.f32 %v2076, 0.0
    %v2101 = vmin.f32 %v2077, 0.0
    %v2102 = vmin.f32 %v2078, 0.0
    %v2103 = vmin.f32 %v2079, 0.0
    %v2104 = vmul.f32 %v2092, 1.442695
    %v2105 = vpow.pop %v2104
    %v2106 = vmul.f32 %v2093, 1.442695
    %v2107 = vpow.pop %v2106
    %v2108 = vmul.f32 %v2094, 1.442695
    %v2109 = vpow.pop %v2108
    %v2110 = vmul.f32 %v2095, 1.442695
    %v2111 = vpow.pop %v2110
    %v2112 = vmul.f32 %v2096, 1.442695
    %v2113 = vpow.pop %v2112
    %v2114 = vmul.f32 %v2097, 1.442695
    %v2115 = vpow.pop %v2114
    %v2116 = vmul.f32 %v2098, 1.442695
    %v2117 = vpow.pop %v2116
    %v2118 = vmul.f32 %v2099, 1.442695
    %v2119 = vpow.pop %v2118
    %v2120 = vmul.f32 %v2100, 1.442695
    %v2121 = vpow.pop %v2120
    %v2122 = vmul.f32 %v2101, 1.442695
    %v2123 = vpow.pop %v2122
    %v2124 = vmul.f32 %v2102, 1.442695
    %v2125 = vpow.pop %v2124
    %v2126 = vmul.f32 %v2103, 1.442695
    %v2127 = vpow.pop %v2126
    %v2128 = vsub.f32 %v2105, 1.0
    %v2129 = vsub.f32 %v2107, 1.0
    %v2130 = vsub.f32 %v2109, 1.0
    %v2131 = vsub.f32 %v2111, 1.0
    %v2132 = vsub.f32 %v2113, 1.0
    %v2133 = vsub.f32 %v2115, 1.0
    %v2134 = vsub.f32 %v2117, 1.0
    %v2135 = vsub.f32 %v2119, 1.0
    %v2136 = vsub.f32 %v2121, 1.0
    %v2137 = vsub.f32 %v2123, 1.0
    %v2138 = vsub.f32 %v2125, 1.0
    %v2139 = vsub.f32 %v2127, 1.0
    %v2140 = vmul.f32 %v2128, 1.6732632
    %v2141 = vmul.f32 %v2129, 1.6732632
    %v2142 = vmul.f32 %v2130, 1.6732632
    %v2143 = vmul.f32 %v2131, 1.6732632
    %v2144 = vmul.f32 %v2132, 1.6732632
    %v2145 = vmul.f32 %v2133, 1.6732632
    %v2146 = vmul.f32 %v2134, 1.6732632
    %v2147 = vmul.f32 %v2135, 1.6732632
    %v2148 = vmul.f32 %v2136, 1.6732632
    %v2149 = vmul.f32 %v2137, 1.6732632
    %v2150 = vmul.f32 %v2138, 1.6732632
    %v2151 = vmul.f32 %v2139, 1.6732632
    %v2152 = vsel %vm2080, %v2068, %v2140
    %v2153 = vsel %vm2081, %v2069, %v2141
    %v2154 = vsel %vm2082, %v2070, %v2142
    %v2155 = vsel %vm2083, %v2071, %v2143
    %v2156 = vsel %vm2084, %v2072, %v2144
    %v2157 = vsel %vm2085, %v2073, %v2145
    %v2158 = vsel %vm2086, %v2074, %v2146
    %v2159 = vsel %vm2087, %v2075, %v2147
    %v2160 = vsel %vm2088, %v2076, %v2148
    %v2161 = vsel %vm2089, %v2077, %v2149
    %v2162 = vsel %vm2090, %v2078, %v2150
    %v2163 = vsel %vm2091, %v2079, %v2151
    %v2164 = vmul.f32 %v2152, 1.050701
    %v2165 = vmul.f32 %v2153, 1.050701
    %v2166 = vmul.f32 %v2154, 1.050701
    %v2167 = vmul.f32 %v2155, 1.050701
    %v2168 = vmul.f32 %v2156, 1.050701
    %v2169 = vmul.f32 %v2157, 1.050701
    %v2170 = vmul.f32 %v2158, 1.050701
    %v2171 = vmul.f32 %v2159, 1.050701
    %v2172 = vmul.f32 %v2160, 1.050701
    %v2173 = vmul.f32 %v2161, 1.050701
    %v2174 = vmul.f32 %v2162, 1.050701
    %v2175 = vmul.f32 %v2163, 1.050701
    %v2176 = vld [vmem:[%s5] sm:$0xff]
    %v2177 = vld [vmem:[%s5 + $0x8] sm:$0xff]
    %v2178 = vld [vmem:[%s5 + $0x10] sm:$0xff]
    %v2179 = vld [vmem:[%s5 + $0x18] sm:$0xff]
    %v2180 = vld [vmem:[%s5 + $0x20] sm:$0xff]
    %v2181 = vld [vmem:[%s5 + $0x28] sm:$0xff]
    %v2182 = vld [vmem:[%s5 + $0x30] sm:$0xff]
    %v2183 = vld [vmem:[%s5 + $0x38] sm:$0xff]
    %v2184 = vld [vmem:[%s5 + $0x40] sm:$0xff]
    %v2185 = vld [vmem:[%s5 + $0x48] sm:$0xff]
    %v2186 = vld [vmem:[%s5 + $0x50] sm:$0xff]
    %v2187 = vld [vmem:[%s5 + $0x58] sm:$0xff]
    %v2188 = vld [vmem:[%s5 + $0x60] sm:$0xff]
    %v2189 = vld [vmem:[%s5 + $0x68] sm:$0xff]
    %v2190 = vld [vmem:[%s5 + $0x70] sm:$0xff]
    %v2191 = vld [vmem:[%s5 + $0x78] sm:$0xff]
    %v2192 = vld [vmem:[%s5 + $0x80] sm:$0xff]
    %v2193 = vld [vmem:[%s5 + $0x88] sm:$0xff]
    %s2194 = scalar_lea.vmem %s5, 432
    %v2195 = vld [vmem:[%s2194] sm:$0xff]
    %v2196 = vld [vmem:[%s2194 + $0x8] sm:$0xff]
    %v2197 = vld [vmem:[%s2194 + $0x10] sm:$0xff]
    %v2198 = vld [vmem:[%s2194 + $0x18] sm:$0xff]
    %v2199 = vld [vmem:[%s2194 + $0x20] sm:$0xff]
    %v2200 = vld [vmem:[%s2194 + $0x28] sm:$0xff]
    %v2201 = vld [vmem:[%s2194 + $0x30] sm:$0xff]
    %v2202 = vld [vmem:[%s2194 + $0x38] sm:$0xff]
    %v2203 = vld [vmem:[%s2194 + $0x40] sm:$0xff]
    %v2204 = vld [vmem:[%s2194 + $0x48] sm:$0xff]
    %v2205 = vld [vmem:[%s2194 + $0x50] sm:$0xff]
    %v2206 = vld [vmem:[%s2194 + $0x58] sm:$0xff]
    %v2207 = vld [vmem:[%s2194 + $0x60] sm:$0xff]
    %v2208 = vld [vmem:[%s2194 + $0x68] sm:$0xff]
    %v2209 = vld [vmem:[%s2194 + $0x70] sm:$0xff]
    %v2210 = vld [vmem:[%s2194 + $0x78] sm:$0xff]
    %v2211 = vld [vmem:[%s2194 + $0x80] sm:$0xff]
    %v2212 = vld [vmem:[%s2194 + $0x88] sm:$0xff]
    %v2225 = vrot.slane %v2164, 1
    %v2226 = vrot.slane %v2166, 1
    %v2227 = vsel %vm83, %v2225, %v2226
    %v2228 = vrot.slane %v2165, 1
    %v2229 = vrot.slane %v2167, 1
    %v2230 = vsel %vm83, %v2228, %v2229
    %v2231 = vrot.slane %v2168, 1
    %v2232 = vsel %vm83, %v2226, %v2231
    %v2233 = vrot.slane %v2169, 1
    %v2234 = vsel %vm83, %v2229, %v2233
    %v2235 = vrot.slane %v2170, 1
    %v2236 = vsel %vm83, %v2231, %v2235
    %v2237 = vrot.slane %v2171, 1
    %v2238 = vsel %vm83, %v2233, %v2237
    %v2239 = vrot.slane %v2172, 1
    %v2240 = vsel %vm83, %v2235, %v2239
    %v2241 = vrot.slane %v2173, 1
    %v2242 = vsel %vm83, %v2237, %v2241
    %v2243 = vrot.slane %v2174, 1
    %v2244 = vsel %vm83, %v2239, %v2243
    %v2245 = vrot.slane %v2175, 1
    %v2246 = vsel %vm83, %v2241, %v2245
    %vm2252 = vcmask 130048
    %v2253 = vsel %vm2252, %v2230, 0
    %v2255 = vsel %vm2252, %v2234, 0
    %v2257 = vsel %vm2252, %v2238, 0
    %v2259 = vsel %vm2252, %v2242, 0
    %v2261 = vsel %vm2252, %v2246, 0
    %2263 = vmatprep.subr.mxu0 0.0
    %v2264 = vand.u32 %v2195, 4294901760
    %2265 = vmatpush1.msra.mxu0 %v2264
    %2266 = vmatprep.subr.mxu0 0.0
    %v2267 = vand.u32 %v2196, 4294901760
    %2268 = vmatpush1.msra.mxu0 %v2267
    %2269 = vmatprep.subr.mxu0 0.0
    %v2270 = vand.u32 %v2197, 4294901760
    %2271 = vmatpush1.msra.mxu0 %v2270
    %2272 = vmatprep.subr.mxu0 0.0
    %v2273 = vand.u32 %v2198, 4294901760
    %2274 = vmatpush1.msra.mxu0 %v2273
    %2275 = vmatprep.subr.mxu0 0.0
    %v2276 = vand.u32 %v2199, 4294901760
    %2277 = vmatpush1.msra.mxu0 %v2276
    %2278 = vmatprep.subr.mxu0 0.0
    %v2279 = vand.u32 %v2200, 4294901760
    %2280 = vmatpush1.msra.mxu0 %v2279
    %2281 = vmatprep.subr.mxu0 0.0
    %v2282 = vand.u32 %v2201, 4294901760
    %2283 = vmatpush1.msra.mxu0 %v2282
    %2284 = vmatprep.subr.mxu0 0.0
    %v2285 = vand.u32 %v2202, 4294901760
    %2286 = vmatpush1.msra.mxu0 %v2285
    %2287 = vmatprep.subr.mxu0 0.0
    %v2288 = vand.u32 %v2203, 4294901760
    %2289 = vmatpush1.msra.mxu0 %v2288
    %2290 = vmatprep.subr.mxu0 0.0
    %v2291 = vand.u32 %v2204, 4294901760
    %2292 = vmatpush1.msra.mxu0 %v2291
    %2293 = vmatprep.subr.mxu0 0.0
    %v2294 = vand.u32 %v2205, 4294901760
    %2295 = vmatpush1.msra.mxu0 %v2294
    %2296 = vmatprep.subr.mxu0 0.0
    %v2297 = vand.u32 %v2206, 4294901760
    %2298 = vmatpush1.msra.mxu0 %v2297
    %2299 = vmatprep.subr.mxu0 0.0
    %v2300 = vand.u32 %v2207, 4294901760
    %2301 = vmatpush1.msra.mxu0 %v2300
    %2302 = vmatprep.subr.mxu0 0.0
    %v2303 = vand.u32 %v2208, 4294901760
    %2304 = vmatpush1.msra.mxu0 %v2303
    %2305 = vmatprep.subr.mxu0 0.0
    %v2306 = vand.u32 %v2209, 4294901760
    %2307 = vmatpush1.msra.mxu0 %v2306
    %2308 = vmatprep.subr.mxu0 0.0
    %v2309 = vand.u32 %v2210, 4294901760
    %2310 = vmatpush1.msra.mxu0 %v2309
    %2311 = vmatprep.subr.mxu0 0.0
    %v2312 = vand.u32 %v2211, 4294901760
    %2313 = vmatpush1.msra.mxu0 %v2312
    %2314 = vmatprep.subr.mxu0 0.0
    %v2315 = vand.u32 %v2212, 4294901760
    %2316 = vmatpush1.msra.mxu0 %v2315
    %2317 = vmatprep.subr.mxu0 0.0
    %2318 = vmatpush1.msra.mxu0 0.0
    %2319 = vmatprep.subr.mxu0 0.0
    %2320 = vmatpush1.msra.mxu0 0.0
    %2321 = vmatprep.subr.mxu0 0.0
    %2322 = vmatpush1.msra.mxu0 0.0
    %2323 = vmatprep.subr.mxu0 0.0
    %2324 = vmatpush1.msra.mxu0 0.0
    %2325 = vmatprep.subr.mxu0 0.0
    %2326 = vmatpush1.msra.mxu0 0.0
    %2327 = vmatprep.subr.mxu0 0.0
    %2328 = vmatpush1.msra.mxu0 0.0
    %2329 = vmatprep.subr.mxu0 0.0
    %2330 = vmatpush1.msra.mxu0 0.0
    %2331 = vmatprep.subr.mxu0 0.0
    %2332 = vmatpush1.msra.mxu0 0.0
    %2333 = vmatprep.subr.mxu0 0.0
    %2334 = vmatpush1.msra.mxu0 0.0
    %2335 = vmatprep.subr.mxu0 0.0
    %2336 = vmatpush1.msra.mxu0 0.0
    %2337 = vmatprep.subr.mxu0 0.0
    %2338 = vmatpush1.msra.mxu0 0.0
    %2339 = vmatprep.subr.mxu0 0.0
    %2340 = vmatpush1.msra.mxu0 0.0
    %2341 = vmatprep.subr.mxu0 0.0
    %2342 = vmatpush1.msra.mxu0 0.0
    %2343 = vmatprep.subr.mxu0 0.0
    %2344 = vmatpush1.msra.mxu0 0.0
    %v2345 = vand.u32 %v2253, 4294901760
    %v2346 = vsub.f32 %v2253, %v2345
    %v2347 = vand.u32 %v2346, 4294901760
    %v2348 = vsub.f32 %v2346, %v2347
    %v2349 = vand.u32 %v2348, 4294901760
    %2350 = vmatprep.mubr.f32.mxu0 %v2349
    %v2351 = vand.u32 %v2227, 4294901760
    %v2352 = vsub.f32 %v2227, %v2351
    %v2353 = vand.u32 %v2352, 4294901760
    %v2354 = vsub.f32 %v2352, %v2353
    %v2355 = vand.u32 %v2354, 4294901760
    %2356 = vmatmul.mubr.f32.gmra.mrb[0].mxu0 %v2355
    %v2357 = vpop.f32.mrb[0].mxu0
    %v2358 = vadd.f32 0.0, %v2357
    %v2359 = vpop.f32.mrb[0].mxu0
    %v2360 = vand.u32 %v2255, 4294901760
    %v2361 = vsub.f32 %v2255, %v2360
    %v2362 = vand.u32 %v2361, 4294901760
    %v2363 = vsub.f32 %v2361, %v2362
    %v2364 = vand.u32 %v2363, 4294901760
    %2365 = vmatprep.mubr.f32.mxu0 %v2364
    %v2366 = vand.u32 %v2232, 4294901760
    %v2367 = vsub.f32 %v2232, %v2366
    %v2368 = vand.u32 %v2367, 4294901760
    %v2369 = vsub.f32 %v2367, %v2368
    %v2370 = vand.u32 %v2369, 4294901760
    %2371 = vmatmul.mubr.f32.gmra.mrb[0].mxu0 %v2370
    %v2372 = vpop.f32.mrb[0].mxu0
    %v2373 = vadd.f32 0.0, %v2372
    %v2374 = vpop.f32.mrb[0].mxu0
    %v2375 = vand.u32 %v2257, 4294901760
    %v2376 = vsub.f32 %v2257, %v2375
    %v2377 = vand.u32 %v2376, 4294901760
    %v2378 = vsub.f32 %v2376, %v2377
    %v2379 = vand.u32 %v2378, 4294901760
    %2380 = vmatprep.mubr.f32.mxu0 %v2379
    %v2381 = vand.u32 %v2236, 4294901760
    %v2382 = vsub.f32 %v2236, %v2381
    %v2383 = vand.u32 %v2382, 4294901760
    %v2384 = vsub.f32 %v2382, %v2383
    %v2385 = vand.u32 %v2384, 4294901760
    %2386 = vmatmul.mubr.f32.gmra.mrb[0].mxu0 %v2385
    %v2387 = vpop.f32.mrb[0].mxu0
    %v2388 = vadd.f32 0.0, %v2387
    %v2389 = vpop.f32.mrb[0].mxu0
    %v2390 = vand.u32 %v2259, 4294901760
    %v2391 = vsub.f32 %v2259, %v2390
    %v2392 = vand.u32 %v2391, 4294901760
    %v2393 = vsub.f32 %v2391, %v2392
    %v2394 = vand.u32 %v2393, 4294901760
    %2395 = vmatprep.mubr.f32.mxu0 %v2394
    %v2396 = vand.u32 %v2240, 4294901760
    %v2397 = vsub.f32 %v2240, %v2396
    %v2398 = vand.u32 %v2397, 4294901760
    %v2399 = vsub.f32 %v2397, %v2398
    %v2400 = vand.u32 %v2399, 4294901760
    %2401 = vmatmul.mubr.f32.gmra.mrb[0].mxu0 %v2400
    %v2402 = vpop.f32.mrb[0].mxu0
    %v2403 = vadd.f32 0.0, %v2402
    %v2404 = vpop.f32.mrb[0].mxu0
    %v2405 = vand.u32 %v2261, 4294901760
    %v2406 = vsub.f32 %v2261, %v2405
    %v2407 = vand.u32 %v2406, 4294901760
    %v2408 = vsub.f32 %v2406, %v2407
    %v2409 = vand.u32 %v2408, 4294901760
    %2410 = vmatprep.mubr.f32.mxu0 %v2409
    %v2411 = vand.u32 %v2244, 4294901760
    %v2412 = vsub.f32 %v2244, %v2411
    %v2413 = vand.u32 %v2412, 4294901760
    %v2414 = vsub.f32 %v2412, %v2413
    %v2415 = vand.u32 %v2414, 4294901760
    %2416 = vmatmul.mubr.f32.gmra.mrb[0].mxu0 %v2415
    %v2417 = vpop.f32.mrb[0].mxu0
    %v2418 = vadd.f32 0.0, %v2417
    %v2419 = vpop.f32.mrb[0].mxu0
    %2420 = vdwg.mxu0
    %2421 = vmatprep.subr.mxu0 0.0
    %v2422 = vand.u32 %v2195, 4294901760
    %v2423 = vsub.f32 %v2195, %v2422
    %v2424 = vand.u32 %v2423, 4294901760
    %v2425 = vsub.f32 %v2423, %v2424
    %v2426 = vand.u32 %v2425, 4294901760
    %2427 = vmatpush1.msra.mxu0 %v2426
    %2428 = vmatprep.subr.mxu0 0.0
    %v2429 = vand.u32 %v2196, 4294901760
    %v2430 = vsub.f32 %v2196, %v2429
    %v2431 = vand.u32 %v2430, 4294901760
    %v2432 = vsub.f32 %v2430, %v2431
    %v2433 = vand.u32 %v2432, 4294901760
    %2434 = vmatpush1.msra.mxu0 %v2433
    %2435 = vmatprep.subr.mxu0 0.0
    %v2436 = vand.u32 %v2197, 4294901760
    %v2437 = vsub.f32 %v2197, %v2436
    %v2438 = vand.u32 %v2437, 4294901760
    %v2439 = vsub.f32 %v2437, %v2438
    %v2440 = vand.u32 %v2439, 4294901760
    %2441 = vmatpush1.msra.mxu0 %v2440
    %2442 = vmatprep.subr.mxu0 0.0
    %v2443 = vand.u32 %v2198, 4294901760
    %v2444 = vsub.f32 %v2198, %v2443
    %v2445 = vand.u32 %v2444, 4294901760
    %v2446 = vsub.f32 %v2444, %v2445
    %v2447 = vand.u32 %v2446, 4294901760
    %2448 = vmatpush1.msra.mxu0 %v2447
    %2449 = vmatprep.subr.mxu0 0.0
    %v2450 = vand.u32 %v2199, 4294901760
    %v2451 = vsub.f32 %v2199, %v2450
    %v2452 = vand.u32 %v2451, 4294901760
    %v2453 = vsub.f32 %v2451, %v2452
    %v2454 = vand.u32 %v2453, 4294901760
    %2455 = vmatpush1.msra.mxu0 %v2454
    %2456 = vmatprep.subr.mxu0 0.0
    %v2457 = vand.u32 %v2200, 4294901760
    %v2458 = vsub.f32 %v2200, %v2457
    %v2459 = vand.u32 %v2458, 4294901760
    %v2460 = vsub.f32 %v2458, %v2459
    %v2461 = vand.u32 %v2460, 4294901760
    %2462 = vmatpush1.msra.mxu0 %v2461
    %2463 = vmatprep.subr.mxu0 0.0
    %v2464 = vand.u32 %v2201, 4294901760
    %v2465 = vsub.f32 %v2201, %v2464
    %v2466 = vand.u32 %v2465, 4294901760
    %v2467 = vsub.f32 %v2465, %v2466
    %v2468 = vand.u32 %v2467, 4294901760
    %2469 = vmatpush1.msra.mxu0 %v2468
    %2470 = vmatprep.subr.mxu0 0.0
    %v2471 = vand.u32 %v2202, 4294901760
    %v2472 = vsub.f32 %v2202, %v2471
    %v2473 = vand.u32 %v2472, 4294901760
    %v2474 = vsub.f32 %v2472, %v2473
    %v2475 = vand.u32 %v2474, 4294901760
    %2476 = vmatpush1.msra.mxu0 %v2475
    %2477 = vmatprep.subr.mxu0 0.0
    %v2478 = vand.u32 %v2203, 4294901760
    %v2479 = vsub.f32 %v2203, %v2478
    %v2480 = vand.u32 %v2479, 4294901760
    %v2481 = vsub.f32 %v2479, %v2480
    %v2482 = vand.u32 %v2481, 4294901760
    %2483 = vmatpush1.msra.mxu0 %v2482
    %2484 = vmatprep.subr.mxu0 0.0
    %v2485 = vand.u32 %v2204, 4294901760
    %v2486 = vsub.f32 %v2204, %v2485
    %v2487 = vand.u32 %v2486, 4294901760
    %v2488 = vsub.f32 %v2486, %v2487
    %v2489 = vand.u32 %v2488, 4294901760
    %2490 = vmatpush1.msra.mxu0 %v2489
    %2491 = vmatprep.subr.mxu0 0.0
    %v2492 = vand.u32 %v2205, 4294901760
    %v2493 = vsub.f32 %v2205, %v2492
    %v2494 = vand.u32 %v2493, 4294901760
    %v2495 = vsub.f32 %v2493, %v2494
    %v2496 = vand.u32 %v2495, 4294901760
    %2497 = vmatpush1.msra.mxu0 %v2496
    %2498 = vmatprep.subr.mxu0 0.0
    %v2499 = vand.u32 %v2206, 4294901760
    %v2500 = vsub.f32 %v2206, %v2499
    %v2501 = vand.u32 %v2500, 4294901760
    %v2502 = vsub.f32 %v2500, %v2501
    %v2503 = vand.u32 %v2502, 4294901760
    %2504 = vmatpush1.msra.mxu0 %v2503
    %2505 = vmatprep.subr.mxu0 0.0
    %v2506 = vand.u32 %v2207, 4294901760
    %v2507 = vsub.f32 %v2207, %v2506
    %v2508 = vand.u32 %v2507, 4294901760
    %v2509 = vsub.f32 %v2507, %v2508
    %v2510 = vand.u32 %v2509, 4294901760
    %2511 = vmatpush1.msra.mxu0 %v2510
    %2512 = vmatprep.subr.mxu0 0.0
    %v2513 = vand.u32 %v2208, 4294901760
    %v2514 = vsub.f32 %v2208, %v2513
    %v2515 = vand.u32 %v2514, 4294901760
    %v2516 = vsub.f32 %v2514, %v2515
    %v2517 = vand.u32 %v2516, 4294901760
    %2518 = vmatpush1.msra.mxu0 %v2517
    %2519 = vmatprep.subr.mxu0 0.0
    %v2520 = vand.u32 %v2209, 4294901760
    %v2521 = vsub.f32 %v2209, %v2520
    %v2522 = vand.u32 %v2521, 4294901760
    %v2523 = vsub.f32 %v2521, %v2522
    %v2524 = vand.u32 %v2523, 4294901760
    %2525 = vmatpush1.msra.mxu0 %v2524
    %2526 = vmatprep.subr.mxu0 0.0
    %v2527 = vand.u32 %v2210, 4294901760
    %v2528 = vsub.f32 %v2210, %v2527
    %v2529 = vand.u32 %v2528, 4294901760
    %v2530 = vsub.f32 %v2528, %v2529
    %v2531 = vand.u32 %v2530, 4294901760
    %2532 = vmatpush1.msra.mxu0 %v2531
    %2533 = vmatprep.subr.mxu0 0.0
    %v2534 = vand.u32 %v2211, 4294901760
    %v2535 = vsub.f32 %v2211, %v2534
    %v2536 = vand.u32 %v2535, 4294901760
    %v2537 = vsub.f32 %v2535, %v2536
    %v2538 = vand.u32 %v2537, 4294901760
    %2539 = vmatpush1.msra.mxu0 %v2538
    %2540 = vmatprep.subr.mxu0 0.0
    %v2541 = vand.u32 %v2212, 4294901760
    %v2542 = vsub.f32 %v2212, %v2541
    %v2543 = vand.u32 %v2542, 4294901760
    %v2544 = vsub.f32 %v2542, %v2543
    %v2545 = vand.u32 %v2544, 4294901760
    %2546 = vmatpush1.msra.mxu0 %v2545
    %2547 = vmatprep.subr.mxu0 0.0
    %2548 = vmatpush1.msra.mxu0 0.0
    %2549 = vmatprep.subr.mxu0 0.0
    %2550 = vmatpush1.msra.mxu0 0.0
    %2551 = vmatprep.subr.mxu0 0.0
    %2552 = vmatpush1.msra.mxu0 0.0
    %2553 = vmatprep.subr.mxu0 0.0
    %2554 = vmatpush1.msra.mxu0 0.0
    %2555 = vmatprep.subr.mxu0 0.0
    %2556 = vmatpush1.msra.mxu0 0.0
    %2557 = vmatprep.subr.mxu0 0.0
    %2558 = vmatpush1.msra.mxu0 0.0
    %2559 = vmatprep.subr.mxu0 0.0
    %2560 = vmatpush1.msra.mxu0 0.0
    %2561 = vmatprep.subr.mxu0 0.0
    %2562 = vmatpush1.msra.mxu0 0.0
    %2563 = vmatprep.subr.mxu0 0.0
    %2564 = vmatpush1.msra.mxu0 0.0
    %2565 = vmatprep.subr.mxu0 0.0
    %2566 = vmatpush1.msra.mxu0 0.0
    %2567 = vmatprep.subr.mxu0 0.0
    %2568 = vmatpush1.msra.mxu0 0.0
    %2569 = vmatprep.subr.mxu0 0.0
    %2570 = vmatpush1.msra.mxu0 0.0
    %2571 = vmatprep.subr.mxu0 0.0
    %2572 = vmatpush1.msra.mxu0 0.0
    %2573 = vmatprep.subr.mxu0 0.0
    %2574 = vmatpush1.msra.mxu0 0.0
    %v2575 = vand.u32 %v2253, 4294901760
    %2576 = vmatprep.mubr.f32.mxu0 %v2575
    %v2577 = vand.u32 %v2227, 4294901760
    %2578 = vmatmul.mubr.f32.gmra.mrb[0].mxu0 %v2577
    %v2579 = vpop.f32.mrb[0].mxu0
    %v2580 = vadd.f32 %v2358, %v2579
    %v2581 = vpop.f32.mrb[0].mxu0
    %v2582 = vand.u32 %v2255, 4294901760
    %2583 = vmatprep.mubr.f32.mxu0 %v2582
    %v2584 = vand.u32 %v2232, 4294901760
    %2585 = vmatmul.mubr.f32.gmra.mrb[0].mxu0 %v2584
    %v2586 = vpop.f32.mrb[0].mxu0
    %v2587 = vadd.f32 %v2373, %v2586
    %v2588 = vpop.f32.mrb[0].mxu0
    %v2589 = vand.u32 %v2257, 4294901760
    %2590 = vmatprep.mubr.f32.mxu0 %v2589
    %v2591 = vand.u32 %v2236, 4294901760
    %2592 = vmatmul.mubr.f32.gmra.mrb[0].mxu0 %v2591
    %v2593 = vpop.f32.mrb[0].mxu0
    %v2594 = vadd.f32 %v2388, %v2593
    %v2595 = vpop.f32.mrb[0].mxu0
    %v2596 = vand.u32 %v2259, 4294901760
    %2597 = vmatprep.mubr.f32.mxu0 %v2596
    %v2598 = vand.u32 %v2240, 4294901760
    %2599 = vmatmul.mubr.f32.gmra.mrb[0].mxu0 %v2598
    %v2600 = vpop.f32.mrb[0].mxu0
    %v2601 = vadd.f32 %v2403, %v2600
    %v2602 = vpop.f32.mrb[0].mxu0
    %v2603 = vand.u32 %v2261, 4294901760
    %2604 = vmatprep.mubr.f32.mxu0 %v2603
    %v2605 = vand.u32 %v2244, 4294901760
    %2606 = vmatmul.mubr.f32.gmra.mrb[0].mxu0 %v2605
    %v2607 = vpop.f32.mrb[0].mxu0
    %v2608 = vadd.f32 %v2418, %v2607
    %v2609 = vpop.f32.mrb[0].mxu0
    %2610 = vdwg.mxu0
    %2611 = vmatprep.subr.mxu0 0.0
    %v2612 = vand.u32 %v2195, 4294901760
    %v2613 = vsub.f32 %v2195, %v2612
    %2614 = vmatpush1.msra.mxu0 %v2613
    %2615 = vmatprep.subr.mxu0 0.0
    %v2616 = vand.u32 %v2196, 4294901760
    %v2617 = vsub.f32 %v2196, %v2616
    %2618 = vmatpush1.msra.mxu0 %v2617
    %2619 = vmatprep.subr.mxu0 0.0
    %v2620 = vand.u32 %v2197, 4294901760
    %v2621 = vsub.f32 %v2197, %v2620
    %2622 = vmatpush1.msra.mxu0 %v2621
    %2623 = vmatprep.subr.mxu0 0.0
    %v2624 = vand.u32 %v2198, 4294901760
    %v2625 = vsub.f32 %v2198, %v2624
    %2626 = vmatpush1.msra.mxu0 %v2625
    %2627 = vmatprep.subr.mxu0 0.0
    %v2628 = vand.u32 %v2199, 4294901760
    %v2629 = vsub.f32 %v2199, %v2628
    %2630 = vmatpush1.msra.mxu0 %v2629
    %2631 = vmatprep.subr.mxu0 0.0
    %v2632 = vand.u32 %v2200, 4294901760
    %v2633 = vsub.f32 %v2200, %v2632
    %2634 = vmatpush1.msra.mxu0 %v2633
    %2635 = vmatprep.subr.mxu0 0.0
    %v2636 = vand.u32 %v2201, 4294901760
    %v2637 = vsub.f32 %v2201, %v2636
    %2638 = vmatpush1.msra.mxu0 %v2637
    %2639 = vmatprep.subr.mxu0 0.0
    %v2640 = vand.u32 %v2202, 4294901760
    %v2641 = vsub.f32 %v2202, %v2640
    %2642 = vmatpush1.msra.mxu0 %v2641
    %2643 = vmatprep.subr.mxu0 0.0
    %v2644 = vand.u32 %v2203, 4294901760
    %v2645 = vsub.f32 %v2203, %v2644
    %2646 = vmatpush1.msra.mxu0 %v2645
    %2647 = vmatprep.subr.mxu0 0.0
    %v2648 = vand.u32 %v2204, 4294901760
    %v2649 = vsub.f32 %v2204, %v2648
    %2650 = vmatpush1.msra.mxu0 %v2649
    %2651 = vmatprep.subr.mxu0 0.0
    %v2652 = vand.u32 %v2205, 4294901760
    %v2653 = vsub.f32 %v2205, %v2652
    %2654 = vmatpush1.msra.mxu0 %v2653
    %2655 = vmatprep.subr.mxu0 0.0
    %v2656 = vand.u32 %v2206, 4294901760
    %v2657 = vsub.f32 %v2206, %v2656
    %2658 = vmatpush1.msra.mxu0 %v2657
    %2659 = vmatprep.subr.mxu0 0.0
    %v2660 = vand.u32 %v2207, 4294901760
    %v2661 = vsub.f32 %v2207, %v2660
    %2662 = vmatpush1.msra.mxu0 %v2661
    %2663 = vmatprep.subr.mxu0 0.0
    %v2664 = vand.u32 %v2208, 4294901760
    %v2665 = vsub.f32 %v2208, %v2664
    %2666 = vmatpush1.msra.mxu0 %v2665
    %2667 = vmatprep.subr.mxu0 0.0
    %v2668 = vand.u32 %v2209, 4294901760
    %v2669 = vsub.f32 %v2209, %v2668
    %2670 = vmatpush1.msra.mxu0 %v2669
    %2671 = vmatprep.subr.mxu0 0.0
    %v2672 = vand.u32 %v2210, 4294901760
    %v2673 = vsub.f32 %v2210, %v2672
    %2674 = vmatpush1.msra.mxu0 %v2673
    %2675 = vmatprep.subr.mxu0 0.0
    %v2676 = vand.u32 %v2211, 4294901760
    %v2677 = vsub.f32 %v2211, %v2676
    %2678 = vmatpush1.msra.mxu0 %v2677
    %2679 = vmatprep.subr.mxu0 0.0
    %v2680 = vand.u32 %v2212, 4294901760
    %v2681 = vsub.f32 %v2212, %v2680
    %2682 = vmatpush1.msra.mxu0 %v2681
    %2683 = vmatprep.subr.mxu0 0.0
    %2684 = vmatpush1.msra.mxu0 0.0
    %2685 = vmatprep.subr.mxu0 0.0
    %2686 = vmatpush1.msra.mxu0 0.0
    %2687 = vmatprep.subr.mxu0 0.0
    %2688 = vmatpush1.msra.mxu0 0.0
    %2689 = vmatprep.subr.mxu0 0.0
    %2690 = vmatpush1.msra.mxu0 0.0
    %2691 = vmatprep.subr.mxu0 0.0
    %2692 = vmatpush1.msra.mxu0 0.0
    %2693 = vmatprep.subr.mxu0 0.0
    %2694 = vmatpush1.msra.mxu0 0.0
    %2695 = vmatprep.subr.mxu0 0.0
    %2696 = vmatpush1.msra.mxu0 0.0
    %2697 = vmatprep.subr.mxu0 0.0
    %2698 = vmatpush1.msra.mxu0 0.0
    %2699 = vmatprep.subr.mxu0 0.0
    %2700 = vmatpush1.msra.mxu0 0.0
    %2701 = vmatprep.subr.mxu0 0.0
    %2702 = vmatpush1.msra.mxu0 0.0
    %2703 = vmatprep.subr.mxu0 0.0
    %2704 = vmatpush1.msra.mxu0 0.0
    %2705 = vmatprep.subr.mxu0 0.0
    %2706 = vmatpush1.msra.mxu0 0.0
    %2707 = vmatprep.subr.mxu0 0.0
    %2708 = vmatpush1.msra.mxu0 0.0
    %2709 = vmatprep.subr.mxu0 0.0
    %2710 = vmatpush1.msra.mxu0 0.0
    %v2711 = vand.u32 %v2253, 4294901760
    %v2712 = vsub.f32 %v2253, %v2711
    %2713 = vmatprep.mubr.f32.mxu0 %v2712
    %v2714 = vand.u32 %v2227, 4294901760
    %v2715 = vsub.f32 %v2227, %v2714
    %2716 = vmatmul.mubr.f32.gmra.mrb[0].mxu0 %v2715
    %v2717 = vpop.f32.mrb[0].mxu0
    %v2718 = vadd.f32 %v2580, %v2717
    %v2719 = vpop.f32.mrb[0].mxu0
    %v2720 = vand.u32 %v2255, 4294901760
    %v2721 = vsub.f32 %v2255, %v2720
    %2722 = vmatprep.mubr.f32.mxu0 %v2721
    %v2723 = vand.u32 %v2232, 4294901760
    %v2724 = vsub.f32 %v2232, %v2723
    %2725 = vmatmul.mubr.f32.gmra.mrb[0].mxu0 %v2724
    %v2726 = vpop.f32.mrb[0].mxu0
    %v2727 = vadd.f32 %v2587, %v2726
    %v2728 = vpop.f32.mrb[0].mxu0
    %v2729 = vand.u32 %v2257, 4294901760
    %v2730 = vsub.f32 %v2257, %v2729
    %2731 = vmatprep.mubr.f32.mxu0 %v2730
    %v2732 = vand.u32 %v2236, 4294901760
    %v2733 = vsub.f32 %v2236, %v2732
    %2734 = vmatmul.mubr.f32.gmra.mrb[0].mxu0 %v2733
    %v2735 = vpop.f32.mrb[0].mxu0
    %v2736 = vadd.f32 %v2594, %v2735
    %v2737 = vpop.f32.mrb[0].mxu0
    %v2738 = vand.u32 %v2259, 4294901760
    %v2739 = vsub.f32 %v2259, %v2738
    %2740 = vmatprep.mubr.f32.mxu0 %v2739
    %v2741 = vand.u32 %v2240, 4294901760
    %v2742 = vsub.f32 %v2240, %v2741
    %2743 = vmatmul.mubr.f32.gmra.mrb[0].mxu0 %v2742
    %v2744 = vpop.f32.mrb[0].mxu0
    %v2745 = vadd.f32 %v2601, %v2744
    %v2746 = vpop.f32.mrb[0].mxu0
    %v2747 = vand.u32 %v2261, 4294901760
    %v2748 = vsub.f32 %v2261, %v2747
    %2749 = vmatprep.mubr.f32.mxu0 %v2748
    %v2750 = vand.u32 %v2244, 4294901760
    %v2751 = vsub.f32 %v2244, %v2750
    %2752 = vmatmul.mubr.f32.gmra.mrb[0].mxu0 %v2751
    %v2753 = vpop.f32.mrb[0].mxu0
    %v2754 = vadd.f32 %v2608, %v2753
    %v2755 = vpop.f32.mrb[0].mxu0
    %2756 = vdwg.mxu0
    %2757 = vmatprep.subr.mxu0 0.0
    %v2758 = vand.u32 %v2195, 4294901760
    %2759 = vmatpush1.msra.mxu0 %v2758
    %2760 = vmatprep.subr.mxu0 0.0
    %v2761 = vand.u32 %v2196, 4294901760
    %2762 = vmatpush1.msra.mxu0 %v2761
    %2763 = vmatprep.subr.mxu0 0.0
    %v2764 = vand.u32 %v2197, 4294901760
    %2765 = vmatpush1.msra.mxu0 %v2764
    %2766 = vmatprep.subr.mxu0 0.0
    %v2767 = vand.u32 %v2198, 4294901760
    %2768 = vmatpush1.msra.mxu0 %v2767
    %2769 = vmatprep.subr.mxu0 0.0
    %v2770 = vand.u32 %v2199, 4294901760
    %2771 = vmatpush1.msra.mxu0 %v2770
    %2772 = vmatprep.subr.mxu0 0.0
    %v2773 = vand.u32 %v2200, 4294901760
    %2774 = vmatpush1.msra.mxu0 %v2773
    %2775 = vmatprep.subr.mxu0 0.0
    %v2776 = vand.u32 %v2201, 4294901760
    %2777 = vmatpush1.msra.mxu0 %v2776
    %2778 = vmatprep.subr.mxu0 0.0
    %v2779 = vand.u32 %v2202, 4294901760
    %2780 = vmatpush1.msra.mxu0 %v2779
    %2781 = vmatprep.subr.mxu0 0.0
    %v2782 = vand.u32 %v2203, 4294901760
    %2783 = vmatpush1.msra.mxu0 %v2782
    %2784 = vmatprep.subr.mxu0 0.0
    %v2785 = vand.u32 %v2204, 4294901760
    %2786 = vmatpush1.msra.mxu0 %v2785
    %2787 = vmatprep.subr.mxu0 0.0
    %v2788 = vand.u32 %v2205, 4294901760
    %2789 = vmatpush1.msra.mxu0 %v2788
    %2790 = vmatprep.subr.mxu0 0.0
    %v2791 = vand.u32 %v2206, 4294901760
    %2792 = vmatpush1.msra.mxu0 %v2791
    %2793 = vmatprep.subr.mxu0 0.0
    %v2794 = vand.u32 %v2207, 4294901760
    %2795 = vmatpush1.msra.mxu0 %v2794
    %2796 = vmatprep.subr.mxu0 0.0
    %v2797 = vand.u32 %v2208, 4294901760
    %2798 = vmatpush1.msra.mxu0 %v2797
    %2799 = vmatprep.subr.mxu0 0.0
    %v2800 = vand.u32 %v2209, 4294901760
    %2801 = vmatpush1.msra.mxu0 %v2800
    %2802 = vmatprep.subr.mxu0 0.0
    %v2803 = vand.u32 %v2210, 4294901760
    %2804 = vmatpush1.msra.mxu0 %v2803
    %2805 = vmatprep.subr.mxu0 0.0
    %v2806 = vand.u32 %v2211, 4294901760
    %2807 = vmatpush1.msra.mxu0 %v2806
    %2808 = vmatprep.subr.mxu0 0.0
    %v2809 = vand.u32 %v2212, 4294901760
    %2810 = vmatpush1.msra.mxu0 %v2809
    %2811 = vmatprep.subr.mxu0 0.0
    %2812 = vmatpush1.msra.mxu0 0.0
    %2813 = vmatprep.subr.mxu0 0.0
    %2814 = vmatpush1.msra.mxu0 0.0
    %2815 = vmatprep.subr.mxu0 0.0
    %2816 = vmatpush1.msra.mxu0 0.0
    %2817 = vmatprep.subr.mxu0 0.0
    %2818 = vmatpush1.msra.mxu0 0.0
    %2819 = vmatprep.subr.mxu0 0.0
    %2820 = vmatpush1.msra.mxu0 0.0
    %2821 = vmatprep.subr.mxu0 0.0
    %2822 = vmatpush1.msra.mxu0 0.0
    %2823 = vmatprep.subr.mxu0 0.0
    %2824 = vmatpush1.msra.mxu0 0.0
    %2825 = vmatprep.subr.mxu0 0.0
    %2826 = vmatpush1.msra.mxu0 0.0
    %2827 = vmatprep.subr.mxu0 0.0
    %2828 = vmatpush1.msra.mxu0 0.0
    %2829 = vmatprep.subr.mxu0 0.0
    %2830 = vmatpush1.msra.mxu0 0.0
    %2831 = vmatprep.subr.mxu0 0.0
    %2832 = vmatpush1.msra.mxu0 0.0
    %2833 = vmatprep.subr.mxu0 0.0
    %2834 = vmatpush1.msra.mxu0 0.0
    %2835 = vmatprep.subr.mxu0 0.0
    %2836 = vmatpush1.msra.mxu0 0.0
    %2837 = vmatprep.subr.mxu0 0.0
    %2838 = vmatpush1.msra.mxu0 0.0
    %v2839 = vand.u32 %v2253, 4294901760
    %v2840 = vsub.f32 %v2253, %v2839
    %v2841 = vand.u32 %v2840, 4294901760
    %2842 = vmatprep.mubr.f32.mxu0 %v2841
    %v2843 = vand.u32 %v2227, 4294901760
    %v2844 = vsub.f32 %v2227, %v2843
    %v2845 = vand.u32 %v2844, 4294901760
    %2846 = vmatmul.mubr.f32.gmra.mrb[0].mxu0 %v2845
    %v2847 = vpop.f32.mrb[0].mxu0
    %v2848 = vadd.f32 %v2718, %v2847
    %v2849 = vpop.f32.mrb[0].mxu0
    %v2850 = vand.u32 %v2255, 4294901760
    %v2851 = vsub.f32 %v2255, %v2850
    %v2852 = vand.u32 %v2851, 4294901760
    %2853 = vmatprep.mubr.f32.mxu0 %v2852
    %v2854 = vand.u32 %v2232, 4294901760
    %v2855 = vsub.f32 %v2232, %v2854
    %v2856 = vand.u32 %v2855, 4294901760
    %2857 = vmatmul.mubr.f32.gmra.mrb[0].mxu0 %v2856
    %v2858 = vpop.f32.mrb[0].mxu0
    %v2859 = vadd.f32 %v2727, %v2858
    %v2860 = vpop.f32.mrb[0].mxu0
    %v2861 = vand.u32 %v2257, 4294901760
    %v2862 = vsub.f32 %v2257, %v2861
    %v2863 = vand.u32 %v2862, 4294901760
    %2864 = vmatprep.mubr.f32.mxu0 %v2863
    %v2865 = vand.u32 %v2236, 4294901760
    %v2866 = vsub.f32 %v2236, %v2865
    %v2867 = vand.u32 %v2866, 4294901760
    %2868 = vmatmul.mubr.f32.gmra.mrb[0].mxu0 %v2867
    %v2869 = vpop.f32.mrb[0].mxu0
    %v2870 = vadd.f32 %v2736, %v2869
    %v2871 = vpop.f32.mrb[0].mxu0
    %v2872 = vand.u32 %v2259, 4294901760
    %v2873 = vsub.f32 %v2259, %v2872
    %v2874 = vand.u32 %v2873, 4294901760
    %2875 = vmatprep.mubr.f32.mxu0 %v2874
    %v2876 = vand.u32 %v2240, 4294901760
    %v2877 = vsub.f32 %v2240, %v2876
    %v2878 = vand.u32 %v2877, 4294901760
    %2879 = vmatmul.mubr.f32.gmra.mrb[0].mxu0 %v2878
    %v2880 = vpop.f32.mrb[0].mxu0
    %v2881 = vadd.f32 %v2745, %v2880
    %v2882 = vpop.f32.mrb[0].mxu0
    %v2883 = vand.u32 %v2261, 4294901760
    %v2884 = vsub.f32 %v2261, %v2883
    %v2885 = vand.u32 %v2884, 4294901760
    %2886 = vmatprep.mubr.f32.mxu0 %v2885
    %v2887 = vand.u32 %v2244, 4294901760
    %v2888 = vsub.f32 %v2244, %v2887
    %v2889 = vand.u32 %v2888, 4294901760
    %2890 = vmatmul.mubr.f32.gmra.mrb[0].mxu0 %v2889
    %v2891 = vpop.f32.mrb[0].mxu0
    %v2892 = vadd.f32 %v2754, %v2891
    %v2893 = vpop.f32.mrb[0].mxu0
    %2894 = vdwg.mxu0
    %2895 = vmatprep.subr.mxu0 0.0
    %v2896 = vand.u32 %v2195, 4294901760
    %v2897 = vsub.f32 %v2195, %v2896
    %v2898 = vand.u32 %v2897, 4294901760
    %2899 = vmatpush1.msra.mxu0 %v2898
    %2900 = vmatprep.subr.mxu0 0.0
    %v2901 = vand.u32 %v2196, 4294901760
    %v2902 = vsub.f32 %v2196, %v2901
    %v2903 = vand.u32 %v2902, 4294901760
    %2904 = vmatpush1.msra.mxu0 %v2903
    %2905 = vmatprep.subr.mxu0 0.0
    %v2906 = vand.u32 %v2197, 4294901760
    %v2907 = vsub.f32 %v2197, %v2906
    %v2908 = vand.u32 %v2907, 4294901760
    %2909 = vmatpush1.msra.mxu0 %v2908
    %2910 = vmatprep.subr.mxu0 0.0
    %v2911 = vand.u32 %v2198, 4294901760
    %v2912 = vsub.f32 %v2198, %v2911
    %v2913 = vand.u32 %v2912, 4294901760
    %2914 = vmatpush1.msra.mxu0 %v2913
    %2915 = vmatprep.subr.mxu0 0.0
    %v2916 = vand.u32 %v2199, 4294901760
    %v2917 = vsub.f32 %v2199, %v2916
    %v2918 = vand.u32 %v2917, 4294901760
    %2919 = vmatpush1.msra.mxu0 %v2918
    %2920 = vmatprep.subr.mxu0 0.0
    %v2921 = vand.u32 %v2200, 4294901760
    %v2922 = vsub.f32 %v2200, %v2921
    %v2923 = vand.u32 %v2922, 4294901760
    %2924 = vmatpush1.msra.mxu0 %v2923
    %2925 = vmatprep.subr.mxu0 0.0
    %v2926 = vand.u32 %v2201, 4294901760
    %v2927 = vsub.f32 %v2201, %v2926
    %v2928 = vand.u32 %v2927, 4294901760
    %2929 = vmatpush1.msra.mxu0 %v2928
    %2930 = vmatprep.subr.mxu0 0.0
    %v2931 = vand.u32 %v2202, 4294901760
    %v2932 = vsub.f32 %v2202, %v2931
    %v2933 = vand.u32 %v2932, 4294901760
    %2934 = vmatpush1.msra.mxu0 %v2933
    %2935 = vmatprep.subr.mxu0 0.0
    %v2936 = vand.u32 %v2203, 4294901760
    %v2937 = vsub.f32 %v2203, %v2936
    %v2938 = vand.u32 %v2937, 4294901760
    %2939 = vmatpush1.msra.mxu0 %v2938
    %2940 = vmatprep.subr.mxu0 0.0
    %v2941 = vand.u32 %v2204, 4294901760
    %v2942 = vsub.f32 %v2204, %v2941
    %v2943 = vand.u32 %v2942, 4294901760
    %2944 = vmatpush1.msra.mxu0 %v2943
    %2945 = vmatprep.subr.mxu0 0.0
    %v2946 = vand.u32 %v2205, 4294901760
    %v2947 = vsub.f32 %v2205, %v2946
    %v2948 = vand.u32 %v2947, 4294901760
    %2949 = vmatpush1.msra.mxu0 %v2948
    %2950 = vmatprep.subr.mxu0 0.0
    %v2951 = vand.u32 %v2206, 4294901760
    %v2952 = vsub.f32 %v2206, %v2951
    %v2953 = vand.u32 %v2952, 4294901760
    %2954 = vmatpush1.msra.mxu0 %v2953
    %2955 = vmatprep.subr.mxu0 0.0
    %v2956 = vand.u32 %v2207, 4294901760
    %v2957 = vsub.f32 %v2207, %v2956
    %v2958 = vand.u32 %v2957, 4294901760
    %2959 = vmatpush1.msra.mxu0 %v2958
    %2960 = vmatprep.subr.mxu0 0.0
    %v2961 = vand.u32 %v2208, 4294901760
    %v2962 = vsub.f32 %v2208, %v2961
    %v2963 = vand.u32 %v2962, 4294901760
    %2964 = vmatpush1.msra.mxu0 %v2963
    %2965 = vmatprep.subr.mxu0 0.0
    %v2966 = vand.u32 %v2209, 4294901760
    %v2967 = vsub.f32 %v2209, %v2966
    %v2968 = vand.u32 %v2967, 4294901760
    %2969 = vmatpush1.msra.mxu0 %v2968
    %2970 = vmatprep.subr.mxu0 0.0
    %v2971 = vand.u32 %v2210, 4294901760
    %v2972 = vsub.f32 %v2210, %v2971
    %v2973 = vand.u32 %v2972, 4294901760
    %2974 = vmatpush1.msra.mxu0 %v2973
    %2975 = vmatprep.subr.mxu0 0.0
    %v2976 = vand.u32 %v2211, 4294901760
    %v2977 = vsub.f32 %v2211, %v2976
    %v2978 = vand.u32 %v2977, 4294901760
    %2979 = vmatpush1.msra.mxu0 %v2978
    %2980 = vmatprep.subr.mxu0 0.0
    %v2981 = vand.u32 %v2212, 4294901760
    %v2982 = vsub.f32 %v2212, %v2981
    %v2983 = vand.u32 %v2982, 4294901760
    %2984 = vmatpush1.msra.mxu0 %v2983
    %2985 = vmatprep.subr.mxu0 0.0
    %2986 = vmatpush1.msra.mxu0 0.0
    %2987 = vmatprep.subr.mxu0 0.0
    %2988 = vmatpush1.msra.mxu0 0.0
    %2989 = vmatprep.subr.mxu0 0.0
    %2990 = vmatpush1.msra.mxu0 0.0
    %2991 = vmatprep.subr.mxu0 0.0
    %2992 = vmatpush1.msra.mxu0 0.0
    %2993 = vmatprep.subr.mxu0 0.0
    %2994 = vmatpush1.msra.mxu0 0.0
    %2995 = vmatprep.subr.mxu0 0.0
    %2996 = vmatpush1.msra.mxu0 0.0
    %2997 = vmatprep.subr.mxu0 0.0
    %2998 = vmatpush1.msra.mxu0 0.0
    %2999 = vmatprep.subr.mxu0 0.0
    %3000 = vmatpush1.msra.mxu0 0.0
    %3001 = vmatprep.subr.mxu0 0.0
    %3002 = vmatpush1.msra.mxu0 0.0
    %3003 = vmatprep.subr.mxu0 0.0
    %3004 = vmatpush1.msra.mxu0 0.0
    %3005 = vmatprep.subr.mxu0 0.0
    %3006 = vmatpush1.msra.mxu0 0.0
    %3007 = vmatprep.subr.mxu0 0.0
    %3008 = vmatpush1.msra.mxu0 0.0
    %3009 = vmatprep.subr.mxu0 0.0
    %3010 = vmatpush1.msra.mxu0 0.0
    %3011 = vmatprep.subr.mxu0 0.0
    %3012 = vmatpush1.msra.mxu0 0.0
    %v3013 = vand.u32 %v2253, 4294901760
    %3014 = vmatprep.mubr.f32.mxu0 %v3013
    %v3015 = vand.u32 %v2227, 4294901760
    %3016 = vmatmul.mubr.f32.gmra.mrb[0].mxu0 %v3015
    %v3017 = vpop.f32.mrb[0].mxu0
    %v3018 = vadd.f32 %v2848, %v3017
    %v3019 = vpop.f32.mrb[0].mxu0
    %v3020 = vand.u32 %v2255, 4294901760
    %3021 = vmatprep.mubr.f32.mxu0 %v3020
    %v3022 = vand.u32 %v2232, 4294901760
    %3023 = vmatmul.mubr.f32.gmra.mrb[0].mxu0 %v3022
    %v3024 = vpop.f32.mrb[0].mxu0
    %v3025 = vadd.f32 %v2859, %v3024
    %v3026 = vpop.f32.mrb[0].mxu0
    %v3027 = vand.u32 %v2257, 4294901760
    %3028 = vmatprep.mubr.f32.mxu0 %v3027
    %v3029 = vand.u32 %v2236, 4294901760
    %3030 = vmatmul.mubr.f32.gmra.mrb[0].mxu0 %v3029
    %v3031 = vpop.f32.mrb[0].mxu0
    %v3032 = vadd.f32 %v2870, %v3031
    %v3033 = vpop.f32.mrb[0].mxu0
    %v3034 = vand.u32 %v2259, 4294901760
    %3035 = vmatprep.mubr.f32.mxu0 %v3034
    %v3036 = vand.u32 %v2240, 4294901760
    %3037 = vmatmul.mubr.f32.gmra.mrb[0].mxu0 %v3036
    %v3038 = vpop.f32.mrb[0].mxu0
    %v3039 = vadd.f32 %v2881, %v3038
    %v3040 = vpop.f32.mrb[0].mxu0
    %v3041 = vand.u32 %v2261, 4294901760
    %3042 = vmatprep.mubr.f32.mxu0 %v3041
    %v3043 = vand.u32 %v2244, 4294901760
    %3044 = vmatmul.mubr.f32.gmra.mrb[0].mxu0 %v3043
    %v3045 = vpop.f32.mrb[0].mxu0
    %v3046 = vadd.f32 %v2892, %v3045
    %v3047 = vpop.f32.mrb[0].mxu0
    %3048 = vdwg.mxu0
    %3049 = vmatprep.subr.mxu0 0.0
    %v3050 = vand.u32 %v2195, 4294901760
    %3051 = vmatpush1.msra.mxu0 %v3050
    %3052 = vmatprep.subr.mxu0 0.0
    %v3053 = vand.u32 %v2196, 4294901760
    %3054 = vmatpush1.msra.mxu0 %v3053
    %3055 = vmatprep.subr.mxu0 0.0
    %v3056 = vand.u32 %v2197, 4294901760
    %3057 = vmatpush1.msra.mxu0 %v3056
    %3058 = vmatprep.subr.mxu0 0.0
    %v3059 = vand.u32 %v2198, 4294901760
    %3060 = vmatpush1.msra.mxu0 %v3059
    %3061 = vmatprep.subr.mxu0 0.0
    %v3062 = vand.u32 %v2199, 4294901760
    %3063 = vmatpush1.msra.mxu0 %v3062
    %3064 = vmatprep.subr.mxu0 0.0
    %v3065 = vand.u32 %v2200, 4294901760
    %3066 = vmatpush1.msra.mxu0 %v3065
    %3067 = vmatprep.subr.mxu0 0.0
    %v3068 = vand.u32 %v2201, 4294901760
    %3069 = vmatpush1.msra.mxu0 %v3068
    %3070 = vmatprep.subr.mxu0 0.0
    %v3071 = vand.u32 %v2202, 4294901760
    %3072 = vmatpush1.msra.mxu0 %v3071
    %3073 = vmatprep.subr.mxu0 0.0
    %v3074 = vand.u32 %v2203, 4294901760
    %3075 = vmatpush1.msra.mxu0 %v3074
    %3076 = vmatprep.subr.mxu0 0.0
    %v3077 = vand.u32 %v2204, 4294901760
    %3078 = vmatpush1.msra.mxu0 %v3077
    %3079 = vmatprep.subr.mxu0 0.0
    %v3080 = vand.u32 %v2205, 4294901760
    %3081 = vmatpush1.msra.mxu0 %v3080
    %3082 = vmatprep.subr.mxu0 0.0
    %v3083 = vand.u32 %v2206, 4294901760
    %3084 = vmatpush1.msra.mxu0 %v3083
    %3085 = vmatprep.subr.mxu0 0.0
    %v3086 = vand.u32 %v2207, 4294901760
    %3087 = vmatpush1.msra.mxu0 %v3086
    %3088 = vmatprep.subr.mxu0 0.0
    %v3089 = vand.u32 %v2208, 4294901760
    %3090 = vmatpush1.msra.mxu0 %v3089
    %3091 = vmatprep.subr.mxu0 0.0
    %v3092 = vand.u32 %v2209, 4294901760
    %3093 = vmatpush1.msra.mxu0 %v3092
    %3094 = vmatprep.subr.mxu0 0.0
    %v3095 = vand.u32 %v2210, 4294901760
    %3096 = vmatpush1.msra.mxu0 %v3095
    %3097 = vmatprep.subr.mxu0 0.0
    %v3098 = vand.u32 %v2211, 4294901760
    %3099 = vmatpush1.msra.mxu0 %v3098
    %3100 = vmatprep.subr.mxu0 0.0
    %v3101 = vand.u32 %v2212, 4294901760
    %3102 = vmatpush1.msra.mxu0 %v3101
    %3103 = vmatprep.subr.mxu0 0.0
    %3104 = vmatpush1.msra.mxu0 0.0
    %3105 = vmatprep.subr.mxu0 0.0
    %3106 = vmatpush1.msra.mxu0 0.0
    %3107 = vmatprep.subr.mxu0 0.0
    %3108 = vmatpush1.msra.mxu0 0.0
    %3109 = vmatprep.subr.mxu0 0.0
    %3110 = vmatpush1.msra.mxu0 0.0
    %3111 = vmatprep.subr.mxu0 0.0
    %3112 = vmatpush1.msra.mxu0 0.0
    %3113 = vmatprep.subr.mxu0 0.0
    %3114 = vmatpush1.msra.mxu0 0.0
    %3115 = vmatprep.subr.mxu0 0.0
    %3116 = vmatpush1.msra.mxu0 0.0
    %3117 = vmatprep.subr.mxu0 0.0
    %3118 = vmatpush1.msra.mxu0 0.0
    %3119 = vmatprep.subr.mxu0 0.0
    %3120 = vmatpush1.msra.mxu0 0.0
    %3121 = vmatprep.subr.mxu0 0.0
    %3122 = vmatpush1.msra.mxu0 0.0
    %3123 = vmatprep.subr.mxu0 0.0
    %3124 = vmatpush1.msra.mxu0 0.0
    %3125 = vmatprep.subr.mxu0 0.0
    %3126 = vmatpush1.msra.mxu0 0.0
    %3127 = vmatprep.subr.mxu0 0.0
    %3128 = vmatpush1.msra.mxu0 0.0
    %3129 = vmatprep.subr.mxu0 0.0
    %3130 = vmatpush1.msra.mxu0 0.0
    %v3131 = vand.u32 %v2253, 4294901760
    %3132 = vmatprep.mubr.f32.mxu0 %v3131
    %v3133 = vand.u32 %v2227, 4294901760
    %3134 = vmatmul.mubr.f32.gmra.mrb[0].mxu0 %v3133
    %v3135 = vpop.f32.mrb[0].mxu0
    %v3136 = vadd.f32 %v3018, %v3135
    %v3137 = vpop.f32.mrb[0].mxu0
    %v3138 = vand.u32 %v2255, 4294901760
    %3139 = vmatprep.mubr.f32.mxu0 %v3138
    %v3140 = vand.u32 %v2232, 4294901760
    %3141 = vmatmul.mubr.f32.gmra.mrb[0].mxu0 %v3140
    %v3142 = vpop.f32.mrb[0].mxu0
    %v3143 = vadd.f32 %v3025, %v3142
    %v3144 = vpop.f32.mrb[0].mxu0
    %v3145 = vand.u32 %v2257, 4294901760
    %3146 = vmatprep.mubr.f32.mxu0 %v3145
    %v3147 = vand.u32 %v2236, 4294901760
    %3148 = vmatmul.mubr.f32.gmra.mrb[0].mxu0 %v3147
    %v3149 = vpop.f32.mrb[0].mxu0
    %v3150 = vadd.f32 %v3032, %v3149
    %v3151 = vpop.f32.mrb[0].mxu0
    %v3152 = vand.u32 %v2259, 4294901760
    %3153 = vmatprep.mubr.f32.mxu0 %v3152
    %v3154 = vand.u32 %v2240, 4294901760
    %3155 = vmatmul.mubr.f32.gmra.mrb[0].mxu0 %v3154
    %v3156 = vpop.f32.mrb[0].mxu0
    %v3157 = vadd.f32 %v3039, %v3156
    %v3158 = vpop.f32.mrb[0].mxu0
    %v3159 = vand.u32 %v2261, 4294901760
    %3160 = vmatprep.mubr.f32.mxu0 %v3159
    %v3161 = vand.u32 %v2244, 4294901760
    %3162 = vmatmul.mubr.f32.gmra.mrb[0].mxu0 %v3161
    %v3163 = vpop.f32.mrb[0].mxu0
    %v3164 = vadd.f32 %v3046, %v3163
    %v3165 = vpop.f32.mrb[0].mxu0
    %3166 = vdwg.mxu0
    %v3167 = vsel %vm2252, %v2165, 0
    %v3169 = vsel %vm2252, %v2167, 0
    %v3171 = vsel %vm2252, %v2169, 0
    %v3173 = vsel %vm2252, %v2171, 0
    %v3175 = vsel %vm2252, %v2173, 0
    %3177 = vmatprep.subr.mxu0 0.0
    %v3178 = vand.u32 %v2176, 4294901760
    %3179 = vmatpush1.msra.mxu0 %v3178
    %3180 = vmatprep.subr.mxu0 0.0
    %v3181 = vand.u32 %v2177, 4294901760
    %3182 = vmatpush1.msra.mxu0 %v3181
    %3183 = vmatprep.subr.mxu0 0.0
    %v3184 = vand.u32 %v2178, 4294901760
    %3185 = vmatpush1.msra.mxu0 %v3184
    %3186 = vmatprep.subr.mxu0 0.0
    %v3187 = vand.u32 %v2179, 4294901760
    %3188 = vmatpush1.msra.mxu0 %v3187
    %3189 = vmatprep.subr.mxu0 0.0
    %v3190 = vand.u32 %v2180, 4294901760
    %3191 = vmatpush1.msra.mxu0 %v3190
    %3192 = vmatprep.subr.mxu0 0.0
    %v3193 = vand.u32 %v2181, 4294901760
    %3194 = vmatpush1.msra.mxu0 %v3193
    %3195 = vmatprep.subr.mxu0 0.0
    %v3196 = vand.u32 %v2182, 4294901760
    %3197 = vmatpush1.msra.mxu0 %v3196
    %3198 = vmatprep.subr.mxu0 0.0
    %v3199 = vand.u32 %v2183, 4294901760
    %3200 = vmatpush1.msra.mxu0 %v3199
    %3201 = vmatprep.subr.mxu0 0.0
    %v3202 = vand.u32 %v2184, 4294901760
    %3203 = vmatpush1.msra.mxu0 %v3202
    %3204 = vmatprep.subr.mxu0 0.0
    %v3205 = vand.u32 %v2185, 4294901760
    %3206 = vmatpush1.msra.mxu0 %v3205
    %3207 = vmatprep.subr.mxu0 0.0
    %v3208 = vand.u32 %v2186, 4294901760
    %3209 = vmatpush1.msra.mxu0 %v3208
    %3210 = vmatprep.subr.mxu0 0.0
    %v3211 = vand.u32 %v2187, 4294901760
    %3212 = vmatpush1.msra.mxu0 %v3211
    %3213 = vmatprep.subr.mxu0 0.0
    %v3214 = vand.u32 %v2188, 4294901760
    %3215 = vmatpush1.msra.mxu0 %v3214
    %3216 = vmatprep.subr.mxu0 0.0
    %v3217 = vand.u32 %v2189, 4294901760
    %3218 = vmatpush1.msra.mxu0 %v3217
    %3219 = vmatprep.subr.mxu0 0.0
    %v3220 = vand.u32 %v2190, 4294901760
    %3221 = vmatpush1.msra.mxu0 %v3220
    %3222 = vmatprep.subr.mxu0 0.0
    %v3223 = vand.u32 %v2191, 4294901760
    %3224 = vmatpush1.msra.mxu0 %v3223
    %3225 = vmatprep.subr.mxu0 0.0
    %v3226 = vand.u32 %v2192, 4294901760
    %3227 = vmatpush1.msra.mxu0 %v3226
    %3228 = vmatprep.subr.mxu0 0.0
    %v3229 = vand.u32 %v2193, 4294901760
    %3230 = vmatpush1.msra.mxu0 %v3229
    %3231 = vmatprep.subr.mxu0 0.0
    %3232 = vmatpush1.msra.mxu0 0.0
    %3233 = vmatprep.subr.mxu0 0.0
    %3234 = vmatpush1.msra.mxu0 0.0
    %3235 = vmatprep.subr.mxu0 0.0
    %3236 = vmatpush1.msra.mxu0 0.0
    %3237 = vmatprep.subr.mxu0 0.0
    %3238 = vmatpush1.msra.mxu0 0.0
    %3239 = vmatprep.subr.mxu0 0.0
    %3240 = vmatpush1.msra.mxu0 0.0
    %3241 = vmatprep.subr.mxu0 0.0
    %3242 = vmatpush1.msra.mxu0 0.0
    %3243 = vmatprep.subr.mxu0 0.0
    %3244 = vmatpush1.msra.mxu0 0.0
    %3245 = vmatprep.subr.mxu0 0.0
    %3246 = vmatpush1.msra.mxu0 0.0
    %3247 = vmatprep.subr.mxu0 0.0
    %3248 = vmatpush1.msra.mxu0 0.0
    %3249 = vmatprep.subr.mxu0 0.0
    %3250 = vmatpush1.msra.mxu0 0.0
    %3251 = vmatprep.subr.mxu0 0.0
    %3252 = vmatpush1.msra.mxu0 0.0
    %3253 = vmatprep.subr.mxu0 0.0
    %3254 = vmatpush1.msra.mxu0 0.0
    %3255 = vmatprep.subr.mxu0 0.0
    %3256 = vmatpush1.msra.mxu0 0.0
    %3257 = vmatprep.subr.mxu0 0.0
    %3258 = vmatpush1.msra.mxu0 0.0
    %v3259 = vand.u32 %v3167, 4294901760
    %v3260 = vsub.f32 %v3167, %v3259
    %v3261 = vand.u32 %v3260, 4294901760
    %v3262 = vsub.f32 %v3260, %v3261
    %v3263 = vand.u32 %v3262, 4294901760
    %3264 = vmatprep.mubr.f32.mxu0 %v3263
    %v3265 = vand.u32 %v2164, 4294901760
    %v3266 = vsub.f32 %v2164, %v3265
    %v3267 = vand.u32 %v3266, 4294901760
    %v3268 = vsub.f32 %v3266, %v3267
    %v3269 = vand.u32 %v3268, 4294901760
    %3270 = vmatmul.mubr.f32.gmra.mrb[0].mxu0 %v3269
    %v3271 = vpop.f32.mrb[0].mxu0
    %v3272 = vadd.f32 %v3136, %v3271
    %v3273 = vpop.f32.mrb[0].mxu0
    %v3274 = vand.u32 %v3169, 4294901760
    %v3275 = vsub.f32 %v3169, %v3274
    %v3276 = vand.u32 %v3275, 4294901760
    %v3277 = vsub.f32 %v3275, %v3276
    %v3278 = vand.u32 %v3277, 4294901760
    %3279 = vmatprep.mubr.f32.mxu0 %v3278
    %v3280 = vand.u32 %v2166, 4294901760
    %v3281 = vsub.f32 %v2166, %v3280
    %v3282 = vand.u32 %v3281, 4294901760
    %v3283 = vsub.f32 %v3281, %v3282
    %v3284 = vand.u32 %v3283, 4294901760
    %3285 = vmatmul.mubr.f32.gmra.mrb[0].mxu0 %v3284
    %v3286 = vpop.f32.mrb[0].mxu0
    %v3287 = vadd.f32 %v3143, %v3286
    %v3288 = vpop.f32.mrb[0].mxu0
    %v3289 = vand.u32 %v3171, 4294901760
    %v3290 = vsub.f32 %v3171, %v3289
    %v3291 = vand.u32 %v3290, 4294901760
    %v3292 = vsub.f32 %v3290, %v3291
    %v3293 = vand.u32 %v3292, 4294901760
    %3294 = vmatprep.mubr.f32.mxu0 %v3293
    %v3295 = vand.u32 %v2168, 4294901760
    %v3296 = vsub.f32 %v2168, %v3295
    %v3297 = vand.u32 %v3296, 4294901760
    %v3298 = vsub.f32 %v3296, %v3297
    %v3299 = vand.u32 %v3298, 4294901760
    %3300 = vmatmul.mubr.f32.gmra.mrb[0].mxu0 %v3299
    %v3301 = vpop.f32.mrb[0].mxu0
    %v3302 = vadd.f32 %v3150, %v3301
    %v3303 = vpop.f32.mrb[0].mxu0
    %v3304 = vand.u32 %v3173, 4294901760
    %v3305 = vsub.f32 %v3173, %v3304
    %v3306 = vand.u32 %v3305, 4294901760
    %v3307 = vsub.f32 %v3305, %v3306
    %v3308 = vand.u32 %v3307, 4294901760
    %3309 = vmatprep.mubr.f32.mxu0 %v3308
    %v3310 = vand.u32 %v2170, 4294901760
    %v3311 = vsub.f32 %v2170, %v3310
    %v3312 = vand.u32 %v3311, 4294901760
    %v3313 = vsub.f32 %v3311, %v3312
    %v3314 = vand.u32 %v3313, 4294901760
    %3315 = vmatmul.mubr.f32.gmra.mrb[0].mxu0 %v3314
    %v3316 = vpop.f32.mrb[0].mxu0
    %v3317 = vadd.f32 %v3157, %v3316
    %v3318 = vpop.f32.mrb[0].mxu0
    %v3319 = vand.u32 %v3175, 4294901760
    %v3320 = vsub.f32 %v3175, %v3319
    %v3321 = vand.u32 %v3320, 4294901760
    %v3322 = vsub.f32 %v3320, %v3321
    %v3323 = vand.u32 %v3322, 4294901760
    %3324 = vmatprep.mubr.f32.mxu0 %v3323
    %v3325 = vand.u32 %v2172, 4294901760
    %v3326 = vsub.f32 %v2172, %v3325
    %v3327 = vand.u32 %v3326, 4294901760
    %v3328 = vsub.f32 %v3326, %v3327
    %v3329 = vand.u32 %v3328, 4294901760
    %3330 = vmatmul.mubr.f32.gmra.mrb[0].mxu0 %v3329
    %v3331 = vpop.f32.mrb[0].mxu0
    %v3332 = vadd.f32 %v3164, %v3331
    %v3333 = vpop.f32.mrb[0].mxu0
    %3334 = vdwg.mxu0
    %3335 = vmatprep.subr.mxu0 0.0
    %v3336 = vand.u32 %v2176, 4294901760
    %v3337 = vsub.f32 %v2176, %v3336
    %v3338 = vand.u32 %v3337, 4294901760
    %v3339 = vsub.f32 %v3337, %v3338
    %v3340 = vand.u32 %v3339, 4294901760
    %3341 = vmatpush1.msra.mxu0 %v3340
    %3342 = vmatprep.subr.mxu0 0.0
    %v3343 = vand.u32 %v2177, 4294901760
    %v3344 = vsub.f32 %v2177, %v3343
    %v3345 = vand.u32 %v3344, 4294901760
    %v3346 = vsub.f32 %v3344, %v3345
    %v3347 = vand.u32 %v3346, 4294901760
    %3348 = vmatpush1.msra.mxu0 %v3347
    %3349 = vmatprep.subr.mxu0 0.0
    %v3350 = vand.u32 %v2178, 4294901760
    %v3351 = vsub.f32 %v2178, %v3350
    %v3352 = vand.u32 %v3351, 4294901760
    %v3353 = vsub.f32 %v3351, %v3352
    %v3354 = vand.u32 %v3353, 4294901760
    %3355 = vmatpush1.msra.mxu0 %v3354
    %3356 = vmatprep.subr.mxu0 0.0
    %v3357 = vand.u32 %v2179, 4294901760
    %v3358 = vsub.f32 %v2179, %v3357
    %v3359 = vand.u32 %v3358, 4294901760
    %v3360 = vsub.f32 %v3358, %v3359
    %v3361 = vand.u32 %v3360, 4294901760
    %3362 = vmatpush1.msra.mxu0 %v3361
    %3363 = vmatprep.subr.mxu0 0.0
    %v3364 = vand.u32 %v2180, 4294901760
    %v3365 = vsub.f32 %v2180, %v3364
    %v3366 = vand.u32 %v3365, 4294901760
    %v3367 = vsub.f32 %v3365, %v3366
    %v3368 = vand.u32 %v3367, 4294901760
    %3369 = vmatpush1.msra.mxu0 %v3368
    %3370 = vmatprep.subr.mxu0 0.0
    %v3371 = vand.u32 %v2181, 4294901760
    %v3372 = vsub.f32 %v2181, %v3371
    %v3373 = vand.u32 %v3372, 4294901760
    %v3374 = vsub.f32 %v3372, %v3373
    %v3375 = vand.u32 %v3374, 4294901760
    %3376 = vmatpush1.msra.mxu0 %v3375
    %3377 = vmatprep.subr.mxu0 0.0
    %v3378 = vand.u32 %v2182, 4294901760
    %v3379 = vsub.f32 %v2182, %v3378
    %v3380 = vand.u32 %v3379, 4294901760
    %v3381 = vsub.f32 %v3379, %v3380
    %v3382 = vand.u32 %v3381, 4294901760
    %3383 = vmatpush1.msra.mxu0 %v3382
    %3384 = vmatprep.subr.mxu0 0.0
    %v3385 = vand.u32 %v2183, 4294901760
    %v3386 = vsub.f32 %v2183, %v3385
    %v3387 = vand.u32 %v3386, 4294901760
    %v3388 = vsub.f32 %v3386, %v3387
    %v3389 = vand.u32 %v3388, 4294901760
    %3390 = vmatpush1.msra.mxu0 %v3389
    %3391 = vmatprep.subr.mxu0 0.0
    %v3392 = vand.u32 %v2184, 4294901760
    %v3393 = vsub.f32 %v2184, %v3392
    %v3394 = vand.u32 %v3393, 4294901760
    %v3395 = vsub.f32 %v3393, %v3394
    %v3396 = vand.u32 %v3395, 4294901760
    %3397 = vmatpush1.msra.mxu0 %v3396
    %3398 = vmatprep.subr.mxu0 0.0
    %v3399 = vand.u32 %v2185, 4294901760
    %v3400 = vsub.f32 %v2185, %v3399
    %v3401 = vand.u32 %v3400, 4294901760
    %v3402 = vsub.f32 %v3400, %v3401
    %v3403 = vand.u32 %v3402, 4294901760
    %3404 = vmatpush1.msra.mxu0 %v3403
    %3405 = vmatprep.subr.mxu0 0.0
    %v3406 = vand.u32 %v2186, 4294901760
    %v3407 = vsub.f32 %v2186, %v3406
    %v3408 = vand.u32 %v3407, 4294901760
    %v3409 = vsub.f32 %v3407, %v3408
    %v3410 = vand.u32 %v3409, 4294901760
    %3411 = vmatpush1.msra.mxu0 %v3410
    %3412 = vmatprep.subr.mxu0 0.0
    %v3413 = vand.u32 %v2187, 4294901760
    %v3414 = vsub.f32 %v2187, %v3413
    %v3415 = vand.u32 %v3414, 4294901760
    %v3416 = vsub.f32 %v3414, %v3415
    %v3417 = vand.u32 %v3416, 4294901760
    %3418 = vmatpush1.msra.mxu0 %v3417
    %3419 = vmatprep.subr.mxu0 0.0
    %v3420 = vand.u32 %v2188, 4294901760
    %v3421 = vsub.f32 %v2188, %v3420
    %v3422 = vand.u32 %v3421, 4294901760
    %v3423 = vsub.f32 %v3421, %v3422
    %v3424 = vand.u32 %v3423, 4294901760
    %3425 = vmatpush1.msra.mxu0 %v3424
    %3426 = vmatprep.subr.mxu0 0.0
    %v3427 = vand.u32 %v2189, 4294901760
    %v3428 = vsub.f32 %v2189, %v3427
    %v3429 = vand.u32 %v3428, 4294901760
    %v3430 = vsub.f32 %v3428, %v3429
    %v3431 = vand.u32 %v3430, 4294901760
    %3432 = vmatpush1.msra.mxu0 %v3431
    %3433 = vmatprep.subr.mxu0 0.0
    %v3434 = vand.u32 %v2190, 4294901760
    %v3435 = vsub.f32 %v2190, %v3434
    %v3436 = vand.u32 %v3435, 4294901760
    %v3437 = vsub.f32 %v3435, %v3436
    %v3438 = vand.u32 %v3437, 4294901760
    %3439 = vmatpush1.msra.mxu0 %v3438
    %3440 = vmatprep.subr.mxu0 0.0
    %v3441 = vand.u32 %v2191, 4294901760
    %v3442 = vsub.f32 %v2191, %v3441
    %v3443 = vand.u32 %v3442, 4294901760
    %v3444 = vsub.f32 %v3442, %v3443
    %v3445 = vand.u32 %v3444, 4294901760
    %3446 = vmatpush1.msra.mxu0 %v3445
    %3447 = vmatprep.subr.mxu0 0.0
    %v3448 = vand.u32 %v2192, 4294901760
    %v3449 = vsub.f32 %v2192, %v3448
    %v3450 = vand.u32 %v3449, 4294901760
    %v3451 = vsub.f32 %v3449, %v3450
    %v3452 = vand.u32 %v3451, 4294901760
    %3453 = vmatpush1.msra.mxu0 %v3452
    %3454 = vmatprep.subr.mxu0 0.0
    %v3455 = vand.u32 %v2193, 4294901760
    %v3456 = vsub.f32 %v2193, %v3455
    %v3457 = vand.u32 %v3456, 4294901760
    %v3458 = vsub.f32 %v3456, %v3457
    %v3459 = vand.u32 %v3458, 4294901760
    %3460 = vmatpush1.msra.mxu0 %v3459
    %3461 = vmatprep.subr.mxu0 0.0
    %3462 = vmatpush1.msra.mxu0 0.0
    %3463 = vmatprep.subr.mxu0 0.0
    %3464 = vmatpush1.msra.mxu0 0.0
    %3465 = vmatprep.subr.mxu0 0.0
    %3466 = vmatpush1.msra.mxu0 0.0
    %3467 = vmatprep.subr.mxu0 0.0
    %3468 = vmatpush1.msra.mxu0 0.0
    %3469 = vmatprep.subr.mxu0 0.0
    %3470 = vmatpush1.msra.mxu0 0.0
    %3471 = vmatprep.subr.mxu0 0.0
    %3472 = vmatpush1.msra.mxu0 0.0
    %3473 = vmatprep.subr.mxu0 0.0
    %3474 = vmatpush1.msra.mxu0 0.0
    %3475 = vmatprep.subr.mxu0 0.0
    %3476 = vmatpush1.msra.mxu0 0.0
    %3477 = vmatprep.subr.mxu0 0.0
    %3478 = vmatpush1.msra.mxu0 0.0
    %3479 = vmatprep.subr.mxu0 0.0
    %3480 = vmatpush1.msra.mxu0 0.0
    %3481 = vmatprep.subr.mxu0 0.0
    %3482 = vmatpush1.msra.mxu0 0.0
    %3483 = vmatprep.subr.mxu0 0.0
    %3484 = vmatpush1.msra.mxu0 0.0
    %3485 = vmatprep.subr.mxu0 0.0
    %3486 = vmatpush1.msra.mxu0 0.0
    %3487 = vmatprep.subr.mxu0 0.0
    %3488 = vmatpush1.msra.mxu0 0.0
    %v3489 = vand.u32 %v3167, 4294901760
    %3490 = vmatprep.mubr.f32.mxu0 %v3489
    %v3491 = vand.u32 %v2164, 4294901760
    %3492 = vmatmul.mubr.f32.gmra.mrb[0].mxu0 %v3491
    %v3493 = vpop.f32.mrb[0].mxu0
    %v3494 = vadd.f32 %v3272, %v3493
    %v3495 = vpop.f32.mrb[0].mxu0
    %v3496 = vand.u32 %v3169, 4294901760
    %3497 = vmatprep.mubr.f32.mxu0 %v3496
    %v3498 = vand.u32 %v2166, 4294901760
    %3499 = vmatmul.mubr.f32.gmra.mrb[0].mxu0 %v3498
    %v3500 = vpop.f32.mrb[0].mxu0
    %v3501 = vadd.f32 %v3287, %v3500
    %v3502 = vpop.f32.mrb[0].mxu0
    %v3503 = vand.u32 %v3171, 4294901760
    %3504 = vmatprep.mubr.f32.mxu0 %v3503
    %v3505 = vand.u32 %v2168, 4294901760
    %3506 = vmatmul.mubr.f32.gmra.mrb[0].mxu0 %v3505
    %v3507 = vpop.f32.mrb[0].mxu0
    %v3508 = vadd.f32 %v3302, %v3507
    %v3509 = vpop.f32.mrb[0].mxu0
    %v3510 = vand.u32 %v3173, 4294901760
    %3511 = vmatprep.mubr.f32.mxu0 %v3510
    %v3512 = vand.u32 %v2170, 4294901760
    %3513 = vmatmul.mubr.f32.gmra.mrb[0].mxu0 %v3512
    %v3514 = vpop.f32.mrb[0].mxu0
    %v3515 = vadd.f32 %v3317, %v3514
    %v3516 = vpop.f32.mrb[0].mxu0
    %v3517 = vand.u32 %v3175, 4294901760
    %3518 = vmatprep.mubr.f32.mxu0 %v3517
    %v3519 = vand.u32 %v2172, 4294901760
    %3520 = vmatmul.mubr.f32.gmra.mrb[0].mxu0 %v3519
    %v3521 = vpop.f32.mrb[0].mxu0
    %v3522 = vadd.f32 %v3332, %v3521
    %v3523 = vpop.f32.mrb[0].mxu0
    %3524 = vdwg.mxu0
    %3525 = vmatprep.subr.mxu0 0.0
    %v3526 = vand.u32 %v2176, 4294901760
    %v3527 = vsub.f32 %v2176, %v3526
    %3528 = vmatpush1.msra.mxu0 %v3527
    %3529 = vmatprep.subr.mxu0 0.0
    %v3530 = vand.u32 %v2177, 4294901760
    %v3531 = vsub.f32 %v2177, %v3530
    %3532 = vmatpush1.msra.mxu0 %v3531
    %3533 = vmatprep.subr.mxu0 0.0
    %v3534 = vand.u32 %v2178, 4294901760
    %v3535 = vsub.f32 %v2178, %v3534
    %3536 = vmatpush1.msra.mxu0 %v3535
    %3537 = vmatprep.subr.mxu0 0.0
    %v3538 = vand.u32 %v2179, 4294901760
    %v3539 = vsub.f32 %v2179, %v3538
    %3540 = vmatpush1.msra.mxu0 %v3539
    %3541 = vmatprep.subr.mxu0 0.0
    %v3542 = vand.u32 %v2180, 4294901760
    %v3543 = vsub.f32 %v2180, %v3542
    %3544 = vmatpush1.msra.mxu0 %v3543
    %3545 = vmatprep.subr.mxu0 0.0
    %v3546 = vand.u32 %v2181, 4294901760
    %v3547 = vsub.f32 %v2181, %v3546
    %3548 = vmatpush1.msra.mxu0 %v3547
    %3549 = vmatprep.subr.mxu0 0.0
    %v3550 = vand.u32 %v2182, 4294901760
    %v3551 = vsub.f32 %v2182, %v3550
    %3552 = vmatpush1.msra.mxu0 %v3551
    %3553 = vmatprep.subr.mxu0 0.0
    %v3554 = vand.u32 %v2183, 4294901760
    %v3555 = vsub.f32 %v2183, %v3554
    %3556 = vmatpush1.msra.mxu0 %v3555
    %3557 = vmatprep.subr.mxu0 0.0
    %v3558 = vand.u32 %v2184, 4294901760
    %v3559 = vsub.f32 %v2184, %v3558
    %3560 = vmatpush1.msra.mxu0 %v3559
    %3561 = vmatprep.subr.mxu0 0.0
    %v3562 = vand.u32 %v2185, 4294901760
    %v3563 = vsub.f32 %v2185, %v3562
    %3564 = vmatpush1.msra.mxu0 %v3563
    %3565 = vmatprep.subr.mxu0 0.0
    %v3566 = vand.u32 %v2186, 4294901760
    %v3567 = vsub.f32 %v2186, %v3566
    %3568 = vmatpush1.msra.mxu0 %v3567
    %3569 = vmatprep.subr.mxu0 0.0
    %v3570 = vand.u32 %v2187, 4294901760
    %v3571 = vsub.f32 %v2187, %v3570
    %3572 = vmatpush1.msra.mxu0 %v3571
    %3573 = vmatprep.subr.mxu0 0.0
    %v3574 = vand.u32 %v2188, 4294901760
    %v3575 = vsub.f32 %v2188, %v3574
    %3576 = vmatpush1.msra.mxu0 %v3575
    %3577 = vmatprep.subr.mxu0 0.0
    %v3578 = vand.u32 %v2189, 4294901760
    %v3579 = vsub.f32 %v2189, %v3578
    %3580 = vmatpush1.msra.mxu0 %v3579
    %3581 = vmatprep.subr.mxu0 0.0
    %v3582 = vand.u32 %v2190, 4294901760
    %v3583 = vsub.f32 %v2190, %v3582
    %3584 = vmatpush1.msra.mxu0 %v3583
    %3585 = vmatprep.subr.mxu0 0.0
    %v3586 = vand.u32 %v2191, 4294901760
    %v3587 = vsub.f32 %v2191, %v3586
    %3588 = vmatpush1.msra.mxu0 %v3587
    %3589 = vmatprep.subr.mxu0 0.0
    %v3590 = vand.u32 %v2192, 4294901760
    %v3591 = vsub.f32 %v2192, %v3590
    %3592 = vmatpush1.msra.mxu0 %v3591
    %3593 = vmatprep.subr.mxu0 0.0
    %v3594 = vand.u32 %v2193, 4294901760
    %v3595 = vsub.f32 %v2193, %v3594
    %3596 = vmatpush1.msra.mxu0 %v3595
    %3597 = vmatprep.subr.mxu0 0.0
    %3598 = vmatpush1.msra.mxu0 0.0
    %3599 = vmatprep.subr.mxu0 0.0
    %3600 = vmatpush1.msra.mxu0 0.0
    %3601 = vmatprep.subr.mxu0 0.0
    %3602 = vmatpush1.msra.mxu0 0.0
    %3603 = vmatprep.subr.mxu0 0.0
    %3604 = vmatpush1.msra.mxu0 0.0
    %3605 = vmatprep.subr.mxu0 0.0
    %3606 = vmatpush1.msra.mxu0 0.0
    %3607 = vmatprep.subr.mxu0 0.0
    %3608 = vmatpush1.msra.mxu0 0.0
    %3609 = vmatprep.subr.mxu0 0.0
    %3610 = vmatpush1.msra.mxu0 0.0
    %3611 = vmatprep.subr.mxu0 0.0
    %3612 = vmatpush1.msra.mxu0 0.0
    %3613 = vmatprep.subr.mxu0 0.0
    %3614 = vmatpush1.msra.mxu0 0.0
    %3615 = vmatprep.subr.mxu0 0.0
    %3616 = vmatpush1.msra.mxu0 0.0
    %3617 = vmatprep.subr.mxu0 0.0
    %3618 = vmatpush1.msra.mxu0 0.0
    %3619 = vmatprep.subr.mxu0 0.0
    %3620 = vmatpush1.msra.mxu0 0.0
    %3621 = vmatprep.subr.mxu0 0.0
    %3622 = vmatpush1.msra.mxu0 0.0
    %3623 = vmatprep.subr.mxu0 0.0
    %3624 = vmatpush1.msra.mxu0 0.0
    %v3625 = vand.u32 %v3167, 4294901760
    %v3626 = vsub.f32 %v3167, %v3625
    %3627 = vmatprep.mubr.f32.mxu0 %v3626
    %v3628 = vand.u32 %v2164, 4294901760
    %v3629 = vsub.f32 %v2164, %v3628
    %3630 = vmatmul.mubr.f32.gmra.mrb[0].mxu0 %v3629
    %v3631 = vpop.f32.mrb[0].mxu0
    %v3632 = vadd.f32 %v3494, %v3631
    %v3633 = vpop.f32.mrb[0].mxu0
    %v3634 = vand.u32 %v3169, 4294901760
    %v3635 = vsub.f32 %v3169, %v3634
    %3636 = vmatprep.mubr.f32.mxu0 %v3635
    %v3637 = vand.u32 %v2166, 4294901760
    %v3638 = vsub.f32 %v2166, %v3637
    %3639 = vmatmul.mubr.f32.gmra.mrb[0].mxu0 %v3638
    %v3640 = vpop.f32.mrb[0].mxu0
    %v3641 = vadd.f32 %v3501, %v3640
    %v3642 = vpop.f32.mrb[0].mxu0
    %v3643 = vand.u32 %v3171, 4294901760
    %v3644 = vsub.f32 %v3171, %v3643
    %3645 = vmatprep.mubr.f32.mxu0 %v3644
    %v3646 = vand.u32 %v2168, 4294901760
    %v3647 = vsub.f32 %v2168, %v3646
    %3648 = vmatmul.mubr.f32.gmra.mrb[0].mxu0 %v3647
    %v3649 = vpop.f32.mrb[0].mxu0
    %v3650 = vadd.f32 %v3508, %v3649
    %v3651 = vpop.f32.mrb[0].mxu0
    %v3652 = vand.u32 %v3173, 4294901760
    %v3653 = vsub.f32 %v3173, %v3652
    %3654 = vmatprep.mubr.f32.mxu0 %v3653
    %v3655 = vand.u32 %v2170, 4294901760
    %v3656 = vsub.f32 %v2170, %v3655
    %3657 = vmatmul.mubr.f32.gmra.mrb[0].mxu0 %v3656
    %v3658 = vpop.f32.mrb[0].mxu0
    %v3659 = vadd.f32 %v3515, %v3658
    %v3660 = vpop.f32.mrb[0].mxu0
    %v3661 = vand.u32 %v3175, 4294901760
    %v3662 = vsub.f32 %v3175, %v3661
    %3663 = vmatprep.mubr.f32.mxu0 %v3662
    %v3664 = vand.u32 %v2172, 4294901760
    %v3665 = vsub.f32 %v2172, %v3664
    %3666 = vmatmul.mubr.f32.gmra.mrb[0].mxu0 %v3665
    %v3667 = vpop.f32.mrb[0].mxu0
    %v3668 = vadd.f32 %v3522, %v3667
    %v3669 = vpop.f32.mrb[0].mxu0
    %3670 = vdwg.mxu0
    %3671 = vmatprep.subr.mxu0 0.0
    %v3672 = vand.u32 %v2176, 4294901760
    %3673 = vmatpush1.msra.mxu0 %v3672
    %3674 = vmatprep.subr.mxu0 0.0
    %v3675 = vand.u32 %v2177, 4294901760
    %3676 = vmatpush1.msra.mxu0 %v3675
    %3677 = vmatprep.subr.mxu0 0.0
    %v3678 = vand.u32 %v2178, 4294901760
    %3679 = vmatpush1.msra.mxu0 %v3678
    %3680 = vmatprep.subr.mxu0 0.0
    %v3681 = vand.u32 %v2179, 4294901760
    %3682 = vmatpush1.msra.mxu0 %v3681
    %3683 = vmatprep.subr.mxu0 0.0
    %v3684 = vand.u32 %v2180, 4294901760
    %3685 = vmatpush1.msra.mxu0 %v3684
    %3686 = vmatprep.subr.mxu0 0.0
    %v3687 = vand.u32 %v2181, 4294901760
    %3688 = vmatpush1.msra.mxu0 %v3687
    %3689 = vmatprep.subr.mxu0 0.0
    %v3690 = vand.u32 %v2182, 4294901760
    %3691 = vmatpush1.msra.mxu0 %v3690
    %3692 = vmatprep.subr.mxu0 0.0
    %v3693 = vand.u32 %v2183, 4294901760
    %3694 = vmatpush1.msra.mxu0 %v3693
    %3695 = vmatprep.subr.mxu0 0.0
    %v3696 = vand.u32 %v2184, 4294901760
    %3697 = vmatpush1.msra.mxu0 %v3696
    %3698 = vmatprep.subr.mxu0 0.0
    %v3699 = vand.u32 %v2185, 4294901760
    %3700 = vmatpush1.msra.mxu0 %v3699
    %3701 = vmatprep.subr.mxu0 0.0
    %v3702 = vand.u32 %v2186, 4294901760
    %3703 = vmatpush1.msra.mxu0 %v3702
    %3704 = vmatprep.subr.mxu0 0.0
    %v3705 = vand.u32 %v2187, 4294901760
    %3706 = vmatpush1.msra.mxu0 %v3705
    %3707 = vmatprep.subr.mxu0 0.0
    %v3708 = vand.u32 %v2188, 4294901760
    %3709 = vmatpush1.msra.mxu0 %v3708
    %3710 = vmatprep.subr.mxu0 0.0
    %v3711 = vand.u32 %v2189, 4294901760
    %3712 = vmatpush1.msra.mxu0 %v3711
    %3713 = vmatprep.subr.mxu0 0.0
    %v3714 = vand.u32 %v2190, 4294901760
    %3715 = vmatpush1.msra.mxu0 %v3714
    %3716 = vmatprep.subr.mxu0 0.0
    %v3717 = vand.u32 %v2191, 4294901760
    %3718 = vmatpush1.msra.mxu0 %v3717
    %3719 = vmatprep.subr.mxu0 0.0
    %v3720 = vand.u32 %v2192, 4294901760
    %3721 = vmatpush1.msra.mxu0 %v3720
    %3722 = vmatprep.subr.mxu0 0.0
    %v3723 = vand.u32 %v2193, 4294901760
    %3724 = vmatpush1.msra.mxu0 %v3723
    %3725 = vmatprep.subr.mxu0 0.0
    %3726 = vmatpush1.msra.mxu0 0.0
    %3727 = vmatprep.subr.mxu0 0.0
    %3728 = vmatpush1.msra.mxu0 0.0
    %3729 = vmatprep.subr.mxu0 0.0
    %3730 = vmatpush1.msra.mxu0 0.0
    %3731 = vmatprep.subr.mxu0 0.0
    %3732 = vmatpush1.msra.mxu0 0.0
    %3733 = vmatprep.subr.mxu0 0.0
    %3734 = vmatpush1.msra.mxu0 0.0
    %3735 = vmatprep.subr.mxu0 0.0
    %3736 = vmatpush1.msra.mxu0 0.0
    %3737 = vmatprep.subr.mxu0 0.0
    %3738 = vmatpush1.msra.mxu0 0.0
    %3739 = vmatprep.subr.mxu0 0.0
    %3740 = vmatpush1.msra.mxu0 0.0
    %3741 = vmatprep.subr.mxu0 0.0
    %3742 = vmatpush1.msra.mxu0 0.0
    %3743 = vmatprep.subr.mxu0 0.0
    %3744 = vmatpush1.msra.mxu0 0.0
    %3745 = vmatprep.subr.mxu0 0.0
    %3746 = vmatpush1.msra.mxu0 0.0
    %3747 = vmatprep.subr.mxu0 0.0
    %3748 = vmatpush1.msra.mxu0 0.0
    %3749 = vmatprep.subr.mxu0 0.0
    %3750 = vmatpush1.msra.mxu0 0.0
    %3751 = vmatprep.subr.mxu0 0.0
    %3752 = vmatpush1.msra.mxu0 0.0
    %v3753 = vand.u32 %v3167, 4294901760
    %v3754 = vsub.f32 %v3167, %v3753
    %v3755 = vand.u32 %v3754, 4294901760
    %3756 = vmatprep.mubr.f32.mxu0 %v3755
    %v3757 = vand.u32 %v2164, 4294901760
    %v3758 = vsub.f32 %v2164, %v3757
    %v3759 = vand.u32 %v3758, 4294901760
    %3760 = vmatmul.mubr.f32.gmra.mrb[0].mxu0 %v3759
    %v3761 = vpop.f32.mrb[0].mxu0
    %v3762 = vadd.f32 %v3632, %v3761
    %v3763 = vpop.f32.mrb[0].mxu0
    %v3764 = vand.u32 %v3169, 4294901760
    %v3765 = vsub.f32 %v3169, %v3764
    %v3766 = vand.u32 %v3765, 4294901760
    %3767 = vmatprep.mubr.f32.mxu0 %v3766
    %v3768 = vand.u32 %v2166, 4294901760
    %v3769 = vsub.f32 %v2166, %v3768
    %v3770 = vand.u32 %v3769, 4294901760
    %3771 = vmatmul.mubr.f32.gmra.mrb[0].mxu0 %v3770
    %v3772 = vpop.f32.mrb[0].mxu0
    %v3773 = vadd.f32 %v3641, %v3772
    %v3774 = vpop.f32.mrb[0].mxu0
    %v3775 = vand.u32 %v3171, 4294901760
    %v3776 = vsub.f32 %v3171, %v3775
    %v3777 = vand.u32 %v3776, 4294901760
    %3778 = vmatprep.mubr.f32.mxu0 %v3777
    %v3779 = vand.u32 %v2168, 4294901760
    %v3780 = vsub.f32 %v2168, %v3779
    %v3781 = vand.u32 %v3780, 4294901760
    %3782 = vmatmul.mubr.f32.gmra.mrb[0].mxu0 %v3781
    %v3783 = vpop.f32.mrb[0].mxu0
    %v3784 = vadd.f32 %v3650, %v3783
    %v3785 = vpop.f32.mrb[0].mxu0
    %v3786 = vand.u32 %v3173, 4294901760
    %v3787 = vsub.f32 %v3173, %v3786
    %v3788 = vand.u32 %v3787, 4294901760
    %3789 = vmatprep.mubr.f32.mxu0 %v3788
    %v3790 = vand.u32 %v2170, 4294901760
    %v3791 = vsub.f32 %v2170, %v3790
    %v3792 = vand.u32 %v3791, 4294901760
    %3793 = vmatmul.mubr.f32.gmra.mrb[0].mxu0 %v3792
    %v3794 = vpop.f32.mrb[0].mxu0
    %v3795 = vadd.f32 %v3659, %v3794
    %v3796 = vpop.f32.mrb[0].mxu0
    %v3797 = vand.u32 %v3175, 4294901760
    %v3798 = vsub.f32 %v3175, %v3797
    %v3799 = vand.u32 %v3798, 4294901760
    %3800 = vmatprep.mubr.f32.mxu0 %v3799
    %v3801 = vand.u32 %v2172, 4294901760
    %v3802 = vsub.f32 %v2172, %v3801
    %v3803 = vand.u32 %v3802, 4294901760
    %3804 = vmatmul.mubr.f32.gmra.mrb[0].mxu0 %v3803
    %v3805 = vpop.f32.mrb[0].mxu0
    %v3806 = vadd.f32 %v3668, %v3805
    %v3807 = vpop.f32.mrb[0].mxu0
    %3808 = vdwg.mxu0
    %3809 = vmatprep.subr.mxu0 0.0
    %v3810 = vand.u32 %v2176, 4294901760
    %v3811 = vsub.f32 %v2176, %v3810
    %v3812 = vand.u32 %v3811, 4294901760
    %3813 = vmatpush1.msra.mxu0 %v3812
    %3814 = vmatprep.subr.mxu0 0.0
    %v3815 = vand.u32 %v2177, 4294901760
    %v3816 = vsub.f32 %v2177, %v3815
    %v3817 = vand.u32 %v3816, 4294901760
    %3818 = vmatpush1.msra.mxu0 %v3817
    %3819 = vmatprep.subr.mxu0 0.0
    %v3820 = vand.u32 %v2178, 4294901760
    %v3821 = vsub.f32 %v2178, %v3820
    %v3822 = vand.u32 %v3821, 4294901760
    %3823 = vmatpush1.msra.mxu0 %v3822
    %3824 = vmatprep.subr.mxu0 0.0
    %v3825 = vand.u32 %v2179, 4294901760
    %v3826 = vsub.f32 %v2179, %v3825
    %v3827 = vand.u32 %v3826, 4294901760
    %3828 = vmatpush1.msra.mxu0 %v3827
    %3829 = vmatprep.subr.mxu0 0.0
    %v3830 = vand.u32 %v2180, 4294901760
    %v3831 = vsub.f32 %v2180, %v3830
    %v3832 = vand.u32 %v3831, 4294901760
    %3833 = vmatpush1.msra.mxu0 %v3832
    %3834 = vmatprep.subr.mxu0 0.0
    %v3835 = vand.u32 %v2181, 4294901760
    %v3836 = vsub.f32 %v2181, %v3835
    %v3837 = vand.u32 %v3836, 4294901760
    %3838 = vmatpush1.msra.mxu0 %v3837
    %3839 = vmatprep.subr.mxu0 0.0
    %v3840 = vand.u32 %v2182, 4294901760
    %v3841 = vsub.f32 %v2182, %v3840
    %v3842 = vand.u32 %v3841, 4294901760
    %3843 = vmatpush1.msra.mxu0 %v3842
    %3844 = vmatprep.subr.mxu0 0.0
    %v3845 = vand.u32 %v2183, 4294901760
    %v3846 = vsub.f32 %v2183, %v3845
    %v3847 = vand.u32 %v3846, 4294901760
    %3848 = vmatpush1.msra.mxu0 %v3847
    %3849 = vmatprep.subr.mxu0 0.0
    %v3850 = vand.u32 %v2184, 4294901760
    %v3851 = vsub.f32 %v2184, %v3850
    %v3852 = vand.u32 %v3851, 4294901760
    %3853 = vmatpush1.msra.mxu0 %v3852
    %3854 = vmatprep.subr.mxu0 0.0
    %v3855 = vand.u32 %v2185, 4294901760
    %v3856 = vsub.f32 %v2185, %v3855
    %v3857 = vand.u32 %v3856, 4294901760
    %3858 = vmatpush1.msra.mxu0 %v3857
    %3859 = vmatprep.subr.mxu0 0.0
    %v3860 = vand.u32 %v2186, 4294901760
    %v3861 = vsub.f32 %v2186, %v3860
    %v3862 = vand.u32 %v3861, 4294901760
    %3863 = vmatpush1.msra.mxu0 %v3862
    %3864 = vmatprep.subr.mxu0 0.0
    %v3865 = vand.u32 %v2187, 4294901760
    %v3866 = vsub.f32 %v2187, %v3865
    %v3867 = vand.u32 %v3866, 4294901760
    %3868 = vmatpush1.msra.mxu0 %v3867
    %3869 = vmatprep.subr.mxu0 0.0
    %v3870 = vand.u32 %v2188, 4294901760
    %v3871 = vsub.f32 %v2188, %v3870
    %v3872 = vand.u32 %v3871, 4294901760
    %3873 = vmatpush1.msra.mxu0 %v3872
    %3874 = vmatprep.subr.mxu0 0.0
    %v3875 = vand.u32 %v2189, 4294901760
    %v3876 = vsub.f32 %v2189, %v3875
    %v3877 = vand.u32 %v3876, 4294901760
    %3878 = vmatpush1.msra.mxu0 %v3877
    %3879 = vmatprep.subr.mxu0 0.0
    %v3880 = vand.u32 %v2190, 4294901760
    %v3881 = vsub.f32 %v2190, %v3880
    %v3882 = vand.u32 %v3881, 4294901760
    %3883 = vmatpush1.msra.mxu0 %v3882
    %3884 = vmatprep.subr.mxu0 0.0
    %v3885 = vand.u32 %v2191, 4294901760
    %v3886 = vsub.f32 %v2191, %v3885
    %v3887 = vand.u32 %v3886, 4294901760
    %3888 = vmatpush1.msra.mxu0 %v3887
    %3889 = vmatprep.subr.mxu0 0.0
    %v3890 = vand.u32 %v2192, 4294901760
    %v3891 = vsub.f32 %v2192, %v3890
    %v3892 = vand.u32 %v3891, 4294901760
    %3893 = vmatpush1.msra.mxu0 %v3892
    %3894 = vmatprep.subr.mxu0 0.0
    %v3895 = vand.u32 %v2193, 4294901760
    %v3896 = vsub.f32 %v2193, %v3895
    %v3897 = vand.u32 %v3896, 4294901760
    %3898 = vmatpush1.msra.mxu0 %v3897
    %3899 = vmatprep.subr.mxu0 0.0
    %3900 = vmatpush1.msra.mxu0 0.0
    %3901 = vmatprep.subr.mxu0 0.0
    %3902 = vmatpush1.msra.mxu0 0.0
    %3903 = vmatprep.subr.mxu0 0.0
    %3904 = vmatpush1.msra.mxu0 0.0
    %3905 = vmatprep.subr.mxu0 0.0
    %3906 = vmatpush1.msra.mxu0 0.0
    %3907 = vmatprep.subr.mxu0 0.0
    %3908 = vmatpush1.msra.mxu0 0.0
    %3909 = vmatprep.subr.mxu0 0.0
    %3910 = vmatpush1.msra.mxu0 0.0
    %3911 = vmatprep.subr.mxu0 0.0
    %3912 = vmatpush1.msra.mxu0 0.0
    %3913 = vmatprep.subr.mxu0 0.0
    %3914 = vmatpush1.msra.mxu0 0.0
    %3915 = vmatprep.subr.mxu0 0.0
    %3916 = vmatpush1.msra.mxu0 0.0
    %3917 = vmatprep.subr.mxu0 0.0
    %3918 = vmatpush1.msra.mxu0 0.0
    %3919 = vmatprep.subr.mxu0 0.0
    %3920 = vmatpush1.msra.mxu0 0.0
    %3921 = vmatprep.subr.mxu0 0.0
    %3922 = vmatpush1.msra.mxu0 0.0
    %3923 = vmatprep.subr.mxu0 0.0
    %3924 = vmatpush1.msra.mxu0 0.0
    %3925 = vmatprep.subr.mxu0 0.0
    %3926 = vmatpush1.msra.mxu0 0.0
    %v3927 = vand.u32 %v3167, 4294901760
    %3928 = vmatprep.mubr.f32.mxu0 %v3927
    %v3929 = vand.u32 %v2164, 4294901760
    %3930 = vmatmul.mubr.f32.gmra.mrb[0].mxu0 %v3929
    %v3931 = vpop.f32.mrb[0].mxu0
    %v3932 = vadd.f32 %v3762, %v3931
    %v3933 = vpop.f32.mrb[0].mxu0
    %v3934 = vand.u32 %v3169, 4294901760
    %3935 = vmatprep.mubr.f32.mxu0 %v3934
    %v3936 = vand.u32 %v2166, 4294901760
    %3937 = vmatmul.mubr.f32.gmra.mrb[0].mxu0 %v3936
    %v3938 = vpop.f32.mrb[0].mxu0
    %v3939 = vadd.f32 %v3773, %v3938
    %v3940 = vpop.f32.mrb[0].mxu0
    %v3941 = vand.u32 %v3171, 4294901760
    %3942 = vmatprep.mubr.f32.mxu0 %v3941
    %v3943 = vand.u32 %v2168, 4294901760
    %3944 = vmatmul.mubr.f32.gmra.mrb[0].mxu0 %v3943
    %v3945 = vpop.f32.mrb[0].mxu0
    %v3946 = vadd.f32 %v3784, %v3945
    %v3947 = vpop.f32.mrb[0].mxu0
    %v3948 = vand.u32 %v3173, 4294901760
    %3949 = vmatprep.mubr.f32.mxu0 %v3948
    %v3950 = vand.u32 %v2170, 4294901760
    %3951 = vmatmul.mubr.f32.gmra.mrb[0].mxu0 %v3950
    %v3952 = vpop.f32.mrb[0].mxu0
    %v3953 = vadd.f32 %v3795, %v3952
    %v3954 = vpop.f32.mrb[0].mxu0
    %v3955 = vand.u32 %v3175, 4294901760
    %3956 = vmatprep.mubr.f32.mxu0 %v3955
    %v3957 = vand.u32 %v2172, 4294901760
    %3958 = vmatmul.mubr.f32.gmra.mrb[0].mxu0 %v3957
    %v3959 = vpop.f32.mrb[0].mxu0
    %v3960 = vadd.f32 %v3806, %v3959
    %v3961 = vpop.f32.mrb[0].mxu0
    %3962 = vdwg.mxu0
    %3963 = vmatprep.subr.mxu0 0.0
    %v3964 = vand.u32 %v2176, 4294901760
    %3965 = vmatpush1.msra.mxu0 %v3964
    %3966 = vmatprep.subr.mxu0 0.0
    %v3967 = vand.u32 %v2177, 4294901760
    %3968 = vmatpush1.msra.mxu0 %v3967
    %3969 = vmatprep.subr.mxu0 0.0
    %v3970 = vand.u32 %v2178, 4294901760
    %3971 = vmatpush1.msra.mxu0 %v3970
    %3972 = vmatprep.subr.mxu0 0.0
    %v3973 = vand.u32 %v2179, 4294901760
    %3974 = vmatpush1.msra.mxu0 %v3973
    %3975 = vmatprep.subr.mxu0 0.0
    %v3976 = vand.u32 %v2180, 4294901760
    %3977 = vmatpush1.msra.mxu0 %v3976
    %3978 = vmatprep.subr.mxu0 0.0
    %v3979 = vand.u32 %v2181, 4294901760
    %3980 = vmatpush1.msra.mxu0 %v3979
    %3981 = vmatprep.subr.mxu0 0.0
    %v3982 = vand.u32 %v2182, 4294901760
    %3983 = vmatpush1.msra.mxu0 %v3982
    %3984 = vmatprep.subr.mxu0 0.0
    %v3985 = vand.u32 %v2183, 4294901760
    %3986 = vmatpush1.msra.mxu0 %v3985
    %3987 = vmatprep.subr.mxu0 0.0
    %v3988 = vand.u32 %v2184, 4294901760
    %3989 = vmatpush1.msra.mxu0 %v3988
    %3990 = vmatprep.subr.mxu0 0.0
    %v3991 = vand.u32 %v2185, 4294901760
    %3992 = vmatpush1.msra.mxu0 %v3991
    %3993 = vmatprep.subr.mxu0 0.0
    %v3994 = vand.u32 %v2186, 4294901760
    %3995 = vmatpush1.msra.mxu0 %v3994
    %3996 = vmatprep.subr.mxu0 0.0
    %v3997 = vand.u32 %v2187, 4294901760
    %3998 = vmatpush1.msra.mxu0 %v3997
    %3999 = vmatprep.subr.mxu0 0.0
    %v4000 = vand.u32 %v2188, 4294901760
    %4001 = vmatpush1.msra.mxu0 %v4000
    %4002 = vmatprep.subr.mxu0 0.0
    %v4003 = vand.u32 %v2189, 4294901760
    %4004 = vmatpush1.msra.mxu0 %v4003
    %4005 = vmatprep.subr.mxu0 0.0
    %v4006 = vand.u32 %v2190, 4294901760
    %4007 = vmatpush1.msra.mxu0 %v4006
    %4008 = vmatprep.subr.mxu0 0.0
    %v4009 = vand.u32 %v2191, 4294901760
    %4010 = vmatpush1.msra.mxu0 %v4009
    %4011 = vmatprep.subr.mxu0 0.0
    %v4012 = vand.u32 %v2192, 4294901760
    %4013 = vmatpush1.msra.mxu0 %v4012
    %4014 = vmatprep.subr.mxu0 0.0
    %v4015 = vand.u32 %v2193, 4294901760
    %4016 = vmatpush1.msra.mxu0 %v4015
    %4017 = vmatprep.subr.mxu0 0.0
    %4018 = vmatpush1.msra.mxu0 0.0
    %4019 = vmatprep.subr.mxu0 0.0
    %4020 = vmatpush1.msra.mxu0 0.0
    %4021 = vmatprep.subr.mxu0 0.0
    %4022 = vmatpush1.msra.mxu0 0.0
    %4023 = vmatprep.subr.mxu0 0.0
    %4024 = vmatpush1.msra.mxu0 0.0
    %4025 = vmatprep.subr.mxu0 0.0
    %4026 = vmatpush1.msra.mxu0 0.0
    %4027 = vmatprep.subr.mxu0 0.0
    %4028 = vmatpush1.msra.mxu0 0.0
    %4029 = vmatprep.subr.mxu0 0.0
    %4030 = vmatpush1.msra.mxu0 0.0
    %4031 = vmatprep.subr.mxu0 0.0
    %4032 = vmatpush1.msra.mxu0 0.0
    %4033 = vmatprep.subr.mxu0 0.0
    %4034 = vmatpush1.msra.mxu0 0.0
    %4035 = vmatprep.subr.mxu0 0.0
    %4036 = vmatpush1.msra.mxu0 0.0
    %4037 = vmatprep.subr.mxu0 0.0
    %4038 = vmatpush1.msra.mxu0 0.0
    %4039 = vmatprep.subr.mxu0 0.0
    %4040 = vmatpush1.msra.mxu0 0.0
    %4041 = vmatprep.subr.mxu0 0.0
    %4042 = vmatpush1.msra.mxu0 0.0
    %4043 = vmatprep.subr.mxu0 0.0
    %4044 = vmatpush1.msra.mxu0 0.0
    %v4045 = vand.u32 %v3167, 4294901760
    %4046 = vmatprep.mubr.f32.mxu0 %v4045
    %v4047 = vand.u32 %v2164, 4294901760
    %4048 = vmatmul.mubr.f32.gmra.mrb[0].mxu0 %v4047
    %v4049 = vpop.f32.mrb[0].mxu0
    %v4050 = vadd.f32 %v3932, %v4049
    %v4051 = vpop.f32.mrb[0].mxu0
    %v4052 = vand.u32 %v3169, 4294901760
    %4053 = vmatprep.mubr.f32.mxu0 %v4052
    %v4054 = vand.u32 %v2166, 4294901760
    %4055 = vmatmul.mubr.f32.gmra.mrb[0].mxu0 %v4054
    %v4056 = vpop.f32.mrb[0].mxu0
    %v4057 = vadd.f32 %v3939, %v4056
    %v4058 = vpop.f32.mrb[0].mxu0
    %v4059 = vand.u32 %v3171, 4294901760
    %4060 = vmatprep.mubr.f32.mxu0 %v4059
    %v4061 = vand.u32 %v2168, 4294901760
    %4062 = vmatmul.mubr.f32.gmra.mrb[0].mxu0 %v4061
    %v4063 = vpop.f32.mrb[0].mxu0
    %v4064 = vadd.f32 %v3946, %v4063
    %v4065 = vpop.f32.mrb[0].mxu0
    %v4066 = vand.u32 %v3173, 4294901760
    %4067 = vmatprep.mubr.f32.mxu0 %v4066
    %v4068 = vand.u32 %v2170, 4294901760
    %4069 = vmatmul.mubr.f32.gmra.mrb[0].mxu0 %v4068
    %v4070 = vpop.f32.mrb[0].mxu0
    %v4071 = vadd.f32 %v3953, %v4070
    %v4072 = vpop.f32.mrb[0].mxu0
    %v4073 = vand.u32 %v3175, 4294901760
    %4074 = vmatprep.mubr.f32.mxu0 %v4073
    %v4075 = vand.u32 %v2172, 4294901760
    %4076 = vmatmul.mubr.f32.gmra.mrb[0].mxu0 %v4075
    %v4077 = vpop.f32.mrb[0].mxu0
    %v4078 = vadd.f32 %v3960, %v4077
    %v4079 = vpop.f32.mrb[0].mxu0
    %4080 = vdwg.mxu0
    %v4081 = vld [vmem:[%s6] sm:$0xff]
    %v4082 = vld [vmem:[%s6 + $0x8] sm:$0xff]
    %v4083 = vld [vmem:[%s6 + $0x10] sm:$0xff]
    %v4084 = vld [vmem:[%s6 + $0x18] sm:$0xff]
    %v4085 = vld [vmem:[%s6 + $0x20] sm:$0xff]
    %v4086 = vld [vmem:[%s6 + $0x28] sm:$0xff]
    %v4087 = vld [vmem:[%s6 + $0x30] sm:$0xff]
    %v4088 = vld [vmem:[%s6 + $0x38] sm:$0xff]
    %v4089 = vld [vmem:[%s6 + $0x40] sm:$0xff]
    %v4090 = vld [vmem:[%s6 + $0x48] sm:$0xff]
    %4091 = vmatprep.subr.mxu0 0.0
    %v4092 = vand.u32 %v4081, 4294901760
    %4093 = vmatpush1.msra.mxu0 %v4092
    %4094 = vmatprep.subr.mxu0 0.0
    %v4095 = vand.u32 %v4082, 4294901760
    %4096 = vmatpush1.msra.mxu0 %v4095
    %4097 = vmatprep.subr.mxu0 0.0
    %v4098 = vand.u32 %v4083, 4294901760
    %4099 = vmatpush1.msra.mxu0 %v4098
    %4100 = vmatprep.subr.mxu0 0.0
    %v4101 = vand.u32 %v4084, 4294901760
    %4102 = vmatpush1.msra.mxu0 %v4101
    %4103 = vmatprep.subr.mxu0 0.0
    %v4104 = vand.u32 %v4085, 4294901760
    %4105 = vmatpush1.msra.mxu0 %v4104
    %4106 = vmatprep.subr.mxu0 0.0
    %v4107 = vand.u32 %v4086, 4294901760
    %4108 = vmatpush1.msra.mxu0 %v4107
    %4109 = vmatprep.subr.mxu0 0.0
    %v4110 = vand.u32 %v4087, 4294901760
    %4111 = vmatpush1.msra.mxu0 %v4110
    %4112 = vmatprep.subr.mxu0 0.0
    %v4113 = vand.u32 %v4088, 4294901760
    %4114 = vmatpush1.msra.mxu0 %v4113
    %4115 = vmatprep.subr.mxu0 0.0
    %v4116 = vand.u32 %v4089, 4294901760
    %4117 = vmatpush1.msra.mxu0 %v4116
    %4118 = vmatprep.subr.mxu0 0.0
    %v4119 = vand.u32 %v4090, 4294901760
    %4120 = vmatpush1.msra.mxu0 %v4119
    %4121 = vmatprep.subr.mxu0 0.0
    %4122 = vmatpush1.msra.mxu0 0.0
    %4123 = vmatprep.subr.mxu0 0.0
    %4124 = vmatpush1.msra.mxu0 0.0
    %4125 = vmatprep.subr.mxu0 0.0
    %4126 = vmatpush1.msra.mxu0 0.0
    %4127 = vmatprep.subr.mxu0 0.0
    %4128 = vmatpush1.msra.mxu0 0.0
    %4129 = vmatprep.subr.mxu0 0.0
    %4130 = vmatpush1.msra.mxu0 0.0
    %4131 = vmatprep.subr.mxu0 0.0
    %4132 = vmatpush1.msra.mxu0 0.0
    %4133 = vmatprep.subr.mxu0 0.0
    %4134 = vmatpush1.msra.mxu0 0.0
    %4135 = vmatprep.subr.mxu0 0.0
    %4136 = vmatpush1.msra.mxu0 0.0
    %4137 = vmatprep.subr.mxu0 0.0
    %4138 = vmatpush1.msra.mxu0 0.0
    %4139 = vmatprep.subr.mxu0 0.0
    %4140 = vmatpush1.msra.mxu0 0.0
    %4141 = vmatprep.subr.mxu0 0.0
    %4142 = vmatpush1.msra.mxu0 0.0
    %4143 = vmatprep.subr.mxu0 0.0
    %4144 = vmatpush1.msra.mxu0 0.0
    %4145 = vmatprep.subr.mxu0 0.0
    %4146 = vmatpush1.msra.mxu0 0.0
    %4147 = vmatprep.subr.mxu0 0.0
    %4148 = vmatpush1.msra.mxu0 0.0
    %4149 = vmatprep.subr.mxu0 0.0
    %4150 = vmatpush1.msra.mxu0 0.0
    %4151 = vmatprep.subr.mxu0 0.0
    %4152 = vmatpush1.msra.mxu0 0.0
    %4153 = vmatprep.subr.mxu0 0.0
    %4154 = vmatpush1.msra.mxu0 0.0
    %4155 = vmatprep.subr.mxu0 0.0
    %4156 = vmatpush1.msra.mxu0 0.0
    %4157 = vmatprep.subr.mxu0 0.0
    %4158 = vmatpush1.msra.mxu0 0.0
    %4159 = vmatprep.subr.mxu0 0.0
    %4160 = vmatpush1.msra.mxu0 0.0
    %4161 = vmatprep.subr.mxu0 0.0
    %4162 = vmatpush1.msra.mxu0 0.0
    %4163 = vmatprep.subr.mxu0 0.0
    %4164 = vmatpush1.msra.mxu0 0.0
    %4165 = vmatprep.mubr.f32.mxu0 0.0
    %v4166 = vand.u32 %v96, 4294901760
    %v4167 = vsub.f32 %v96, %v4166
    %v4168 = vand.u32 %v4167, 4294901760
    %v4169 = vsub.f32 %v4167, %v4168
    %v4170 = vand.u32 %v4169, 4294901760
    %4171 = vmatmul.mubr.f32.gmra.mrb[0].mxu0 %v4170
    %v4172 = vpop.f32.mrb[0].mxu0
    %v4173 = vadd.f32 0.0, %v4172
    %v4174 = vpop.f32.mrb[0].mxu0
    %4175 = vmatprep.mubr.f32.mxu0 0.0
    %v4176 = vand.u32 %v98, 4294901760
    %v4177 = vsub.f32 %v98, %v4176
    %v4178 = vand.u32 %v4177, 4294901760
    %v4179 = vsub.f32 %v4177, %v4178
    %v4180 = vand.u32 %v4179, 4294901760
    %4181 = vmatmul.mubr.f32.gmra.mrb[0].mxu0 %v4180
    %v4182 = vpop.f32.mrb[0].mxu0
    %v4183 = vadd.f32 0.0, %v4182
    %v4184 = vpop.f32.mrb[0].mxu0
    %4185 = vmatprep.mubr.f32.mxu0 0.0
    %v4186 = vand.u32 %v100, 4294901760
    %v4187 = vsub.f32 %v100, %v4186
    %v4188 = vand.u32 %v4187, 4294901760
    %v4189 = vsub.f32 %v4187, %v4188
    %v4190 = vand.u32 %v4189, 4294901760
    %4191 = vmatmul.mubr.f32.gmra.mrb[0].mxu0 %v4190
    %v4192 = vpop.f32.mrb[0].mxu0
    %v4193 = vadd.f32 0.0, %v4192
    %v4194 = vpop.f32.mrb[0].mxu0
    %4195 = vmatprep.mubr.f32.mxu0 0.0
    %v4196 = vand.u32 %v102, 4294901760
    %v4197 = vsub.f32 %v102, %v4196
    %v4198 = vand.u32 %v4197, 4294901760
    %v4199 = vsub.f32 %v4197, %v4198
    %v4200 = vand.u32 %v4199, 4294901760
    %4201 = vmatmul.mubr.f32.gmra.mrb[0].mxu0 %v4200
    %v4202 = vpop.f32.mrb[0].mxu0
    %v4203 = vadd.f32 0.0, %v4202
    %v4204 = vpop.f32.mrb[0].mxu0
    %4205 = vmatprep.mubr.f32.mxu0 0.0
    %v4206 = vand.u32 %v104, 4294901760
    %v4207 = vsub.f32 %v104, %v4206
    %v4208 = vand.u32 %v4207, 4294901760
    %v4209 = vsub.f32 %v4207, %v4208
    %v4210 = vand.u32 %v4209, 4294901760
    %4211 = vmatmul.mubr.f32.gmra.mrb[0].mxu0 %v4210
    %v4212 = vpop.f32.mrb[0].mxu0
    %v4213 = vadd.f32 0.0, %v4212
    %v4214 = vpop.f32.mrb[0].mxu0
    %4215 = vdwg.mxu0
    %4216 = vmatprep.subr.mxu0 0.0
    %v4217 = vand.u32 %v4081, 4294901760
    %v4218 = vsub.f32 %v4081, %v4217
    %v4219 = vand.u32 %v4218, 4294901760
    %v4220 = vsub.f32 %v4218, %v4219
    %v4221 = vand.u32 %v4220, 4294901760
    %4222 = vmatpush1.msra.mxu0 %v4221
    %4223 = vmatprep.subr.mxu0 0.0
    %v4224 = vand.u32 %v4082, 4294901760
    %v4225 = vsub.f32 %v4082, %v4224
    %v4226 = vand.u32 %v4225, 4294901760
    %v4227 = vsub.f32 %v4225, %v4226
    %v4228 = vand.u32 %v4227, 4294901760
    %4229 = vmatpush1.msra.mxu0 %v4228
    %4230 = vmatprep.subr.mxu0 0.0
    %v4231 = vand.u32 %v4083, 4294901760
    %v4232 = vsub.f32 %v4083, %v4231
    %v4233 = vand.u32 %v4232, 4294901760
    %v4234 = vsub.f32 %v4232, %v4233
    %v4235 = vand.u32 %v4234, 4294901760
    %4236 = vmatpush1.msra.mxu0 %v4235
    %4237 = vmatprep.subr.mxu0 0.0
    %v4238 = vand.u32 %v4084, 4294901760
    %v4239 = vsub.f32 %v4084, %v4238
    %v4240 = vand.u32 %v4239, 4294901760
    %v4241 = vsub.f32 %v4239, %v4240
    %v4242 = vand.u32 %v4241, 4294901760
    %4243 = vmatpush1.msra.mxu0 %v4242
    %4244 = vmatprep.subr.mxu0 0.0
    %v4245 = vand.u32 %v4085, 4294901760
    %v4246 = vsub.f32 %v4085, %v4245
    %v4247 = vand.u32 %v4246, 4294901760
    %v4248 = vsub.f32 %v4246, %v4247
    %v4249 = vand.u32 %v4248, 4294901760
    %4250 = vmatpush1.msra.mxu0 %v4249
    %4251 = vmatprep.subr.mxu0 0.0
    %v4252 = vand.u32 %v4086, 4294901760
    %v4253 = vsub.f32 %v4086, %v4252
    %v4254 = vand.u32 %v4253, 4294901760
    %v4255 = vsub.f32 %v4253, %v4254
    %v4256 = vand.u32 %v4255, 4294901760
    %4257 = vmatpush1.msra.mxu0 %v4256
    %4258 = vmatprep.subr.mxu0 0.0
    %v4259 = vand.u32 %v4087, 4294901760
    %v4260 = vsub.f32 %v4087, %v4259
    %v4261 = vand.u32 %v4260, 4294901760
    %v4262 = vsub.f32 %v4260, %v4261
    %v4263 = vand.u32 %v4262, 4294901760
    %4264 = vmatpush1.msra.mxu0 %v4263
    %4265 = vmatprep.subr.mxu0 0.0
    %v4266 = vand.u32 %v4088, 4294901760
    %v4267 = vsub.f32 %v4088, %v4266
    %v4268 = vand.u32 %v4267, 4294901760
    %v4269 = vsub.f32 %v4267, %v4268
    %v4270 = vand.u32 %v4269, 4294901760
    %4271 = vmatpush1.msra.mxu0 %v4270
    %4272 = vmatprep.subr.mxu0 0.0
    %v4273 = vand.u32 %v4089, 4294901760
    %v4274 = vsub.f32 %v4089, %v4273
    %v4275 = vand.u32 %v4274, 4294901760
    %v4276 = vsub.f32 %v4274, %v4275
    %v4277 = vand.u32 %v4276, 4294901760
    %4278 = vmatpush1.msra.mxu0 %v4277
    %4279 = vmatprep.subr.mxu0 0.0
    %v4280 = vand.u32 %v4090, 4294901760
    %v4281 = vsub.f32 %v4090, %v4280
    %v4282 = vand.u32 %v4281, 4294901760
    %v4283 = vsub.f32 %v4281, %v4282
    %v4284 = vand.u32 %v4283, 4294901760
    %4285 = vmatpush1.msra.mxu0 %v4284
    %4286 = vmatprep.subr.mxu0 0.0
    %4287 = vmatpush1.msra.mxu0 0.0
    %4288 = vmatprep.subr.mxu0 0.0
    %4289 = vmatpush1.msra.mxu0 0.0
    %4290 = vmatprep.subr.mxu0 0.0
    %4291 = vmatpush1.msra.mxu0 0.0
    %4292 = vmatprep.subr.mxu0 0.0
    %4293 = vmatpush1.msra.mxu0 0.0
    %4294 = vmatprep.subr.mxu0 0.0
    %4295 = vmatpush1.msra.mxu0 0.0
    %4296 = vmatprep.subr.mxu0 0.0
    %4297 = vmatpush1.msra.mxu0 0.0
    %4298 = vmatprep.subr.mxu0 0.0
    %4299 = vmatpush1.msra.mxu0 0.0
    %4300 = vmatprep.subr.mxu0 0.0
    %4301 = vmatpush1.msra.mxu0 0.0
    %4302 = vmatprep.subr.mxu0 0.0
    %4303 = vmatpush1.msra.mxu0 0.0
    %4304 = vmatprep.subr.mxu0 0.0
    %4305 = vmatpush1.msra.mxu0 0.0
    %4306 = vmatprep.subr.mxu0 0.0
    %4307 = vmatpush1.msra.mxu0 0.0
    %4308 = vmatprep.subr.mxu0 0.0
    %4309 = vmatpush1.msra.mxu0 0.0
    %4310 = vmatprep.subr.mxu0 0.0
    %4311 = vmatpush1.msra.mxu0 0.0
    %4312 = vmatprep.subr.mxu0 0.0
    %4313 = vmatpush1.msra.mxu0 0.0
    %4314 = vmatprep.subr.mxu0 0.0
    %4315 = vmatpush1.msra.mxu0 0.0
    %4316 = vmatprep.subr.mxu0 0.0
    %4317 = vmatpush1.msra.mxu0 0.0
    %4318 = vmatprep.subr.mxu0 0.0
    %4319 = vmatpush1.msra.mxu0 0.0
    %4320 = vmatprep.subr.mxu0 0.0
    %4321 = vmatpush1.msra.mxu0 0.0
    %4322 = vmatprep.subr.mxu0 0.0
    %4323 = vmatpush1.msra.mxu0 0.0
    %4324 = vmatprep.subr.mxu0 0.0
    %4325 = vmatpush1.msra.mxu0 0.0
    %4326 = vmatprep.subr.mxu0 0.0
    %4327 = vmatpush1.msra.mxu0 0.0
    %4328 = vmatprep.subr.mxu0 0.0
    %4329 = vmatpush1.msra.mxu0 0.0
    %4330 = vmatprep.mubr.f32.mxu0 0.0
    %v4331 = vand.u32 %v96, 4294901760
    %4332 = vmatmul.mubr.f32.gmra.mrb[0].mxu0 %v4331
    %v4333 = vpop.f32.mrb[0].mxu0
    %v4334 = vadd.f32 %v4173, %v4333
    %v4335 = vpop.f32.mrb[0].mxu0
    %4336 = vmatprep.mubr.f32.mxu0 0.0
    %v4337 = vand.u32 %v98, 4294901760
    %4338 = vmatmul.mubr.f32.gmra.mrb[0].mxu0 %v4337
    %v4339 = vpop.f32.mrb[0].mxu0
    %v4340 = vadd.f32 %v4183, %v4339
    %v4341 = vpop.f32.mrb[0].mxu0
    %4342 = vmatprep.mubr.f32.mxu0 0.0
    %v4343 = vand.u32 %v100, 4294901760
    %4344 = vmatmul.mubr.f32.gmra.mrb[0].mxu0 %v4343
    %v4345 = vpop.f32.mrb[0].mxu0
    %v4346 = vadd.f32 %v4193, %v4345
    %v4347 = vpop.f32.mrb[0].mxu0
    %4348 = vmatprep.mubr.f32.mxu0 0.0
    %v4349 = vand.u32 %v102, 4294901760
    %4350 = vmatmul.mubr.f32.gmra.mrb[0].mxu0 %v4349
    %v4351 = vpop.f32.mrb[0].mxu0
    %v4352 = vadd.f32 %v4203, %v4351
    %v4353 = vpop.f32.mrb[0].mxu0
    %4354 = vmatprep.mubr.f32.mxu0 0.0
    %v4355 = vand.u32 %v104, 4294901760
    %4356 = vmatmul.mubr.f32.gmra.mrb[0].mxu0 %v4355
    %v4357 = vpop.f32.mrb[0].mxu0
    %v4358 = vadd.f32 %v4213, %v4357
    %v4359 = vpop.f32.mrb[0].mxu0
    %4360 = vdwg.mxu0
    %4361 = vmatprep.subr.mxu0 0.0
    %v4362 = vand.u32 %v4081, 4294901760
    %v4363 = vsub.f32 %v4081, %v4362
    %4364 = vmatpush1.msra.mxu0 %v4363
    %4365 = vmatprep.subr.mxu0 0.0
    %v4366 = vand.u32 %v4082, 4294901760
    %v4367 = vsub.f32 %v4082, %v4366
    %4368 = vmatpush1.msra.mxu0 %v4367
    %4369 = vmatprep.subr.mxu0 0.0
    %v4370 = vand.u32 %v4083, 4294901760
    %v4371 = vsub.f32 %v4083, %v4370
    %4372 = vmatpush1.msra.mxu0 %v4371
    %4373 = vmatprep.subr.mxu0 0.0
    %v4374 = vand.u32 %v4084, 4294901760
    %v4375 = vsub.f32 %v4084, %v4374
    %4376 = vmatpush1.msra.mxu0 %v4375
    %4377 = vmatprep.subr.mxu0 0.0
    %v4378 = vand.u32 %v4085, 4294901760
    %v4379 = vsub.f32 %v4085, %v4378
    %4380 = vmatpush1.msra.mxu0 %v4379
    %4381 = vmatprep.subr.mxu0 0.0
    %v4382 = vand.u32 %v4086, 4294901760
    %v4383 = vsub.f32 %v4086, %v4382
    %4384 = vmatpush1.msra.mxu0 %v4383
    %4385 = vmatprep.subr.mxu0 0.0
    %v4386 = vand.u32 %v4087, 4294901760
    %v4387 = vsub.f32 %v4087, %v4386
    %4388 = vmatpush1.msra.mxu0 %v4387
    %4389 = vmatprep.subr.mxu0 0.0
    %v4390 = vand.u32 %v4088, 4294901760
    %v4391 = vsub.f32 %v4088, %v4390
    %4392 = vmatpush1.msra.mxu0 %v4391
    %4393 = vmatprep.subr.mxu0 0.0
    %v4394 = vand.u32 %v4089, 4294901760
    %v4395 = vsub.f32 %v4089, %v4394
    %4396 = vmatpush1.msra.mxu0 %v4395
    %4397 = vmatprep.subr.mxu0 0.0
    %v4398 = vand.u32 %v4090, 4294901760
    %v4399 = vsub.f32 %v4090, %v4398
    %4400 = vmatpush1.msra.mxu0 %v4399
    %4401 = vmatprep.subr.mxu0 0.0
    %4402 = vmatpush1.msra.mxu0 0.0
    %4403 = vmatprep.subr.mxu0 0.0
    %4404 = vmatpush1.msra.mxu0 0.0
    %4405 = vmatprep.subr.mxu0 0.0
    %4406 = vmatpush1.msra.mxu0 0.0
    %4407 = vmatprep.subr.mxu0 0.0
    %4408 = vmatpush1.msra.mxu0 0.0
    %4409 = vmatprep.subr.mxu0 0.0
    %4410 = vmatpush1.msra.mxu0 0.0
    %4411 = vmatprep.subr.mxu0 0.0
    %4412 = vmatpush1.msra.mxu0 0.0
    %4413 = vmatprep.subr.mxu0 0.0
    %4414 = vmatpush1.msra.mxu0 0.0
    %4415 = vmatprep.subr.mxu0 0.0
    %4416 = vmatpush1.msra.mxu0 0.0
    %4417 = vmatprep.subr.mxu0 0.0
    %4418 = vmatpush1.msra.mxu0 0.0
    %4419 = vmatprep.subr.mxu0 0.0
    %4420 = vmatpush1.msra.mxu0 0.0
    %4421 = vmatprep.subr.mxu0 0.0
    %4422 = vmatpush1.msra.mxu0 0.0
    %4423 = vmatprep.subr.mxu0 0.0
    %4424 = vmatpush1.msra.mxu0 0.0
    %4425 = vmatprep.subr.mxu0 0.0
    %4426 = vmatpush1.msra.mxu0 0.0
    %4427 = vmatprep.subr.mxu0 0.0
    %4428 = vmatpush1.msra.mxu0 0.0
    %4429 = vmatprep.subr.mxu0 0.0
    %4430 = vmatpush1.msra.mxu0 0.0
    %4431 = vmatprep.subr.mxu0 0.0
    %4432 = vmatpush1.msra.mxu0 0.0
    %4433 = vmatprep.subr.mxu0 0.0
    %4434 = vmatpush1.msra.mxu0 0.0
    %4435 = vmatprep.subr.mxu0 0.0
    %4436 = vmatpush1.msra.mxu0 0.0
    %4437 = vmatprep.subr.mxu0 0.0
    %4438 = vmatpush1.msra.mxu0 0.0
    %4439 = vmatprep.subr.mxu0 0.0
    %4440 = vmatpush1.msra.mxu0 0.0
    %4441 = vmatprep.subr.mxu0 0.0
    %4442 = vmatpush1.msra.mxu0 0.0
    %4443 = vmatprep.subr.mxu0 0.0
    %4444 = vmatpush1.msra.mxu0 0.0
    %4445 = vmatprep.mubr.f32.mxu0 0.0
    %v4446 = vand.u32 %v96, 4294901760
    %v4447 = vsub.f32 %v96, %v4446
    %4448 = vmatmul.mubr.f32.gmra.mrb[0].mxu0 %v4447
    %v4449 = vpop.f32.mrb[0].mxu0
    %v4450 = vadd.f32 %v4334, %v4449
    %v4451 = vpop.f32.mrb[0].mxu0
    %4452 = vmatprep.mubr.f32.mxu0 0.0
    %v4453 = vand.u32 %v98, 4294901760
    %v4454 = vsub.f32 %v98, %v4453
    %4455 = vmatmul.mubr.f32.gmra.mrb[0].mxu0 %v4454
    %v4456 = vpop.f32.mrb[0].mxu0
    %v4457 = vadd.f32 %v4340, %v4456
    %v4458 = vpop.f32.mrb[0].mxu0
    %4459 = vmatprep.mubr.f32.mxu0 0.0
    %v4460 = vand.u32 %v100, 4294901760
    %v4461 = vsub.f32 %v100, %v4460
    %4462 = vmatmul.mubr.f32.gmra.mrb[0].mxu0 %v4461
    %v4463 = vpop.f32.mrb[0].mxu0
    %v4464 = vadd.f32 %v4346, %v4463
    %v4465 = vpop.f32.mrb[0].mxu0
    %4466 = vmatprep.mubr.f32.mxu0 0.0
    %v4467 = vand.u32 %v102, 4294901760
    %v4468 = vsub.f32 %v102, %v4467
    %4469 = vmatmul.mubr.f32.gmra.mrb[0].mxu0 %v4468
    %v4470 = vpop.f32.mrb[0].mxu0
    %v4471 = vadd.f32 %v4352, %v4470
    %v4472 = vpop.f32.mrb[0].mxu0
    %4473 = vmatprep.mubr.f32.mxu0 0.0
    %v4474 = vand.u32 %v104, 4294901760
    %v4475 = vsub.f32 %v104, %v4474
    %4476 = vmatmul.mubr.f32.gmra.mrb[0].mxu0 %v4475
    %v4477 = vpop.f32.mrb[0].mxu0
    %v4478 = vadd.f32 %v4358, %v4477
    %v4479 = vpop.f32.mrb[0].mxu0
    %4480 = vdwg.mxu0
    %4481 = vmatprep.subr.mxu0 0.0
    %v4482 = vand.u32 %v4081, 4294901760
    %4483 = vmatpush1.msra.mxu0 %v4482
    %4484 = vmatprep.subr.mxu0 0.0
    %v4485 = vand.u32 %v4082, 4294901760
    %4486 = vmatpush1.msra.mxu0 %v4485
    %4487 = vmatprep.subr.mxu0 0.0
    %v4488 = vand.u32 %v4083, 4294901760
    %4489 = vmatpush1.msra.mxu0 %v4488
    %4490 = vmatprep.subr.mxu0 0.0
    %v4491 = vand.u32 %v4084, 4294901760
    %4492 = vmatpush1.msra.mxu0 %v4491
    %4493 = vmatprep.subr.mxu0 0.0
    %v4494 = vand.u32 %v4085, 4294901760
    %4495 = vmatpush1.msra.mxu0 %v4494
    %4496 = vmatprep.subr.mxu0 0.0
    %v4497 = vand.u32 %v4086, 4294901760
    %4498 = vmatpush1.msra.mxu0 %v4497
    %4499 = vmatprep.subr.mxu0 0.0
    %v4500 = vand.u32 %v4087, 4294901760
    %4501 = vmatpush1.msra.mxu0 %v4500
    %4502 = vmatprep.subr.mxu0 0.0
    %v4503 = vand.u32 %v4088, 4294901760
    %4504 = vmatpush1.msra.mxu0 %v4503
    %4505 = vmatprep.subr.mxu0 0.0
    %v4506 = vand.u32 %v4089, 4294901760
    %4507 = vmatpush1.msra.mxu0 %v4506
    %4508 = vmatprep.subr.mxu0 0.0
    %v4509 = vand.u32 %v4090, 4294901760
    %4510 = vmatpush1.msra.mxu0 %v4509
    %4511 = vmatprep.subr.mxu0 0.0
    %4512 = vmatpush1.msra.mxu0 0.0
    %4513 = vmatprep.subr.mxu0 0.0
    %4514 = vmatpush1.msra.mxu0 0.0
    %4515 = vmatprep.subr.mxu0 0.0
    %4516 = vmatpush1.msra.mxu0 0.0
    %4517 = vmatprep.subr.mxu0 0.0
    %4518 = vmatpush1.msra.mxu0 0.0
    %4519 = vmatprep.subr.mxu0 0.0
    %4520 = vmatpush1.msra.mxu0 0.0
    %4521 = vmatprep.subr.mxu0 0.0
    %4522 = vmatpush1.msra.mxu0 0.0
    %4523 = vmatprep.subr.mxu0 0.0
    %4524 = vmatpush1.msra.mxu0 0.0
    %4525 = vmatprep.subr.mxu0 0.0
    %4526 = vmatpush1.msra.mxu0 0.0
    %4527 = vmatprep.subr.mxu0 0.0
    %4528 = vmatpush1.msra.mxu0 0.0
    %4529 = vmatprep.subr.mxu0 0.0
    %4530 = vmatpush1.msra.mxu0 0.0
    %4531 = vmatprep.subr.mxu0 0.0
    %4532 = vmatpush1.msra.mxu0 0.0
    %4533 = vmatprep.subr.mxu0 0.0
    %4534 = vmatpush1.msra.mxu0 0.0
    %4535 = vmatprep.subr.mxu0 0.0
    %4536 = vmatpush1.msra.mxu0 0.0
    %4537 = vmatprep.subr.mxu0 0.0
    %4538 = vmatpush1.msra.mxu0 0.0
    %4539 = vmatprep.subr.mxu0 0.0
    %4540 = vmatpush1.msra.mxu0 0.0
    %4541 = vmatprep.subr.mxu0 0.0
    %4542 = vmatpush1.msra.mxu0 0.0
    %4543 = vmatprep.subr.mxu0 0.0
    %4544 = vmatpush1.msra.mxu0 0.0
    %4545 = vmatprep.subr.mxu0 0.0
    %4546 = vmatpush1.msra.mxu0 0.0
    %4547 = vmatprep.subr.mxu0 0.0
    %4548 = vmatpush1.msra.mxu0 0.0
    %4549 = vmatprep.subr.mxu0 0.0
    %4550 = vmatpush1.msra.mxu0 0.0
    %4551 = vmatprep.subr.mxu0 0.0
    %4552 = vmatpush1.msra.mxu0 0.0
    %4553 = vmatprep.subr.mxu0 0.0
    %4554 = vmatpush1.msra.mxu0 0.0
    %4555 = vmatprep.mubr.f32.mxu0 0.0
    %v4556 = vand.u32 %v96, 4294901760
    %v4557 = vsub.f32 %v96, %v4556
    %v4558 = vand.u32 %v4557, 4294901760
    %4559 = vmatmul.mubr.f32.gmra.mrb[0].mxu0 %v4558
    %v4560 = vpop.f32.mrb[0].mxu0
    %v4561 = vadd.f32 %v4450, %v4560
    %v4562 = vpop.f32.mrb[0].mxu0
    %4563 = vmatprep.mubr.f32.mxu0 0.0
    %v4564 = vand.u32 %v98, 4294901760
    %v4565 = vsub.f32 %v98, %v4564
    %v4566 = vand.u32 %v4565, 4294901760
    %4567 = vmatmul.mubr.f32.gmra.mrb[0].mxu0 %v4566
    %v4568 = vpop.f32.mrb[0].mxu0
    %v4569 = vadd.f32 %v4457, %v4568
    %v4570 = vpop.f32.mrb[0].mxu0
    %4571 = vmatprep.mubr.f32.mxu0 0.0
    %v4572 = vand.u32 %v100, 4294901760
    %v4573 = vsub.f32 %v100, %v4572
    %v4574 = vand.u32 %v4573, 4294901760
    %4575 = vmatmul.mubr.f32.gmra.mrb[0].mxu0 %v4574
    %v4576 = vpop.f32.mrb[0].mxu0
    %v4577 = vadd.f32 %v4464, %v4576
    %v4578 = vpop.f32.mrb[0].mxu0
    %4579 = vmatprep.mubr.f32.mxu0 0.0
    %v4580 = vand.u32 %v102, 4294901760
    %v4581 = vsub.f32 %v102, %v4580
    %v4582 = vand.u32 %v4581, 4294901760
    %4583 = vmatmul.mubr.f32.gmra.mrb[0].mxu0 %v4582
    %v4584 = vpop.f32.mrb[0].mxu0
    %v4585 = vadd.f32 %v4471, %v4584
    %v4586 = vpop.f32.mrb[0].mxu0
    %4587 = vmatprep.mubr.f32.mxu0 0.0
    %v4588 = vand.u32 %v104, 4294901760
    %v4589 = vsub.f32 %v104, %v4588
    %v4590 = vand.u32 %v4589, 4294901760
    %4591 = vmatmul.mubr.f32.gmra.mrb[0].mxu0 %v4590
    %v4592 = vpop.f32.mrb[0].mxu0
    %v4593 = vadd.f32 %v4478, %v4592
    %v4594 = vpop.f32.mrb[0].mxu0
    %4595 = vdwg.mxu0
    %4596 = vmatprep.subr.mxu0 0.0
    %v4597 = vand.u32 %v4081, 4294901760
    %v4598 = vsub.f32 %v4081, %v4597
    %v4599 = vand.u32 %v4598, 4294901760
    %4600 = vmatpush1.msra.mxu0 %v4599
    %4601 = vmatprep.subr.mxu0 0.0
    %v4602 = vand.u32 %v4082, 4294901760
    %v4603 = vsub.f32 %v4082, %v4602
    %v4604 = vand.u32 %v4603, 4294901760
    %4605 = vmatpush1.msra.mxu0 %v4604
    %4606 = vmatprep.subr.mxu0 0.0
    %v4607 = vand.u32 %v4083, 4294901760
    %v4608 = vsub.f32 %v4083, %v4607
    %v4609 = vand.u32 %v4608, 4294901760
    %4610 = vmatpush1.msra.mxu0 %v4609
    %4611 = vmatprep.subr.mxu0 0.0
    %v4612 = vand.u32 %v4084, 4294901760
    %v4613 = vsub.f32 %v4084, %v4612
    %v4614 = vand.u32 %v4613, 4294901760
    %4615 = vmatpush1.msra.mxu0 %v4614
    %4616 = vmatprep.subr.mxu0 0.0
    %v4617 = vand.u32 %v4085, 4294901760
    %v4618 = vsub.f32 %v4085, %v4617
    %v4619 = vand.u32 %v4618, 4294901760
    %4620 = vmatpush1.msra.mxu0 %v4619
    %4621 = vmatprep.subr.mxu0 0.0
    %v4622 = vand.u32 %v4086, 4294901760
    %v4623 = vsub.f32 %v4086, %v4622
    %v4624 = vand.u32 %v4623, 4294901760
    %4625 = vmatpush1.msra.mxu0 %v4624
    %4626 = vmatprep.subr.mxu0 0.0
    %v4627 = vand.u32 %v4087, 4294901760
    %v4628 = vsub.f32 %v4087, %v4627
    %v4629 = vand.u32 %v4628, 4294901760
    %4630 = vmatpush1.msra.mxu0 %v4629
    %4631 = vmatprep.subr.mxu0 0.0
    %v4632 = vand.u32 %v4088, 4294901760
    %v4633 = vsub.f32 %v4088, %v4632
    %v4634 = vand.u32 %v4633, 4294901760
    %4635 = vmatpush1.msra.mxu0 %v4634
    %4636 = vmatprep.subr.mxu0 0.0
    %v4637 = vand.u32 %v4089, 4294901760
    %v4638 = vsub.f32 %v4089, %v4637
    %v4639 = vand.u32 %v4638, 4294901760
    %4640 = vmatpush1.msra.mxu0 %v4639
    %4641 = vmatprep.subr.mxu0 0.0
    %v4642 = vand.u32 %v4090, 4294901760
    %v4643 = vsub.f32 %v4090, %v4642
    %v4644 = vand.u32 %v4643, 4294901760
    %4645 = vmatpush1.msra.mxu0 %v4644
    %4646 = vmatprep.subr.mxu0 0.0
    %4647 = vmatpush1.msra.mxu0 0.0
    %4648 = vmatprep.subr.mxu0 0.0
    %4649 = vmatpush1.msra.mxu0 0.0
    %4650 = vmatprep.subr.mxu0 0.0
    %4651 = vmatpush1.msra.mxu0 0.0
    %4652 = vmatprep.subr.mxu0 0.0
    %4653 = vmatpush1.msra.mxu0 0.0
    %4654 = vmatprep.subr.mxu0 0.0
    %4655 = vmatpush1.msra.mxu0 0.0
    %4656 = vmatprep.subr.mxu0 0.0
    %4657 = vmatpush1.msra.mxu0 0.0
    %4658 = vmatprep.subr.mxu0 0.0
    %4659 = vmatpush1.msra.mxu0 0.0
    %4660 = vmatprep.subr.mxu0 0.0
    %4661 = vmatpush1.msra.mxu0 0.0
    %4662 = vmatprep.subr.mxu0 0.0
    %4663 = vmatpush1.msra.mxu0 0.0
    %4664 = vmatprep.subr.mxu0 0.0
    %4665 = vmatpush1.msra.mxu0 0.0
    %4666 = vmatprep.subr.mxu0 0.0
    %4667 = vmatpush1.msra.mxu0 0.0
    %4668 = vmatprep.subr.mxu0 0.0
    %4669 = vmatpush1.msra.mxu0 0.0
    %4670 = vmatprep.subr.mxu0 0.0
    %4671 = vmatpush1.msra.mxu0 0.0
    %4672 = vmatprep.subr.mxu0 0.0
    %4673 = vmatpush1.msra.mxu0 0.0
    %4674 = vmatprep.subr.mxu0 0.0
    %4675 = vmatpush1.msra.mxu0 0.0
    %4676 = vmatprep.subr.mxu0 0.0
    %4677 = vmatpush1.msra.mxu0 0.0
    %4678 = vmatprep.subr.mxu0 0.0
    %4679 = vmatpush1.msra.mxu0 0.0
    %4680 = vmatprep.subr.mxu0 0.0
    %4681 = vmatpush1.msra.mxu0 0.0
    %4682 = vmatprep.subr.mxu0 0.0
    %4683 = vmatpush1.msra.mxu0 0.0
    %4684 = vmatprep.subr.mxu0 0.0
    %4685 = vmatpush1.msra.mxu0 0.0
    %4686 = vmatprep.subr.mxu0 0.0
    %4687 = vmatpush1.msra.mxu0 0.0
    %4688 = vmatprep.subr.mxu0 0.0
    %4689 = vmatpush1.msra.mxu0 0.0
    %4690 = vmatprep.mubr.f32.mxu0 0.0
    %v4691 = vand.u32 %v96, 4294901760
    %4692 = vmatmul.mubr.f32.gmra.mrb[0].mxu0 %v4691
    %v4693 = vpop.f32.mrb[0].mxu0
    %v4694 = vadd.f32 %v4561, %v4693
    %v4695 = vpop.f32.mrb[0].mxu0
    %4696 = vmatprep.mubr.f32.mxu0 0.0
    %v4697 = vand.u32 %v98, 4294901760
    %4698 = vmatmul.mubr.f32.gmra.mrb[0].mxu0 %v4697
    %v4699 = vpop.f32.mrb[0].mxu0
    %v4700 = vadd.f32 %v4569, %v4699
    %v4701 = vpop.f32.mrb[0].mxu0
    %4702 = vmatprep.mubr.f32.mxu0 0.0
    %v4703 = vand.u32 %v100, 4294901760
    %4704 = vmatmul.mubr.f32.gmra.mrb[0].mxu0 %v4703
    %v4705 = vpop.f32.mrb[0].mxu0
    %v4706 = vadd.f32 %v4577, %v4705
    %v4707 = vpop.f32.mrb[0].mxu0
    %4708 = vmatprep.mubr.f32.mxu0 0.0
    %v4709 = vand.u32 %v102, 4294901760
    %4710 = vmatmul.mubr.f32.gmra.mrb[0].mxu0 %v4709
    %v4711 = vpop.f32.mrb[0].mxu0
    %v4712 = vadd.f32 %v4585, %v4711
    %v4713 = vpop.f32.mrb[0].mxu0
    %4714 = vmatprep.mubr.f32.mxu0 0.0
    %v4715 = vand.u32 %v104, 4294901760
    %4716 = vmatmul.mubr.f32.gmra.mrb[0].mxu0 %v4715
    %v4717 = vpop.f32.mrb[0].mxu0
    %v4718 = vadd.f32 %v4593, %v4717
    %v4719 = vpop.f32.mrb[0].mxu0
    %4720 = vdwg.mxu0
    %4721 = vmatprep.subr.mxu0 0.0
    %v4722 = vand.u32 %v4081, 4294901760
    %4723 = vmatpush1.msra.mxu0 %v4722
    %4724 = vmatprep.subr.mxu0 0.0
    %v4725 = vand.u32 %v4082, 4294901760
    %4726 = vmatpush1.msra.mxu0 %v4725
    %4727 = vmatprep.subr.mxu0 0.0
    %v4728 = vand.u32 %v4083, 4294901760
    %4729 = vmatpush1.msra.mxu0 %v4728
    %4730 = vmatprep.subr.mxu0 0.0
    %v4731 = vand.u32 %v4084, 4294901760
    %4732 = vmatpush1.msra.mxu0 %v4731
    %4733 = vmatprep.subr.mxu0 0.0
    %v4734 = vand.u32 %v4085, 4294901760
    %4735 = vmatpush1.msra.mxu0 %v4734
    %4736 = vmatprep.subr.mxu0 0.0
    %v4737 = vand.u32 %v4086, 4294901760
    %4738 = vmatpush1.msra.mxu0 %v4737
    %4739 = vmatprep.subr.mxu0 0.0
    %v4740 = vand.u32 %v4087, 4294901760
    %4741 = vmatpush1.msra.mxu0 %v4740
    %4742 = vmatprep.subr.mxu0 0.0
    %v4743 = vand.u32 %v4088, 4294901760
    %4744 = vmatpush1.msra.mxu0 %v4743
    %4745 = vmatprep.subr.mxu0 0.0
    %v4746 = vand.u32 %v4089, 4294901760
    %4747 = vmatpush1.msra.mxu0 %v4746
    %4748 = vmatprep.subr.mxu0 0.0
    %v4749 = vand.u32 %v4090, 4294901760
    %4750 = vmatpush1.msra.mxu0 %v4749
    %4751 = vmatprep.subr.mxu0 0.0
    %4752 = vmatpush1.msra.mxu0 0.0
    %4753 = vmatprep.subr.mxu0 0.0
    %4754 = vmatpush1.msra.mxu0 0.0
    %4755 = vmatprep.subr.mxu0 0.0
    %4756 = vmatpush1.msra.mxu0 0.0
    %4757 = vmatprep.subr.mxu0 0.0
    %4758 = vmatpush1.msra.mxu0 0.0
    %4759 = vmatprep.subr.mxu0 0.0
    %4760 = vmatpush1.msra.mxu0 0.0
    %4761 = vmatprep.subr.mxu0 0.0
    %4762 = vmatpush1.msra.mxu0 0.0
    %4763 = vmatprep.subr.mxu0 0.0
    %4764 = vmatpush1.msra.mxu0 0.0
    %4765 = vmatprep.subr.mxu0 0.0
    %4766 = vmatpush1.msra.mxu0 0.0
    %4767 = vmatprep.subr.mxu0 0.0
    %4768 = vmatpush1.msra.mxu0 0.0
    %4769 = vmatprep.subr.mxu0 0.0
    %4770 = vmatpush1.msra.mxu0 0.0
    %4771 = vmatprep.subr.mxu0 0.0
    %4772 = vmatpush1.msra.mxu0 0.0
    %4773 = vmatprep.subr.mxu0 0.0
    %4774 = vmatpush1.msra.mxu0 0.0
    %4775 = vmatprep.subr.mxu0 0.0
    %4776 = vmatpush1.msra.mxu0 0.0
    %4777 = vmatprep.subr.mxu0 0.0
    %4778 = vmatpush1.msra.mxu0 0.0
    %4779 = vmatprep.subr.mxu0 0.0
    %4780 = vmatpush1.msra.mxu0 0.0
    %4781 = vmatprep.subr.mxu0 0.0
    %4782 = vmatpush1.msra.mxu0 0.0
    %4783 = vmatprep.subr.mxu0 0.0
    %4784 = vmatpush1.msra.mxu0 0.0
    %4785 = vmatprep.subr.mxu0 0.0
    %4786 = vmatpush1.msra.mxu0 0.0
    %4787 = vmatprep.subr.mxu0 0.0
    %4788 = vmatpush1.msra.mxu0 0.0
    %4789 = vmatprep.subr.mxu0 0.0
    %4790 = vmatpush1.msra.mxu0 0.0
    %4791 = vmatprep.subr.mxu0 0.0
    %4792 = vmatpush1.msra.mxu0 0.0
    %4793 = vmatprep.subr.mxu0 0.0
    %4794 = vmatpush1.msra.mxu0 0.0
    %4795 = vmatprep.mubr.f32.mxu0 0.0
    %v4796 = vand.u32 %v96, 4294901760
    %4797 = vmatmul.mubr.f32.gmra.mrb[0].mxu0 %v4796
    %v4798 = vpop.f32.mrb[0].mxu0
    %v4799 = vadd.f32 %v4694, %v4798
    %v4800 = vpop.f32.mrb[0].mxu0
    %4801 = vmatprep.mubr.f32.mxu0 0.0
    %v4802 = vand.u32 %v98, 4294901760
    %4803 = vmatmul.mubr.f32.gmra.mrb[0].mxu0 %v4802
    %v4804 = vpop.f32.mrb[0].mxu0
    %v4805 = vadd.f32 %v4700, %v4804
    %v4806 = vpop.f32.mrb[0].mxu0
    %4807 = vmatprep.mubr.f32.mxu0 0.0
    %v4808 = vand.u32 %v100, 4294901760
    %4809 = vmatmul.mubr.f32.gmra.mrb[0].mxu0 %v4808
    %v4810 = vpop.f32.mrb[0].mxu0
    %v4811 = vadd.f32 %v4706, %v4810
    %v4812 = vpop.f32.mrb[0].mxu0
    %4813 = vmatprep.mubr.f32.mxu0 0.0
    %v4814 = vand.u32 %v102, 4294901760
    %4815 = vmatmul.mubr.f32.gmra.mrb[0].mxu0 %v4814
    %v4816 = vpop.f32.mrb[0].mxu0
    %v4817 = vadd.f32 %v4712, %v4816
    %v4818 = vpop.f32.mrb[0].mxu0
    %4819 = vmatprep.mubr.f32.mxu0 0.0
    %v4820 = vand.u32 %v104, 4294901760
    %4821 = vmatmul.mubr.f32.gmra.mrb[0].mxu0 %v4820
    %v4822 = vpop.f32.mrb[0].mxu0
    %v4823 = vadd.f32 %v4718, %v4822
    %v4824 = vpop.f32.mrb[0].mxu0
    %4825 = vdwg.mxu0
    %v4826 = vadd.f32 %v4050, %v4799
    %v4827 = vadd.f32 %v4057, %v4805
    %v4828 = vadd.f32 %v4064, %v4811
    %v4829 = vadd.f32 %v4071, %v4817
    %v4830 = vadd.f32 %v4078, %v4823
    %s4831 = scalar_lea.vmem %s5, 144
    %v4832 = vld [vmem:[%s4831] sm:$0xff]
    %v4833 = vld [vmem:[%s4831 + $0x8] sm:$0xff]
    %v4834 = vld [vmem:[%s4831 + $0x10] sm:$0xff]
    %v4835 = vld [vmem:[%s4831 + $0x18] sm:$0xff]
    %v4836 = vld [vmem:[%s4831 + $0x20] sm:$0xff]
    %v4837 = vld [vmem:[%s4831 + $0x28] sm:$0xff]
    %v4838 = vld [vmem:[%s4831 + $0x30] sm:$0xff]
    %v4839 = vld [vmem:[%s4831 + $0x38] sm:$0xff]
    %v4840 = vld [vmem:[%s4831 + $0x40] sm:$0xff]
    %v4841 = vld [vmem:[%s4831 + $0x48] sm:$0xff]
    %v4842 = vld [vmem:[%s4831 + $0x50] sm:$0xff]
    %v4843 = vld [vmem:[%s4831 + $0x58] sm:$0xff]
    %v4844 = vld [vmem:[%s4831 + $0x60] sm:$0xff]
    %v4845 = vld [vmem:[%s4831 + $0x68] sm:$0xff]
    %v4846 = vld [vmem:[%s4831 + $0x70] sm:$0xff]
    %v4847 = vld [vmem:[%s4831 + $0x78] sm:$0xff]
    %v4848 = vld [vmem:[%s4831 + $0x80] sm:$0xff]
    %v4849 = vld [vmem:[%s4831 + $0x88] sm:$0xff]
    %s4850 = scalar_lea.vmem %s5, 576
    %v4851 = vld [vmem:[%s4850] sm:$0xff]
    %v4852 = vld [vmem:[%s4850 + $0x8] sm:$0xff]
    %v4853 = vld [vmem:[%s4850 + $0x10] sm:$0xff]
    %v4854 = vld [vmem:[%s4850 + $0x18] sm:$0xff]
    %v4855 = vld [vmem:[%s4850 + $0x20] sm:$0xff]
    %v4856 = vld [vmem:[%s4850 + $0x28] sm:$0xff]
    %v4857 = vld [vmem:[%s4850 + $0x30] sm:$0xff]
    %v4858 = vld [vmem:[%s4850 + $0x38] sm:$0xff]
    %v4859 = vld [vmem:[%s4850 + $0x40] sm:$0xff]
    %v4860 = vld [vmem:[%s4850 + $0x48] sm:$0xff]
    %v4861 = vld [vmem:[%s4850 + $0x50] sm:$0xff]
    %v4862 = vld [vmem:[%s4850 + $0x58] sm:$0xff]
    %v4863 = vld [vmem:[%s4850 + $0x60] sm:$0xff]
    %v4864 = vld [vmem:[%s4850 + $0x68] sm:$0xff]
    %v4865 = vld [vmem:[%s4850 + $0x70] sm:$0xff]
    %v4866 = vld [vmem:[%s4850 + $0x78] sm:$0xff]
    %v4867 = vld [vmem:[%s4850 + $0x80] sm:$0xff]
    %v4868 = vld [vmem:[%s4850 + $0x88] sm:$0xff]
    %4869 = vmatprep.subr.mxu0 0.0
    %v4870 = vand.u32 %v4851, 4294901760
    %4871 = vmatpush1.msra.mxu0 %v4870
    %4872 = vmatprep.subr.mxu0 0.0
    %v4873 = vand.u32 %v4852, 4294901760
    %4874 = vmatpush1.msra.mxu0 %v4873
    %4875 = vmatprep.subr.mxu0 0.0
    %v4876 = vand.u32 %v4853, 4294901760
    %4877 = vmatpush1.msra.mxu0 %v4876
    %4878 = vmatprep.subr.mxu0 0.0
    %v4879 = vand.u32 %v4854, 4294901760
    %4880 = vmatpush1.msra.mxu0 %v4879
    %4881 = vmatprep.subr.mxu0 0.0
    %v4882 = vand.u32 %v4855, 4294901760
    %4883 = vmatpush1.msra.mxu0 %v4882
    %4884 = vmatprep.subr.mxu0 0.0
    %v4885 = vand.u32 %v4856, 4294901760
    %4886 = vmatpush1.msra.mxu0 %v4885
    %4887 = vmatprep.subr.mxu0 0.0
    %v4888 = vand.u32 %v4857, 4294901760
    %4889 = vmatpush1.msra.mxu0 %v4888
    %4890 = vmatprep.subr.mxu0 0.0
    %v4891 = vand.u32 %v4858, 4294901760
    %4892 = vmatpush1.msra.mxu0 %v4891
    %4893 = vmatprep.subr.mxu0 0.0
    %v4894 = vand.u32 %v4859, 4294901760
    %4895 = vmatpush1.msra.mxu0 %v4894
    %4896 = vmatprep.subr.mxu0 0.0
    %v4897 = vand.u32 %v4860, 4294901760
    %4898 = vmatpush1.msra.mxu0 %v4897
    %4899 = vmatprep.subr.mxu0 0.0
    %v4900 = vand.u32 %v4861, 4294901760
    %4901 = vmatpush1.msra.mxu0 %v4900
    %4902 = vmatprep.subr.mxu0 0.0
    %v4903 = vand.u32 %v4862, 4294901760
    %4904 = vmatpush1.msra.mxu0 %v4903
    %4905 = vmatprep.subr.mxu0 0.0
    %v4906 = vand.u32 %v4863, 4294901760
    %4907 = vmatpush1.msra.mxu0 %v4906
    %4908 = vmatprep.subr.mxu0 0.0
    %v4909 = vand.u32 %v4864, 4294901760
    %4910 = vmatpush1.msra.mxu0 %v4909
    %4911 = vmatprep.subr.mxu0 0.0
    %v4912 = vand.u32 %v4865, 4294901760
    %4913 = vmatpush1.msra.mxu0 %v4912
    %4914 = vmatprep.subr.mxu0 0.0
    %v4915 = vand.u32 %v4866, 4294901760
    %4916 = vmatpush1.msra.mxu0 %v4915
    %4917 = vmatprep.subr.mxu0 0.0
    %v4918 = vand.u32 %v4867, 4294901760
    %4919 = vmatpush1.msra.mxu0 %v4918
    %4920 = vmatprep.subr.mxu0 0.0
    %v4921 = vand.u32 %v4868, 4294901760
    %4922 = vmatpush1.msra.mxu0 %v4921
    %4923 = vmatprep.subr.mxu0 0.0
    %4924 = vmatpush1.msra.mxu0 0.0
    %4925 = vmatprep.subr.mxu0 0.0
    %4926 = vmatpush1.msra.mxu0 0.0
    %4927 = vmatprep.subr.mxu0 0.0
    %4928 = vmatpush1.msra.mxu0 0.0
    %4929 = vmatprep.subr.mxu0 0.0
    %4930 = vmatpush1.msra.mxu0 0.0
    %4931 = vmatprep.subr.mxu0 0.0
    %4932 = vmatpush1.msra.mxu0 0.0
    %4933 = vmatprep.subr.mxu0 0.0
    %4934 = vmatpush1.msra.mxu0 0.0
    %4935 = vmatprep.subr.mxu0 0.0
    %4936 = vmatpush1.msra.mxu0 0.0
    %4937 = vmatprep.subr.mxu0 0.0
    %4938 = vmatpush1.msra.mxu0 0.0
    %4939 = vmatprep.subr.mxu0 0.0
    %4940 = vmatpush1.msra.mxu0 0.0
    %4941 = vmatprep.subr.mxu0 0.0
    %4942 = vmatpush1.msra.mxu0 0.0
    %4943 = vmatprep.subr.mxu0 0.0
    %4944 = vmatpush1.msra.mxu0 0.0
    %4945 = vmatprep.subr.mxu0 0.0
    %4946 = vmatpush1.msra.mxu0 0.0
    %4947 = vmatprep.subr.mxu0 0.0
    %4948 = vmatpush1.msra.mxu0 0.0
    %4949 = vmatprep.subr.mxu0 0.0
    %4950 = vmatpush1.msra.mxu0 0.0
    %v4951 = vand.u32 %v2253, 4294901760
    %v4952 = vsub.f32 %v2253, %v4951
    %v4953 = vand.u32 %v4952, 4294901760
    %v4954 = vsub.f32 %v4952, %v4953
    %v4955 = vand.u32 %v4954, 4294901760
    %4956 = vmatprep.mubr.f32.mxu0 %v4955
    %v4957 = vand.u32 %v2227, 4294901760
    %v4958 = vsub.f32 %v2227, %v4957
    %v4959 = vand.u32 %v4958, 4294901760
    %v4960 = vsub.f32 %v4958, %v4959
    %v4961 = vand.u32 %v4960, 4294901760
    %4962 = vmatmul.mubr.f32.gmra.mrb[0].mxu0 %v4961
    %v4963 = vpop.f32.mrb[0].mxu0
    %v4964 = vadd.f32 0.0, %v4963
    %v4965 = vpop.f32.mrb[0].mxu0
    %v4966 = vand.u32 %v2255, 4294901760
    %v4967 = vsub.f32 %v2255, %v4966
    %v4968 = vand.u32 %v4967, 4294901760
    %v4969 = vsub.f32 %v4967, %v4968
    %v4970 = vand.u32 %v4969, 4294901760
    %4971 = vmatprep.mubr.f32.mxu0 %v4970
    %v4972 = vand.u32 %v2232, 4294901760
    %v4973 = vsub.f32 %v2232, %v4972
    %v4974 = vand.u32 %v4973, 4294901760
    %v4975 = vsub.f32 %v4973, %v4974
    %v4976 = vand.u32 %v4975, 4294901760
    %4977 = vmatmul.mubr.f32.gmra.mrb[0].mxu0 %v4976
    %v4978 = vpop.f32.mrb[0].mxu0
    %v4979 = vadd.f32 0.0, %v4978
    %v4980 = vpop.f32.mrb[0].mxu0
    %v4981 = vand.u32 %v2257, 4294901760
    %v4982 = vsub.f32 %v2257, %v4981
    %v4983 = vand.u32 %v4982, 4294901760
    %v4984 = vsub.f32 %v4982, %v4983
    %v4985 = vand.u32 %v4984, 4294901760
    %4986 = vmatprep.mubr.f32.mxu0 %v4985
    %v4987 = vand.u32 %v2236, 4294901760
    %v4988 = vsub.f32 %v2236, %v4987
    %v4989 = vand.u32 %v4988, 4294901760
    %v4990 = vsub.f32 %v4988, %v4989
    %v4991 = vand.u32 %v4990, 4294901760
    %4992 = vmatmul.mubr.f32.gmra.mrb[0].mxu0 %v4991
    %v4993 = vpop.f32.mrb[0].mxu0
    %v4994 = vadd.f32 0.0, %v4993
    %v4995 = vpop.f32.mrb[0].mxu0
    %v4996 = vand.u32 %v2259, 4294901760
    %v4997 = vsub.f32 %v2259, %v4996
    %v4998 = vand.u32 %v4997, 4294901760
    %v4999 = vsub.f32 %v4997, %v4998
    %v5000 = vand.u32 %v4999, 4294901760
    %5001 = vmatprep.mubr.f32.mxu0 %v5000
    %v5002 = vand.u32 %v2240, 4294901760
    %v5003 = vsub.f32 %v2240, %v5002
    %v5004 = vand.u32 %v5003, 4294901760
    %v5005 = vsub.f32 %v5003, %v5004
    %v5006 = vand.u32 %v5005, 4294901760
    %5007 = vmatmul.mubr.f32.gmra.mrb[0].mxu0 %v5006
    %v5008 = vpop.f32.mrb[0].mxu0
    %v5009 = vadd.f32 0.0, %v5008
    %v5010 = vpop.f32.mrb[0].mxu0
    %v5011 = vand.u32 %v2261, 4294901760
    %v5012 = vsub.f32 %v2261, %v5011
    %v5013 = vand.u32 %v5012, 4294901760
    %v5014 = vsub.f32 %v5012, %v5013
    %v5015 = vand.u32 %v5014, 4294901760
    %5016 = vmatprep.mubr.f32.mxu0 %v5015
    %v5017 = vand.u32 %v2244, 4294901760
    %v5018 = vsub.f32 %v2244, %v5017
    %v5019 = vand.u32 %v5018, 4294901760
    %v5020 = vsub.f32 %v5018, %v5019
    %v5021 = vand.u32 %v5020, 4294901760
    %5022 = vmatmul.mubr.f32.gmra.mrb[0].mxu0 %v5021
    %v5023 = vpop.f32.mrb[0].mxu0
    %v5024 = vadd.f32 0.0, %v5023
    %v5025 = vpop.f32.mrb[0].mxu0
    %5026 = vdwg.mxu0
    %5027 = vmatprep.subr.mxu0 0.0
    %v5028 = vand.u32 %v4851, 4294901760
    %v5029 = vsub.f32 %v4851, %v5028
    %v5030 = vand.u32 %v5029, 4294901760
    %v5031 = vsub.f32 %v5029, %v5030
    %v5032 = vand.u32 %v5031, 4294901760
    %5033 = vmatpush1.msra.mxu0 %v5032
    %5034 = vmatprep.subr.mxu0 0.0
    %v5035 = vand.u32 %v4852, 4294901760
    %v5036 = vsub.f32 %v4852, %v5035
    %v5037 = vand.u32 %v5036, 4294901760
    %v5038 = vsub.f32 %v5036, %v5037
    %v5039 = vand.u32 %v5038, 4294901760
    %5040 = vmatpush1.msra.mxu0 %v5039
    %5041 = vmatprep.subr.mxu0 0.0
    %v5042 = vand.u32 %v4853, 4294901760
    %v5043 = vsub.f32 %v4853, %v5042
    %v5044 = vand.u32 %v5043, 4294901760
    %v5045 = vsub.f32 %v5043, %v5044
    %v5046 = vand.u32 %v5045, 4294901760
    %5047 = vmatpush1.msra.mxu0 %v5046
    %5048 = vmatprep.subr.mxu0 0.0
    %v5049 = vand.u32 %v4854, 4294901760
    %v5050 = vsub.f32 %v4854, %v5049
    %v5051 = vand.u32 %v5050, 4294901760
    %v5052 = vsub.f32 %v5050, %v5051
    %v5053 = vand.u32 %v5052, 4294901760
    %5054 = vmatpush1.msra.mxu0 %v5053
    %5055 = vmatprep.subr.mxu0 0.0
    %v5056 = vand.u32 %v4855, 4294901760
    %v5057 = vsub.f32 %v4855, %v5056
    %v5058 = vand.u32 %v5057, 4294901760
    %v5059 = vsub.f32 %v5057, %v5058
    %v5060 = vand.u32 %v5059, 4294901760
    %5061 = vmatpush1.msra.mxu0 %v5060
    %5062 = vmatprep.subr.mxu0 0.0
    %v5063 = vand.u32 %v4856, 4294901760
    %v5064 = vsub.f32 %v4856, %v5063
    %v5065 = vand.u32 %v5064, 4294901760
    %v5066 = vsub.f32 %v5064, %v5065
    %v5067 = vand.u32 %v5066, 4294901760
    %5068 = vmatpush1.msra.mxu0 %v5067
    %5069 = vmatprep.subr.mxu0 0.0
    %v5070 = vand.u32 %v4857, 4294901760
    %v5071 = vsub.f32 %v4857, %v5070
    %v5072 = vand.u32 %v5071, 4294901760
    %v5073 = vsub.f32 %v5071, %v5072
    %v5074 = vand.u32 %v5073, 4294901760
    %5075 = vmatpush1.msra.mxu0 %v5074
    %5076 = vmatprep.subr.mxu0 0.0
    %v5077 = vand.u32 %v4858, 4294901760
    %v5078 = vsub.f32 %v4858, %v5077
    %v5079 = vand.u32 %v5078, 4294901760
    %v5080 = vsub.f32 %v5078, %v5079
    %v5081 = vand.u32 %v5080, 4294901760
    %5082 = vmatpush1.msra.mxu0 %v5081
    %5083 = vmatprep.subr.mxu0 0.0
    %v5084 = vand.u32 %v4859, 4294901760
    %v5085 = vsub.f32 %v4859, %v5084
    %v5086 = vand.u32 %v5085, 4294901760
    %v5087 = vsub.f32 %v5085, %v5086
    %v5088 = vand.u32 %v5087, 4294901760
    %5089 = vmatpush1.msra.mxu0 %v5088
    %5090 = vmatprep.subr.mxu0 0.0
    %v5091 = vand.u32 %v4860, 4294901760
    %v5092 = vsub.f32 %v4860, %v5091
    %v5093 = vand.u32 %v5092, 4294901760
    %v5094 = vsub.f32 %v5092, %v5093
    %v5095 = vand.u32 %v5094, 4294901760
    %5096 = vmatpush1.msra.mxu0 %v5095
    %5097 = vmatprep.subr.mxu0 0.0
    %v5098 = vand.u32 %v4861, 4294901760
    %v5099 = vsub.f32 %v4861, %v5098
    %v5100 = vand.u32 %v5099, 4294901760
    %v5101 = vsub.f32 %v5099, %v5100
    %v5102 = vand.u32 %v5101, 4294901760
    %5103 = vmatpush1.msra.mxu0 %v5102
    %5104 = vmatprep.subr.mxu0 0.0
    %v5105 = vand.u32 %v4862, 4294901760
    %v5106 = vsub.f32 %v4862, %v5105
    %v5107 = vand.u32 %v5106, 4294901760
    %v5108 = vsub.f32 %v5106, %v5107
    %v5109 = vand.u32 %v5108, 4294901760
    %5110 = vmatpush1.msra.mxu0 %v5109
    %5111 = vmatprep.subr.mxu0 0.0
    %v5112 = vand.u32 %v4863, 4294901760
    %v5113 = vsub.f32 %v4863, %v5112
    %v5114 = vand.u32 %v5113, 4294901760
    %v5115 = vsub.f32 %v5113, %v5114
    %v5116 = vand.u32 %v5115, 4294901760
    %5117 = vmatpush1.msra.mxu0 %v5116
    %5118 = vmatprep.subr.mxu0 0.0
    %v5119 = vand.u32 %v4864, 4294901760
    %v5120 = vsub.f32 %v4864, %v5119
    %v5121 = vand.u32 %v5120, 4294901760
    %v5122 = vsub.f32 %v5120, %v5121
    %v5123 = vand.u32 %v5122, 4294901760
    %5124 = vmatpush1.msra.mxu0 %v5123
    %5125 = vmatprep.subr.mxu0 0.0
    %v5126 = vand.u32 %v4865, 4294901760
    %v5127 = vsub.f32 %v4865, %v5126
    %v5128 = vand.u32 %v5127, 4294901760
    %v5129 = vsub.f32 %v5127, %v5128
    %v5130 = vand.u32 %v5129, 4294901760
    %5131 = vmatpush1.msra.mxu0 %v5130
    %5132 = vmatprep.subr.mxu0 0.0
    %v5133 = vand.u32 %v4866, 4294901760
    %v5134 = vsub.f32 %v4866, %v5133
    %v5135 = vand.u32 %v5134, 4294901760
    %v5136 = vsub.f32 %v5134, %v5135
    %v5137 = vand.u32 %v5136, 4294901760
    %5138 = vmatpush1.msra.mxu0 %v5137
    %5139 = vmatprep.subr.mxu0 0.0
    %v5140 = vand.u32 %v4867, 4294901760
    %v5141 = vsub.f32 %v4867, %v5140
    %v5142 = vand.u32 %v5141, 4294901760
    %v5143 = vsub.f32 %v5141, %v5142
    %v5144 = vand.u32 %v5143, 4294901760
    %5145 = vmatpush1.msra.mxu0 %v5144
    %5146 = vmatprep.subr.mxu0 0.0
    %v5147 = vand.u32 %v4868, 4294901760
    %v5148 = vsub.f32 %v4868, %v5147
    %v5149 = vand.u32 %v5148, 4294901760
    %v5150 = vsub.f32 %v5148, %v5149
    %v5151 = vand.u32 %v5150, 4294901760
    %5152 = vmatpush1.msra.mxu0 %v5151
    %5153 = vmatprep.subr.mxu0 0.0
    %5154 = vmatpush1.msra.mxu0 0.0
    %5155 = vmatprep.subr.mxu0 0.0
    %5156 = vmatpush1.msra.mxu0 0.0
    %5157 = vmatprep.subr.mxu0 0.0
    %5158 = vmatpush1.msra.mxu0 0.0
    %5159 = vmatprep.subr.mxu0 0.0
    %5160 = vmatpush1.msra.mxu0 0.0
    %5161 = vmatprep.subr.mxu0 0.0
    %5162 = vmatpush1.msra.mxu0 0.0
    %5163 = vmatprep.subr.mxu0 0.0
    %5164 = vmatpush1.msra.mxu0 0.0
    %5165 = vmatprep.subr.mxu0 0.0
    %5166 = vmatpush1.msra.mxu0 0.0
    %5167 = vmatprep.subr.mxu0 0.0
    %5168 = vmatpush1.msra.mxu0 0.0
    %5169 = vmatprep.subr.mxu0 0.0
    %5170 = vmatpush1.msra.mxu0 0.0
    %5171 = vmatprep.subr.mxu0 0.0
    %5172 = vmatpush1.msra.mxu0 0.0
    %5173 = vmatprep.subr.mxu0 0.0
    %5174 = vmatpush1.msra.mxu0 0.0
    %5175 = vmatprep.subr.mxu0 0.0
    %5176 = vmatpush1.msra.mxu0 0.0
    %5177 = vmatprep.subr.mxu0 0.0
    %5178 = vmatpush1.msra.mxu0 0.0
    %5179 = vmatprep.subr.mxu0 0.0
    %5180 = vmatpush1.msra.mxu0 0.0
    %v5181 = vand.u32 %v2253, 4294901760
    %5182 = vmatprep.mubr.f32.mxu0 %v5181
    %v5183 = vand.u32 %v2227, 4294901760
    %5184 = vmatmul.mubr.f32.gmra.mrb[0].mxu0 %v5183
    %v5185 = vpop.f32.mrb[0].mxu0
    %v5186 = vadd.f32 %v4964, %v5185
    %v5187 = vpop.f32.mrb[0].mxu0
    %v5188 = vand.u32 %v2255, 4294901760
    %5189 = vmatprep.mubr.f32.mxu0 %v5188
    %v5190 = vand.u32 %v2232, 4294901760
    %5191 = vmatmul.mubr.f32.gmra.mrb[0].mxu0 %v5190
    %v5192 = vpop.f32.mrb[0].mxu0
    %v5193 = vadd.f32 %v4979, %v5192
    %v5194 = vpop.f32.mrb[0].mxu0
    %v5195 = vand.u32 %v2257, 4294901760
    %5196 = vmatprep.mubr.f32.mxu0 %v5195
    %v5197 = vand.u32 %v2236, 4294901760
    %5198 = vmatmul.mubr.f32.gmra.mrb[0].mxu0 %v5197
    %v5199 = vpop.f32.mrb[0].mxu0
    %v5200 = vadd.f32 %v4994, %v5199
    %v5201 = vpop.f32.mrb[0].mxu0
    %v5202 = vand.u32 %v2259, 4294901760
    %5203 = vmatprep.mubr.f32.mxu0 %v5202
    %v5204 = vand.u32 %v2240, 4294901760
    %5205 = vmatmul.mubr.f32.gmra.mrb[0].mxu0 %v5204
    %v5206 = vpop.f32.mrb[0].mxu0
    %v5207 = vadd.f32 %v5009, %v5206
    %v5208 = vpop.f32.mrb[0].mxu0
    %v5209 = vand.u32 %v2261, 4294901760
    %5210 = vmatprep.mubr.f32.mxu0 %v5209
    %v5211 = vand.u32 %v2244, 4294901760
    %5212 = vmatmul.mubr.f32.gmra.mrb[0].mxu0 %v5211
    %v5213 = vpop.f32.mrb[0].mxu0
    %v5214 = vadd.f32 %v5024, %v5213
    %v5215 = vpop.f32.mrb[0].mxu0
    %5216 = vdwg.mxu0
    %5217 = vmatprep.subr.mxu0 0.0
    %v5218 = vand.u32 %v4851, 4294901760
    %v5219 = vsub.f32 %v4851, %v5218
    %5220 = vmatpush1.msra.mxu0 %v5219
    %5221 = vmatprep.subr.mxu0 0.0
    %v5222 = vand.u32 %v4852, 4294901760
    %v5223 = vsub.f32 %v4852, %v5222
    %5224 = vmatpush1.msra.mxu0 %v5223
    %5225 = vmatprep.subr.mxu0 0.0
    %v5226 = vand.u32 %v4853, 4294901760
    %v5227 = vsub.f32 %v4853, %v5226
    %5228 = vmatpush1.msra.mxu0 %v5227
    %5229 = vmatprep.subr.mxu0 0.0
    %v5230 = vand.u32 %v4854, 4294901760
    %v5231 = vsub.f32 %v4854, %v5230
    %5232 = vmatpush1.msra.mxu0 %v5231
    %5233 = vmatprep.subr.mxu0 0.0
    %v5234 = vand.u32 %v4855, 4294901760
    %v5235 = vsub.f32 %v4855, %v5234
    %5236 = vmatpush1.msra.mxu0 %v5235
    %5237 = vmatprep.subr.mxu0 0.0
    %v5238 = vand.u32 %v4856, 4294901760
    %v5239 = vsub.f32 %v4856, %v5238
    %5240 = vmatpush1.msra.mxu0 %v5239
    %5241 = vmatprep.subr.mxu0 0.0
    %v5242 = vand.u32 %v4857, 4294901760
    %v5243 = vsub.f32 %v4857, %v5242
    %5244 = vmatpush1.msra.mxu0 %v5243
    %5245 = vmatprep.subr.mxu0 0.0
    %v5246 = vand.u32 %v4858, 4294901760
    %v5247 = vsub.f32 %v4858, %v5246
    %5248 = vmatpush1.msra.mxu0 %v5247
    %5249 = vmatprep.subr.mxu0 0.0
    %v5250 = vand.u32 %v4859, 4294901760
    %v5251 = vsub.f32 %v4859, %v5250
    %5252 = vmatpush1.msra.mxu0 %v5251
    %5253 = vmatprep.subr.mxu0 0.0
    %v5254 = vand.u32 %v4860, 4294901760
    %v5255 = vsub.f32 %v4860, %v5254
    %5256 = vmatpush1.msra.mxu0 %v5255
    %5257 = vmatprep.subr.mxu0 0.0
    %v5258 = vand.u32 %v4861, 4294901760
    %v5259 = vsub.f32 %v4861, %v5258
    %5260 = vmatpush1.msra.mxu0 %v5259
    %5261 = vmatprep.subr.mxu0 0.0
    %v5262 = vand.u32 %v4862, 4294901760
    %v5263 = vsub.f32 %v4862, %v5262
    %5264 = vmatpush1.msra.mxu0 %v5263
    %5265 = vmatprep.subr.mxu0 0.0
    %v5266 = vand.u32 %v4863, 4294901760
    %v5267 = vsub.f32 %v4863, %v5266
    %5268 = vmatpush1.msra.mxu0 %v5267
    %5269 = vmatprep.subr.mxu0 0.0
    %v5270 = vand.u32 %v4864, 4294901760
    %v5271 = vsub.f32 %v4864, %v5270
    %5272 = vmatpush1.msra.mxu0 %v5271
    %5273 = vmatprep.subr.mxu0 0.0
    %v5274 = vand.u32 %v4865, 4294901760
    %v5275 = vsub.f32 %v4865, %v5274
    %5276 = vmatpush1.msra.mxu0 %v5275
    %5277 = vmatprep.subr.mxu0 0.0
    %v5278 = vand.u32 %v4866, 4294901760
    %v5279 = vsub.f32 %v4866, %v5278
    %5280 = vmatpush1.msra.mxu0 %v5279
    %5281 = vmatprep.subr.mxu0 0.0
    %v5282 = vand.u32 %v4867, 4294901760
    %v5283 = vsub.f32 %v4867, %v5282
    %5284 = vmatpush1.msra.mxu0 %v5283
    %5285 = vmatprep.subr.mxu0 0.0
    %v5286 = vand.u32 %v4868, 4294901760
    %v5287 = vsub.f32 %v4868, %v5286
    %5288 = vmatpush1.msra.mxu0 %v5287
    %5289 = vmatprep.subr.mxu0 0.0
    %5290 = vmatpush1.msra.mxu0 0.0
    %5291 = vmatprep.subr.mxu0 0.0
    %5292 = vmatpush1.msra.mxu0 0.0
    %5293 = vmatprep.subr.mxu0 0.0
    %5294 = vmatpush1.msra.mxu0 0.0
    %5295 = vmatprep.subr.mxu0 0.0
    %5296 = vmatpush1.msra.mxu0 0.0
    %5297 = vmatprep.subr.mxu0 0.0
    %5298 = vmatpush1.msra.mxu0 0.0
    %5299 = vmatprep.subr.mxu0 0.0
    %5300 = vmatpush1.msra.mxu0 0.0
    %5301 = vmatprep.subr.mxu0 0.0
    %5302 = vmatpush1.msra.mxu0 0.0
    %5303 = vmatprep.subr.mxu0 0.0
    %5304 = vmatpush1.msra.mxu0 0.0
    %5305 = vmatprep.subr.mxu0 0.0
    %5306 = vmatpush1.msra.mxu0 0.0
    %5307 = vmatprep.subr.mxu0 0.0
    %5308 = vmatpush1.msra.mxu0 0.0
    %5309 = vmatprep.subr.mxu0 0.0
    %5310 = vmatpush1.msra.mxu0 0.0
    %5311 = vmatprep.subr.mxu0 0.0
    %5312 = vmatpush1.msra.mxu0 0.0
    %5313 = vmatprep.subr.mxu0 0.0
    %5314 = vmatpush1.msra.mxu0 0.0
    %5315 = vmatprep.subr.mxu0 0.0
    %5316 = vmatpush1.msra.mxu0 0.0
    %v5317 = vand.u32 %v2253, 4294901760
    %v5318 = vsub.f32 %v2253, %v5317
    %5319 = vmatprep.mubr.f32.mxu0 %v5318
    %v5320 = vand.u32 %v2227, 4294901760
    %v5321 = vsub.f32 %v2227, %v5320
    %5322 = vmatmul.mubr.f32.gmra.mrb[0].mxu0 %v5321
    %v5323 = vpop.f32.mrb[0].mxu0
    %v5324 = vadd.f32 %v5186, %v5323
    %v5325 = vpop.f32.mrb[0].mxu0
    %v5326 = vand.u32 %v2255, 4294901760
    %v5327 = vsub.f32 %v2255, %v5326
    %5328 = vmatprep.mubr.f32.mxu0 %v5327
    %v5329 = vand.u32 %v2232, 4294901760
    %v5330 = vsub.f32 %v2232, %v5329
    %5331 = vmatmul.mubr.f32.gmra.mrb[0].mxu0 %v5330
    %v5332 = vpop.f32.mrb[0].mxu0
    %v5333 = vadd.f32 %v5193, %v5332
    %v5334 = vpop.f32.mrb[0].mxu0
    %v5335 = vand.u32 %v2257, 4294901760
    %v5336 = vsub.f32 %v2257, %v5335
    %5337 = vmatprep.mubr.f32.mxu0 %v5336
    %v5338 = vand.u32 %v2236, 4294901760
    %v5339 = vsub.f32 %v2236, %v5338
    %5340 = vmatmul.mubr.f32.gmra.mrb[0].mxu0 %v5339
    %v5341 = vpop.f32.mrb[0].mxu0
    %v5342 = vadd.f32 %v5200, %v5341
    %v5343 = vpop.f32.mrb[0].mxu0
    %v5344 = vand.u32 %v2259, 4294901760
    %v5345 = vsub.f32 %v2259, %v5344
    %5346 = vmatprep.mubr.f32.mxu0 %v5345
    %v5347 = vand.u32 %v2240, 4294901760
    %v5348 = vsub.f32 %v2240, %v5347
    %5349 = vmatmul.mubr.f32.gmra.mrb[0].mxu0 %v5348
    %v5350 = vpop.f32.mrb[0].mxu0
    %v5351 = vadd.f32 %v5207, %v5350
    %v5352 = vpop.f32.mrb[0].mxu0
    %v5353 = vand.u32 %v2261, 4294901760
    %v5354 = vsub.f32 %v2261, %v5353
    %5355 = vmatprep.mubr.f32.mxu0 %v5354
    %v5356 = vand.u32 %v2244, 4294901760
    %v5357 = vsub.f32 %v2244, %v5356
    %5358 = vmatmul.mubr.f32.gmra.mrb[0].mxu0 %v5357
    %v5359 = vpop.f32.mrb[0].mxu0
    %v5360 = vadd.f32 %v5214, %v5359
    %v5361 = vpop.f32.mrb[0].mxu0
    %5362 = vdwg.mxu0
    %5363 = vmatprep.subr.mxu0 0.0
    %v5364 = vand.u32 %v4851, 4294901760
    %5365 = vmatpush1.msra.mxu0 %v5364
    %5366 = vmatprep.subr.mxu0 0.0
    %v5367 = vand.u32 %v4852, 4294901760
    %5368 = vmatpush1.msra.mxu0 %v5367
    %5369 = vmatprep.subr.mxu0 0.0
    %v5370 = vand.u32 %v4853, 4294901760
    %5371 = vmatpush1.msra.mxu0 %v5370
    %5372 = vmatprep.subr.mxu0 0.0
    %v5373 = vand.u32 %v4854, 4294901760
    %5374 = vmatpush1.msra.mxu0 %v5373
    %5375 = vmatprep.subr.mxu0 0.0
    %v5376 = vand.u32 %v4855, 4294901760
    %5377 = vmatpush1.msra.mxu0 %v5376
    %5378 = vmatprep.subr.mxu0 0.0
    %v5379 = vand.u32 %v4856, 4294901760
    %5380 = vmatpush1.msra.mxu0 %v5379
    %5381 = vmatprep.subr.mxu0 0.0
    %v5382 = vand.u32 %v4857, 4294901760
    %5383 = vmatpush1.msra.mxu0 %v5382
    %5384 = vmatprep.subr.mxu0 0.0
    %v5385 = vand.u32 %v4858, 4294901760
    %5386 = vmatpush1.msra.mxu0 %v5385
    %5387 = vmatprep.subr.mxu0 0.0
    %v5388 = vand.u32 %v4859, 4294901760
    %5389 = vmatpush1.msra.mxu0 %v5388
    %5390 = vmatprep.subr.mxu0 0.0
    %v5391 = vand.u32 %v4860, 4294901760
    %5392 = vmatpush1.msra.mxu0 %v5391
    %5393 = vmatprep.subr.mxu0 0.0
    %v5394 = vand.u32 %v4861, 4294901760
    %5395 = vmatpush1.msra.mxu0 %v5394
    %5396 = vmatprep.subr.mxu0 0.0
    %v5397 = vand.u32 %v4862, 4294901760
    %5398 = vmatpush1.msra.mxu0 %v5397
    %5399 = vmatprep.subr.mxu0 0.0
    %v5400 = vand.u32 %v4863, 4294901760
    %5401 = vmatpush1.msra.mxu0 %v5400
    %5402 = vmatprep.subr.mxu0 0.0
    %v5403 = vand.u32 %v4864, 4294901760
    %5404 = vmatpush1.msra.mxu0 %v5403
    %5405 = vmatprep.subr.mxu0 0.0
    %v5406 = vand.u32 %v4865, 4294901760
    %5407 = vmatpush1.msra.mxu0 %v5406
    %5408 = vmatprep.subr.mxu0 0.0
    %v5409 = vand.u32 %v4866, 4294901760
    %5410 = vmatpush1.msra.mxu0 %v5409
    %5411 = vmatprep.subr.mxu0 0.0
    %v5412 = vand.u32 %v4867, 4294901760
    %5413 = vmatpush1.msra.mxu0 %v5412
    %5414 = vmatprep.subr.mxu0 0.0
    %v5415 = vand.u32 %v4868, 4294901760
    %5416 = vmatpush1.msra.mxu0 %v5415
    %5417 = vmatprep.subr.mxu0 0.0
    %5418 = vmatpush1.msra.mxu0 0.0
    %5419 = vmatprep.subr.mxu0 0.0
    %5420 = vmatpush1.msra.mxu0 0.0
    %5421 = vmatprep.subr.mxu0 0.0
    %5422 = vmatpush1.msra.mxu0 0.0
    %5423 = vmatprep.subr.mxu0 0.0
    %5424 = vmatpush1.msra.mxu0 0.0
    %5425 = vmatprep.subr.mxu0 0.0
    %5426 = vmatpush1.msra.mxu0 0.0
    %5427 = vmatprep.subr.mxu0 0.0
    %5428 = vmatpush1.msra.mxu0 0.0
    %5429 = vmatprep.subr.mxu0 0.0
    %5430 = vmatpush1.msra.mxu0 0.0
    %5431 = vmatprep.subr.mxu0 0.0
    %5432 = vmatpush1.msra.mxu0 0.0
    %5433 = vmatprep.subr.mxu0 0.0
    %5434 = vmatpush1.msra.mxu0 0.0
    %5435 = vmatprep.subr.mxu0 0.0
    %5436 = vmatpush1.msra.mxu0 0.0
    %5437 = vmatprep.subr.mxu0 0.0
    %5438 = vmatpush1.msra.mxu0 0.0
    %5439 = vmatprep.subr.mxu0 0.0
    %5440 = vmatpush1.msra.mxu0 0.0
    %5441 = vmatprep.subr.mxu0 0.0
    %5442 = vmatpush1.msra.mxu0 0.0
    %5443 = vmatprep.subr.mxu0 0.0
    %5444 = vmatpush1.msra.mxu0 0.0
    %v5445 = vand.u32 %v2253, 4294901760
    %v5446 = vsub.f32 %v2253, %v5445
    %v5447 = vand.u32 %v5446, 4294901760
    %5448 = vmatprep.mubr.f32.mxu0 %v5447
    %v5449 = vand.u32 %v2227, 4294901760
    %v5450 = vsub.f32 %v2227, %v5449
    %v5451 = vand.u32 %v5450, 4294901760
    %5452 = vmatmul.mubr.f32.gmra.mrb[0].mxu0 %v5451
    %v5453 = vpop.f32.mrb[0].mxu0
    %v5454 = vadd.f32 %v5324, %v5453
    %v5455 = vpop.f32.mrb[0].mxu0
    %v5456 = vand.u32 %v2255, 4294901760
    %v5457 = vsub.f32 %v2255, %v5456
    %v5458 = vand.u32 %v5457, 4294901760
    %5459 = vmatprep.mubr.f32.mxu0 %v5458
    %v5460 = vand.u32 %v2232, 4294901760
    %v5461 = vsub.f32 %v2232, %v5460
    %v5462 = vand.u32 %v5461, 4294901760
    %5463 = vmatmul.mubr.f32.gmra.mrb[0].mxu0 %v5462
    %v5464 = vpop.f32.mrb[0].mxu0
    %v5465 = vadd.f32 %v5333, %v5464
    %v5466 = vpop.f32.mrb[0].mxu0
    %v5467 = vand.u32 %v2257, 4294901760
    %v5468 = vsub.f32 %v2257, %v5467
    %v5469 = vand.u32 %v5468, 4294901760
    %5470 = vmatprep.mubr.f32.mxu0 %v5469
    %v5471 = vand.u32 %v2236, 4294901760
    %v5472 = vsub.f32 %v2236, %v5471
    %v5473 = vand.u32 %v5472, 4294901760
    %5474 = vmatmul.mubr.f32.gmra.mrb[0].mxu0 %v5473
    %v5475 = vpop.f32.mrb[0].mxu0
    %v5476 = vadd.f32 %v5342, %v5475
    %v5477 = vpop.f32.mrb[0].mxu0
    %v5478 = vand.u32 %v2259, 4294901760
    %v5479 = vsub.f32 %v2259, %v5478
    %v5480 = vand.u32 %v5479, 4294901760
    %5481 = vmatprep.mubr.f32.mxu0 %v5480
    %v5482 = vand.u32 %v2240, 4294901760
    %v5483 = vsub.f32 %v2240, %v5482
    %v5484 = vand.u32 %v5483, 4294901760
    %5485 = vmatmul.mubr.f32.gmra.mrb[0].mxu0 %v5484
    %v5486 = vpop.f32.mrb[0].mxu0
    %v5487 = vadd.f32 %v5351, %v5486
    %v5488 = vpop.f32.mrb[0].mxu0
    %v5489 = vand.u32 %v2261, 4294901760
    %v5490 = vsub.f32 %v2261, %v5489
    %v5491 = vand.u32 %v5490, 4294901760
    %5492 = vmatprep.mubr.f32.mxu0 %v5491
    %v5493 = vand.u32 %v2244, 4294901760
    %v5494 = vsub.f32 %v2244, %v5493
    %v5495 = vand.u32 %v5494, 4294901760
    %5496 = vmatmul.mubr.f32.gmra.mrb[0].mxu0 %v5495
    %v5497 = vpop.f32.mrb[0].mxu0
    %v5498 = vadd.f32 %v5360, %v5497
    %v5499 = vpop.f32.mrb[0].mxu0
    %5500 = vdwg.mxu0
    %5501 = vmatprep.subr.mxu0 0.0
    %v5502 = vand.u32 %v4851, 4294901760
    %v5503 = vsub.f32 %v4851, %v5502
    %v5504 = vand.u32 %v5503, 4294901760
    %5505 = vmatpush1.msra.mxu0 %v5504
    %5506 = vmatprep.subr.mxu0 0.0
    %v5507 = vand.u32 %v4852, 4294901760
    %v5508 = vsub.f32 %v4852, %v5507
    %v5509 = vand.u32 %v5508, 4294901760
    %5510 = vmatpush1.msra.mxu0 %v5509
    %5511 = vmatprep.subr.mxu0 0.0
    %v5512 = vand.u32 %v4853, 4294901760
    %v5513 = vsub.f32 %v4853, %v5512
    %v5514 = vand.u32 %v5513, 4294901760
    %5515 = vmatpush1.msra.mxu0 %v5514
    %5516 = vmatprep.subr.mxu0 0.0
    %v5517 = vand.u32 %v4854, 4294901760
    %v5518 = vsub.f32 %v4854, %v5517
    %v5519 = vand.u32 %v5518, 4294901760
    %5520 = vmatpush1.msra.mxu0 %v5519
    %5521 = vmatprep.subr.mxu0 0.0
    %v5522 = vand.u32 %v4855, 4294901760
    %v5523 = vsub.f32 %v4855, %v5522
    %v5524 = vand.u32 %v5523, 4294901760
    %5525 = vmatpush1.msra.mxu0 %v5524
    %5526 = vmatprep.subr.mxu0 0.0
    %v5527 = vand.u32 %v4856, 4294901760
    %v5528 = vsub.f32 %v4856, %v5527
    %v5529 = vand.u32 %v5528, 4294901760
    %5530 = vmatpush1.msra.mxu0 %v5529
    %5531 = vmatprep.subr.mxu0 0.0
    %v5532 = vand.u32 %v4857, 4294901760
    %v5533 = vsub.f32 %v4857, %v5532
    %v5534 = vand.u32 %v5533, 4294901760
    %5535 = vmatpush1.msra.mxu0 %v5534
    %5536 = vmatprep.subr.mxu0 0.0
    %v5537 = vand.u32 %v4858, 4294901760
    %v5538 = vsub.f32 %v4858, %v5537
    %v5539 = vand.u32 %v5538, 4294901760
    %5540 = vmatpush1.msra.mxu0 %v5539
    %5541 = vmatprep.subr.mxu0 0.0
    %v5542 = vand.u32 %v4859, 4294901760
    %v5543 = vsub.f32 %v4859, %v5542
    %v5544 = vand.u32 %v5543, 4294901760
    %5545 = vmatpush1.msra.mxu0 %v5544
    %5546 = vmatprep.subr.mxu0 0.0
    %v5547 = vand.u32 %v4860, 4294901760
    %v5548 = vsub.f32 %v4860, %v5547
    %v5549 = vand.u32 %v5548, 4294901760
    %5550 = vmatpush1.msra.mxu0 %v5549
    %5551 = vmatprep.subr.mxu0 0.0
    %v5552 = vand.u32 %v4861, 4294901760
    %v5553 = vsub.f32 %v4861, %v5552
    %v5554 = vand.u32 %v5553, 4294901760
    %5555 = vmatpush1.msra.mxu0 %v5554
    %5556 = vmatprep.subr.mxu0 0.0
    %v5557 = vand.u32 %v4862, 4294901760
    %v5558 = vsub.f32 %v4862, %v5557
    %v5559 = vand.u32 %v5558, 4294901760
    %5560 = vmatpush1.msra.mxu0 %v5559
    %5561 = vmatprep.subr.mxu0 0.0
    %v5562 = vand.u32 %v4863, 4294901760
    %v5563 = vsub.f32 %v4863, %v5562
    %v5564 = vand.u32 %v5563, 4294901760
    %5565 = vmatpush1.msra.mxu0 %v5564
    %5566 = vmatprep.subr.mxu0 0.0
    %v5567 = vand.u32 %v4864, 4294901760
    %v5568 = vsub.f32 %v4864, %v5567
    %v5569 = vand.u32 %v5568, 4294901760
    %5570 = vmatpush1.msra.mxu0 %v5569
    %5571 = vmatprep.subr.mxu0 0.0
    %v5572 = vand.u32 %v4865, 4294901760
    %v5573 = vsub.f32 %v4865, %v5572
    %v5574 = vand.u32 %v5573, 4294901760
    %5575 = vmatpush1.msra.mxu0 %v5574
    %5576 = vmatprep.subr.mxu0 0.0
    %v5577 = vand.u32 %v4866, 4294901760
    %v5578 = vsub.f32 %v4866, %v5577
    %v5579 = vand.u32 %v5578, 4294901760
    %5580 = vmatpush1.msra.mxu0 %v5579
    %5581 = vmatprep.subr.mxu0 0.0
    %v5582 = vand.u32 %v4867, 4294901760
    %v5583 = vsub.f32 %v4867, %v5582
    %v5584 = vand.u32 %v5583, 4294901760
    %5585 = vmatpush1.msra.mxu0 %v5584
    %5586 = vmatprep.subr.mxu0 0.0
    %v5587 = vand.u32 %v4868, 4294901760
    %v5588 = vsub.f32 %v4868, %v5587
    %v5589 = vand.u32 %v5588, 4294901760
    %5590 = vmatpush1.msra.mxu0 %v5589
    %5591 = vmatprep.subr.mxu0 0.0
    %5592 = vmatpush1.msra.mxu0 0.0
    %5593 = vmatprep.subr.mxu0 0.0
    %5594 = vmatpush1.msra.mxu0 0.0
    %5595 = vmatprep.subr.mxu0 0.0
    %5596 = vmatpush1.msra.mxu0 0.0
    %5597 = vmatprep.subr.mxu0 0.0
    %5598 = vmatpush1.msra.mxu0 0.0
    %5599 = vmatprep.subr.mxu0 0.0
    %5600 = vmatpush1.msra.mxu0 0.0
    %5601 = vmatprep.subr.mxu0 0.0
    %5602 = vmatpush1.msra.mxu0 0.0
    %5603 = vmatprep.subr.mxu0 0.0
    %5604 = vmatpush1.msra.mxu0 0.0
    %5605 = vmatprep.subr.mxu0 0.0
    %5606 = vmatpush1.msra.mxu0 0.0
    %5607 = vmatprep.subr.mxu0 0.0
    %5608 = vmatpush1.msra.mxu0 0.0
    %5609 = vmatprep.subr.mxu0 0.0
    %5610 = vmatpush1.msra.mxu0 0.0
    %5611 = vmatprep.subr.mxu0 0.0
    %5612 = vmatpush1.msra.mxu0 0.0
    %5613 = vmatprep.subr.mxu0 0.0
    %5614 = vmatpush1.msra.mxu0 0.0
    %5615 = vmatprep.subr.mxu0 0.0
    %5616 = vmatpush1.msra.mxu0 0.0
    %5617 = vmatprep.subr.mxu0 0.0
    %5618 = vmatpush1.msra.mxu0 0.0
    %v5619 = vand.u32 %v2253, 4294901760
    %5620 = vmatprep.mubr.f32.mxu0 %v5619
    %v5621 = vand.u32 %v2227, 4294901760
    %5622 = vmatmul.mubr.f32.gmra.mrb[0].mxu0 %v5621
    %v5623 = vpop.f32.mrb[0].mxu0
    %v5624 = vadd.f32 %v5454, %v5623
    %v5625 = vpop.f32.mrb[0].mxu0
    %v5626 = vand.u32 %v2255, 4294901760
    %5627 = vmatprep.mubr.f32.mxu0 %v5626
    %v5628 = vand.u32 %v2232, 4294901760
    %5629 = vmatmul.mubr.f32.gmra.mrb[0].mxu0 %v5628
    %v5630 = vpop.f32.mrb[0].mxu0
    %v5631 = vadd.f32 %v5465, %v5630
    %v5632 = vpop.f32.mrb[0].mxu0
    %v5633 = vand.u32 %v2257, 4294901760
    %5634 = vmatprep.mubr.f32.mxu0 %v5633
    %v5635 = vand.u32 %v2236, 4294901760
    %5636 = vmatmul.mubr.f32.gmra.mrb[0].mxu0 %v5635
    %v5637 = vpop.f32.mrb[0].mxu0
    %v5638 = vadd.f32 %v5476, %v5637
    %v5639 = vpop.f32.mrb[0].mxu0
    %v5640 = vand.u32 %v2259, 4294901760
    %5641 = vmatprep.mubr.f32.mxu0 %v5640
    %v5642 = vand.u32 %v2240, 4294901760
    %5643 = vmatmul.mubr.f32.gmra.mrb[0].mxu0 %v5642
    %v5644 = vpop.f32.mrb[0].mxu0
    %v5645 = vadd.f32 %v5487, %v5644
    %v5646 = vpop.f32.mrb[0].mxu0
    %v5647 = vand.u32 %v2261, 4294901760
    %5648 = vmatprep.mubr.f32.mxu0 %v5647
    %v5649 = vand.u32 %v2244, 4294901760
    %5650 = vmatmul.mubr.f32.gmra.mrb[0].mxu0 %v5649
    %v5651 = vpop.f32.mrb[0].mxu0
    %v5652 = vadd.f32 %v5498, %v5651
    %v5653 = vpop.f32.mrb[0].mxu0
    %5654 = vdwg.mxu0
    %5655 = vmatprep.subr.mxu0 0.0
    %v5656 = vand.u32 %v4851, 4294901760
    %5657 = vmatpush1.msra.mxu0 %v5656
    %5658 = vmatprep.subr.mxu0 0.0
    %v5659 = vand.u32 %v4852, 4294901760
    %5660 = vmatpush1.msra.mxu0 %v5659
    %5661 = vmatprep.subr.mxu0 0.0
    %v5662 = vand.u32 %v4853, 4294901760
    %5663 = vmatpush1.msra.mxu0 %v5662
    %5664 = vmatprep.subr.mxu0 0.0
    %v5665 = vand.u32 %v4854, 4294901760
    %5666 = vmatpush1.msra.mxu0 %v5665
    %5667 = vmatprep.subr.mxu0 0.0
    %v5668 = vand.u32 %v4855, 4294901760
    %5669 = vmatpush1.msra.mxu0 %v5668
    %5670 = vmatprep.subr.mxu0 0.0
    %v5671 = vand.u32 %v4856, 4294901760
    %5672 = vmatpush1.msra.mxu0 %v5671
    %5673 = vmatprep.subr.mxu0 0.0
    %v5674 = vand.u32 %v4857, 4294901760
    %5675 = vmatpush1.msra.mxu0 %v5674
    %5676 = vmatprep.subr.mxu0 0.0
    %v5677 = vand.u32 %v4858, 4294901760
    %5678 = vmatpush1.msra.mxu0 %v5677
    %5679 = vmatprep.subr.mxu0 0.0
    %v5680 = vand.u32 %v4859, 4294901760
    %5681 = vmatpush1.msra.mxu0 %v5680
    %5682 = vmatprep.subr.mxu0 0.0
    %v5683 = vand.u32 %v4860, 4294901760
    %5684 = vmatpush1.msra.mxu0 %v5683
    %5685 = vmatprep.subr.mxu0 0.0
    %v5686 = vand.u32 %v4861, 4294901760
    %5687 = vmatpush1.msra.mxu0 %v5686
    %5688 = vmatprep.subr.mxu0 0.0
    %v5689 = vand.u32 %v4862, 4294901760
    %5690 = vmatpush1.msra.mxu0 %v5689
    %5691 = vmatprep.subr.mxu0 0.0
    %v5692 = vand.u32 %v4863, 4294901760
    %5693 = vmatpush1.msra.mxu0 %v5692
    %5694 = vmatprep.subr.mxu0 0.0
    %v5695 = vand.u32 %v4864, 4294901760
    %5696 = vmatpush1.msra.mxu0 %v5695
    %5697 = vmatprep.subr.mxu0 0.0
    %v5698 = vand.u32 %v4865, 4294901760
    %5699 = vmatpush1.msra.mxu0 %v5698
    %5700 = vmatprep.subr.mxu0 0.0
    %v5701 = vand.u32 %v4866, 4294901760
    %5702 = vmatpush1.msra.mxu0 %v5701
    %5703 = vmatprep.subr.mxu0 0.0
    %v5704 = vand.u32 %v4867, 4294901760
    %5705 = vmatpush1.msra.mxu0 %v5704
    %5706 = vmatprep.subr.mxu0 0.0
    %v5707 = vand.u32 %v4868, 4294901760
    %5708 = vmatpush1.msra.mxu0 %v5707
    %5709 = vmatprep.subr.mxu0 0.0
    %5710 = vmatpush1.msra.mxu0 0.0
    %5711 = vmatprep.subr.mxu0 0.0
    %5712 = vmatpush1.msra.mxu0 0.0
    %5713 = vmatprep.subr.mxu0 0.0
    %5714 = vmatpush1.msra.mxu0 0.0
    %5715 = vmatprep.subr.mxu0 0.0
    %5716 = vmatpush1.msra.mxu0 0.0
    %5717 = vmatprep.subr.mxu0 0.0
    %5718 = vmatpush1.msra.mxu0 0.0
    %5719 = vmatprep.subr.mxu0 0.0
    %5720 = vmatpush1.msra.mxu0 0.0
    %5721 = vmatprep.subr.mxu0 0.0
    %5722 = vmatpush1.msra.mxu0 0.0
    %5723 = vmatprep.subr.mxu0 0.0
    %5724 = vmatpush1.msra.mxu0 0.0
    %5725 = vmatprep.subr.mxu0 0.0
    %5726 = vmatpush1.msra.mxu0 0.0
    %5727 = vmatprep.subr.mxu0 0.0
    %5728 = vmatpush1.msra.mxu0 0.0
    %5729 = vmatprep.subr.mxu0 0.0
    %5730 = vmatpush1.msra.mxu0 0.0
    %5731 = vmatprep.subr.mxu0 0.0
    %5732 = vmatpush1.msra.mxu0 0.0
    %5733 = vmatprep.subr.mxu0 0.0
    %5734 = vmatpush1.msra.mxu0 0.0
    %5735 = vmatprep.subr.mxu0 0.0
    %5736 = vmatpush1.msra.mxu0 0.0
    %v5737 = vand.u32 %v2253, 4294901760
    %5738 = vmatprep.mubr.f32.mxu0 %v5737
    %v5739 = vand.u32 %v2227, 4294901760
    %5740 = vmatmul.mubr.f32.gmra.mrb[0].mxu0 %v5739
    %v5741 = vpop.f32.mrb[0].mxu0
    %v5742 = vadd.f32 %v5624, %v5741
    %v5743 = vpop.f32.mrb[0].mxu0
    %v5744 = vand.u32 %v2255, 4294901760
    %5745 = vmatprep.mubr.f32.mxu0 %v5744
    %v5746 = vand.u32 %v2232, 4294901760
    %5747 = vmatmul.mubr.f32.gmra.mrb[0].mxu0 %v5746
    %v5748 = vpop.f32.mrb[0].mxu0
    %v5749 = vadd.f32 %v5631, %v5748
    %v5750 = vpop.f32.mrb[0].mxu0
    %v5751 = vand.u32 %v2257, 4294901760
    %5752 = vmatprep.mubr.f32.mxu0 %v5751
    %v5753 = vand.u32 %v2236, 4294901760
    %5754 = vmatmul.mubr.f32.gmra.mrb[0].mxu0 %v5753
    %v5755 = vpop.f32.mrb[0].mxu0
    %v5756 = vadd.f32 %v5638, %v5755
    %v5757 = vpop.f32.mrb[0].mxu0
    %v5758 = vand.u32 %v2259, 4294901760
    %5759 = vmatprep.mubr.f32.mxu0 %v5758
    %v5760 = vand.u32 %v2240, 4294901760
    %5761 = vmatmul.mubr.f32.gmra.mrb[0].mxu0 %v5760
    %v5762 = vpop.f32.mrb[0].mxu0
    %v5763 = vadd.f32 %v5645, %v5762
    %v5764 = vpop.f32.mrb[0].mxu0
    %v5765 = vand.u32 %v2261, 4294901760
    %5766 = vmatprep.mubr.f32.mxu0 %v5765
    %v5767 = vand.u32 %v2244, 4294901760
    %5768 = vmatmul.mubr.f32.gmra.mrb[0].mxu0 %v5767
    %v5769 = vpop.f32.mrb[0].mxu0
    %v5770 = vadd.f32 %v5652, %v5769
    %v5771 = vpop.f32.mrb[0].mxu0
    %5772 = vdwg.mxu0
    %5773 = vmatprep.subr.mxu0 0.0
    %v5774 = vand.u32 %v4832, 4294901760
    %5775 = vmatpush1.msra.mxu0 %v5774
    %5776 = vmatprep.subr.mxu0 0.0
    %v5777 = vand.u32 %v4833, 4294901760
    %5778 = vmatpush1.msra.mxu0 %v5777
    %5779 = vmatprep.subr.mxu0 0.0
    %v5780 = vand.u32 %v4834, 4294901760
    %5781 = vmatpush1.msra.mxu0 %v5780
    %5782 = vmatprep.subr.mxu0 0.0
    %v5783 = vand.u32 %v4835, 4294901760
    %5784 = vmatpush1.msra.mxu0 %v5783
    %5785 = vmatprep.subr.mxu0 0.0
    %v5786 = vand.u32 %v4836, 4294901760
    %5787 = vmatpush1.msra.mxu0 %v5786
    %5788 = vmatprep.subr.mxu0 0.0
    %v5789 = vand.u32 %v4837, 4294901760
    %5790 = vmatpush1.msra.mxu0 %v5789
    %5791 = vmatprep.subr.mxu0 0.0
    %v5792 = vand.u32 %v4838, 4294901760
    %5793 = vmatpush1.msra.mxu0 %v5792
    %5794 = vmatprep.subr.mxu0 0.0
    %v5795 = vand.u32 %v4839, 4294901760
    %5796 = vmatpush1.msra.mxu0 %v5795
    %5797 = vmatprep.subr.mxu0 0.0
    %v5798 = vand.u32 %v4840, 4294901760
    %5799 = vmatpush1.msra.mxu0 %v5798
    %5800 = vmatprep.subr.mxu0 0.0
    %v5801 = vand.u32 %v4841, 4294901760
    %5802 = vmatpush1.msra.mxu0 %v5801
    %5803 = vmatprep.subr.mxu0 0.0
    %v5804 = vand.u32 %v4842, 4294901760
    %5805 = vmatpush1.msra.mxu0 %v5804
    %5806 = vmatprep.subr.mxu0 0.0
    %v5807 = vand.u32 %v4843, 4294901760
    %5808 = vmatpush1.msra.mxu0 %v5807
    %5809 = vmatprep.subr.mxu0 0.0
    %v5810 = vand.u32 %v4844, 4294901760
    %5811 = vmatpush1.msra.mxu0 %v5810
    %5812 = vmatprep.subr.mxu0 0.0
    %v5813 = vand.u32 %v4845, 4294901760
    %5814 = vmatpush1.msra.mxu0 %v5813
    %5815 = vmatprep.subr.mxu0 0.0
    %v5816 = vand.u32 %v4846, 4294901760
    %5817 = vmatpush1.msra.mxu0 %v5816
    %5818 = vmatprep.subr.mxu0 0.0
    %v5819 = vand.u32 %v4847, 4294901760
    %5820 = vmatpush1.msra.mxu0 %v5819
    %5821 = vmatprep.subr.mxu0 0.0
    %v5822 = vand.u32 %v4848, 4294901760
    %5823 = vmatpush1.msra.mxu0 %v5822
    %5824 = vmatprep.subr.mxu0 0.0
    %v5825 = vand.u32 %v4849, 4294901760
    %5826 = vmatpush1.msra.mxu0 %v5825
    %5827 = vmatprep.subr.mxu0 0.0
    %5828 = vmatpush1.msra.mxu0 0.0
    %5829 = vmatprep.subr.mxu0 0.0
    %5830 = vmatpush1.msra.mxu0 0.0
    %5831 = vmatprep.subr.mxu0 0.0
    %5832 = vmatpush1.msra.mxu0 0.0
    %5833 = vmatprep.subr.mxu0 0.0
    %5834 = vmatpush1.msra.mxu0 0.0
    %5835 = vmatprep.subr.mxu0 0.0
    %5836 = vmatpush1.msra.mxu0 0.0
    %5837 = vmatprep.subr.mxu0 0.0
    %5838 = vmatpush1.msra.mxu0 0.0
    %5839 = vmatprep.subr.mxu0 0.0
    %5840 = vmatpush1.msra.mxu0 0.0
    %5841 = vmatprep.subr.mxu0 0.0
    %5842 = vmatpush1.msra.mxu0 0.0
    %5843 = vmatprep.subr.mxu0 0.0
    %5844 = vmatpush1.msra.mxu0 0.0
    %5845 = vmatprep.subr.mxu0 0.0
    %5846 = vmatpush1.msra.mxu0 0.0
    %5847 = vmatprep.subr.mxu0 0.0
    %5848 = vmatpush1.msra.mxu0 0.0
    %5849 = vmatprep.subr.mxu0 0.0
    %5850 = vmatpush1.msra.mxu0 0.0
    %5851 = vmatprep.subr.mxu0 0.0
    %5852 = vmatpush1.msra.mxu0 0.0
    %5853 = vmatprep.subr.mxu0 0.0
    %5854 = vmatpush1.msra.mxu0 0.0
    %v5855 = vand.u32 %v3167, 4294901760
    %v5856 = vsub.f32 %v3167, %v5855
    %v5857 = vand.u32 %v5856, 4294901760
    %v5858 = vsub.f32 %v5856, %v5857
    %v5859 = vand.u32 %v5858, 4294901760
    %5860 = vmatprep.mubr.f32.mxu0 %v5859
    %v5861 = vand.u32 %v2164, 4294901760
    %v5862 = vsub.f32 %v2164, %v5861
    %v5863 = vand.u32 %v5862, 4294901760
    %v5864 = vsub.f32 %v5862, %v5863
    %v5865 = vand.u32 %v5864, 4294901760
    %5866 = vmatmul.mubr.f32.gmra.mrb[0].mxu0 %v5865
    %v5867 = vpop.f32.mrb[0].mxu0
    %v5868 = vadd.f32 %v5742, %v5867
    %v5869 = vpop.f32.mrb[0].mxu0
    %v5870 = vand.u32 %v3169, 4294901760
    %v5871 = vsub.f32 %v3169, %v5870
    %v5872 = vand.u32 %v5871, 4294901760
    %v5873 = vsub.f32 %v5871, %v5872
    %v5874 = vand.u32 %v5873, 4294901760
    %5875 = vmatprep.mubr.f32.mxu0 %v5874
    %v5876 = vand.u32 %v2166, 4294901760
    %v5877 = vsub.f32 %v2166, %v5876
    %v5878 = vand.u32 %v5877, 4294901760
    %v5879 = vsub.f32 %v5877, %v5878
    %v5880 = vand.u32 %v5879, 4294901760
    %5881 = vmatmul.mubr.f32.gmra.mrb[0].mxu0 %v5880
    %v5882 = vpop.f32.mrb[0].mxu0
    %v5883 = vadd.f32 %v5749, %v5882
    %v5884 = vpop.f32.mrb[0].mxu0
    %v5885 = vand.u32 %v3171, 4294901760
    %v5886 = vsub.f32 %v3171, %v5885
    %v5887 = vand.u32 %v5886, 4294901760
    %v5888 = vsub.f32 %v5886, %v5887
    %v5889 = vand.u32 %v5888, 4294901760
    %5890 = vmatprep.mubr.f32.mxu0 %v5889
    %v5891 = vand.u32 %v2168, 4294901760
    %v5892 = vsub.f32 %v2168, %v5891
    %v5893 = vand.u32 %v5892, 4294901760
    %v5894 = vsub.f32 %v5892, %v5893
    %v5895 = vand.u32 %v5894, 4294901760
    %5896 = vmatmul.mubr.f32.gmra.mrb[0].mxu0 %v5895
    %v5897 = vpop.f32.mrb[0].mxu0
    %v5898 = vadd.f32 %v5756, %v5897
    %v5899 = vpop.f32.mrb[0].mxu0
    %v5900 = vand.u32 %v3173, 4294901760
    %v5901 = vsub.f32 %v3173, %v5900
    %v5902 = vand.u32 %v5901, 4294901760
    %v5903 = vsub.f32 %v5901, %v5902
    %v5904 = vand.u32 %v5903, 4294901760
    %5905 = vmatprep.mubr.f32.mxu0 %v5904
    %v5906 = vand.u32 %v2170, 4294901760
    %v5907 = vsub.f32 %v2170, %v5906
    %v5908 = vand.u32 %v5907, 4294901760
    %v5909 = vsub.f32 %v5907, %v5908
    %v5910 = vand.u32 %v5909, 4294901760
    %5911 = vmatmul.mubr.f32.gmra.mrb[0].mxu0 %v5910
    %v5912 = vpop.f32.mrb[0].mxu0
    %v5913 = vadd.f32 %v5763, %v5912
    %v5914 = vpop.f32.mrb[0].mxu0
    %v5915 = vand.u32 %v3175, 4294901760
    %v5916 = vsub.f32 %v3175, %v5915
    %v5917 = vand.u32 %v5916, 4294901760
    %v5918 = vsub.f32 %v5916, %v5917
    %v5919 = vand.u32 %v5918, 4294901760
    %5920 = vmatprep.mubr.f32.mxu0 %v5919
    %v5921 = vand.u32 %v2172, 4294901760
    %v5922 = vsub.f32 %v2172, %v5921
    %v5923 = vand.u32 %v5922, 4294901760
    %v5924 = vsub.f32 %v5922, %v5923
    %v5925 = vand.u32 %v5924, 4294901760
    %5926 = vmatmul.mubr.f32.gmra.mrb[0].mxu0 %v5925
    %v5927 = vpop.f32.mrb[0].mxu0
    %v5928 = vadd.f32 %v5770, %v5927
    %v5929 = vpop.f32.mrb[0].mxu0
    %5930 = vdwg.mxu0
    %5931 = vmatprep.subr.mxu0 0.0
    %v5932 = vand.u32 %v4832, 4294901760
    %v5933 = vsub.f32 %v4832, %v5932
    %v5934 = vand.u32 %v5933, 4294901760
    %v5935 = vsub.f32 %v5933, %v5934
    %v5936 = vand.u32 %v5935, 4294901760
    %5937 = vmatpush1.msra.mxu0 %v5936
    %5938 = vmatprep.subr.mxu0 0.0
    %v5939 = vand.u32 %v4833, 4294901760
    %v5940 = vsub.f32 %v4833, %v5939
    %v5941 = vand.u32 %v5940, 4294901760
    %v5942 = vsub.f32 %v5940, %v5941
    %v5943 = vand.u32 %v5942, 4294901760
    %5944 = vmatpush1.msra.mxu0 %v5943
    %5945 = vmatprep.subr.mxu0 0.0
    %v5946 = vand.u32 %v4834, 4294901760
    %v5947 = vsub.f32 %v4834, %v5946
    %v5948 = vand.u32 %v5947, 4294901760
    %v5949 = vsub.f32 %v5947, %v5948
    %v5950 = vand.u32 %v5949, 4294901760
    %5951 = vmatpush1.msra.mxu0 %v5950
    %5952 = vmatprep.subr.mxu0 0.0
    %v5953 = vand.u32 %v4835, 4294901760
    %v5954 = vsub.f32 %v4835, %v5953
    %v5955 = vand.u32 %v5954, 4294901760
    %v5956 = vsub.f32 %v5954, %v5955
    %v5957 = vand.u32 %v5956, 4294901760
    %5958 = vmatpush1.msra.mxu0 %v5957
    %5959 = vmatprep.subr.mxu0 0.0
    %v5960 = vand.u32 %v4836, 4294901760
    %v5961 = vsub.f32 %v4836, %v5960
    %v5962 = vand.u32 %v5961, 4294901760
    %v5963 = vsub.f32 %v5961, %v5962
    %v5964 = vand.u32 %v5963, 4294901760
    %5965 = vmatpush1.msra.mxu0 %v5964
    %5966 = vmatprep.subr.mxu0 0.0
    %v5967 = vand.u32 %v4837, 4294901760
    %v5968 = vsub.f32 %v4837, %v5967
    %v5969 = vand.u32 %v5968, 4294901760
    %v5970 = vsub.f32 %v5968, %v5969
    %v5971 = vand.u32 %v5970, 4294901760
    %5972 = vmatpush1.msra.mxu0 %v5971
    %5973 = vmatprep.subr.mxu0 0.0
    %v5974 = vand.u32 %v4838, 4294901760
    %v5975 = vsub.f32 %v4838, %v5974
    %v5976 = vand.u32 %v5975, 4294901760
    %v5977 = vsub.f32 %v5975, %v5976
    %v5978 = vand.u32 %v5977, 4294901760
    %5979 = vmatpush1.msra.mxu0 %v5978
    %5980 = vmatprep.subr.mxu0 0.0
    %v5981 = vand.u32 %v4839, 4294901760
    %v5982 = vsub.f32 %v4839, %v5981
    %v5983 = vand.u32 %v5982, 4294901760
    %v5984 = vsub.f32 %v5982, %v5983
    %v5985 = vand.u32 %v5984, 4294901760
    %5986 = vmatpush1.msra.mxu0 %v5985
    %5987 = vmatprep.subr.mxu0 0.0
    %v5988 = vand.u32 %v4840, 4294901760
    %v5989 = vsub.f32 %v4840, %v5988
    %v5990 = vand.u32 %v5989, 4294901760
    %v5991 = vsub.f32 %v5989, %v5990
    %v5992 = vand.u32 %v5991, 4294901760
    %5993 = vmatpush1.msra.mxu0 %v5992
    %5994 = vmatprep.subr.mxu0 0.0
    %v5995 = vand.u32 %v4841, 4294901760
    %v5996 = vsub.f32 %v4841, %v5995
    %v5997 = vand.u32 %v5996, 4294901760
    %v5998 = vsub.f32 %v5996, %v5997
    %v5999 = vand.u32 %v5998, 4294901760
    %6000 = vmatpush1.msra.mxu0 %v5999
    %6001 = vmatprep.subr.mxu0 0.0
    %v6002 = vand.u32 %v4842, 4294901760
    %v6003 = vsub.f32 %v4842, %v6002
    %v6004 = vand.u32 %v6003, 4294901760
    %v6005 = vsub.f32 %v6003, %v6004
    %v6006 = vand.u32 %v6005, 4294901760
    %6007 = vmatpush1.msra.mxu0 %v6006
    %6008 = vmatprep.subr.mxu0 0.0
    %v6009 = vand.u32 %v4843, 4294901760
    %v6010 = vsub.f32 %v4843, %v6009
    %v6011 = vand.u32 %v6010, 4294901760
    %v6012 = vsub.f32 %v6010, %v6011
    %v6013 = vand.u32 %v6012, 4294901760
    %6014 = vmatpush1.msra.mxu0 %v6013
    %6015 = vmatprep.subr.mxu0 0.0
    %v6016 = vand.u32 %v4844, 4294901760
    %v6017 = vsub.f32 %v4844, %v6016
    %v6018 = vand.u32 %v6017, 4294901760
    %v6019 = vsub.f32 %v6017, %v6018
    %v6020 = vand.u32 %v6019, 4294901760
    %6021 = vmatpush1.msra.mxu0 %v6020
    %6022 = vmatprep.subr.mxu0 0.0
    %v6023 = vand.u32 %v4845, 4294901760
    %v6024 = vsub.f32 %v4845, %v6023
    %v6025 = vand.u32 %v6024, 4294901760
    %v6026 = vsub.f32 %v6024, %v6025
    %v6027 = vand.u32 %v6026, 4294901760
    %6028 = vmatpush1.msra.mxu0 %v6027
    %6029 = vmatprep.subr.mxu0 0.0
    %v6030 = vand.u32 %v4846, 4294901760
    %v6031 = vsub.f32 %v4846, %v6030
    %v6032 = vand.u32 %v6031, 4294901760
    %v6033 = vsub.f32 %v6031, %v6032
    %v6034 = vand.u32 %v6033, 4294901760
    %6035 = vmatpush1.msra.mxu0 %v6034
    %6036 = vmatprep.subr.mxu0 0.0
    %v6037 = vand.u32 %v4847, 4294901760
    %v6038 = vsub.f32 %v4847, %v6037
    %v6039 = vand.u32 %v6038, 4294901760
    %v6040 = vsub.f32 %v6038, %v6039
    %v6041 = vand.u32 %v6040, 4294901760
    %6042 = vmatpush1.msra.mxu0 %v6041
    %6043 = vmatprep.subr.mxu0 0.0
    %v6044 = vand.u32 %v4848, 4294901760
    %v6045 = vsub.f32 %v4848, %v6044
    %v6046 = vand.u32 %v6045, 4294901760
    %v6047 = vsub.f32 %v6045, %v6046
    %v6048 = vand.u32 %v6047, 4294901760
    %6049 = vmatpush1.msra.mxu0 %v6048
    %6050 = vmatprep.subr.mxu0 0.0
    %v6051 = vand.u32 %v4849, 4294901760
    %v6052 = vsub.f32 %v4849, %v6051
    %v6053 = vand.u32 %v6052, 4294901760
    %v6054 = vsub.f32 %v6052, %v6053
    %v6055 = vand.u32 %v6054, 4294901760
    %6056 = vmatpush1.msra.mxu0 %v6055
    %6057 = vmatprep.subr.mxu0 0.0
    %6058 = vmatpush1.msra.mxu0 0.0
    %6059 = vmatprep.subr.mxu0 0.0
    %6060 = vmatpush1.msra.mxu0 0.0
    %6061 = vmatprep.subr.mxu0 0.0
    %6062 = vmatpush1.msra.mxu0 0.0
    %6063 = vmatprep.subr.mxu0 0.0
    %6064 = vmatpush1.msra.mxu0 0.0
    %6065 = vmatprep.subr.mxu0 0.0
    %6066 = vmatpush1.msra.mxu0 0.0
    %6067 = vmatprep.subr.mxu0 0.0
    %6068 = vmatpush1.msra.mxu0 0.0
    %6069 = vmatprep.subr.mxu0 0.0
    %6070 = vmatpush1.msra.mxu0 0.0
    %6071 = vmatprep.subr.mxu0 0.0
    %6072 = vmatpush1.msra.mxu0 0.0
    %6073 = vmatprep.subr.mxu0 0.0
    %6074 = vmatpush1.msra.mxu0 0.0
    %6075 = vmatprep.subr.mxu0 0.0
    %6076 = vmatpush1.msra.mxu0 0.0
    %6077 = vmatprep.subr.mxu0 0.0
    %6078 = vmatpush1.msra.mxu0 0.0
    %6079 = vmatprep.subr.mxu0 0.0
    %6080 = vmatpush1.msra.mxu0 0.0
    %6081 = vmatprep.subr.mxu0 0.0
    %6082 = vmatpush1.msra.mxu0 0.0
    %6083 = vmatprep.subr.mxu0 0.0
    %6084 = vmatpush1.msra.mxu0 0.0
    %v6085 = vand.u32 %v3167, 4294901760
    %6086 = vmatprep.mubr.f32.mxu0 %v6085
    %v6087 = vand.u32 %v2164, 4294901760
    %6088 = vmatmul.mubr.f32.gmra.mrb[0].mxu0 %v6087
    %v6089 = vpop.f32.mrb[0].mxu0
    %v6090 = vadd.f32 %v5868, %v6089
    %v6091 = vpop.f32.mrb[0].mxu0
    %v6092 = vand.u32 %v3169, 4294901760
    %6093 = vmatprep.mubr.f32.mxu0 %v6092
    %v6094 = vand.u32 %v2166, 4294901760
    %6095 = vmatmul.mubr.f32.gmra.mrb[0].mxu0 %v6094
    %v6096 = vpop.f32.mrb[0].mxu0
    %v6097 = vadd.f32 %v5883, %v6096
    %v6098 = vpop.f32.mrb[0].mxu0
    %v6099 = vand.u32 %v3171, 4294901760
    %6100 = vmatprep.mubr.f32.mxu0 %v6099
    %v6101 = vand.u32 %v2168, 4294901760
    %6102 = vmatmul.mubr.f32.gmra.mrb[0].mxu0 %v6101
    %v6103 = vpop.f32.mrb[0].mxu0
    %v6104 = vadd.f32 %v5898, %v6103
    %v6105 = vpop.f32.mrb[0].mxu0
    %v6106 = vand.u32 %v3173, 4294901760
    %6107 = vmatprep.mubr.f32.mxu0 %v6106
    %v6108 = vand.u32 %v2170, 4294901760
    %6109 = vmatmul.mubr.f32.gmra.mrb[0].mxu0 %v6108
    %v6110 = vpop.f32.mrb[0].mxu0
    %v6111 = vadd.f32 %v5913, %v6110
    %v6112 = vpop.f32.mrb[0].mxu0
    %v6113 = vand.u32 %v3175, 4294901760
    %6114 = vmatprep.mubr.f32.mxu0 %v6113
    %v6115 = vand.u32 %v2172, 4294901760
    %6116 = vmatmul.mubr.f32.gmra.mrb[0].mxu0 %v6115
    %v6117 = vpop.f32.mrb[0].mxu0
    %v6118 = vadd.f32 %v5928, %v6117
    %v6119 = vpop.f32.mrb[0].mxu0
    %6120 = vdwg.mxu0
    %6121 = vmatprep.subr.mxu0 0.0
    %v6122 = vand.u32 %v4832, 4294901760
    %v6123 = vsub.f32 %v4832, %v6122
    %6124 = vmatpush1.msra.mxu0 %v6123
    %6125 = vmatprep.subr.mxu0 0.0
    %v6126 = vand.u32 %v4833, 4294901760
    %v6127 = vsub.f32 %v4833, %v6126
    %6128 = vmatpush1.msra.mxu0 %v6127
    %6129 = vmatprep.subr.mxu0 0.0
    %v6130 = vand.u32 %v4834, 4294901760
    %v6131 = vsub.f32 %v4834, %v6130
    %6132 = vmatpush1.msra.mxu0 %v6131
    %6133 = vmatprep.subr.mxu0 0.0
    %v6134 = vand.u32 %v4835, 4294901760
    %v6135 = vsub.f32 %v4835, %v6134
    %6136 = vmatpush1.msra.mxu0 %v6135
    %6137 = vmatprep.subr.mxu0 0.0
    %v6138 = vand.u32 %v4836, 4294901760
    %v6139 = vsub.f32 %v4836, %v6138
    %6140 = vmatpush1.msra.mxu0 %v6139
    %6141 = vmatprep.subr.mxu0 0.0
    %v6142 = vand.u32 %v4837, 4294901760
    %v6143 = vsub.f32 %v4837, %v6142
    %6144 = vmatpush1.msra.mxu0 %v6143
    %6145 = vmatprep.subr.mxu0 0.0
    %v6146 = vand.u32 %v4838, 4294901760
    %v6147 = vsub.f32 %v4838, %v6146
    %6148 = vmatpush1.msra.mxu0 %v6147
    %6149 = vmatprep.subr.mxu0 0.0
    %v6150 = vand.u32 %v4839, 4294901760
    %v6151 = vsub.f32 %v4839, %v6150
    %6152 = vmatpush1.msra.mxu0 %v6151
    %6153 = vmatprep.subr.mxu0 0.0
    %v6154 = vand.u32 %v4840, 4294901760
    %v6155 = vsub.f32 %v4840, %v6154
    %6156 = vmatpush1.msra.mxu0 %v6155
    %6157 = vmatprep.subr.mxu0 0.0
    %v6158 = vand.u32 %v4841, 4294901760
    %v6159 = vsub.f32 %v4841, %v6158
    %6160 = vmatpush1.msra.mxu0 %v6159
    %6161 = vmatprep.subr.mxu0 0.0
    %v6162 = vand.u32 %v4842, 4294901760
    %v6163 = vsub.f32 %v4842, %v6162
    %6164 = vmatpush1.msra.mxu0 %v6163
    %6165 = vmatprep.subr.mxu0 0.0
    %v6166 = vand.u32 %v4843, 4294901760
    %v6167 = vsub.f32 %v4843, %v6166
    %6168 = vmatpush1.msra.mxu0 %v6167
    %6169 = vmatprep.subr.mxu0 0.0
    %v6170 = vand.u32 %v4844, 4294901760
    %v6171 = vsub.f32 %v4844, %v6170
    %6172 = vmatpush1.msra.mxu0 %v6171
    %6173 = vmatprep.subr.mxu0 0.0
    %v6174 = vand.u32 %v4845, 4294901760
    %v6175 = vsub.f32 %v4845, %v6174
    %6176 = vmatpush1.msra.mxu0 %v6175
    %6177 = vmatprep.subr.mxu0 0.0
    %v6178 = vand.u32 %v4846, 4294901760
    %v6179 = vsub.f32 %v4846, %v6178
    %6180 = vmatpush1.msra.mxu0 %v6179
    %6181 = vmatprep.subr.mxu0 0.0
    %v6182 = vand.u32 %v4847, 4294901760
    %v6183 = vsub.f32 %v4847, %v6182
    %6184 = vmatpush1.msra.mxu0 %v6183
    %6185 = vmatprep.subr.mxu0 0.0
    %v6186 = vand.u32 %v4848, 4294901760
    %v6187 = vsub.f32 %v4848, %v6186
    %6188 = vmatpush1.msra.mxu0 %v6187
    %6189 = vmatprep.subr.mxu0 0.0
    %v6190 = vand.u32 %v4849, 4294901760
    %v6191 = vsub.f32 %v4849, %v6190
    %6192 = vmatpush1.msra.mxu0 %v6191
    %6193 = vmatprep.subr.mxu0 0.0
    %6194 = vmatpush1.msra.mxu0 0.0
    %6195 = vmatprep.subr.mxu0 0.0
    %6196 = vmatpush1.msra.mxu0 0.0
    %6197 = vmatprep.subr.mxu0 0.0
    %6198 = vmatpush1.msra.mxu0 0.0
    %6199 = vmatprep.subr.mxu0 0.0
    %6200 = vmatpush1.msra.mxu0 0.0
    %6201 = vmatprep.subr.mxu0 0.0
    %6202 = vmatpush1.msra.mxu0 0.0
    %6203 = vmatprep.subr.mxu0 0.0
    %6204 = vmatpush1.msra.mxu0 0.0
    %6205 = vmatprep.subr.mxu0 0.0
    %6206 = vmatpush1.msra.mxu0 0.0
    %6207 = vmatprep.subr.mxu0 0.0
    %6208 = vmatpush1.msra.mxu0 0.0
    %6209 = vmatprep.subr.mxu0 0.0
    %6210 = vmatpush1.msra.mxu0 0.0
    %6211 = vmatprep.subr.mxu0 0.0
    %6212 = vmatpush1.msra.mxu0 0.0
    %6213 = vmatprep.subr.mxu0 0.0
    %6214 = vmatpush1.msra.mxu0 0.0
    %6215 = vmatprep.subr.mxu0 0.0
    %6216 = vmatpush1.msra.mxu0 0.0
    %6217 = vmatprep.subr.mxu0 0.0
    %6218 = vmatpush1.msra.mxu0 0.0
    %6219 = vmatprep.subr.mxu0 0.0
    %6220 = vmatpush1.msra.mxu0 0.0
    %v6221 = vand.u32 %v3167, 4294901760
    %v6222 = vsub.f32 %v3167, %v6221
    %6223 = vmatprep.mubr.f32.mxu0 %v6222
    %v6224 = vand.u32 %v2164, 4294901760
    %v6225 = vsub.f32 %v2164, %v6224
    %6226 = vmatmul.mubr.f32.gmra.mrb[0].mxu0 %v6225
    %v6227 = vpop.f32.mrb[0].mxu0
    %v6228 = vadd.f32 %v6090, %v6227
    %v6229 = vpop.f32.mrb[0].mxu0
    %v6230 = vand.u32 %v3169, 4294901760
    %v6231 = vsub.f32 %v3169, %v6230
    %6232 = vmatprep.mubr.f32.mxu0 %v6231
    %v6233 = vand.u32 %v2166, 4294901760
    %v6234 = vsub.f32 %v2166, %v6233
    %6235 = vmatmul.mubr.f32.gmra.mrb[0].mxu0 %v6234
    %v6236 = vpop.f32.mrb[0].mxu0
    %v6237 = vadd.f32 %v6097, %v6236
    %v6238 = vpop.f32.mrb[0].mxu0
    %v6239 = vand.u32 %v3171, 4294901760
    %v6240 = vsub.f32 %v3171, %v6239
    %6241 = vmatprep.mubr.f32.mxu0 %v6240
    %v6242 = vand.u32 %v2168, 4294901760
    %v6243 = vsub.f32 %v2168, %v6242
    %6244 = vmatmul.mubr.f32.gmra.mrb[0].mxu0 %v6243
    %v6245 = vpop.f32.mrb[0].mxu0
    %v6246 = vadd.f32 %v6104, %v6245
    %v6247 = vpop.f32.mrb[0].mxu0
    %v6248 = vand.u32 %v3173, 4294901760
    %v6249 = vsub.f32 %v3173, %v6248
    %6250 = vmatprep.mubr.f32.mxu0 %v6249
    %v6251 = vand.u32 %v2170, 4294901760
    %v6252 = vsub.f32 %v2170, %v6251
    %6253 = vmatmul.mubr.f32.gmra.mrb[0].mxu0 %v6252
    %v6254 = vpop.f32.mrb[0].mxu0
    %v6255 = vadd.f32 %v6111, %v6254
    %v6256 = vpop.f32.mrb[0].mxu0
    %v6257 = vand.u32 %v3175, 4294901760
    %v6258 = vsub.f32 %v3175, %v6257
    %6259 = vmatprep.mubr.f32.mxu0 %v6258
    %v6260 = vand.u32 %v2172, 4294901760
    %v6261 = vsub.f32 %v2172, %v6260
    %6262 = vmatmul.mubr.f32.gmra.mrb[0].mxu0 %v6261
    %v6263 = vpop.f32.mrb[0].mxu0
    %v6264 = vadd.f32 %v6118, %v6263
    %v6265 = vpop.f32.mrb[0].mxu0
    %6266 = vdwg.mxu0
    %6267 = vmatprep.subr.mxu0 0.0
    %v6268 = vand.u32 %v4832, 4294901760
    %6269 = vmatpush1.msra.mxu0 %v6268
    %6270 = vmatprep.subr.mxu0 0.0
    %v6271 = vand.u32 %v4833, 4294901760
    %6272 = vmatpush1.msra.mxu0 %v6271
    %6273 = vmatprep.subr.mxu0 0.0
    %v6274 = vand.u32 %v4834, 4294901760
    %6275 = vmatpush1.msra.mxu0 %v6274
    %6276 = vmatprep.subr.mxu0 0.0
    %v6277 = vand.u32 %v4835, 4294901760
    %6278 = vmatpush1.msra.mxu0 %v6277
    %6279 = vmatprep.subr.mxu0 0.0
    %v6280 = vand.u32 %v4836, 4294901760
    %6281 = vmatpush1.msra.mxu0 %v6280
    %6282 = vmatprep.subr.mxu0 0.0
    %v6283 = vand.u32 %v4837, 4294901760
    %6284 = vmatpush1.msra.mxu0 %v6283
    %6285 = vmatprep.subr.mxu0 0.0
    %v6286 = vand.u32 %v4838, 4294901760
    %6287 = vmatpush1.msra.mxu0 %v6286
    %6288 = vmatprep.subr.mxu0 0.0
    %v6289 = vand.u32 %v4839, 4294901760
    %6290 = vmatpush1.msra.mxu0 %v6289
    %6291 = vmatprep.subr.mxu0 0.0
    %v6292 = vand.u32 %v4840, 4294901760
    %6293 = vmatpush1.msra.mxu0 %v6292
    %6294 = vmatprep.subr.mxu0 0.0
    %v6295 = vand.u32 %v4841, 4294901760
    %6296 = vmatpush1.msra.mxu0 %v6295
    %6297 = vmatprep.subr.mxu0 0.0
    %v6298 = vand.u32 %v4842, 4294901760
    %6299 = vmatpush1.msra.mxu0 %v6298
    %6300 = vmatprep.subr.mxu0 0.0
    %v6301 = vand.u32 %v4843, 4294901760
    %6302 = vmatpush1.msra.mxu0 %v6301
    %6303 = vmatprep.subr.mxu0 0.0
    %v6304 = vand.u32 %v4844, 4294901760
    %6305 = vmatpush1.msra.mxu0 %v6304
    %6306 = vmatprep.subr.mxu0 0.0
    %v6307 = vand.u32 %v4845, 4294901760
    %6308 = vmatpush1.msra.mxu0 %v6307
    %6309 = vmatprep.subr.mxu0 0.0
    %v6310 = vand.u32 %v4846, 4294901760
    %6311 = vmatpush1.msra.mxu0 %v6310
    %6312 = vmatprep.subr.mxu0 0.0
    %v6313 = vand.u32 %v4847, 4294901760
    %6314 = vmatpush1.msra.mxu0 %v6313
    %6315 = vmatprep.subr.mxu0 0.0
    %v6316 = vand.u32 %v4848, 4294901760
    %6317 = vmatpush1.msra.mxu0 %v6316
    %6318 = vmatprep.subr.mxu0 0.0
    %v6319 = vand.u32 %v4849, 4294901760
    %6320 = vmatpush1.msra.mxu0 %v6319
    %6321 = vmatprep.subr.mxu0 0.0
    %6322 = vmatpush1.msra.mxu0 0.0
    %6323 = vmatprep.subr.mxu0 0.0
    %6324 = vmatpush1.msra.mxu0 0.0
    %6325 = vmatprep.subr.mxu0 0.0
    %6326 = vmatpush1.msra.mxu0 0.0
    %6327 = vmatprep.subr.mxu0 0.0
    %6328 = vmatpush1.msra.mxu0 0.0
    %6329 = vmatprep.subr.mxu0 0.0
    %6330 = vmatpush1.msra.mxu0 0.0
    %6331 = vmatprep.subr.mxu0 0.0
    %6332 = vmatpush1.msra.mxu0 0.0
    %6333 = vmatprep.subr.mxu0 0.0
    %6334 = vmatpush1.msra.mxu0 0.0
    %6335 = vmatprep.subr.mxu0 0.0
    %6336 = vmatpush1.msra.mxu0 0.0
    %6337 = vmatprep.subr.mxu0 0.0
    %6338 = vmatpush1.msra.mxu0 0.0
    %6339 = vmatprep.subr.mxu0 0.0
    %6340 = vmatpush1.msra.mxu0 0.0
    %6341 = vmatprep.subr.mxu0 0.0
    %6342 = vmatpush1.msra.mxu0 0.0
    %6343 = vmatprep.subr.mxu0 0.0
    %6344 = vmatpush1.msra.mxu0 0.0
    %6345 = vmatprep.subr.mxu0 0.0
    %6346 = vmatpush1.msra.mxu0 0.0
    %6347 = vmatprep.subr.mxu0 0.0
    %6348 = vmatpush1.msra.mxu0 0.0
    %v6349 = vand.u32 %v3167, 4294901760
    %v6350 = vsub.f32 %v3167, %v6349
    %v6351 = vand.u32 %v6350, 4294901760
    %6352 = vmatprep.mubr.f32.mxu0 %v6351
    %v6353 = vand.u32 %v2164, 4294901760
    %v6354 = vsub.f32 %v2164, %v6353
    %v6355 = vand.u32 %v6354, 4294901760
    %6356 = vmatmul.mubr.f32.gmra.mrb[0].mxu0 %v6355
    %v6357 = vpop.f32.mrb[0].mxu0
    %v6358 = vadd.f32 %v6228, %v6357
    %v6359 = vpop.f32.mrb[0].mxu0
    %v6360 = vand.u32 %v3169, 4294901760
    %v6361 = vsub.f32 %v3169, %v6360
    %v6362 = vand.u32 %v6361, 4294901760
    %6363 = vmatprep.mubr.f32.mxu0 %v6362
    %v6364 = vand.u32 %v2166, 4294901760
    %v6365 = vsub.f32 %v2166, %v6364
    %v6366 = vand.u32 %v6365, 4294901760
    %6367 = vmatmul.mubr.f32.gmra.mrb[0].mxu0 %v6366
    %v6368 = vpop.f32.mrb[0].mxu0
    %v6369 = vadd.f32 %v6237, %v6368
    %v6370 = vpop.f32.mrb[0].mxu0
    %v6371 = vand.u32 %v3171, 4294901760
    %v6372 = vsub.f32 %v3171, %v6371
    %v6373 = vand.u32 %v6372, 4294901760
    %6374 = vmatprep.mubr.f32.mxu0 %v6373
    %v6375 = vand.u32 %v2168, 4294901760
    %v6376 = vsub.f32 %v2168, %v6375
    %v6377 = vand.u32 %v6376, 4294901760
    %6378 = vmatmul.mubr.f32.gmra.mrb[0].mxu0 %v6377
    %v6379 = vpop.f32.mrb[0].mxu0
    %v6380 = vadd.f32 %v6246, %v6379
    %v6381 = vpop.f32.mrb[0].mxu0
    %v6382 = vand.u32 %v3173, 4294901760
    %v6383 = vsub.f32 %v3173, %v6382
    %v6384 = vand.u32 %v6383, 4294901760
    %6385 = vmatprep.mubr.f32.mxu0 %v6384
    %v6386 = vand.u32 %v2170, 4294901760
    %v6387 = vsub.f32 %v2170, %v6386
    %v6388 = vand.u32 %v6387, 4294901760
    %6389 = vmatmul.mubr.f32.gmra.mrb[0].mxu0 %v6388
    %v6390 = vpop.f32.mrb[0].mxu0
    %v6391 = vadd.f32 %v6255, %v6390
    %v6392 = vpop.f32.mrb[0].mxu0
    %v6393 = vand.u32 %v3175, 4294901760
    %v6394 = vsub.f32 %v3175, %v6393
    %v6395 = vand.u32 %v6394, 4294901760
    %6396 = vmatprep.mubr.f32.mxu0 %v6395
    %v6397 = vand.u32 %v2172, 4294901760
    %v6398 = vsub.f32 %v2172, %v6397
    %v6399 = vand.u32 %v6398, 4294901760
    %6400 = vmatmul.mubr.f32.gmra.mrb[0].mxu0 %v6399
    %v6401 = vpop.f32.mrb[0].mxu0
    %v6402 = vadd.f32 %v6264, %v6401
    %v6403 = vpop.f32.mrb[0].mxu0
    %6404 = vdwg.mxu0
    %6405 = vmatprep.subr.mxu0 0.0
    %v6406 = vand.u32 %v4832, 4294901760
    %v6407 = vsub.f32 %v4832, %v6406
    %v6408 = vand.u32 %v6407, 4294901760
    %6409 = vmatpush1.msra.mxu0 %v6408
    %6410 = vmatprep.subr.mxu0 0.0
    %v6411 = vand.u32 %v4833, 4294901760
    %v6412 = vsub.f32 %v4833, %v6411
    %v6413 = vand.u32 %v6412, 4294901760
    %6414 = vmatpush1.msra.mxu0 %v6413
    %6415 = vmatprep.subr.mxu0 0.0
    %v6416 = vand.u32 %v4834, 4294901760
    %v6417 = vsub.f32 %v4834, %v6416
    %v6418 = vand.u32 %v6417, 4294901760
    %6419 = vmatpush1.msra.mxu0 %v6418
    %6420 = vmatprep.subr.mxu0 0.0
    %v6421 = vand.u32 %v4835, 4294901760
    %v6422 = vsub.f32 %v4835, %v6421
    %v6423 = vand.u32 %v6422, 4294901760
    %6424 = vmatpush1.msra.mxu0 %v6423
    %6425 = vmatprep.subr.mxu0 0.0
    %v6426 = vand.u32 %v4836, 4294901760
    %v6427 = vsub.f32 %v4836, %v6426
    %v6428 = vand.u32 %v6427, 4294901760
    %6429 = vmatpush1.msra.mxu0 %v6428
    %6430 = vmatprep.subr.mxu0 0.0
    %v6431 = vand.u32 %v4837, 4294901760
    %v6432 = vsub.f32 %v4837, %v6431
    %v6433 = vand.u32 %v6432, 4294901760
    %6434 = vmatpush1.msra.mxu0 %v6433
    %6435 = vmatprep.subr.mxu0 0.0
    %v6436 = vand.u32 %v4838, 4294901760
    %v6437 = vsub.f32 %v4838, %v6436
    %v6438 = vand.u32 %v6437, 4294901760
    %6439 = vmatpush1.msra.mxu0 %v6438
    %6440 = vmatprep.subr.mxu0 0.0
    %v6441 = vand.u32 %v4839, 4294901760
    %v6442 = vsub.f32 %v4839, %v6441
    %v6443 = vand.u32 %v6442, 4294901760
    %6444 = vmatpush1.msra.mxu0 %v6443
    %6445 = vmatprep.subr.mxu0 0.0
    %v6446 = vand.u32 %v4840, 4294901760
    %v6447 = vsub.f32 %v4840, %v6446
    %v6448 = vand.u32 %v6447, 4294901760
    %6449 = vmatpush1.msra.mxu0 %v6448
    %6450 = vmatprep.subr.mxu0 0.0
    %v6451 = vand.u32 %v4841, 4294901760
    %v6452 = vsub.f32 %v4841, %v6451
    %v6453 = vand.u32 %v6452, 4294901760
    %6454 = vmatpush1.msra.mxu0 %v6453
    %6455 = vmatprep.subr.mxu0 0.0
    %v6456 = vand.u32 %v4842, 4294901760
    %v6457 = vsub.f32 %v4842, %v6456
    %v6458 = vand.u32 %v6457, 4294901760
    %6459 = vmatpush1.msra.mxu0 %v6458
    %6460 = vmatprep.subr.mxu0 0.0
    %v6461 = vand.u32 %v4843, 4294901760
    %v6462 = vsub.f32 %v4843, %v6461
    %v6463 = vand.u32 %v6462, 4294901760
    %6464 = vmatpush1.msra.mxu0 %v6463
    %6465 = vmatprep.subr.mxu0 0.0
    %v6466 = vand.u32 %v4844, 4294901760
    %v6467 = vsub.f32 %v4844, %v6466
    %v6468 = vand.u32 %v6467, 4294901760
    %6469 = vmatpush1.msra.mxu0 %v6468
    %6470 = vmatprep.subr.mxu0 0.0
    %v6471 = vand.u32 %v4845, 4294901760
    %v6472 = vsub.f32 %v4845, %v6471
    %v6473 = vand.u32 %v6472, 4294901760
    %6474 = vmatpush1.msra.mxu0 %v6473
    %6475 = vmatprep.subr.mxu0 0.0
    %v6476 = vand.u32 %v4846, 4294901760
    %v6477 = vsub.f32 %v4846, %v6476
    %v6478 = vand.u32 %v6477, 4294901760
    %6479 = vmatpush1.msra.mxu0 %v6478
    %6480 = vmatprep.subr.mxu0 0.0
    %v6481 = vand.u32 %v4847, 4294901760
    %v6482 = vsub.f32 %v4847, %v6481
    %v6483 = vand.u32 %v6482, 4294901760
    %6484 = vmatpush1.msra.mxu0 %v6483
    %6485 = vmatprep.subr.mxu0 0.0
    %v6486 = vand.u32 %v4848, 4294901760
    %v6487 = vsub.f32 %v4848, %v6486
    %v6488 = vand.u32 %v6487, 4294901760
    %6489 = vmatpush1.msra.mxu0 %v6488
    %6490 = vmatprep.subr.mxu0 0.0
    %v6491 = vand.u32 %v4849, 4294901760
    %v6492 = vsub.f32 %v4849, %v6491
    %v6493 = vand.u32 %v6492, 4294901760
    %6494 = vmatpush1.msra.mxu0 %v6493
    %6495 = vmatprep.subr.mxu0 0.0
    %6496 = vmatpush1.msra.mxu0 0.0
    %6497 = vmatprep.subr.mxu0 0.0
    %6498 = vmatpush1.msra.mxu0 0.0
    %6499 = vmatprep.subr.mxu0 0.0
    %6500 = vmatpush1.msra.mxu0 0.0
    %6501 = vmatprep.subr.mxu0 0.0
    %6502 = vmatpush1.msra.mxu0 0.0
    %6503 = vmatprep.subr.mxu0 0.0
    %6504 = vmatpush1.msra.mxu0 0.0
    %6505 = vmatprep.subr.mxu0 0.0
    %6506 = vmatpush1.msra.mxu0 0.0
    %6507 = vmatprep.subr.mxu0 0.0
    %6508 = vmatpush1.msra.mxu0 0.0
    %6509 = vmatprep.subr.mxu0 0.0
    %6510 = vmatpush1.msra.mxu0 0.0
    %6511 = vmatprep.subr.mxu0 0.0
    %6512 = vmatpush1.msra.mxu0 0.0
    %6513 = vmatprep.subr.mxu0 0.0
    %6514 = vmatpush1.msra.mxu0 0.0
    %6515 = vmatprep.subr.mxu0 0.0
    %6516 = vmatpush1.msra.mxu0 0.0
    %6517 = vmatprep.subr.mxu0 0.0
    %6518 = vmatpush1.msra.mxu0 0.0
    %6519 = vmatprep.subr.mxu0 0.0
    %6520 = vmatpush1.msra.mxu0 0.0
    %6521 = vmatprep.subr.mxu0 0.0
    %6522 = vmatpush1.msra.mxu0 0.0
    %v6523 = vand.u32 %v3167, 4294901760
    %6524 = vmatprep.mubr.f32.mxu0 %v6523
    %v6525 = vand.u32 %v2164, 4294901760
    %6526 = vmatmul.mubr.f32.gmra.mrb[0].mxu0 %v6525
    %v6527 = vpop.f32.mrb[0].mxu0
    %v6528 = vadd.f32 %v6358, %v6527
    %v6529 = vpop.f32.mrb[0].mxu0
    %v6530 = vand.u32 %v3169, 4294901760
    %6531 = vmatprep.mubr.f32.mxu0 %v6530
    %v6532 = vand.u32 %v2166, 4294901760
    %6533 = vmatmul.mubr.f32.gmra.mrb[0].mxu0 %v6532
    %v6534 = vpop.f32.mrb[0].mxu0
    %v6535 = vadd.f32 %v6369, %v6534
    %v6536 = vpop.f32.mrb[0].mxu0
    %v6537 = vand.u32 %v3171, 4294901760
    %6538 = vmatprep.mubr.f32.mxu0 %v6537
    %v6539 = vand.u32 %v2168, 4294901760
    %6540 = vmatmul.mubr.f32.gmra.mrb[0].mxu0 %v6539
    %v6541 = vpop.f32.mrb[0].mxu0
    %v6542 = vadd.f32 %v6380, %v6541
    %v6543 = vpop.f32.mrb[0].mxu0
    %v6544 = vand.u32 %v3173, 4294901760
    %6545 = vmatprep.mubr.f32.mxu0 %v6544
    %v6546 = vand.u32 %v2170, 4294901760
    %6547 = vmatmul.mubr.f32.gmra.mrb[0].mxu0 %v6546
    %v6548 = vpop.f32.mrb[0].mxu0
    %v6549 = vadd.f32 %v6391, %v6548
    %v6550 = vpop.f32.mrb[0].mxu0
    %v6551 = vand.u32 %v3175, 4294901760
    %6552 = vmatprep.mubr.f32.mxu0 %v6551
    %v6553 = vand.u32 %v2172, 4294901760
    %6554 = vmatmul.mubr.f32.gmra.mrb[0].mxu0 %v6553
    %v6555 = vpop.f32.mrb[0].mxu0
    %v6556 = vadd.f32 %v6402, %v6555
    %v6557 = vpop.f32.mrb[0].mxu0
    %6558 = vdwg.mxu0
    %6559 = vmatprep.subr.mxu0 0.0
    %v6560 = vand.u32 %v4832, 4294901760
    %6561 = vmatpush1.msra.mxu0 %v6560
    %6562 = vmatprep.subr.mxu0 0.0
    %v6563 = vand.u32 %v4833, 4294901760
    %6564 = vmatpush1.msra.mxu0 %v6563
    %6565 = vmatprep.subr.mxu0 0.0
    %v6566 = vand.u32 %v4834, 4294901760
    %6567 = vmatpush1.msra.mxu0 %v6566
    %6568 = vmatprep.subr.mxu0 0.0
    %v6569 = vand.u32 %v4835, 4294901760
    %6570 = vmatpush1.msra.mxu0 %v6569
    %6571 = vmatprep.subr.mxu0 0.0
    %v6572 = vand.u32 %v4836, 4294901760
    %6573 = vmatpush1.msra.mxu0 %v6572
    %6574 = vmatprep.subr.mxu0 0.0
    %v6575 = vand.u32 %v4837, 4294901760
    %6576 = vmatpush1.msra.mxu0 %v6575
    %6577 = vmatprep.subr.mxu0 0.0
    %v6578 = vand.u32 %v4838, 4294901760
    %6579 = vmatpush1.msra.mxu0 %v6578
    %6580 = vmatprep.subr.mxu0 0.0
    %v6581 = vand.u32 %v4839, 4294901760
    %6582 = vmatpush1.msra.mxu0 %v6581
    %6583 = vmatprep.subr.mxu0 0.0
    %v6584 = vand.u32 %v4840, 4294901760
    %6585 = vmatpush1.msra.mxu0 %v6584
    %6586 = vmatprep.subr.mxu0 0.0
    %v6587 = vand.u32 %v4841, 4294901760
    %6588 = vmatpush1.msra.mxu0 %v6587
    %6589 = vmatprep.subr.mxu0 0.0
    %v6590 = vand.u32 %v4842, 4294901760
    %6591 = vmatpush1.msra.mxu0 %v6590
    %6592 = vmatprep.subr.mxu0 0.0
    %v6593 = vand.u32 %v4843, 4294901760
    %6594 = vmatpush1.msra.mxu0 %v6593
    %6595 = vmatprep.subr.mxu0 0.0
    %v6596 = vand.u32 %v4844, 4294901760
    %6597 = vmatpush1.msra.mxu0 %v6596
    %6598 = vmatprep.subr.mxu0 0.0
    %v6599 = vand.u32 %v4845, 4294901760
    %6600 = vmatpush1.msra.mxu0 %v6599
    %6601 = vmatprep.subr.mxu0 0.0
    %v6602 = vand.u32 %v4846, 4294901760
    %6603 = vmatpush1.msra.mxu0 %v6602
    %6604 = vmatprep.subr.mxu0 0.0
    %v6605 = vand.u32 %v4847, 4294901760
    %6606 = vmatpush1.msra.mxu0 %v6605
    %6607 = vmatprep.subr.mxu0 0.0
    %v6608 = vand.u32 %v4848, 4294901760
    %6609 = vmatpush1.msra.mxu0 %v6608
    %6610 = vmatprep.subr.mxu0 0.0
    %v6611 = vand.u32 %v4849, 4294901760
    %6612 = vmatpush1.msra.mxu0 %v6611
    %6613 = vmatprep.subr.mxu0 0.0
    %6614 = vmatpush1.msra.mxu0 0.0
    %6615 = vmatprep.subr.mxu0 0.0
    %6616 = vmatpush1.msra.mxu0 0.0
    %6617 = vmatprep.subr.mxu0 0.0
    %6618 = vmatpush1.msra.mxu0 0.0
    %6619 = vmatprep.subr.mxu0 0.0
    %6620 = vmatpush1.msra.mxu0 0.0
    %6621 = vmatprep.subr.mxu0 0.0
    %6622 = vmatpush1.msra.mxu0 0.0
    %6623 = vmatprep.subr.mxu0 0.0
    %6624 = vmatpush1.msra.mxu0 0.0
    %6625 = vmatprep.subr.mxu0 0.0
    %6626 = vmatpush1.msra.mxu0 0.0
    %6627 = vmatprep.subr.mxu0 0.0
    %6628 = vmatpush1.msra.mxu0 0.0
    %6629 = vmatprep.subr.mxu0 0.0
    %6630 = vmatpush1.msra.mxu0 0.0
    %6631 = vmatprep.subr.mxu0 0.0
    %6632 = vmatpush1.msra.mxu0 0.0
    %6633 = vmatprep.subr.mxu0 0.0
    %6634 = vmatpush1.msra.mxu0 0.0
    %6635 = vmatprep.subr.mxu0 0.0
    %6636 = vmatpush1.msra.mxu0 0.0
    %6637 = vmatprep.subr.mxu0 0.0
    %6638 = vmatpush1.msra.mxu0 0.0
    %6639 = vmatprep.subr.mxu0 0.0
    %6640 = vmatpush1.msra.mxu0 0.0
    %v6641 = vand.u32 %v3167, 4294901760
    %6642 = vmatprep.mubr.f32.mxu0 %v6641
    %v6643 = vand.u32 %v2164, 4294901760
    %6644 = vmatmul.mubr.f32.gmra.mrb[0].mxu0 %v6643
    %v6645 = vpop.f32.mrb[0].mxu0
    %v6646 = vadd.f32 %v6528, %v6645
    %v6647 = vpop.f32.mrb[0].mxu0
    %v6648 = vand.u32 %v3169, 4294901760
    %6649 = vmatprep.mubr.f32.mxu0 %v6648
    %v6650 = vand.u32 %v2166, 4294901760
    %6651 = vmatmul.mubr.f32.gmra.mrb[0].mxu0 %v6650
    %v6652 = vpop.f32.mrb[0].mxu0
    %v6653 = vadd.f32 %v6535, %v6652
    %v6654 = vpop.f32.mrb[0].mxu0
    %v6655 = vand.u32 %v3171, 4294901760
    %6656 = vmatprep.mubr.f32.mxu0 %v6655
    %v6657 = vand.u32 %v2168, 4294901760
    %6658 = vmatmul.mubr.f32.gmra.mrb[0].mxu0 %v6657
    %v6659 = vpop.f32.mrb[0].mxu0
    %v6660 = vadd.f32 %v6542, %v6659
    %v6661 = vpop.f32.mrb[0].mxu0
    %v6662 = vand.u32 %v3173, 4294901760
    %6663 = vmatprep.mubr.f32.mxu0 %v6662
    %v6664 = vand.u32 %v2170, 4294901760
    %6665 = vmatmul.mubr.f32.gmra.mrb[0].mxu0 %v6664
    %v6666 = vpop.f32.mrb[0].mxu0
    %v6667 = vadd.f32 %v6549, %v6666
    %v6668 = vpop.f32.mrb[0].mxu0
    %v6669 = vand.u32 %v3175, 4294901760
    %6670 = vmatprep.mubr.f32.mxu0 %v6669
    %v6671 = vand.u32 %v2172, 4294901760
    %6672 = vmatmul.mubr.f32.gmra.mrb[0].mxu0 %v6671
    %v6673 = vpop.f32.mrb[0].mxu0
    %v6674 = vadd.f32 %v6556, %v6673
    %v6675 = vpop.f32.mrb[0].mxu0
    %6676 = vdwg.mxu0
    %s6677 = scalar_lea.vmem %s6, 80
    %v6678 = vld [vmem:[%s6677] sm:$0xff]
    %v6679 = vld [vmem:[%s6677 + $0x8] sm:$0xff]
    %v6680 = vld [vmem:[%s6677 + $0x10] sm:$0xff]
    %v6681 = vld [vmem:[%s6677 + $0x18] sm:$0xff]
    %v6682 = vld [vmem:[%s6677 + $0x20] sm:$0xff]
    %v6683 = vld [vmem:[%s6677 + $0x28] sm:$0xff]
    %v6684 = vld [vmem:[%s6677 + $0x30] sm:$0xff]
    %v6685 = vld [vmem:[%s6677 + $0x38] sm:$0xff]
    %v6686 = vld [vmem:[%s6677 + $0x40] sm:$0xff]
    %v6687 = vld [vmem:[%s6677 + $0x48] sm:$0xff]
    %6688 = vmatprep.subr.mxu0 0.0
    %v6689 = vand.u32 %v6678, 4294901760
    %6690 = vmatpush1.msra.mxu0 %v6689
    %6691 = vmatprep.subr.mxu0 0.0
    %v6692 = vand.u32 %v6679, 4294901760
    %6693 = vmatpush1.msra.mxu0 %v6692
    %6694 = vmatprep.subr.mxu0 0.0
    %v6695 = vand.u32 %v6680, 4294901760
    %6696 = vmatpush1.msra.mxu0 %v6695
    %6697 = vmatprep.subr.mxu0 0.0
    %v6698 = vand.u32 %v6681, 4294901760
    %6699 = vmatpush1.msra.mxu0 %v6698
    %6700 = vmatprep.subr.mxu0 0.0
    %v6701 = vand.u32 %v6682, 4294901760
    %6702 = vmatpush1.msra.mxu0 %v6701
    %6703 = vmatprep.subr.mxu0 0.0
    %v6704 = vand.u32 %v6683, 4294901760
    %6705 = vmatpush1.msra.mxu0 %v6704
    %6706 = vmatprep.subr.mxu0 0.0
    %v6707 = vand.u32 %v6684, 4294901760
    %6708 = vmatpush1.msra.mxu0 %v6707
    %6709 = vmatprep.subr.mxu0 0.0
    %v6710 = vand.u32 %v6685, 4294901760
    %6711 = vmatpush1.msra.mxu0 %v6710
    %6712 = vmatprep.subr.mxu0 0.0
    %v6713 = vand.u32 %v6686, 4294901760
    %6714 = vmatpush1.msra.mxu0 %v6713
    %6715 = vmatprep.subr.mxu0 0.0
    %v6716 = vand.u32 %v6687, 4294901760
    %6717 = vmatpush1.msra.mxu0 %v6716
    %6718 = vmatprep.subr.mxu0 0.0
    %6719 = vmatpush1.msra.mxu0 0.0
    %6720 = vmatprep.subr.mxu0 0.0
    %6721 = vmatpush1.msra.mxu0 0.0
    %6722 = vmatprep.subr.mxu0 0.0
    %6723 = vmatpush1.msra.mxu0 0.0
    %6724 = vmatprep.subr.mxu0 0.0
    %6725 = vmatpush1.msra.mxu0 0.0
    %6726 = vmatprep.subr.mxu0 0.0
    %6727 = vmatpush1.msra.mxu0 0.0
    %6728 = vmatprep.subr.mxu0 0.0
    %6729 = vmatpush1.msra.mxu0 0.0
    %6730 = vmatprep.subr.mxu0 0.0
    %6731 = vmatpush1.msra.mxu0 0.0
    %6732 = vmatprep.subr.mxu0 0.0
    %6733 = vmatpush1.msra.mxu0 0.0
    %6734 = vmatprep.subr.mxu0 0.0
    %6735 = vmatpush1.msra.mxu0 0.0
    %6736 = vmatprep.subr.mxu0 0.0
    %6737 = vmatpush1.msra.mxu0 0.0
    %6738 = vmatprep.subr.mxu0 0.0
    %6739 = vmatpush1.msra.mxu0 0.0
    %6740 = vmatprep.subr.mxu0 0.0
    %6741 = vmatpush1.msra.mxu0 0.0
    %6742 = vmatprep.subr.mxu0 0.0
    %6743 = vmatpush1.msra.mxu0 0.0
    %6744 = vmatprep.subr.mxu0 0.0
    %6745 = vmatpush1.msra.mxu0 0.0
    %6746 = vmatprep.subr.mxu0 0.0
    %6747 = vmatpush1.msra.mxu0 0.0
    %6748 = vmatprep.subr.mxu0 0.0
    %6749 = vmatpush1.msra.mxu0 0.0
    %6750 = vmatprep.subr.mxu0 0.0
    %6751 = vmatpush1.msra.mxu0 0.0
    %6752 = vmatprep.subr.mxu0 0.0
    %6753 = vmatpush1.msra.mxu0 0.0
    %6754 = vmatprep.subr.mxu0 0.0
    %6755 = vmatpush1.msra.mxu0 0.0
    %6756 = vmatprep.subr.mxu0 0.0
    %6757 = vmatpush1.msra.mxu0 0.0
    %6758 = vmatprep.subr.mxu0 0.0
    %6759 = vmatpush1.msra.mxu0 0.0
    %6760 = vmatprep.subr.mxu0 0.0
    %6761 = vmatpush1.msra.mxu0 0.0
    %6762 = vmatprep.mubr.f32.mxu0 0.0
    %v6763 = vand.u32 %v96, 4294901760
    %v6764 = vsub.f32 %v96, %v6763
    %v6765 = vand.u32 %v6764, 4294901760
    %v6766 = vsub.f32 %v6764, %v6765
    %v6767 = vand.u32 %v6766, 4294901760
    %6768 = vmatmul.mubr.f32.gmra.mrb[0].mxu0 %v6767
    %v6769 = vpop.f32.mrb[0].mxu0
    %v6770 = vadd.f32 0.0, %v6769
    %v6771 = vpop.f32.mrb[0].mxu0
    %6772 = vmatprep.mubr.f32.mxu0 0.0
    %v6773 = vand.u32 %v98, 4294901760
    %v6774 = vsub.f32 %v98, %v6773
    %v6775 = vand.u32 %v6774, 4294901760
    %v6776 = vsub.f32 %v6774, %v6775
    %v6777 = vand.u32 %v6776, 4294901760
    %6778 = vmatmul.mubr.f32.gmra.mrb[0].mxu0 %v6777
    %v6779 = vpop.f32.mrb[0].mxu0
    %v6780 = vadd.f32 0.0, %v6779
    %v6781 = vpop.f32.mrb[0].mxu0
    %6782 = vmatprep.mubr.f32.mxu0 0.0
    %v6783 = vand.u32 %v100, 4294901760
    %v6784 = vsub.f32 %v100, %v6783
    %v6785 = vand.u32 %v6784, 4294901760
    %v6786 = vsub.f32 %v6784, %v6785
    %v6787 = vand.u32 %v6786, 4294901760
    %6788 = vmatmul.mubr.f32.gmra.mrb[0].mxu0 %v6787
    %v6789 = vpop.f32.mrb[0].mxu0
    %v6790 = vadd.f32 0.0, %v6789
    %v6791 = vpop.f32.mrb[0].mxu0
    %6792 = vmatprep.mubr.f32.mxu0 0.0
    %v6793 = vand.u32 %v102, 4294901760
    %v6794 = vsub.f32 %v102, %v6793
    %v6795 = vand.u32 %v6794, 4294901760
    %v6796 = vsub.f32 %v6794, %v6795
    %v6797 = vand.u32 %v6796, 4294901760
    %6798 = vmatmul.mubr.f32.gmra.mrb[0].mxu0 %v6797
    %v6799 = vpop.f32.mrb[0].mxu0
    %v6800 = vadd.f32 0.0, %v6799
    %v6801 = vpop.f32.mrb[0].mxu0
    %6802 = vmatprep.mubr.f32.mxu0 0.0
    %v6803 = vand.u32 %v104, 4294901760
    %v6804 = vsub.f32 %v104, %v6803
    %v6805 = vand.u32 %v6804, 4294901760
    %v6806 = vsub.f32 %v6804, %v6805
    %v6807 = vand.u32 %v6806, 4294901760
    %6808 = vmatmul.mubr.f32.gmra.mrb[0].mxu0 %v6807
    %v6809 = vpop.f32.mrb[0].mxu0
    %v6810 = vadd.f32 0.0, %v6809
    %v6811 = vpop.f32.mrb[0].mxu0
    %6812 = vdwg.mxu0
    %6813 = vmatprep.subr.mxu0 0.0
    %v6814 = vand.u32 %v6678, 4294901760
    %v6815 = vsub.f32 %v6678, %v6814
    %v6816 = vand.u32 %v6815, 4294901760
    %v6817 = vsub.f32 %v6815, %v6816
    %v6818 = vand.u32 %v6817, 4294901760
    %6819 = vmatpush1.msra.mxu0 %v6818
    %6820 = vmatprep.subr.mxu0 0.0
    %v6821 = vand.u32 %v6679, 4294901760
    %v6822 = vsub.f32 %v6679, %v6821
    %v6823 = vand.u32 %v6822, 4294901760
    %v6824 = vsub.f32 %v6822, %v6823
    %v6825 = vand.u32 %v6824, 4294901760
    %6826 = vmatpush1.msra.mxu0 %v6825
    %6827 = vmatprep.subr.mxu0 0.0
    %v6828 = vand.u32 %v6680, 4294901760
    %v6829 = vsub.f32 %v6680, %v6828
    %v6830 = vand.u32 %v6829, 4294901760
    %v6831 = vsub.f32 %v6829, %v6830
    %v6832 = vand.u32 %v6831, 4294901760
    %6833 = vmatpush1.msra.mxu0 %v6832
    %6834 = vmatprep.subr.mxu0 0.0
    %v6835 = vand.u32 %v6681, 4294901760
    %v6836 = vsub.f32 %v6681, %v6835
    %v6837 = vand.u32 %v6836, 4294901760
    %v6838 = vsub.f32 %v6836, %v6837
    %v6839 = vand.u32 %v6838, 4294901760
    %6840 = vmatpush1.msra.mxu0 %v6839
    %6841 = vmatprep.subr.mxu0 0.0
    %v6842 = vand.u32 %v6682, 4294901760
    %v6843 = vsub.f32 %v6682, %v6842
    %v6844 = vand.u32 %v6843, 4294901760
    %v6845 = vsub.f32 %v6843, %v6844
    %v6846 = vand.u32 %v6845, 4294901760
    %6847 = vmatpush1.msra.mxu0 %v6846
    %6848 = vmatprep.subr.mxu0 0.0
    %v6849 = vand.u32 %v6683, 4294901760
    %v6850 = vsub.f32 %v6683, %v6849
    %v6851 = vand.u32 %v6850, 4294901760
    %v6852 = vsub.f32 %v6850, %v6851
    %v6853 = vand.u32 %v6852, 4294901760
    %6854 = vmatpush1.msra.mxu0 %v6853
    %6855 = vmatprep.subr.mxu0 0.0
    %v6856 = vand.u32 %v6684, 4294901760
    %v6857 = vsub.f32 %v6684, %v6856
    %v6858 = vand.u32 %v6857, 4294901760
    %v6859 = vsub.f32 %v6857, %v6858
    %v6860 = vand.u32 %v6859, 4294901760
    %6861 = vmatpush1.msra.mxu0 %v6860
    %6862 = vmatprep.subr.mxu0 0.0
    %v6863 = vand.u32 %v6685, 4294901760
    %v6864 = vsub.f32 %v6685, %v6863
    %v6865 = vand.u32 %v6864, 4294901760
    %v6866 = vsub.f32 %v6864, %v6865
    %v6867 = vand.u32 %v6866, 4294901760
    %6868 = vmatpush1.msra.mxu0 %v6867
    %6869 = vmatprep.subr.mxu0 0.0
    %v6870 = vand.u32 %v6686, 4294901760
    %v6871 = vsub.f32 %v6686, %v6870
    %v6872 = vand.u32 %v6871, 4294901760
    %v6873 = vsub.f32 %v6871, %v6872
    %v6874 = vand.u32 %v6873, 4294901760
    %6875 = vmatpush1.msra.mxu0 %v6874
    %6876 = vmatprep.subr.mxu0 0.0
    %v6877 = vand.u32 %v6687, 4294901760
    %v6878 = vsub.f32 %v6687, %v6877
    %v6879 = vand.u32 %v6878, 4294901760
    %v6880 = vsub.f32 %v6878, %v6879
    %v6881 = vand.u32 %v6880, 4294901760
    %6882 = vmatpush1.msra.mxu0 %v6881
    %6883 = vmatprep.subr.mxu0 0.0
    %6884 = vmatpush1.msra.mxu0 0.0
    %6885 = vmatprep.subr.mxu0 0.0
    %6886 = vmatpush1.msra.mxu0 0.0
    %6887 = vmatprep.subr.mxu0 0.0
    %6888 = vmatpush1.msra.mxu0 0.0
    %6889 = vmatprep.subr.mxu0 0.0
    %6890 = vmatpush1.msra.mxu0 0.0
    %6891 = vmatprep.subr.mxu0 0.0
    %6892 = vmatpush1.msra.mxu0 0.0
    %6893 = vmatprep.subr.mxu0 0.0
    %6894 = vmatpush1.msra.mxu0 0.0
    %6895 = vmatprep.subr.mxu0 0.0
    %6896 = vmatpush1.msra.mxu0 0.0
    %6897 = vmatprep.subr.mxu0 0.0
    %6898 = vmatpush1.msra.mxu0 0.0
    %6899 = vmatprep.subr.mxu0 0.0
    %6900 = vmatpush1.msra.mxu0 0.0
    %6901 = vmatprep.subr.mxu0 0.0
    %6902 = vmatpush1.msra.mxu0 0.0
    %6903 = vmatprep.subr.mxu0 0.0
    %6904 = vmatpush1.msra.mxu0 0.0
    %6905 = vmatprep.subr.mxu0 0.0
    %6906 = vmatpush1.msra.mxu0 0.0
    %6907 = vmatprep.subr.mxu0 0.0
    %6908 = vmatpush1.msra.mxu0 0.0
    %6909 = vmatprep.subr.mxu0 0.0
    %6910 = vmatpush1.msra.mxu0 0.0
    %6911 = vmatprep.subr.mxu0 0.0
    %6912 = vmatpush1.msra.mxu0 0.0
    %6913 = vmatprep.subr.mxu0 0.0
    %6914 = vmatpush1.msra.mxu0 0.0
    %6915 = vmatprep.subr.mxu0 0.0
    %6916 = vmatpush1.msra.mxu0 0.0
    %6917 = vmatprep.subr.mxu0 0.0
    %6918 = vmatpush1.msra.mxu0 0.0
    %6919 = vmatprep.subr.mxu0 0.0
    %6920 = vmatpush1.msra.mxu0 0.0
    %6921 = vmatprep.subr.mxu0 0.0
    %6922 = vmatpush1.msra.mxu0 0.0
    %6923 = vmatprep.subr.mxu0 0.0
    %6924 = vmatpush1.msra.mxu0 0.0
    %6925 = vmatprep.subr.mxu0 0.0
    %6926 = vmatpush1.msra.mxu0 0.0
    %6927 = vmatprep.mubr.f32.mxu0 0.0
    %v6928 = vand.u32 %v96, 4294901760
    %6929 = vmatmul.mubr.f32.gmra.mrb[0].mxu0 %v6928
    %v6930 = vpop.f32.mrb[0].mxu0
    %v6931 = vadd.f32 %v6770, %v6930
    %v6932 = vpop.f32.mrb[0].mxu0
    %6933 = vmatprep.mubr.f32.mxu0 0.0
    %v6934 = vand.u32 %v98, 4294901760
    %6935 = vmatmul.mubr.f32.gmra.mrb[0].mxu0 %v6934
    %v6936 = vpop.f32.mrb[0].mxu0
    %v6937 = vadd.f32 %v6780, %v6936
    %v6938 = vpop.f32.mrb[0].mxu0
    %6939 = vmatprep.mubr.f32.mxu0 0.0
    %v6940 = vand.u32 %v100, 4294901760
    %6941 = vmatmul.mubr.f32.gmra.mrb[0].mxu0 %v6940
    %v6942 = vpop.f32.mrb[0].mxu0
    %v6943 = vadd.f32 %v6790, %v6942
    %v6944 = vpop.f32.mrb[0].mxu0
    %6945 = vmatprep.mubr.f32.mxu0 0.0
    %v6946 = vand.u32 %v102, 4294901760
    %6947 = vmatmul.mubr.f32.gmra.mrb[0].mxu0 %v6946
    %v6948 = vpop.f32.mrb[0].mxu0
    %v6949 = vadd.f32 %v6800, %v6948
    %v6950 = vpop.f32.mrb[0].mxu0
    %6951 = vmatprep.mubr.f32.mxu0 0.0
    %v6952 = vand.u32 %v104, 4294901760
    %6953 = vmatmul.mubr.f32.gmra.mrb[0].mxu0 %v6952
    %v6954 = vpop.f32.mrb[0].mxu0
    %v6955 = vadd.f32 %v6810, %v6954
    %v6956 = vpop.f32.mrb[0].mxu0
    %6957 = vdwg.mxu0
    %6958 = vmatprep.subr.mxu0 0.0
    %v6959 = vand.u32 %v6678, 4294901760
    %v6960 = vsub.f32 %v6678, %v6959
    %6961 = vmatpush1.msra.mxu0 %v6960
    %6962 = vmatprep.subr.mxu0 0.0
    %v6963 = vand.u32 %v6679, 4294901760
    %v6964 = vsub.f32 %v6679, %v6963
    %6965 = vmatpush1.msra.mxu0 %v6964
    %6966 = vmatprep.subr.mxu0 0.0
    %v6967 = vand.u32 %v6680, 4294901760
    %v6968 = vsub.f32 %v6680, %v6967
    %6969 = vmatpush1.msra.mxu0 %v6968
    %6970 = vmatprep.subr.mxu0 0.0
    %v6971 = vand.u32 %v6681, 4294901760
    %v6972 = vsub.f32 %v6681, %v6971
    %6973 = vmatpush1.msra.mxu0 %v6972
    %6974 = vmatprep.subr.mxu0 0.0
    %v6975 = vand.u32 %v6682, 4294901760
    %v6976 = vsub.f32 %v6682, %v6975
    %6977 = vmatpush1.msra.mxu0 %v6976
    %6978 = vmatprep.subr.mxu0 0.0
    %v6979 = vand.u32 %v6683, 4294901760
    %v6980 = vsub.f32 %v6683, %v6979
    %6981 = vmatpush1.msra.mxu0 %v6980
    %6982 = vmatprep.subr.mxu0 0.0
    %v6983 = vand.u32 %v6684, 4294901760
    %v6984 = vsub.f32 %v6684, %v6983
    %6985 = vmatpush1.msra.mxu0 %v6984
    %6986 = vmatprep.subr.mxu0 0.0
    %v6987 = vand.u32 %v6685, 4294901760
    %v6988 = vsub.f32 %v6685, %v6987
    %6989 = vmatpush1.msra.mxu0 %v6988
    %6990 = vmatprep.subr.mxu0 0.0
    %v6991 = vand.u32 %v6686, 4294901760
    %v6992 = vsub.f32 %v6686, %v6991
    %6993 = vmatpush1.msra.mxu0 %v6992
    %6994 = vmatprep.subr.mxu0 0.0
    %v6995 = vand.u32 %v6687, 4294901760
    %v6996 = vsub.f32 %v6687, %v6995
    %6997 = vmatpush1.msra.mxu0 %v6996
    %6998 = vmatprep.subr.mxu0 0.0
    %6999 = vmatpush1.msra.mxu0 0.0
    %7000 = vmatprep.subr.mxu0 0.0
    %7001 = vmatpush1.msra.mxu0 0.0
    %7002 = vmatprep.subr.mxu0 0.0
    %7003 = vmatpush1.msra.mxu0 0.0
    %7004 = vmatprep.subr.mxu0 0.0
    %7005 = vmatpush1.msra.mxu0 0.0
    %7006 = vmatprep.subr.mxu0 0.0
    %7007 = vmatpush1.msra.mxu0 0.0
    %7008 = vmatprep.subr.mxu0 0.0
    %7009 = vmatpush1.msra.mxu0 0.0
    %7010 = vmatprep.subr.mxu0 0.0
    %7011 = vmatpush1.msra.mxu0 0.0
    %7012 = vmatprep.subr.mxu0 0.0
    %7013 = vmatpush1.msra.mxu0 0.0
    %7014 = vmatprep.subr.mxu0 0.0
    %7015 = vmatpush1.msra.mxu0 0.0
    %7016 = vmatprep.subr.mxu0 0.0
    %7017 = vmatpush1.msra.mxu0 0.0
    %7018 = vmatprep.subr.mxu0 0.0
    %7019 = vmatpush1.msra.mxu0 0.0
    %7020 = vmatprep.subr.mxu0 0.0
    %7021 = vmatpush1.msra.mxu0 0.0
    %7022 = vmatprep.subr.mxu0 0.0
    %7023 = vmatpush1.msra.mxu0 0.0
    %7024 = vmatprep.subr.mxu0 0.0
    %7025 = vmatpush1.msra.mxu0 0.0
    %7026 = vmatprep.subr.mxu0 0.0
    %7027 = vmatpush1.msra.mxu0 0.0
    %7028 = vmatprep.subr.mxu0 0.0
    %7029 = vmatpush1.msra.mxu0 0.0
    %7030 = vmatprep.subr.mxu0 0.0
    %7031 = vmatpush1.msra.mxu0 0.0
    %7032 = vmatprep.subr.mxu0 0.0
    %7033 = vmatpush1.msra.mxu0 0.0
    %7034 = vmatprep.subr.mxu0 0.0
    %7035 = vmatpush1.msra.mxu0 0.0
    %7036 = vmatprep.subr.mxu0 0.0
    %7037 = vmatpush1.msra.mxu0 0.0
    %7038 = vmatprep.subr.mxu0 0.0
    %7039 = vmatpush1.msra.mxu0 0.0
    %7040 = vmatprep.subr.mxu0 0.0
    %7041 = vmatpush1.msra.mxu0 0.0
    %7042 = vmatprep.mubr.f32.mxu0 0.0
    %v7043 = vand.u32 %v96, 4294901760
    %v7044 = vsub.f32 %v96, %v7043
    %7045 = vmatmul.mubr.f32.gmra.mrb[0].mxu0 %v7044
    %v7046 = vpop.f32.mrb[0].mxu0
    %v7047 = vadd.f32 %v6931, %v7046
    %v7048 = vpop.f32.mrb[0].mxu0
    %7049 = vmatprep.mubr.f32.mxu0 0.0
    %v7050 = vand.u32 %v98, 4294901760
    %v7051 = vsub.f32 %v98, %v7050
    %7052 = vmatmul.mubr.f32.gmra.mrb[0].mxu0 %v7051
    %v7053 = vpop.f32.mrb[0].mxu0
    %v7054 = vadd.f32 %v6937, %v7053
    %v7055 = vpop.f32.mrb[0].mxu0
    %7056 = vmatprep.mubr.f32.mxu0 0.0
    %v7057 = vand.u32 %v100, 4294901760
    %v7058 = vsub.f32 %v100, %v7057
    %7059 = vmatmul.mubr.f32.gmra.mrb[0].mxu0 %v7058
    %v7060 = vpop.f32.mrb[0].mxu0
    %v7061 = vadd.f32 %v6943, %v7060
    %v7062 = vpop.f32.mrb[0].mxu0
    %7063 = vmatprep.mubr.f32.mxu0 0.0
    %v7064 = vand.u32 %v102, 4294901760
    %v7065 = vsub.f32 %v102, %v7064
    %7066 = vmatmul.mubr.f32.gmra.mrb[0].mxu0 %v7065
    %v7067 = vpop.f32.mrb[0].mxu0
    %v7068 = vadd.f32 %v6949, %v7067
    %v7069 = vpop.f32.mrb[0].mxu0
    %7070 = vmatprep.mubr.f32.mxu0 0.0
    %v7071 = vand.u32 %v104, 4294901760
    %v7072 = vsub.f32 %v104, %v7071
    %7073 = vmatmul.mubr.f32.gmra.mrb[0].mxu0 %v7072
    %v7074 = vpop.f32.mrb[0].mxu0
    %v7075 = vadd.f32 %v6955, %v7074
    %v7076 = vpop.f32.mrb[0].mxu0
    %7077 = vdwg.mxu0
    %7078 = vmatprep.subr.mxu0 0.0
    %v7079 = vand.u32 %v6678, 4294901760
    %7080 = vmatpush1.msra.mxu0 %v7079
    %7081 = vmatprep.subr.mxu0 0.0
    %v7082 = vand.u32 %v6679, 4294901760
    %7083 = vmatpush1.msra.mxu0 %v7082
    %7084 = vmatprep.subr.mxu0 0.0
    %v7085 = vand.u32 %v6680, 4294901760
    %7086 = vmatpush1.msra.mxu0 %v7085
    %7087 = vmatprep.subr.mxu0 0.0
    %v7088 = vand.u32 %v6681, 4294901760
    %7089 = vmatpush1.msra.mxu0 %v7088
    %7090 = vmatprep.subr.mxu0 0.0
    %v7091 = vand.u32 %v6682, 4294901760
    %7092 = vmatpush1.msra.mxu0 %v7091
    %7093 = vmatprep.subr.mxu0 0.0
    %v7094 = vand.u32 %v6683, 4294901760
    %7095 = vmatpush1.msra.mxu0 %v7094
    %7096 = vmatprep.subr.mxu0 0.0
    %v7097 = vand.u32 %v6684, 4294901760
    %7098 = vmatpush1.msra.mxu0 %v7097
    %7099 = vmatprep.subr.mxu0 0.0
    %v7100 = vand.u32 %v6685, 4294901760
    %7101 = vmatpush1.msra.mxu0 %v7100
    %7102 = vmatprep.subr.mxu0 0.0
    %v7103 = vand.u32 %v6686, 4294901760
    %7104 = vmatpush1.msra.mxu0 %v7103
    %7105 = vmatprep.subr.mxu0 0.0
    %v7106 = vand.u32 %v6687, 4294901760
    %7107 = vmatpush1.msra.mxu0 %v7106
    %7108 = vmatprep.subr.mxu0 0.0
    %7109 = vmatpush1.msra.mxu0 0.0
    %7110 = vmatprep.subr.mxu0 0.0
    %7111 = vmatpush1.msra.mxu0 0.0
    %7112 = vmatprep.subr.mxu0 0.0
    %7113 = vmatpush1.msra.mxu0 0.0
    %7114 = vmatprep.subr.mxu0 0.0
    %7115 = vmatpush1.msra.mxu0 0.0
    %7116 = vmatprep.subr.mxu0 0.0
    %7117 = vmatpush1.msra.mxu0 0.0
    %7118 = vmatprep.subr.mxu0 0.0
    %7119 = vmatpush1.msra.mxu0 0.0
    %7120 = vmatprep.subr.mxu0 0.0
    %7121 = vmatpush1.msra.mxu0 0.0
    %7122 = vmatprep.subr.mxu0 0.0
    %7123 = vmatpush1.msra.mxu0 0.0
    %7124 = vmatprep.subr.mxu0 0.0
    %7125 = vmatpush1.msra.mxu0 0.0
    %7126 = vmatprep.subr.mxu0 0.0
    %7127 = vmatpush1.msra.mxu0 0.0
    %7128 = vmatprep.subr.mxu0 0.0
    %7129 = vmatpush1.msra.mxu0 0.0
    %7130 = vmatprep.subr.mxu0 0.0
    %7131 = vmatpush1.msra.mxu0 0.0
    %7132 = vmatprep.subr.mxu0 0.0
    %7133 = vmatpush1.msra.mxu0 0.0
    %7134 = vmatprep.subr.mxu0 0.0
    %7135 = vmatpush1.msra.mxu0 0.0
    %7136 = vmatprep.subr.mxu0 0.0
    %7137 = vmatpush1.msra.mxu0 0.0
    %7138 = vmatprep.subr.mxu0 0.0
    %7139 = vmatpush1.msra.mxu0 0.0
    %7140 = vmatprep.subr.mxu0 0.0
    %7141 = vmatpush1.msra.mxu0 0.0
    %7142 = vmatprep.subr.mxu0 0.0
    %7143 = vmatpush1.msra.mxu0 0.0
    %7144 = vmatprep.subr.mxu0 0.0
    %7145 = vmatpush1.msra.mxu0 0.0
    %7146 = vmatprep.subr.mxu0 0.0
    %7147 = vmatpush1.msra.mxu0 0.0
    %7148 = vmatprep.subr.mxu0 0.0
    %7149 = vmatpush1.msra.mxu0 0.0
    %7150 = vmatprep.subr.mxu0 0.0
    %7151 = vmatpush1.msra.mxu0 0.0
    %7152 = vmatprep.mubr.f32.mxu0 0.0
    %v7153 = vand.u32 %v96, 4294901760
    %v7154 = vsub.f32 %v96, %v7153
    %v7155 = vand.u32 %v7154, 4294901760
    %7156 = vmatmul.mubr.f32.gmra.mrb[0].mxu0 %v7155
    %v7157 = vpop.f32.mrb[0].mxu0
    %v7158 = vadd.f32 %v7047, %v7157
    %v7159 = vpop.f32.mrb[0].mxu0
    %7160 = vmatprep.mubr.f32.mxu0 0.0
    %v7161 = vand.u32 %v98, 4294901760
    %v7162 = vsub.f32 %v98, %v7161
    %v7163 = vand.u32 %v7162, 4294901760
    %7164 = vmatmul.mubr.f32.gmra.mrb[0].mxu0 %v7163
    %v7165 = vpop.f32.mrb[0].mxu0
    %v7166 = vadd.f32 %v7054, %v7165
    %v7167 = vpop.f32.mrb[0].mxu0
    %7168 = vmatprep.mubr.f32.mxu0 0.0
    %v7169 = vand.u32 %v100, 4294901760
    %v7170 = vsub.f32 %v100, %v7169
    %v7171 = vand.u32 %v7170, 4294901760
    %7172 = vmatmul.mubr.f32.gmra.mrb[0].mxu0 %v7171
    %v7173 = vpop.f32.mrb[0].mxu0
    %v7174 = vadd.f32 %v7061, %v7173
    %v7175 = vpop.f32.mrb[0].mxu0
    %7176 = vmatprep.mubr.f32.mxu0 0.0
    %v7177 = vand.u32 %v102, 4294901760
    %v7178 = vsub.f32 %v102, %v7177
    %v7179 = vand.u32 %v7178, 4294901760
    %7180 = vmatmul.mubr.f32.gmra.mrb[0].mxu0 %v7179
    %v7181 = vpop.f32.mrb[0].mxu0
    %v7182 = vadd.f32 %v7068, %v7181
    %v7183 = vpop.f32.mrb[0].mxu0
    %7184 = vmatprep.mubr.f32.mxu0 0.0
    %v7185 = vand.u32 %v104, 4294901760
    %v7186 = vsub.f32 %v104, %v7185
    %v7187 = vand.u32 %v7186, 4294901760
    %7188 = vmatmul.mubr.f32.gmra.mrb[0].mxu0 %v7187
    %v7189 = vpop.f32.mrb[0].mxu0
    %v7190 = vadd.f32 %v7075, %v7189
    %v7191 = vpop.f32.mrb[0].mxu0
    %7192 = vdwg.mxu0
    %7193 = vmatprep.subr.mxu0 0.0
    %v7194 = vand.u32 %v6678, 4294901760
    %v7195 = vsub.f32 %v6678, %v7194
    %v7196 = vand.u32 %v7195, 4294901760
    %7197 = vmatpush1.msra.mxu0 %v7196
    %7198 = vmatprep.subr.mxu0 0.0
    %v7199 = vand.u32 %v6679, 4294901760
    %v7200 = vsub.f32 %v6679, %v7199
    %v7201 = vand.u32 %v7200, 4294901760
    %7202 = vmatpush1.msra.mxu0 %v7201
    %7203 = vmatprep.subr.mxu0 0.0
    %v7204 = vand.u32 %v6680, 4294901760
    %v7205 = vsub.f32 %v6680, %v7204
    %v7206 = vand.u32 %v7205, 4294901760
    %7207 = vmatpush1.msra.mxu0 %v7206
    %7208 = vmatprep.subr.mxu0 0.0
    %v7209 = vand.u32 %v6681, 4294901760
    %v7210 = vsub.f32 %v6681, %v7209
    %v7211 = vand.u32 %v7210, 4294901760
    %7212 = vmatpush1.msra.mxu0 %v7211
    %7213 = vmatprep.subr.mxu0 0.0
    %v7214 = vand.u32 %v6682, 4294901760
    %v7215 = vsub.f32 %v6682, %v7214
    %v7216 = vand.u32 %v7215, 4294901760
    %7217 = vmatpush1.msra.mxu0 %v7216
    %7218 = vmatprep.subr.mxu0 0.0
    %v7219 = vand.u32 %v6683, 4294901760
    %v7220 = vsub.f32 %v6683, %v7219
    %v7221 = vand.u32 %v7220, 4294901760
    %7222 = vmatpush1.msra.mxu0 %v7221
    %7223 = vmatprep.subr.mxu0 0.0
    %v7224 = vand.u32 %v6684, 4294901760
    %v7225 = vsub.f32 %v6684, %v7224
    %v7226 = vand.u32 %v7225, 4294901760
    %7227 = vmatpush1.msra.mxu0 %v7226
    %7228 = vmatprep.subr.mxu0 0.0
    %v7229 = vand.u32 %v6685, 4294901760
    %v7230 = vsub.f32 %v6685, %v7229
    %v7231 = vand.u32 %v7230, 4294901760
    %7232 = vmatpush1.msra.mxu0 %v7231
    %7233 = vmatprep.subr.mxu0 0.0
    %v7234 = vand.u32 %v6686, 4294901760
    %v7235 = vsub.f32 %v6686, %v7234
    %v7236 = vand.u32 %v7235, 4294901760
    %7237 = vmatpush1.msra.mxu0 %v7236
    %7238 = vmatprep.subr.mxu0 0.0
    %v7239 = vand.u32 %v6687, 4294901760
    %v7240 = vsub.f32 %v6687, %v7239
    %v7241 = vand.u32 %v7240, 4294901760
    %7242 = vmatpush1.msra.mxu0 %v7241
    %7243 = vmatprep.subr.mxu0 0.0
    %7244 = vmatpush1.msra.mxu0 0.0
    %7245 = vmatprep.subr.mxu0 0.0
    %7246 = vmatpush1.msra.mxu0 0.0
    %7247 = vmatprep.subr.mxu0 0.0
    %7248 = vmatpush1.msra.mxu0 0.0
    %7249 = vmatprep.subr.mxu0 0.0
    %7250 = vmatpush1.msra.mxu0 0.0
    %7251 = vmatprep.subr.mxu0 0.0
    %7252 = vmatpush1.msra.mxu0 0.0
    %7253 = vmatprep.subr.mxu0 0.0
    %7254 = vmatpush1.msra.mxu0 0.0
    %7255 = vmatprep.subr.mxu0 0.0
    %7256 = vmatpush1.msra.mxu0 0.0
    %7257 = vmatprep.subr.mxu0 0.0
    %7258 = vmatpush1.msra.mxu0 0.0
    %7259 = vmatprep.subr.mxu0 0.0
    %7260 = vmatpush1.msra.mxu0 0.0
    %7261 = vmatprep.subr.mxu0 0.0
    %7262 = vmatpush1.msra.mxu0 0.0
    %7263 = vmatprep.subr.mxu0 0.0
    %7264 = vmatpush1.msra.mxu0 0.0
    %7265 = vmatprep.subr.mxu0 0.0
    %7266 = vmatpush1.msra.mxu0 0.0
    %7267 = vmatprep.subr.mxu0 0.0
    %7268 = vmatpush1.msra.mxu0 0.0
    %7269 = vmatprep.subr.mxu0 0.0
    %7270 = vmatpush1.msra.mxu0 0.0
    %7271 = vmatprep.subr.mxu0 0.0
    %7272 = vmatpush1.msra.mxu0 0.0
    %7273 = vmatprep.subr.mxu0 0.0
    %7274 = vmatpush1.msra.mxu0 0.0
    %7275 = vmatprep.subr.mxu0 0.0
    %7276 = vmatpush1.msra.mxu0 0.0
    %7277 = vmatprep.subr.mxu0 0.0
    %7278 = vmatpush1.msra.mxu0 0.0
    %7279 = vmatprep.subr.mxu0 0.0
    %7280 = vmatpush1.msra.mxu0 0.0
    %7281 = vmatprep.subr.mxu0 0.0
    %7282 = vmatpush1.msra.mxu0 0.0
    %7283 = vmatprep.subr.mxu0 0.0
    %7284 = vmatpush1.msra.mxu0 0.0
    %7285 = vmatprep.subr.mxu0 0.0
    %7286 = vmatpush1.msra.mxu0 0.0
    %7287 = vmatprep.mubr.f32.mxu0 0.0
    %v7288 = vand.u32 %v96, 4294901760
    %7289 = vmatmul.mubr.f32.gmra.mrb[0].mxu0 %v7288
    %v7290 = vpop.f32.mrb[0].mxu0
    %v7291 = vadd.f32 %v7158, %v7290
    %v7292 = vpop.f32.mrb[0].mxu0
    %7293 = vmatprep.mubr.f32.mxu0 0.0
    %v7294 = vand.u32 %v98, 4294901760
    %7295 = vmatmul.mubr.f32.gmra.mrb[0].mxu0 %v7294
    %v7296 = vpop.f32.mrb[0].mxu0
    %v7297 = vadd.f32 %v7166, %v7296
    %v7298 = vpop.f32.mrb[0].mxu0
    %7299 = vmatprep.mubr.f32.mxu0 0.0
    %v7300 = vand.u32 %v100, 4294901760
    %7301 = vmatmul.mubr.f32.gmra.mrb[0].mxu0 %v7300
    %v7302 = vpop.f32.mrb[0].mxu0
    %v7303 = vadd.f32 %v7174, %v7302
    %v7304 = vpop.f32.mrb[0].mxu0
    %7305 = vmatprep.mubr.f32.mxu0 0.0
    %v7306 = vand.u32 %v102, 4294901760
    %7307 = vmatmul.mubr.f32.gmra.mrb[0].mxu0 %v7306
    %v7308 = vpop.f32.mrb[0].mxu0
    %v7309 = vadd.f32 %v7182, %v7308
    %v7310 = vpop.f32.mrb[0].mxu0
    %7311 = vmatprep.mubr.f32.mxu0 0.0
    %v7312 = vand.u32 %v104, 4294901760
    %7313 = vmatmul.mubr.f32.gmra.mrb[0].mxu0 %v7312
    %v7314 = vpop.f32.mrb[0].mxu0
    %v7315 = vadd.f32 %v7190, %v7314
    %v7316 = vpop.f32.mrb[0].mxu0
    %7317 = vdwg.mxu0
    %7318 = vmatprep.subr.mxu0 0.0
    %v7319 = vand.u32 %v6678, 4294901760
    %7320 = vmatpush1.msra.mxu0 %v7319
    %7321 = vmatprep.subr.mxu0 0.0
    %v7322 = vand.u32 %v6679, 4294901760
    %7323 = vmatpush1.msra.mxu0 %v7322
    %7324 = vmatprep.subr.mxu0 0.0
    %v7325 = vand.u32 %v6680, 4294901760
    %7326 = vmatpush1.msra.mxu0 %v7325
    %7327 = vmatprep.subr.mxu0 0.0
    %v7328 = vand.u32 %v6681, 4294901760
    %7329 = vmatpush1.msra.mxu0 %v7328
    %7330 = vmatprep.subr.mxu0 0.0
    %v7331 = vand.u32 %v6682, 4294901760
    %7332 = vmatpush1.msra.mxu0 %v7331
    %7333 = vmatprep.subr.mxu0 0.0
    %v7334 = vand.u32 %v6683, 4294901760
    %7335 = vmatpush1.msra.mxu0 %v7334
    %7336 = vmatprep.subr.mxu0 0.0
    %v7337 = vand.u32 %v6684, 4294901760
    %7338 = vmatpush1.msra.mxu0 %v7337
    %7339 = vmatprep.subr.mxu0 0.0
    %v7340 = vand.u32 %v6685, 4294901760
    %7341 = vmatpush1.msra.mxu0 %v7340
    %7342 = vmatprep.subr.mxu0 0.0
    %v7343 = vand.u32 %v6686, 4294901760
    %7344 = vmatpush1.msra.mxu0 %v7343
    %7345 = vmatprep.subr.mxu0 0.0
    %v7346 = vand.u32 %v6687, 4294901760
    %7347 = vmatpush1.msra.mxu0 %v7346
    %7348 = vmatprep.subr.mxu0 0.0
    %7349 = vmatpush1.msra.mxu0 0.0
    %7350 = vmatprep.subr.mxu0 0.0
    %7351 = vmatpush1.msra.mxu0 0.0
    %7352 = vmatprep.subr.mxu0 0.0
    %7353 = vmatpush1.msra.mxu0 0.0
    %7354 = vmatprep.subr.mxu0 0.0
    %7355 = vmatpush1.msra.mxu0 0.0
    %7356 = vmatprep.subr.mxu0 0.0
    %7357 = vmatpush1.msra.mxu0 0.0
    %7358 = vmatprep.subr.mxu0 0.0
    %7359 = vmatpush1.msra.mxu0 0.0
    %7360 = vmatprep.subr.mxu0 0.0
    %7361 = vmatpush1.msra.mxu0 0.0
    %7362 = vmatprep.subr.mxu0 0.0
    %7363 = vmatpush1.msra.mxu0 0.0
    %7364 = vmatprep.subr.mxu0 0.0
    %7365 = vmatpush1.msra.mxu0 0.0
    %7366 = vmatprep.subr.mxu0 0.0
    %7367 = vmatpush1.msra.mxu0 0.0
    %7368 = vmatprep.subr.mxu0 0.0
    %7369 = vmatpush1.msra.mxu0 0.0
    %7370 = vmatprep.subr.mxu0 0.0
    %7371 = vmatpush1.msra.mxu0 0.0
    %7372 = vmatprep.subr.mxu0 0.0
    %7373 = vmatpush1.msra.mxu0 0.0
    %7374 = vmatprep.subr.mxu0 0.0
    %7375 = vmatpush1.msra.mxu0 0.0
    %7376 = vmatprep.subr.mxu0 0.0
    %7377 = vmatpush1.msra.mxu0 0.0
    %7378 = vmatprep.subr.mxu0 0.0
    %7379 = vmatpush1.msra.mxu0 0.0
    %7380 = vmatprep.subr.mxu0 0.0
    %7381 = vmatpush1.msra.mxu0 0.0
    %7382 = vmatprep.subr.mxu0 0.0
    %7383 = vmatpush1.msra.mxu0 0.0
    %7384 = vmatprep.subr.mxu0 0.0
    %7385 = vmatpush1.msra.mxu0 0.0
    %7386 = vmatprep.subr.mxu0 0.0
    %7387 = vmatpush1.msra.mxu0 0.0
    %7388 = vmatprep.subr.mxu0 0.0
    %7389 = vmatpush1.msra.mxu0 0.0
    %7390 = vmatprep.subr.mxu0 0.0
    %7391 = vmatpush1.msra.mxu0 0.0
    %7392 = vmatprep.mubr.f32.mxu0 0.0
    %v7393 = vand.u32 %v96, 4294901760
    %7394 = vmatmul.mubr.f32.gmra.mrb[0].mxu0 %v7393
    %v7395 = vpop.f32.mrb[0].mxu0
    %v7396 = vadd.f32 %v7291, %v7395
    %v7397 = vpop.f32.mrb[0].mxu0
    %7398 = vmatprep.mubr.f32.mxu0 0.0
    %v7399 = vand.u32 %v98, 4294901760
    %7400 = vmatmul.mubr.f32.gmra.mrb[0].mxu0 %v7399
    %v7401 = vpop.f32.mrb[0].mxu0
    %v7402 = vadd.f32 %v7297, %v7401
    %v7403 = vpop.f32.mrb[0].mxu0
    %7404 = vmatprep.mubr.f32.mxu0 0.0
    %v7405 = vand.u32 %v100, 4294901760
    %7406 = vmatmul.mubr.f32.gmra.mrb[0].mxu0 %v7405
    %v7407 = vpop.f32.mrb[0].mxu0
    %v7408 = vadd.f32 %v7303, %v7407
    %v7409 = vpop.f32.mrb[0].mxu0
    %7410 = vmatprep.mubr.f32.mxu0 0.0
    %v7411 = vand.u32 %v102, 4294901760
    %7412 = vmatmul.mubr.f32.gmra.mrb[0].mxu0 %v7411
    %v7413 = vpop.f32.mrb[0].mxu0
    %v7414 = vadd.f32 %v7309, %v7413
    %v7415 = vpop.f32.mrb[0].mxu0
    %7416 = vmatprep.mubr.f32.mxu0 0.0
    %v7417 = vand.u32 %v104, 4294901760
    %7418 = vmatmul.mubr.f32.gmra.mrb[0].mxu0 %v7417
    %v7419 = vpop.f32.mrb[0].mxu0
    %v7420 = vadd.f32 %v7315, %v7419
    %v7421 = vpop.f32.mrb[0].mxu0
    %7422 = vdwg.mxu0
    %v7423 = vadd.f32 %v6646, %v7396
    %v7424 = vadd.f32 %v6653, %v7402
    %v7425 = vadd.f32 %v6660, %v7408
    %v7426 = vadd.f32 %v6667, %v7414
    %v7427 = vadd.f32 %v6674, %v7420
    %v7428 = vmax.f32 %v4826, %v7423
    %v7429 = vmax.f32 %v4827, %v7424
    %v7430 = vmax.f32 %v4828, %v7425
    %v7431 = vmax.f32 %v4829, %v7426
    %v7432 = vmax.f32 %v4830, %v7427
    %s7433 = scalar_lea.vmem %s5, 288
    %v7434 = vld [vmem:[%s7433] sm:$0xff]
    %v7435 = vld [vmem:[%s7433 + $0x8] sm:$0xff]
    %v7436 = vld [vmem:[%s7433 + $0x10] sm:$0xff]
    %v7437 = vld [vmem:[%s7433 + $0x18] sm:$0xff]
    %v7438 = vld [vmem:[%s7433 + $0x20] sm:$0xff]
    %v7439 = vld [vmem:[%s7433 + $0x28] sm:$0xff]
    %v7440 = vld [vmem:[%s7433 + $0x30] sm:$0xff]
    %v7441 = vld [vmem:[%s7433 + $0x38] sm:$0xff]
    %v7442 = vld [vmem:[%s7433 + $0x40] sm:$0xff]
    %v7443 = vld [vmem:[%s7433 + $0x48] sm:$0xff]
    %v7444 = vld [vmem:[%s7433 + $0x50] sm:$0xff]
    %v7445 = vld [vmem:[%s7433 + $0x58] sm:$0xff]
    %v7446 = vld [vmem:[%s7433 + $0x60] sm:$0xff]
    %v7447 = vld [vmem:[%s7433 + $0x68] sm:$0xff]
    %v7448 = vld [vmem:[%s7433 + $0x70] sm:$0xff]
    %v7449 = vld [vmem:[%s7433 + $0x78] sm:$0xff]
    %v7450 = vld [vmem:[%s7433 + $0x80] sm:$0xff]
    %v7451 = vld [vmem:[%s7433 + $0x88] sm:$0xff]
    %s7452 = scalar_lea.vmem %s5, 720
    %v7453 = vld [vmem:[%s7452] sm:$0xff]
    %v7454 = vld [vmem:[%s7452 + $0x8] sm:$0xff]
    %v7455 = vld [vmem:[%s7452 + $0x10] sm:$0xff]
    %v7456 = vld [vmem:[%s7452 + $0x18] sm:$0xff]
    %v7457 = vld [vmem:[%s7452 + $0x20] sm:$0xff]
    %v7458 = vld [vmem:[%s7452 + $0x28] sm:$0xff]
    %v7459 = vld [vmem:[%s7452 + $0x30] sm:$0xff]
    %v7460 = vld [vmem:[%s7452 + $0x38] sm:$0xff]
    %v7461 = vld [vmem:[%s7452 + $0x40] sm:$0xff]
    %v7462 = vld [vmem:[%s7452 + $0x48] sm:$0xff]
    %v7463 = vld [vmem:[%s7452 + $0x50] sm:$0xff]
    %v7464 = vld [vmem:[%s7452 + $0x58] sm:$0xff]
    %v7465 = vld [vmem:[%s7452 + $0x60] sm:$0xff]
    %v7466 = vld [vmem:[%s7452 + $0x68] sm:$0xff]
    %v7467 = vld [vmem:[%s7452 + $0x70] sm:$0xff]
    %v7468 = vld [vmem:[%s7452 + $0x78] sm:$0xff]
    %v7469 = vld [vmem:[%s7452 + $0x80] sm:$0xff]
    %v7470 = vld [vmem:[%s7452 + $0x88] sm:$0xff]
    %7471 = vmatprep.subr.mxu0 0.0
    %v7472 = vand.u32 %v7453, 4294901760
    %7473 = vmatpush1.msra.mxu0 %v7472
    %7474 = vmatprep.subr.mxu0 0.0
    %v7475 = vand.u32 %v7454, 4294901760
    %7476 = vmatpush1.msra.mxu0 %v7475
    %7477 = vmatprep.subr.mxu0 0.0
    %v7478 = vand.u32 %v7455, 4294901760
    %7479 = vmatpush1.msra.mxu0 %v7478
    %7480 = vmatprep.subr.mxu0 0.0
    %v7481 = vand.u32 %v7456, 4294901760
    %7482 = vmatpush1.msra.mxu0 %v7481
    %7483 = vmatprep.subr.mxu0 0.0
    %v7484 = vand.u32 %v7457, 4294901760
    %7485 = vmatpush1.msra.mxu0 %v7484
    %7486 = vmatprep.subr.mxu0 0.0
    %v7487 = vand.u32 %v7458, 4294901760
    %7488 = vmatpush1.msra.mxu0 %v7487
    %7489 = vmatprep.subr.mxu0 0.0
    %v7490 = vand.u32 %v7459, 4294901760
    %7491 = vmatpush1.msra.mxu0 %v7490
    %7492 = vmatprep.subr.mxu0 0.0
    %v7493 = vand.u32 %v7460, 4294901760
    %7494 = vmatpush1.msra.mxu0 %v7493
    %7495 = vmatprep.subr.mxu0 0.0
    %v7496 = vand.u32 %v7461, 4294901760
    %7497 = vmatpush1.msra.mxu0 %v7496
    %7498 = vmatprep.subr.mxu0 0.0
    %v7499 = vand.u32 %v7462, 4294901760
    %7500 = vmatpush1.msra.mxu0 %v7499
    %7501 = vmatprep.subr.mxu0 0.0
    %v7502 = vand.u32 %v7463, 4294901760
    %7503 = vmatpush1.msra.mxu0 %v7502
    %7504 = vmatprep.subr.mxu0 0.0
    %v7505 = vand.u32 %v7464, 4294901760
    %7506 = vmatpush1.msra.mxu0 %v7505
    %7507 = vmatprep.subr.mxu0 0.0
    %v7508 = vand.u32 %v7465, 4294901760
    %7509 = vmatpush1.msra.mxu0 %v7508
    %7510 = vmatprep.subr.mxu0 0.0
    %v7511 = vand.u32 %v7466, 4294901760
    %7512 = vmatpush1.msra.mxu0 %v7511
    %7513 = vmatprep.subr.mxu0 0.0
    %v7514 = vand.u32 %v7467, 4294901760
    %7515 = vmatpush1.msra.mxu0 %v7514
    %7516 = vmatprep.subr.mxu0 0.0
    %v7517 = vand.u32 %v7468, 4294901760
    %7518 = vmatpush1.msra.mxu0 %v7517
    %7519 = vmatprep.subr.mxu0 0.0
    %v7520 = vand.u32 %v7469, 4294901760
    %7521 = vmatpush1.msra.mxu0 %v7520
    %7522 = vmatprep.subr.mxu0 0.0
    %v7523 = vand.u32 %v7470, 4294901760
    %7524 = vmatpush1.msra.mxu0 %v7523
    %7525 = vmatprep.subr.mxu0 0.0
    %7526 = vmatpush1.msra.mxu0 0.0
    %7527 = vmatprep.subr.mxu0 0.0
    %7528 = vmatpush1.msra.mxu0 0.0
    %7529 = vmatprep.subr.mxu0 0.0
    %7530 = vmatpush1.msra.mxu0 0.0
    %7531 = vmatprep.subr.mxu0 0.0
    %7532 = vmatpush1.msra.mxu0 0.0
    %7533 = vmatprep.subr.mxu0 0.0
    %7534 = vmatpush1.msra.mxu0 0.0
    %7535 = vmatprep.subr.mxu0 0.0
    %7536 = vmatpush1.msra.mxu0 0.0
    %7537 = vmatprep.subr.mxu0 0.0
    %7538 = vmatpush1.msra.mxu0 0.0
    %7539 = vmatprep.subr.mxu0 0.0
    %7540 = vmatpush1.msra.mxu0 0.0
    %7541 = vmatprep.subr.mxu0 0.0
    %7542 = vmatpush1.msra.mxu0 0.0
    %7543 = vmatprep.subr.mxu0 0.0
    %7544 = vmatpush1.msra.mxu0 0.0
    %7545 = vmatprep.subr.mxu0 0.0
    %7546 = vmatpush1.msra.mxu0 0.0
    %7547 = vmatprep.subr.mxu0 0.0
    %7548 = vmatpush1.msra.mxu0 0.0
    %7549 = vmatprep.subr.mxu0 0.0
    %7550 = vmatpush1.msra.mxu0 0.0
    %7551 = vmatprep.subr.mxu0 0.0
    %7552 = vmatpush1.msra.mxu0 0.0
    %v7553 = vand.u32 %v2253, 4294901760
    %v7554 = vsub.f32 %v2253, %v7553
    %v7555 = vand.u32 %v7554, 4294901760
    %v7556 = vsub.f32 %v7554, %v7555
    %v7557 = vand.u32 %v7556, 4294901760
    %7558 = vmatprep.mubr.f32.mxu0 %v7557
    %v7559 = vand.u32 %v2227, 4294901760
    %v7560 = vsub.f32 %v2227, %v7559
    %v7561 = vand.u32 %v7560, 4294901760
    %v7562 = vsub.f32 %v7560, %v7561
    %v7563 = vand.u32 %v7562, 4294901760
    %7564 = vmatmul.mubr.f32.gmra.mrb[0].mxu0 %v7563
    %v7565 = vpop.f32.mrb[0].mxu0
    %v7566 = vadd.f32 0.0, %v7565
    %v7567 = vpop.f32.mrb[0].mxu0
    %v7568 = vand.u32 %v2255, 4294901760
    %v7569 = vsub.f32 %v2255, %v7568
    %v7570 = vand.u32 %v7569, 4294901760
    %v7571 = vsub.f32 %v7569, %v7570
    %v7572 = vand.u32 %v7571, 4294901760
    %7573 = vmatprep.mubr.f32.mxu0 %v7572
    %v7574 = vand.u32 %v2232, 4294901760
    %v7575 = vsub.f32 %v2232, %v7574
    %v7576 = vand.u32 %v7575, 4294901760
    %v7577 = vsub.f32 %v7575, %v7576
    %v7578 = vand.u32 %v7577, 4294901760
    %7579 = vmatmul.mubr.f32.gmra.mrb[0].mxu0 %v7578
    %v7580 = vpop.f32.mrb[0].mxu0
    %v7581 = vadd.f32 0.0, %v7580
    %v7582 = vpop.f32.mrb[0].mxu0
    %v7583 = vand.u32 %v2257, 4294901760
    %v7584 = vsub.f32 %v2257, %v7583
    %v7585 = vand.u32 %v7584, 4294901760
    %v7586 = vsub.f32 %v7584, %v7585
    %v7587 = vand.u32 %v7586, 4294901760
    %7588 = vmatprep.mubr.f32.mxu0 %v7587
    %v7589 = vand.u32 %v2236, 4294901760
    %v7590 = vsub.f32 %v2236, %v7589
    %v7591 = vand.u32 %v7590, 4294901760
    %v7592 = vsub.f32 %v7590, %v7591
    %v7593 = vand.u32 %v7592, 4294901760
    %7594 = vmatmul.mubr.f32.gmra.mrb[0].mxu0 %v7593
    %v7595 = vpop.f32.mrb[0].mxu0
    %v7596 = vadd.f32 0.0, %v7595
    %v7597 = vpop.f32.mrb[0].mxu0
    %v7598 = vand.u32 %v2259, 4294901760
    %v7599 = vsub.f32 %v2259, %v7598
    %v7600 = vand.u32 %v7599, 4294901760
    %v7601 = vsub.f32 %v7599, %v7600
    %v7602 = vand.u32 %v7601, 4294901760
    %7603 = vmatprep.mubr.f32.mxu0 %v7602
    %v7604 = vand.u32 %v2240, 4294901760
    %v7605 = vsub.f32 %v2240, %v7604
    %v7606 = vand.u32 %v7605, 4294901760
    %v7607 = vsub.f32 %v7605, %v7606
    %v7608 = vand.u32 %v7607, 4294901760
    %7609 = vmatmul.mubr.f32.gmra.mrb[0].mxu0 %v7608
    %v7610 = vpop.f32.mrb[0].mxu0
    %v7611 = vadd.f32 0.0, %v7610
    %v7612 = vpop.f32.mrb[0].mxu0
    %v7613 = vand.u32 %v2261, 4294901760
    %v7614 = vsub.f32 %v2261, %v7613
    %v7615 = vand.u32 %v7614, 4294901760
    %v7616 = vsub.f32 %v7614, %v7615
    %v7617 = vand.u32 %v7616, 4294901760
    %7618 = vmatprep.mubr.f32.mxu0 %v7617
    %v7619 = vand.u32 %v2244, 4294901760
    %v7620 = vsub.f32 %v2244, %v7619
    %v7621 = vand.u32 %v7620, 4294901760
    %v7622 = vsub.f32 %v7620, %v7621
    %v7623 = vand.u32 %v7622, 4294901760
    %7624 = vmatmul.mubr.f32.gmra.mrb[0].mxu0 %v7623
    %v7625 = vpop.f32.mrb[0].mxu0
    %v7626 = vadd.f32 0.0, %v7625
    %v7627 = vpop.f32.mrb[0].mxu0
    %7628 = vdwg.mxu0
    %7629 = vmatprep.subr.mxu0 0.0
    %v7630 = vand.u32 %v7453, 4294901760
    %v7631 = vsub.f32 %v7453, %v7630
    %v7632 = vand.u32 %v7631, 4294901760
    %v7633 = vsub.f32 %v7631, %v7632
    %v7634 = vand.u32 %v7633, 4294901760
    %7635 = vmatpush1.msra.mxu0 %v7634
    %7636 = vmatprep.subr.mxu0 0.0
    %v7637 = vand.u32 %v7454, 4294901760
    %v7638 = vsub.f32 %v7454, %v7637
    %v7639 = vand.u32 %v7638, 4294901760
    %v7640 = vsub.f32 %v7638, %v7639
    %v7641 = vand.u32 %v7640, 4294901760
    %7642 = vmatpush1.msra.mxu0 %v7641
    %7643 = vmatprep.subr.mxu0 0.0
    %v7644 = vand.u32 %v7455, 4294901760
    %v7645 = vsub.f32 %v7455, %v7644
    %v7646 = vand.u32 %v7645, 4294901760
    %v7647 = vsub.f32 %v7645, %v7646
    %v7648 = vand.u32 %v7647, 4294901760
    %7649 = vmatpush1.msra.mxu0 %v7648
    %7650 = vmatprep.subr.mxu0 0.0
    %v7651 = vand.u32 %v7456, 4294901760
    %v7652 = vsub.f32 %v7456, %v7651
    %v7653 = vand.u32 %v7652, 4294901760
    %v7654 = vsub.f32 %v7652, %v7653
    %v7655 = vand.u32 %v7654, 4294901760
    %7656 = vmatpush1.msra.mxu0 %v7655
    %7657 = vmatprep.subr.mxu0 0.0
    %v7658 = vand.u32 %v7457, 4294901760
    %v7659 = vsub.f32 %v7457, %v7658
    %v7660 = vand.u32 %v7659, 4294901760
    %v7661 = vsub.f32 %v7659, %v7660
    %v7662 = vand.u32 %v7661, 4294901760
    %7663 = vmatpush1.msra.mxu0 %v7662
    %7664 = vmatprep.subr.mxu0 0.0
    %v7665 = vand.u32 %v7458, 4294901760
    %v7666 = vsub.f32 %v7458, %v7665
    %v7667 = vand.u32 %v7666, 4294901760
    %v7668 = vsub.f32 %v7666, %v7667
    %v7669 = vand.u32 %v7668, 4294901760
    %7670 = vmatpush1.msra.mxu0 %v7669
    %7671 = vmatprep.subr.mxu0 0.0
    %v7672 = vand.u32 %v7459, 4294901760
    %v7673 = vsub.f32 %v7459, %v7672
    %v7674 = vand.u32 %v7673, 4294901760
    %v7675 = vsub.f32 %v7673, %v7674
    %v7676 = vand.u32 %v7675, 4294901760
    %7677 = vmatpush1.msra.mxu0 %v7676
    %7678 = vmatprep.subr.mxu0 0.0
    %v7679 = vand.u32 %v7460, 4294901760
    %v7680 = vsub.f32 %v7460, %v7679
    %v7681 = vand.u32 %v7680, 4294901760
    %v7682 = vsub.f32 %v7680, %v7681
    %v7683 = vand.u32 %v7682, 4294901760
    %7684 = vmatpush1.msra.mxu0 %v7683
    %7685 = vmatprep.subr.mxu0 0.0
    %v7686 = vand.u32 %v7461, 4294901760
    %v7687 = vsub.f32 %v7461, %v7686
    %v7688 = vand.u32 %v7687, 4294901760
    %v7689 = vsub.f32 %v7687, %v7688
    %v7690 = vand.u32 %v7689, 4294901760
    %7691 = vmatpush1.msra.mxu0 %v7690
    %7692 = vmatprep.subr.mxu0 0.0
    %v7693 = vand.u32 %v7462, 4294901760
    %v7694 = vsub.f32 %v7462, %v7693
    %v7695 = vand.u32 %v7694, 4294901760
    %v7696 = vsub.f32 %v7694, %v7695
    %v7697 = vand.u32 %v7696, 4294901760
    %7698 = vmatpush1.msra.mxu0 %v7697
    %7699 = vmatprep.subr.mxu0 0.0
    %v7700 = vand.u32 %v7463, 4294901760
    %v7701 = vsub.f32 %v7463, %v7700
    %v7702 = vand.u32 %v7701, 4294901760
    %v7703 = vsub.f32 %v7701, %v7702
    %v7704 = vand.u32 %v7703, 4294901760
    %7705 = vmatpush1.msra.mxu0 %v7704
    %7706 = vmatprep.subr.mxu0 0.0
    %v7707 = vand.u32 %v7464, 4294901760
    %v7708 = vsub.f32 %v7464, %v7707
    %v7709 = vand.u32 %v7708, 4294901760
    %v7710 = vsub.f32 %v7708, %v7709
    %v7711 = vand.u32 %v7710, 4294901760
    %7712 = vmatpush1.msra.mxu0 %v7711
    %7713 = vmatprep.subr.mxu0 0.0
    %v7714 = vand.u32 %v7465, 4294901760
    %v7715 = vsub.f32 %v7465, %v7714
    %v7716 = vand.u32 %v7715, 4294901760
    %v7717 = vsub.f32 %v7715, %v7716
    %v7718 = vand.u32 %v7717, 4294901760
    %7719 = vmatpush1.msra.mxu0 %v7718
    %7720 = vmatprep.subr.mxu0 0.0
    %v7721 = vand.u32 %v7466, 4294901760
    %v7722 = vsub.f32 %v7466, %v7721
    %v7723 = vand.u32 %v7722, 4294901760
    %v7724 = vsub.f32 %v7722, %v7723
    %v7725 = vand.u32 %v7724, 4294901760
    %7726 = vmatpush1.msra.mxu0 %v7725
    %7727 = vmatprep.subr.mxu0 0.0
    %v7728 = vand.u32 %v7467, 4294901760
    %v7729 = vsub.f32 %v7467, %v7728
    %v7730 = vand.u32 %v7729, 4294901760
    %v7731 = vsub.f32 %v7729, %v7730
    %v7732 = vand.u32 %v7731, 4294901760
    %7733 = vmatpush1.msra.mxu0 %v7732
    %7734 = vmatprep.subr.mxu0 0.0
    %v7735 = vand.u32 %v7468, 4294901760
    %v7736 = vsub.f32 %v7468, %v7735
    %v7737 = vand.u32 %v7736, 4294901760
    %v7738 = vsub.f32 %v7736, %v7737
    %v7739 = vand.u32 %v7738, 4294901760
    %7740 = vmatpush1.msra.mxu0 %v7739
    %7741 = vmatprep.subr.mxu0 0.0
    %v7742 = vand.u32 %v7469, 4294901760
    %v7743 = vsub.f32 %v7469, %v7742
    %v7744 = vand.u32 %v7743, 4294901760
    %v7745 = vsub.f32 %v7743, %v7744
    %v7746 = vand.u32 %v7745, 4294901760
    %7747 = vmatpush1.msra.mxu0 %v7746
    %7748 = vmatprep.subr.mxu0 0.0
    %v7749 = vand.u32 %v7470, 4294901760
    %v7750 = vsub.f32 %v7470, %v7749
    %v7751 = vand.u32 %v7750, 4294901760
    %v7752 = vsub.f32 %v7750, %v7751
    %v7753 = vand.u32 %v7752, 4294901760
    %7754 = vmatpush1.msra.mxu0 %v7753
    %7755 = vmatprep.subr.mxu0 0.0
    %7756 = vmatpush1.msra.mxu0 0.0
    %7757 = vmatprep.subr.mxu0 0.0
    %7758 = vmatpush1.msra.mxu0 0.0
    %7759 = vmatprep.subr.mxu0 0.0
    %7760 = vmatpush1.msra.mxu0 0.0
    %7761 = vmatprep.subr.mxu0 0.0
    %7762 = vmatpush1.msra.mxu0 0.0
    %7763 = vmatprep.subr.mxu0 0.0
    %7764 = vmatpush1.msra.mxu0 0.0
    %7765 = vmatprep.subr.mxu0 0.0
    %7766 = vmatpush1.msra.mxu0 0.0
    %7767 = vmatprep.subr.mxu0 0.0
    %7768 = vmatpush1.msra.mxu0 0.0
    %7769 = vmatprep.subr.mxu0 0.0
    %7770 = vmatpush1.msra.mxu0 0.0
    %7771 = vmatprep.subr.mxu0 0.0
    %7772 = vmatpush1.msra.mxu0 0.0
    %7773 = vmatprep.subr.mxu0 0.0
    %7774 = vmatpush1.msra.mxu0 0.0
    %7775 = vmatprep.subr.mxu0 0.0
    %7776 = vmatpush1.msra.mxu0 0.0
    %7777 = vmatprep.subr.mxu0 0.0
    %7778 = vmatpush1.msra.mxu0 0.0
    %7779 = vmatprep.subr.mxu0 0.0
    %7780 = vmatpush1.msra.mxu0 0.0
    %7781 = vmatprep.subr.mxu0 0.0
    %7782 = vmatpush1.msra.mxu0 0.0
    %v7783 = vand.u32 %v2253, 4294901760
    %7784 = vmatprep.mubr.f32.mxu0 %v7783
    %v7785 = vand.u32 %v2227, 4294901760
    %7786 = vmatmul.mubr.f32.gmra.mrb[0].mxu0 %v7785
    %v7787 = vpop.f32.mrb[0].mxu0
    %v7788 = vadd.f32 %v7566, %v7787
    %v7789 = vpop.f32.mrb[0].mxu0
    %v7790 = vand.u32 %v2255, 4294901760
    %7791 = vmatprep.mubr.f32.mxu0 %v7790
    %v7792 = vand.u32 %v2232, 4294901760
    %7793 = vmatmul.mubr.f32.gmra.mrb[0].mxu0 %v7792
    %v7794 = vpop.f32.mrb[0].mxu0
    %v7795 = vadd.f32 %v7581, %v7794
    %v7796 = vpop.f32.mrb[0].mxu0
    %v7797 = vand.u32 %v2257, 4294901760
    %7798 = vmatprep.mubr.f32.mxu0 %v7797
    %v7799 = vand.u32 %v2236, 4294901760
    %7800 = vmatmul.mubr.f32.gmra.mrb[0].mxu0 %v7799
    %v7801 = vpop.f32.mrb[0].mxu0
    %v7802 = vadd.f32 %v7596, %v7801
    %v7803 = vpop.f32.mrb[0].mxu0
    %v7804 = vand.u32 %v2259, 4294901760
    %7805 = vmatprep.mubr.f32.mxu0 %v7804
    %v7806 = vand.u32 %v2240, 4294901760
    %7807 = vmatmul.mubr.f32.gmra.mrb[0].mxu0 %v7806
    %v7808 = vpop.f32.mrb[0].mxu0
    %v7809 = vadd.f32 %v7611, %v7808
    %v7810 = vpop.f32.mrb[0].mxu0
    %v7811 = vand.u32 %v2261, 4294901760
    %7812 = vmatprep.mubr.f32.mxu0 %v7811
    %v7813 = vand.u32 %v2244, 4294901760
    %7814 = vmatmul.mubr.f32.gmra.mrb[0].mxu0 %v7813
    %v7815 = vpop.f32.mrb[0].mxu0
    %v7816 = vadd.f32 %v7626, %v7815
    %v7817 = vpop.f32.mrb[0].mxu0
    %7818 = vdwg.mxu0
    %7819 = vmatprep.subr.mxu0 0.0
    %v7820 = vand.u32 %v7453, 4294901760
    %v7821 = vsub.f32 %v7453, %v7820
    %7822 = vmatpush1.msra.mxu0 %v7821
    %7823 = vmatprep.subr.mxu0 0.0
    %v7824 = vand.u32 %v7454, 4294901760
    %v7825 = vsub.f32 %v7454, %v7824
    %7826 = vmatpush1.msra.mxu0 %v7825
    %7827 = vmatprep.subr.mxu0 0.0
    %v7828 = vand.u32 %v7455, 4294901760
    %v7829 = vsub.f32 %v7455, %v7828
    %7830 = vmatpush1.msra.mxu0 %v7829
    %7831 = vmatprep.subr.mxu0 0.0
    %v7832 = vand.u32 %v7456, 4294901760
    %v7833 = vsub.f32 %v7456, %v7832
    %7834 = vmatpush1.msra.mxu0 %v7833
    %7835 = vmatprep.subr.mxu0 0.0
    %v7836 = vand.u32 %v7457, 4294901760
    %v7837 = vsub.f32 %v7457, %v7836
    %7838 = vmatpush1.msra.mxu0 %v7837
    %7839 = vmatprep.subr.mxu0 0.0
    %v7840 = vand.u32 %v7458, 4294901760
    %v7841 = vsub.f32 %v7458, %v7840
    %7842 = vmatpush1.msra.mxu0 %v7841
    %7843 = vmatprep.subr.mxu0 0.0
    %v7844 = vand.u32 %v7459, 4294901760
    %v7845 = vsub.f32 %v7459, %v7844
    %7846 = vmatpush1.msra.mxu0 %v7845
    %7847 = vmatprep.subr.mxu0 0.0
    %v7848 = vand.u32 %v7460, 4294901760
    %v7849 = vsub.f32 %v7460, %v7848
    %7850 = vmatpush1.msra.mxu0 %v7849
    %7851 = vmatprep.subr.mxu0 0.0
    %v7852 = vand.u32 %v7461, 4294901760
    %v7853 = vsub.f32 %v7461, %v7852
    %7854 = vmatpush1.msra.mxu0 %v7853
    %7855 = vmatprep.subr.mxu0 0.0
    %v7856 = vand.u32 %v7462, 4294901760
    %v7857 = vsub.f32 %v7462, %v7856
    %7858 = vmatpush1.msra.mxu0 %v7857
    %7859 = vmatprep.subr.mxu0 0.0
    %v7860 = vand.u32 %v7463, 4294901760
    %v7861 = vsub.f32 %v7463, %v7860
    %7862 = vmatpush1.msra.mxu0 %v7861
    %7863 = vmatprep.subr.mxu0 0.0
    %v7864 = vand.u32 %v7464, 4294901760
    %v7865 = vsub.f32 %v7464, %v7864
    %7866 = vmatpush1.msra.mxu0 %v7865
    %7867 = vmatprep.subr.mxu0 0.0
    %v7868 = vand.u32 %v7465, 4294901760
    %v7869 = vsub.f32 %v7465, %v7868
    %7870 = vmatpush1.msra.mxu0 %v7869
    %7871 = vmatprep.subr.mxu0 0.0
    %v7872 = vand.u32 %v7466, 4294901760
    %v7873 = vsub.f32 %v7466, %v7872
    %7874 = vmatpush1.msra.mxu0 %v7873
    %7875 = vmatprep.subr.mxu0 0.0
    %v7876 = vand.u32 %v7467, 4294901760
    %v7877 = vsub.f32 %v7467, %v7876
    %7878 = vmatpush1.msra.mxu0 %v7877
    %7879 = vmatprep.subr.mxu0 0.0
    %v7880 = vand.u32 %v7468, 4294901760
    %v7881 = vsub.f32 %v7468, %v7880
    %7882 = vmatpush1.msra.mxu0 %v7881
    %7883 = vmatprep.subr.mxu0 0.0
    %v7884 = vand.u32 %v7469, 4294901760
    %v7885 = vsub.f32 %v7469, %v7884
    %7886 = vmatpush1.msra.mxu0 %v7885
    %7887 = vmatprep.subr.mxu0 0.0
    %v7888 = vand.u32 %v7470, 4294901760
    %v7889 = vsub.f32 %v7470, %v7888
    %7890 = vmatpush1.msra.mxu0 %v7889
    %7891 = vmatprep.subr.mxu0 0.0
    %7892 = vmatpush1.msra.mxu0 0.0
    %7893 = vmatprep.subr.mxu0 0.0
    %7894 = vmatpush1.msra.mxu0 0.0
    %7895 = vmatprep.subr.mxu0 0.0
    %7896 = vmatpush1.msra.mxu0 0.0
    %7897 = vmatprep.subr.mxu0 0.0
    %7898 = vmatpush1.msra.mxu0 0.0
    %7899 = vmatprep.subr.mxu0 0.0
    %7900 = vmatpush1.msra.mxu0 0.0
    %7901 = vmatprep.subr.mxu0 0.0
    %7902 = vmatpush1.msra.mxu0 0.0
    %7903 = vmatprep.subr.mxu0 0.0
    %7904 = vmatpush1.msra.mxu0 0.0
    %7905 = vmatprep.subr.mxu0 0.0
    %7906 = vmatpush1.msra.mxu0 0.0
    %7907 = vmatprep.subr.mxu0 0.0
    %7908 = vmatpush1.msra.mxu0 0.0
    %7909 = vmatprep.subr.mxu0 0.0
    %7910 = vmatpush1.msra.mxu0 0.0
    %7911 = vmatprep.subr.mxu0 0.0
    %7912 = vmatpush1.msra.mxu0 0.0
    %7913 = vmatprep.subr.mxu0 0.0
    %7914 = vmatpush1.msra.mxu0 0.0
    %7915 = vmatprep.subr.mxu0 0.0
    %7916 = vmatpush1.msra.mxu0 0.0
    %7917 = vmatprep.subr.mxu0 0.0
    %7918 = vmatpush1.msra.mxu0 0.0
    %v7919 = vand.u32 %v2253, 4294901760
    %v7920 = vsub.f32 %v2253, %v7919
    %7921 = vmatprep.mubr.f32.mxu0 %v7920
    %v7922 = vand.u32 %v2227, 4294901760
    %v7923 = vsub.f32 %v2227, %v7922
    %7924 = vmatmul.mubr.f32.gmra.mrb[0].mxu0 %v7923
    %v7925 = vpop.f32.mrb[0].mxu0
    %v7926 = vadd.f32 %v7788, %v7925
    %v7927 = vpop.f32.mrb[0].mxu0
    %v7928 = vand.u32 %v2255, 4294901760
    %v7929 = vsub.f32 %v2255, %v7928
    %7930 = vmatprep.mubr.f32.mxu0 %v7929
    %v7931 = vand.u32 %v2232, 4294901760
    %v7932 = vsub.f32 %v2232, %v7931
    %7933 = vmatmul.mubr.f32.gmra.mrb[0].mxu0 %v7932
    %v7934 = vpop.f32.mrb[0].mxu0
    %v7935 = vadd.f32 %v7795, %v7934
    %v7936 = vpop.f32.mrb[0].mxu0
    %v7937 = vand.u32 %v2257, 4294901760
    %v7938 = vsub.f32 %v2257, %v7937
    %7939 = vmatprep.mubr.f32.mxu0 %v7938
    %v7940 = vand.u32 %v2236, 4294901760
    %v7941 = vsub.f32 %v2236, %v7940
    %7942 = vmatmul.mubr.f32.gmra.mrb[0].mxu0 %v7941
    %v7943 = vpop.f32.mrb[0].mxu0
    %v7944 = vadd.f32 %v7802, %v7943
    %v7945 = vpop.f32.mrb[0].mxu0
    %v7946 = vand.u32 %v2259, 4294901760
    %v7947 = vsub.f32 %v2259, %v7946
    %7948 = vmatprep.mubr.f32.mxu0 %v7947
    %v7949 = vand.u32 %v2240, 4294901760
    %v7950 = vsub.f32 %v2240, %v7949
    %7951 = vmatmul.mubr.f32.gmra.mrb[0].mxu0 %v7950
    %v7952 = vpop.f32.mrb[0].mxu0
    %v7953 = vadd.f32 %v7809, %v7952
    %v7954 = vpop.f32.mrb[0].mxu0
    %v7955 = vand.u32 %v2261, 4294901760
    %v7956 = vsub.f32 %v2261, %v7955
    %7957 = vmatprep.mubr.f32.mxu0 %v7956
    %v7958 = vand.u32 %v2244, 4294901760
    %v7959 = vsub.f32 %v2244, %v7958
    %7960 = vmatmul.mubr.f32.gmra.mrb[0].mxu0 %v7959
    %v7961 = vpop.f32.mrb[0].mxu0
    %v7962 = vadd.f32 %v7816, %v7961
    %v7963 = vpop.f32.mrb[0].mxu0
    %7964 = vdwg.mxu0
    %7965 = vmatprep.subr.mxu0 0.0
    %v7966 = vand.u32 %v7453, 4294901760
    %7967 = vmatpush1.msra.mxu0 %v7966
    %7968 = vmatprep.subr.mxu0 0.0
    %v7969 = vand.u32 %v7454, 4294901760
    %7970 = vmatpush1.msra.mxu0 %v7969
    %7971 = vmatprep.subr.mxu0 0.0
    %v7972 = vand.u32 %v7455, 4294901760
    %7973 = vmatpush1.msra.mxu0 %v7972
    %7974 = vmatprep.subr.mxu0 0.0
    %v7975 = vand.u32 %v7456, 4294901760
    %7976 = vmatpush1.msra.mxu0 %v7975
    %7977 = vmatprep.subr.mxu0 0.0
    %v7978 = vand.u32 %v7457, 4294901760
    %7979 = vmatpush1.msra.mxu0 %v7978
    %7980 = vmatprep.subr.mxu0 0.0
    %v7981 = vand.u32 %v7458, 4294901760
    %7982 = vmatpush1.msra.mxu0 %v7981
    %7983 = vmatprep.subr.mxu0 0.0
    %v7984 = vand.u32 %v7459, 4294901760
    %7985 = vmatpush1.msra.mxu0 %v7984
    %7986 = vmatprep.subr.mxu0 0.0
    %v7987 = vand.u32 %v7460, 4294901760
    %7988 = vmatpush1.msra.mxu0 %v7987
    %7989 = vmatprep.subr.mxu0 0.0
    %v7990 = vand.u32 %v7461, 4294901760
    %7991 = vmatpush1.msra.mxu0 %v7990
    %7992 = vmatprep.subr.mxu0 0.0
    %v7993 = vand.u32 %v7462, 4294901760
    %7994 = vmatpush1.msra.mxu0 %v7993
    %7995 = vmatprep.subr.mxu0 0.0
    %v7996 = vand.u32 %v7463, 4294901760
    %7997 = vmatpush1.msra.mxu0 %v7996
    %7998 = vmatprep.subr.mxu0 0.0
    %v7999 = vand.u32 %v7464, 4294901760
    %8000 = vmatpush1.msra.mxu0 %v7999
    %8001 = vmatprep.subr.mxu0 0.0
    %v8002 = vand.u32 %v7465, 4294901760
    %8003 = vmatpush1.msra.mxu0 %v8002
    %8004 = vmatprep.subr.mxu0 0.0
    %v8005 = vand.u32 %v7466, 4294901760
    %8006 = vmatpush1.msra.mxu0 %v8005
    %8007 = vmatprep.subr.mxu0 0.0
    %v8008 = vand.u32 %v7467, 4294901760
    %8009 = vmatpush1.msra.mxu0 %v8008
    %8010 = vmatprep.subr.mxu0 0.0
    %v8011 = vand.u32 %v7468, 4294901760
    %8012 = vmatpush1.msra.mxu0 %v8011
    %8013 = vmatprep.subr.mxu0 0.0
    %v8014 = vand.u32 %v7469, 4294901760
    %8015 = vmatpush1.msra.mxu0 %v8014
    %8016 = vmatprep.subr.mxu0 0.0
    %v8017 = vand.u32 %v7470, 4294901760
    %8018 = vmatpush1.msra.mxu0 %v8017
    %8019 = vmatprep.subr.mxu0 0.0
    %8020 = vmatpush1.msra.mxu0 0.0
    %8021 = vmatprep.subr.mxu0 0.0
    %8022 = vmatpush1.msra.mxu0 0.0
    %8023 = vmatprep.subr.mxu0 0.0
    %8024 = vmatpush1.msra.mxu0 0.0
    %8025 = vmatprep.subr.mxu0 0.0
    %8026 = vmatpush1.msra.mxu0 0.0
    %8027 = vmatprep.subr.mxu0 0.0
    %8028 = vmatpush1.msra.mxu0 0.0
    %8029 = vmatprep.subr.mxu0 0.0
    %8030 = vmatpush1.msra.mxu0 0.0
    %8031 = vmatprep.subr.mxu0 0.0
    %8032 = vmatpush1.msra.mxu0 0.0
    %8033 = vmatprep.subr.mxu0 0.0
    %8034 = vmatpush1.msra.mxu0 0.0
    %8035 = vmatprep.subr.mxu0 0.0
    %8036 = vmatpush1.msra.mxu0 0.0
    %8037 = vmatprep.subr.mxu0 0.0
    %8038 = vmatpush1.msra.mxu0 0.0
    %8039 = vmatprep.subr.mxu0 0.0
    %8040 = vmatpush1.msra.mxu0 0.0
    %8041 = vmatprep.subr.mxu0 0.0
    %8042 = vmatpush1.msra.mxu0 0.0
    %8043 = vmatprep.subr.mxu0 0.0
    %8044 = vmatpush1.msra.mxu0 0.0
    %8045 = vmatprep.subr.mxu0 0.0
    %8046 = vmatpush1.msra.mxu0 0.0
    %v8047 = vand.u32 %v2253, 4294901760
    %v8048 = vsub.f32 %v2253, %v8047
    %v8049 = vand.u32 %v8048, 4294901760
    %8050 = vmatprep.mubr.f32.mxu0 %v8049
    %v8051 = vand.u32 %v2227, 4294901760
    %v8052 = vsub.f32 %v2227, %v8051
    %v8053 = vand.u32 %v8052, 4294901760
    %8054 = vmatmul.mubr.f32.gmra.mrb[0].mxu0 %v8053
    %v8055 = vpop.f32.mrb[0].mxu0
    %v8056 = vadd.f32 %v7926, %v8055
    %v8057 = vpop.f32.mrb[0].mxu0
    %v8058 = vand.u32 %v2255, 4294901760
    %v8059 = vsub.f32 %v2255, %v8058
    %v8060 = vand.u32 %v8059, 4294901760
    %8061 = vmatprep.mubr.f32.mxu0 %v8060
    %v8062 = vand.u32 %v2232, 4294901760
    %v8063 = vsub.f32 %v2232, %v8062
    %v8064 = vand.u32 %v8063, 4294901760
    %8065 = vmatmul.mubr.f32.gmra.mrb[0].mxu0 %v8064
    %v8066 = vpop.f32.mrb[0].mxu0
    %v8067 = vadd.f32 %v7935, %v8066
    %v8068 = vpop.f32.mrb[0].mxu0
    %v8069 = vand.u32 %v2257, 4294901760
    %v8070 = vsub.f32 %v2257, %v8069
    %v8071 = vand.u32 %v8070, 4294901760
    %8072 = vmatprep.mubr.f32.mxu0 %v8071
    %v8073 = vand.u32 %v2236, 4294901760
    %v8074 = vsub.f32 %v2236, %v8073
    %v8075 = vand.u32 %v8074, 4294901760
    %8076 = vmatmul.mubr.f32.gmra.mrb[0].mxu0 %v8075
    %v8077 = vpop.f32.mrb[0].mxu0
    %v8078 = vadd.f32 %v7944, %v8077
    %v8079 = vpop.f32.mrb[0].mxu0
    %v8080 = vand.u32 %v2259, 4294901760
    %v8081 = vsub.f32 %v2259, %v8080
    %v8082 = vand.u32 %v8081, 4294901760
    %8083 = vmatprep.mubr.f32.mxu0 %v8082
    %v8084 = vand.u32 %v2240, 4294901760
    %v8085 = vsub.f32 %v2240, %v8084
    %v8086 = vand.u32 %v8085, 4294901760
    %8087 = vmatmul.mubr.f32.gmra.mrb[0].mxu0 %v8086
    %v8088 = vpop.f32.mrb[0].mxu0
    %v8089 = vadd.f32 %v7953, %v8088
    %v8090 = vpop.f32.mrb[0].mxu0
    %v8091 = vand.u32 %v2261, 4294901760
    %v8092 = vsub.f32 %v2261, %v8091
    %v8093 = vand.u32 %v8092, 4294901760
    %8094 = vmatprep.mubr.f32.mxu0 %v8093
    %v8095 = vand.u32 %v2244, 4294901760
    %v8096 = vsub.f32 %v2244, %v8095
    %v8097 = vand.u32 %v8096, 4294901760
    %8098 = vmatmul.mubr.f32.gmra.mrb[0].mxu0 %v8097
    %v8099 = vpop.f32.mrb[0].mxu0
    %v8100 = vadd.f32 %v7962, %v8099
    %v8101 = vpop.f32.mrb[0].mxu0
    %8102 = vdwg.mxu0
    %8103 = vmatprep.subr.mxu0 0.0
    %v8104 = vand.u32 %v7453, 4294901760
    %v8105 = vsub.f32 %v7453, %v8104
    %v8106 = vand.u32 %v8105, 4294901760
    %8107 = vmatpush1.msra.mxu0 %v8106
    %8108 = vmatprep.subr.mxu0 0.0
    %v8109 = vand.u32 %v7454, 4294901760
    %v8110 = vsub.f32 %v7454, %v8109
    %v8111 = vand.u32 %v8110, 4294901760
    %8112 = vmatpush1.msra.mxu0 %v8111
    %8113 = vmatprep.subr.mxu0 0.0
    %v8114 = vand.u32 %v7455, 4294901760
    %v8115 = vsub.f32 %v7455, %v8114
    %v8116 = vand.u32 %v8115, 4294901760
    %8117 = vmatpush1.msra.mxu0 %v8116
    %8118 = vmatprep.subr.mxu0 0.0
    %v8119 = vand.u32 %v7456, 4294901760
    %v8120 = vsub.f32 %v7456, %v8119
    %v8121 = vand.u32 %v8120, 4294901760
    %8122 = vmatpush1.msra.mxu0 %v8121
    %8123 = vmatprep.subr.mxu0 0.0
    %v8124 = vand.u32 %v7457, 4294901760
    %v8125 = vsub.f32 %v7457, %v8124
    %v8126 = vand.u32 %v8125, 4294901760
    %8127 = vmatpush1.msra.mxu0 %v8126
    %8128 = vmatprep.subr.mxu0 0.0
    %v8129 = vand.u32 %v7458, 4294901760
    %v8130 = vsub.f32 %v7458, %v8129
    %v8131 = vand.u32 %v8130, 4294901760
    %8132 = vmatpush1.msra.mxu0 %v8131
    %8133 = vmatprep.subr.mxu0 0.0
    %v8134 = vand.u32 %v7459, 4294901760
    %v8135 = vsub.f32 %v7459, %v8134
    %v8136 = vand.u32 %v8135, 4294901760
    %8137 = vmatpush1.msra.mxu0 %v8136
    %8138 = vmatprep.subr.mxu0 0.0
    %v8139 = vand.u32 %v7460, 4294901760
    %v8140 = vsub.f32 %v7460, %v8139
    %v8141 = vand.u32 %v8140, 4294901760
    %8142 = vmatpush1.msra.mxu0 %v8141
    %8143 = vmatprep.subr.mxu0 0.0
    %v8144 = vand.u32 %v7461, 4294901760
    %v8145 = vsub.f32 %v7461, %v8144
    %v8146 = vand.u32 %v8145, 4294901760
    %8147 = vmatpush1.msra.mxu0 %v8146
    %8148 = vmatprep.subr.mxu0 0.0
    %v8149 = vand.u32 %v7462, 4294901760
    %v8150 = vsub.f32 %v7462, %v8149
    %v8151 = vand.u32 %v8150, 4294901760
    %8152 = vmatpush1.msra.mxu0 %v8151
    %8153 = vmatprep.subr.mxu0 0.0
    %v8154 = vand.u32 %v7463, 4294901760
    %v8155 = vsub.f32 %v7463, %v8154
    %v8156 = vand.u32 %v8155, 4294901760
    %8157 = vmatpush1.msra.mxu0 %v8156
    %8158 = vmatprep.subr.mxu0 0.0
    %v8159 = vand.u32 %v7464, 4294901760
    %v8160 = vsub.f32 %v7464, %v8159
    %v8161 = vand.u32 %v8160, 4294901760
    %8162 = vmatpush1.msra.mxu0 %v8161
    %8163 = vmatprep.subr.mxu0 0.0
    %v8164 = vand.u32 %v7465, 4294901760
    %v8165 = vsub.f32 %v7465, %v8164
    %v8166 = vand.u32 %v8165, 4294901760
    %8167 = vmatpush1.msra.mxu0 %v8166
    %8168 = vmatprep.subr.mxu0 0.0
    %v8169 = vand.u32 %v7466, 4294901760
    %v8170 = vsub.f32 %v7466, %v8169
    %v8171 = vand.u32 %v8170, 4294901760
    %8172 = vmatpush1.msra.mxu0 %v8171
    %8173 = vmatprep.subr.mxu0 0.0
    %v8174 = vand.u32 %v7467, 4294901760
    %v8175 = vsub.f32 %v7467, %v8174
    %v8176 = vand.u32 %v8175, 4294901760
    %8177 = vmatpush1.msra.mxu0 %v8176
    %8178 = vmatprep.subr.mxu0 0.0
    %v8179 = vand.u32 %v7468, 4294901760
    %v8180 = vsub.f32 %v7468, %v8179
    %v8181 = vand.u32 %v8180, 4294901760
    %8182 = vmatpush1.msra.mxu0 %v8181
    %8183 = vmatprep.subr.mxu0 0.0
    %v8184 = vand.u32 %v7469, 4294901760
    %v8185 = vsub.f32 %v7469, %v8184
    %v8186 = vand.u32 %v8185, 4294901760
    %8187 = vmatpush1.msra.mxu0 %v8186
    %8188 = vmatprep.subr.mxu0 0.0
    %v8189 = vand.u32 %v7470, 4294901760
    %v8190 = vsub.f32 %v7470, %v8189
    %v8191 = vand.u32 %v8190, 4294901760
    %8192 = vmatpush1.msra.mxu0 %v8191
    %8193 = vmatprep.subr.mxu0 0.0
    %8194 = vmatpush1.msra.mxu0 0.0
    %8195 = vmatprep.subr.mxu0 0.0
    %8196 = vmatpush1.msra.mxu0 0.0
    %8197 = vmatprep.subr.mxu0 0.0
    %8198 = vmatpush1.msra.mxu0 0.0
    %8199 = vmatprep.subr.mxu0 0.0
    %8200 = vmatpush1.msra.mxu0 0.0
    %8201 = vmatprep.subr.mxu0 0.0
    %8202 = vmatpush1.msra.mxu0 0.0
    %8203 = vmatprep.subr.mxu0 0.0
    %8204 = vmatpush1.msra.mxu0 0.0
    %8205 = vmatprep.subr.mxu0 0.0
    %8206 = vmatpush1.msra.mxu0 0.0
    %8207 = vmatprep.subr.mxu0 0.0
    %8208 = vmatpush1.msra.mxu0 0.0
    %8209 = vmatprep.subr.mxu0 0.0
    %8210 = vmatpush1.msra.mxu0 0.0
    %8211 = vmatprep.subr.mxu0 0.0
    %8212 = vmatpush1.msra.mxu0 0.0
    %8213 = vmatprep.subr.mxu0 0.0
    %8214 = vmatpush1.msra.mxu0 0.0
    %8215 = vmatprep.subr.mxu0 0.0
    %8216 = vmatpush1.msra.mxu0 0.0
    %8217 = vmatprep.subr.mxu0 0.0
    %8218 = vmatpush1.msra.mxu0 0.0
    %8219 = vmatprep.subr.mxu0 0.0
    %8220 = vmatpush1.msra.mxu0 0.0
    %v8221 = vand.u32 %v2253, 4294901760
    %8222 = vmatprep.mubr.f32.mxu0 %v8221
    %v8223 = vand.u32 %v2227, 4294901760
    %8224 = vmatmul.mubr.f32.gmra.mrb[0].mxu0 %v8223
    %v8225 = vpop.f32.mrb[0].mxu0
    %v8226 = vadd.f32 %v8056, %v8225
    %v8227 = vpop.f32.mrb[0].mxu0
    %v8228 = vand.u32 %v2255, 4294901760
    %8229 = vmatprep.mubr.f32.mxu0 %v8228
    %v8230 = vand.u32 %v2232, 4294901760
    %8231 = vmatmul.mubr.f32.gmra.mrb[0].mxu0 %v8230
    %v8232 = vpop.f32.mrb[0].mxu0
    %v8233 = vadd.f32 %v8067, %v8232
    %v8234 = vpop.f32.mrb[0].mxu0
    %v8235 = vand.u32 %v2257, 4294901760
    %8236 = vmatprep.mubr.f32.mxu0 %v8235
    %v8237 = vand.u32 %v2236, 4294901760
    %8238 = vmatmul.mubr.f32.gmra.mrb[0].mxu0 %v8237
    %v8239 = vpop.f32.mrb[0].mxu0
    %v8240 = vadd.f32 %v8078, %v8239
    %v8241 = vpop.f32.mrb[0].mxu0
    %v8242 = vand.u32 %v2259, 4294901760
    %8243 = vmatprep.mubr.f32.mxu0 %v8242
    %v8244 = vand.u32 %v2240, 4294901760
    %8245 = vmatmul.mubr.f32.gmra.mrb[0].mxu0 %v8244
    %v8246 = vpop.f32.mrb[0].mxu0
    %v8247 = vadd.f32 %v8089, %v8246
    %v8248 = vpop.f32.mrb[0].mxu0
    %v8249 = vand.u32 %v2261, 4294901760
    %8250 = vmatprep.mubr.f32.mxu0 %v8249
    %v8251 = vand.u32 %v2244, 4294901760
    %8252 = vmatmul.mubr.f32.gmra.mrb[0].mxu0 %v8251
    %v8253 = vpop.f32.mrb[0].mxu0
    %v8254 = vadd.f32 %v8100, %v8253
    %v8255 = vpop.f32.mrb[0].mxu0
    %8256 = vdwg.mxu0
    %8257 = vmatprep.subr.mxu0 0.0
    %v8258 = vand.u32 %v7453, 4294901760
    %8259 = vmatpush1.msra.mxu0 %v8258
    %8260 = vmatprep.subr.mxu0 0.0
    %v8261 = vand.u32 %v7454, 4294901760
    %8262 = vmatpush1.msra.mxu0 %v8261
    %8263 = vmatprep.subr.mxu0 0.0
    %v8264 = vand.u32 %v7455, 4294901760
    %8265 = vmatpush1.msra.mxu0 %v8264
    %8266 = vmatprep.subr.mxu0 0.0
    %v8267 = vand.u32 %v7456, 4294901760
    %8268 = vmatpush1.msra.mxu0 %v8267
    %8269 = vmatprep.subr.mxu0 0.0
    %v8270 = vand.u32 %v7457, 4294901760
    %8271 = vmatpush1.msra.mxu0 %v8270
    %8272 = vmatprep.subr.mxu0 0.0
    %v8273 = vand.u32 %v7458, 4294901760
    %8274 = vmatpush1.msra.mxu0 %v8273
    %8275 = vmatprep.subr.mxu0 0.0
    %v8276 = vand.u32 %v7459, 4294901760
    %8277 = vmatpush1.msra.mxu0 %v8276
    %8278 = vmatprep.subr.mxu0 0.0
    %v8279 = vand.u32 %v7460, 4294901760
    %8280 = vmatpush1.msra.mxu0 %v8279
    %8281 = vmatprep.subr.mxu0 0.0
    %v8282 = vand.u32 %v7461, 4294901760
    %8283 = vmatpush1.msra.mxu0 %v8282
    %8284 = vmatprep.subr.mxu0 0.0
    %v8285 = vand.u32 %v7462, 4294901760
    %8286 = vmatpush1.msra.mxu0 %v8285
    %8287 = vmatprep.subr.mxu0 0.0
    %v8288 = vand.u32 %v7463, 4294901760
    %8289 = vmatpush1.msra.mxu0 %v8288
    %8290 = vmatprep.subr.mxu0 0.0
    %v8291 = vand.u32 %v7464, 4294901760
    %8292 = vmatpush1.msra.mxu0 %v8291
    %8293 = vmatprep.subr.mxu0 0.0
    %v8294 = vand.u32 %v7465, 4294901760
    %8295 = vmatpush1.msra.mxu0 %v8294
    %8296 = vmatprep.subr.mxu0 0.0
    %v8297 = vand.u32 %v7466, 4294901760
    %8298 = vmatpush1.msra.mxu0 %v8297
    %8299 = vmatprep.subr.mxu0 0.0
    %v8300 = vand.u32 %v7467, 4294901760
    %8301 = vmatpush1.msra.mxu0 %v8300
    %8302 = vmatprep.subr.mxu0 0.0
    %v8303 = vand.u32 %v7468, 4294901760
    %8304 = vmatpush1.msra.mxu0 %v8303
    %8305 = vmatprep.subr.mxu0 0.0
    %v8306 = vand.u32 %v7469, 4294901760
    %8307 = vmatpush1.msra.mxu0 %v8306
    %8308 = vmatprep.subr.mxu0 0.0
    %v8309 = vand.u32 %v7470, 4294901760
    %8310 = vmatpush1.msra.mxu0 %v8309
    %8311 = vmatprep.subr.mxu0 0.0
    %8312 = vmatpush1.msra.mxu0 0.0
    %8313 = vmatprep.subr.mxu0 0.0
    %8314 = vmatpush1.msra.mxu0 0.0
    %8315 = vmatprep.subr.mxu0 0.0
    %8316 = vmatpush1.msra.mxu0 0.0
    %8317 = vmatprep.subr.mxu0 0.0
    %8318 = vmatpush1.msra.mxu0 0.0
    %8319 = vmatprep.subr.mxu0 0.0
    %8320 = vmatpush1.msra.mxu0 0.0
    %8321 = vmatprep.subr.mxu0 0.0
    %8322 = vmatpush1.msra.mxu0 0.0
    %8323 = vmatprep.subr.mxu0 0.0
    %8324 = vmatpush1.msra.mxu0 0.0
    %8325 = vmatprep.subr.mxu0 0.0
    %8326 = vmatpush1.msra.mxu0 0.0
    %8327 = vmatprep.subr.mxu0 0.0
    %8328 = vmatpush1.msra.mxu0 0.0
    %8329 = vmatprep.subr.mxu0 0.0
    %8330 = vmatpush1.msra.mxu0 0.0
    %8331 = vmatprep.subr.mxu0 0.0
    %8332 = vmatpush1.msra.mxu0 0.0
    %8333 = vmatprep.subr.mxu0 0.0
    %8334 = vmatpush1.msra.mxu0 0.0
    %8335 = vmatprep.subr.mxu0 0.0
    %8336 = vmatpush1.msra.mxu0 0.0
    %8337 = vmatprep.subr.mxu0 0.0
    %8338 = vmatpush1.msra.mxu0 0.0
    %v8339 = vand.u32 %v2253, 4294901760
    %8340 = vmatprep.mubr.f32.mxu0 %v8339
    %v8341 = vand.u32 %v2227, 4294901760
    %8342 = vmatmul.mubr.f32.gmra.mrb[0].mxu0 %v8341
    %v8343 = vpop.f32.mrb[0].mxu0
    %v8344 = vadd.f32 %v8226, %v8343
    %v8345 = vpop.f32.mrb[0].mxu0
    %v8346 = vand.u32 %v2255, 4294901760
    %8347 = vmatprep.mubr.f32.mxu0 %v8346
    %v8348 = vand.u32 %v2232, 4294901760
    %8349 = vmatmul.mubr.f32.gmra.mrb[0].mxu0 %v8348
    %v8350 = vpop.f32.mrb[0].mxu0
    %v8351 = vadd.f32 %v8233, %v8350
    %v8352 = vpop.f32.mrb[0].mxu0
    %v8353 = vand.u32 %v2257, 4294901760
    %8354 = vmatprep.mubr.f32.mxu0 %v8353
    %v8355 = vand.u32 %v2236, 4294901760
    %8356 = vmatmul.mubr.f32.gmra.mrb[0].mxu0 %v8355
    %v8357 = vpop.f32.mrb[0].mxu0
    %v8358 = vadd.f32 %v8240, %v8357
    %v8359 = vpop.f32.mrb[0].mxu0
    %v8360 = vand.u32 %v2259, 4294901760
    %8361 = vmatprep.mubr.f32.mxu0 %v8360
    %v8362 = vand.u32 %v2240, 4294901760
    %8363 = vmatmul.mubr.f32.gmra.mrb[0].mxu0 %v8362
    %v8364 = vpop.f32.mrb[0].mxu0
    %v8365 = vadd.f32 %v8247, %v8364
    %v8366 = vpop.f32.mrb[0].mxu0
    %v8367 = vand.u32 %v2261, 4294901760
    %8368 = vmatprep.mubr.f32.mxu0 %v8367
    %v8369 = vand.u32 %v2244, 4294901760
    %8370 = vmatmul.mubr.f32.gmra.mrb[0].mxu0 %v8369
    %v8371 = vpop.f32.mrb[0].mxu0
    %v8372 = vadd.f32 %v8254, %v8371
    %v8373 = vpop.f32.mrb[0].mxu0
    %8374 = vdwg.mxu0
    %8375 = vmatprep.subr.mxu0 0.0
    %v8376 = vand.u32 %v7434, 4294901760
    %8377 = vmatpush1.msra.mxu0 %v8376
    %8378 = vmatprep.subr.mxu0 0.0
    %v8379 = vand.u32 %v7435, 4294901760
    %8380 = vmatpush1.msra.mxu0 %v8379
    %8381 = vmatprep.subr.mxu0 0.0
    %v8382 = vand.u32 %v7436, 4294901760
    %8383 = vmatpush1.msra.mxu0 %v8382
    %8384 = vmatprep.subr.mxu0 0.0
    %v8385 = vand.u32 %v7437, 4294901760
    %8386 = vmatpush1.msra.mxu0 %v8385
    %8387 = vmatprep.subr.mxu0 0.0
    %v8388 = vand.u32 %v7438, 4294901760
    %8389 = vmatpush1.msra.mxu0 %v8388
    %8390 = vmatprep.subr.mxu0 0.0
    %v8391 = vand.u32 %v7439, 4294901760
    %8392 = vmatpush1.msra.mxu0 %v8391
    %8393 = vmatprep.subr.mxu0 0.0
    %v8394 = vand.u32 %v7440, 4294901760
    %8395 = vmatpush1.msra.mxu0 %v8394
    %8396 = vmatprep.subr.mxu0 0.0
    %v8397 = vand.u32 %v7441, 4294901760
    %8398 = vmatpush1.msra.mxu0 %v8397
    %8399 = vmatprep.subr.mxu0 0.0
    %v8400 = vand.u32 %v7442, 4294901760
    %8401 = vmatpush1.msra.mxu0 %v8400
    %8402 = vmatprep.subr.mxu0 0.0
    %v8403 = vand.u32 %v7443, 4294901760
    %8404 = vmatpush1.msra.mxu0 %v8403
    %8405 = vmatprep.subr.mxu0 0.0
    %v8406 = vand.u32 %v7444, 4294901760
    %8407 = vmatpush1.msra.mxu0 %v8406
    %8408 = vmatprep.subr.mxu0 0.0
    %v8409 = vand.u32 %v7445, 4294901760
    %8410 = vmatpush1.msra.mxu0 %v8409
    %8411 = vmatprep.subr.mxu0 0.0
    %v8412 = vand.u32 %v7446, 4294901760
    %8413 = vmatpush1.msra.mxu0 %v8412
    %8414 = vmatprep.subr.mxu0 0.0
    %v8415 = vand.u32 %v7447, 4294901760
    %8416 = vmatpush1.msra.mxu0 %v8415
    %8417 = vmatprep.subr.mxu0 0.0
    %v8418 = vand.u32 %v7448, 4294901760
    %8419 = vmatpush1.msra.mxu0 %v8418
    %8420 = vmatprep.subr.mxu0 0.0
    %v8421 = vand.u32 %v7449, 4294901760
    %8422 = vmatpush1.msra.mxu0 %v8421
    %8423 = vmatprep.subr.mxu0 0.0
    %v8424 = vand.u32 %v7450, 4294901760
    %8425 = vmatpush1.msra.mxu0 %v8424
    %8426 = vmatprep.subr.mxu0 0.0
    %v8427 = vand.u32 %v7451, 4294901760
    %8428 = vmatpush1.msra.mxu0 %v8427
    %8429 = vmatprep.subr.mxu0 0.0
    %8430 = vmatpush1.msra.mxu0 0.0
    %8431 = vmatprep.subr.mxu0 0.0
    %8432 = vmatpush1.msra.mxu0 0.0
    %8433 = vmatprep.subr.mxu0 0.0
    %8434 = vmatpush1.msra.mxu0 0.0
    %8435 = vmatprep.subr.mxu0 0.0
    %8436 = vmatpush1.msra.mxu0 0.0
    %8437 = vmatprep.subr.mxu0 0.0
    %8438 = vmatpush1.msra.mxu0 0.0
    %8439 = vmatprep.subr.mxu0 0.0
    %8440 = vmatpush1.msra.mxu0 0.0
    %8441 = vmatprep.subr.mxu0 0.0
    %8442 = vmatpush1.msra.mxu0 0.0
    %8443 = vmatprep.subr.mxu0 0.0
    %8444 = vmatpush1.msra.mxu0 0.0
    %8445 = vmatprep.subr.mxu0 0.0
    %8446 = vmatpush1.msra.mxu0 0.0
    %8447 = vmatprep.subr.mxu0 0.0
    %8448 = vmatpush1.msra.mxu0 0.0
    %8449 = vmatprep.subr.mxu0 0.0
    %8450 = vmatpush1.msra.mxu0 0.0
    %8451 = vmatprep.subr.mxu0 0.0
    %8452 = vmatpush1.msra.mxu0 0.0
    %8453 = vmatprep.subr.mxu0 0.0
    %8454 = vmatpush1.msra.mxu0 0.0
    %8455 = vmatprep.subr.mxu0 0.0
    %8456 = vmatpush1.msra.mxu0 0.0
    %v8457 = vand.u32 %v3167, 4294901760
    %v8458 = vsub.f32 %v3167, %v8457
    %v8459 = vand.u32 %v8458, 4294901760
    %v8460 = vsub.f32 %v8458, %v8459
    %v8461 = vand.u32 %v8460, 4294901760
    %8462 = vmatprep.mubr.f32.mxu0 %v8461
    %v8463 = vand.u32 %v2164, 4294901760
    %v8464 = vsub.f32 %v2164, %v8463
    %v8465 = vand.u32 %v8464, 4294901760
    %v8466 = vsub.f32 %v8464, %v8465
    %v8467 = vand.u32 %v8466, 4294901760
    %8468 = vmatmul.mubr.f32.gmra.mrb[0].mxu0 %v8467
    %v8469 = vpop.f32.mrb[0].mxu0
    %v8470 = vadd.f32 %v8344, %v8469
    %v8471 = vpop.f32.mrb[0].mxu0
    %v8472 = vand.u32 %v3169, 4294901760
    %v8473 = vsub.f32 %v3169, %v8472
    %v8474 = vand.u32 %v8473, 4294901760
    %v8475 = vsub.f32 %v8473, %v8474
    %v8476 = vand.u32 %v8475, 4294901760
    %8477 = vmatprep.mubr.f32.mxu0 %v8476
    %v8478 = vand.u32 %v2166, 4294901760
    %v8479 = vsub.f32 %v2166, %v8478
    %v8480 = vand.u32 %v8479, 4294901760
    %v8481 = vsub.f32 %v8479, %v8480
    %v8482 = vand.u32 %v8481, 4294901760
    %8483 = vmatmul.mubr.f32.gmra.mrb[0].mxu0 %v8482
    %v8484 = vpop.f32.mrb[0].mxu0
    %v8485 = vadd.f32 %v8351, %v8484
    %v8486 = vpop.f32.mrb[0].mxu0
    %v8487 = vand.u32 %v3171, 4294901760
    %v8488 = vsub.f32 %v3171, %v8487
    %v8489 = vand.u32 %v8488, 4294901760
    %v8490 = vsub.f32 %v8488, %v8489
    %v8491 = vand.u32 %v8490, 4294901760
    %8492 = vmatprep.mubr.f32.mxu0 %v8491
    %v8493 = vand.u32 %v2168, 4294901760
    %v8494 = vsub.f32 %v2168, %v8493
    %v8495 = vand.u32 %v8494, 4294901760
    %v8496 = vsub.f32 %v8494, %v8495
    %v8497 = vand.u32 %v8496, 4294901760
    %8498 = vmatmul.mubr.f32.gmra.mrb[0].mxu0 %v8497
    %v8499 = vpop.f32.mrb[0].mxu0
    %v8500 = vadd.f32 %v8358, %v8499
    %v8501 = vpop.f32.mrb[0].mxu0
    %v8502 = vand.u32 %v3173, 4294901760
    %v8503 = vsub.f32 %v3173, %v8502
    %v8504 = vand.u32 %v8503, 4294901760
    %v8505 = vsub.f32 %v8503, %v8504
    %v8506 = vand.u32 %v8505, 4294901760
    %8507 = vmatprep.mubr.f32.mxu0 %v8506
    %v8508 = vand.u32 %v2170, 4294901760
    %v8509 = vsub.f32 %v2170, %v8508
    %v8510 = vand.u32 %v8509, 4294901760
    %v8511 = vsub.f32 %v8509, %v8510
    %v8512 = vand.u32 %v8511, 4294901760
    %8513 = vmatmul.mubr.f32.gmra.mrb[0].mxu0 %v8512
    %v8514 = vpop.f32.mrb[0].mxu0
    %v8515 = vadd.f32 %v8365, %v8514
    %v8516 = vpop.f32.mrb[0].mxu0
    %v8517 = vand.u32 %v3175, 4294901760
    %v8518 = vsub.f32 %v3175, %v8517
    %v8519 = vand.u32 %v8518, 4294901760
    %v8520 = vsub.f32 %v8518, %v8519
    %v8521 = vand.u32 %v8520, 4294901760
    %8522 = vmatprep.mubr.f32.mxu0 %v8521
    %v8523 = vand.u32 %v2172, 4294901760
    %v8524 = vsub.f32 %v2172, %v8523
    %v8525 = vand.u32 %v8524, 4294901760
    %v8526 = vsub.f32 %v8524, %v8525
    %v8527 = vand.u32 %v8526, 4294901760
    %8528 = vmatmul.mubr.f32.gmra.mrb[0].mxu0 %v8527
    %v8529 = vpop.f32.mrb[0].mxu0
    %v8530 = vadd.f32 %v8372, %v8529
    %v8531 = vpop.f32.mrb[0].mxu0
    %8532 = vdwg.mxu0
    %8533 = vmatprep.subr.mxu0 0.0
    %v8534 = vand.u32 %v7434, 4294901760
    %v8535 = vsub.f32 %v7434, %v8534
    %v8536 = vand.u32 %v8535, 4294901760
    %v8537 = vsub.f32 %v8535, %v8536
    %v8538 = vand.u32 %v8537, 4294901760
    %8539 = vmatpush1.msra.mxu0 %v8538
    %8540 = vmatprep.subr.mxu0 0.0
    %v8541 = vand.u32 %v7435, 4294901760
    %v8542 = vsub.f32 %v7435, %v8541
    %v8543 = vand.u32 %v8542, 4294901760
    %v8544 = vsub.f32 %v8542, %v8543
    %v8545 = vand.u32 %v8544, 4294901760
    %8546 = vmatpush1.msra.mxu0 %v8545
    %8547 = vmatprep.subr.mxu0 0.0
    %v8548 = vand.u32 %v7436, 4294901760
    %v8549 = vsub.f32 %v7436, %v8548
    %v8550 = vand.u32 %v8549, 4294901760
    %v8551 = vsub.f32 %v8549, %v8550
    %v8552 = vand.u32 %v8551, 4294901760
    %8553 = vmatpush1.msra.mxu0 %v8552
    %8554 = vmatprep.subr.mxu0 0.0
    %v8555 = vand.u32 %v7437, 4294901760
    %v8556 = vsub.f32 %v7437, %v8555
    %v8557 = vand.u32 %v8556, 4294901760
    %v8558 = vsub.f32 %v8556, %v8557
    %v8559 = vand.u32 %v8558, 4294901760
    %8560 = vmatpush1.msra.mxu0 %v8559
    %8561 = vmatprep.subr.mxu0 0.0
    %v8562 = vand.u32 %v7438, 4294901760
    %v8563 = vsub.f32 %v7438, %v8562
    %v8564 = vand.u32 %v8563, 4294901760
    %v8565 = vsub.f32 %v8563, %v8564
    %v8566 = vand.u32 %v8565, 4294901760
    %8567 = vmatpush1.msra.mxu0 %v8566
    %8568 = vmatprep.subr.mxu0 0.0
    %v8569 = vand.u32 %v7439, 4294901760
    %v8570 = vsub.f32 %v7439, %v8569
    %v8571 = vand.u32 %v8570, 4294901760
    %v8572 = vsub.f32 %v8570, %v8571
    %v8573 = vand.u32 %v8572, 4294901760
    %8574 = vmatpush1.msra.mxu0 %v8573
    %8575 = vmatprep.subr.mxu0 0.0
    %v8576 = vand.u32 %v7440, 4294901760
    %v8577 = vsub.f32 %v7440, %v8576
    %v8578 = vand.u32 %v8577, 4294901760
    %v8579 = vsub.f32 %v8577, %v8578
    %v8580 = vand.u32 %v8579, 4294901760
    %8581 = vmatpush1.msra.mxu0 %v8580
    %8582 = vmatprep.subr.mxu0 0.0
    %v8583 = vand.u32 %v7441, 4294901760
    %v8584 = vsub.f32 %v7441, %v8583
    %v8585 = vand.u32 %v8584, 4294901760
    %v8586 = vsub.f32 %v8584, %v8585
    %v8587 = vand.u32 %v8586, 4294901760
    %8588 = vmatpush1.msra.mxu0 %v8587
    %8589 = vmatprep.subr.mxu0 0.0
    %v8590 = vand.u32 %v7442, 4294901760
    %v8591 = vsub.f32 %v7442, %v8590
    %v8592 = vand.u32 %v8591, 4294901760
    %v8593 = vsub.f32 %v8591, %v8592
    %v8594 = vand.u32 %v8593, 4294901760
    %8595 = vmatpush1.msra.mxu0 %v8594
    %8596 = vmatprep.subr.mxu0 0.0
    %v8597 = vand.u32 %v7443, 4294901760
    %v8598 = vsub.f32 %v7443, %v8597
    %v8599 = vand.u32 %v8598, 4294901760
    %v8600 = vsub.f32 %v8598, %v8599
    %v8601 = vand.u32 %v8600, 4294901760
    %8602 = vmatpush1.msra.mxu0 %v8601
    %8603 = vmatprep.subr.mxu0 0.0
    %v8604 = vand.u32 %v7444, 4294901760
    %v8605 = vsub.f32 %v7444, %v8604
    %v8606 = vand.u32 %v8605, 4294901760
    %v8607 = vsub.f32 %v8605, %v8606
    %v8608 = vand.u32 %v8607, 4294901760
    %8609 = vmatpush1.msra.mxu0 %v8608
    %8610 = vmatprep.subr.mxu0 0.0
    %v8611 = vand.u32 %v7445, 4294901760
    %v8612 = vsub.f32 %v7445, %v8611
    %v8613 = vand.u32 %v8612, 4294901760
    %v8614 = vsub.f32 %v8612, %v8613
    %v8615 = vand.u32 %v8614, 4294901760
    %8616 = vmatpush1.msra.mxu0 %v8615
    %8617 = vmatprep.subr.mxu0 0.0
    %v8618 = vand.u32 %v7446, 4294901760
    %v8619 = vsub.f32 %v7446, %v8618
    %v8620 = vand.u32 %v8619, 4294901760
    %v8621 = vsub.f32 %v8619, %v8620
    %v8622 = vand.u32 %v8621, 4294901760
    %8623 = vmatpush1.msra.mxu0 %v8622
    %8624 = vmatprep.subr.mxu0 0.0
    %v8625 = vand.u32 %v7447, 4294901760
    %v8626 = vsub.f32 %v7447, %v8625
    %v8627 = vand.u32 %v8626, 4294901760
    %v8628 = vsub.f32 %v8626, %v8627
    %v8629 = vand.u32 %v8628, 4294901760
    %8630 = vmatpush1.msra.mxu0 %v8629
    %8631 = vmatprep.subr.mxu0 0.0
    %v8632 = vand.u32 %v7448, 4294901760
    %v8633 = vsub.f32 %v7448, %v8632
    %v8634 = vand.u32 %v8633, 4294901760
    %v8635 = vsub.f32 %v8633, %v8634
    %v8636 = vand.u32 %v8635, 4294901760
    %8637 = vmatpush1.msra.mxu0 %v8636
    %8638 = vmatprep.subr.mxu0 0.0
    %v8639 = vand.u32 %v7449, 4294901760
    %v8640 = vsub.f32 %v7449, %v8639
    %v8641 = vand.u32 %v8640, 4294901760
    %v8642 = vsub.f32 %v8640, %v8641
    %v8643 = vand.u32 %v8642, 4294901760
    %8644 = vmatpush1.msra.mxu0 %v8643
    %8645 = vmatprep.subr.mxu0 0.0
    %v8646 = vand.u32 %v7450, 4294901760
    %v8647 = vsub.f32 %v7450, %v8646
    %v8648 = vand.u32 %v8647, 4294901760
    %v8649 = vsub.f32 %v8647, %v8648
    %v8650 = vand.u32 %v8649, 4294901760
    %8651 = vmatpush1.msra.mxu0 %v8650
    %8652 = vmatprep.subr.mxu0 0.0
    %v8653 = vand.u32 %v7451, 4294901760
    %v8654 = vsub.f32 %v7451, %v8653
    %v8655 = vand.u32 %v8654, 4294901760
    %v8656 = vsub.f32 %v8654, %v8655
    %v8657 = vand.u32 %v8656, 4294901760
    %8658 = vmatpush1.msra.mxu0 %v8657
    %8659 = vmatprep.subr.mxu0 0.0
    %8660 = vmatpush1.msra.mxu0 0.0
    %8661 = vmatprep.subr.mxu0 0.0
    %8662 = vmatpush1.msra.mxu0 0.0
    %8663 = vmatprep.subr.mxu0 0.0
    %8664 = vmatpush1.msra.mxu0 0.0
    %8665 = vmatprep.subr.mxu0 0.0
    %8666 = vmatpush1.msra.mxu0 0.0
    %8667 = vmatprep.subr.mxu0 0.0
    %8668 = vmatpush1.msra.mxu0 0.0
    %8669 = vmatprep.subr.mxu0 0.0
    %8670 = vmatpush1.msra.mxu0 0.0
    %8671 = vmatprep.subr.mxu0 0.0
    %8672 = vmatpush1.msra.mxu0 0.0
    %8673 = vmatprep.subr.mxu0 0.0
    %8674 = vmatpush1.msra.mxu0 0.0
    %8675 = vmatprep.subr.mxu0 0.0
    %8676 = vmatpush1.msra.mxu0 0.0
    %8677 = vmatprep.subr.mxu0 0.0
    %8678 = vmatpush1.msra.mxu0 0.0
    %8679 = vmatprep.subr.mxu0 0.0
    %8680 = vmatpush1.msra.mxu0 0.0
    %8681 = vmatprep.subr.mxu0 0.0
    %8682 = vmatpush1.msra.mxu0 0.0
    %8683 = vmatprep.subr.mxu0 0.0
    %8684 = vmatpush1.msra.mxu0 0.0
    %8685 = vmatprep.subr.mxu0 0.0
    %8686 = vmatpush1.msra.mxu0 0.0
    %v8687 = vand.u32 %v3167, 4294901760
    %8688 = vmatprep.mubr.f32.mxu0 %v8687
    %v8689 = vand.u32 %v2164, 4294901760
    %8690 = vmatmul.mubr.f32.gmra.mrb[0].mxu0 %v8689
    %v8691 = vpop.f32.mrb[0].mxu0
    %v8692 = vadd.f32 %v8470, %v8691
    %v8693 = vpop.f32.mrb[0].mxu0
    %v8694 = vand.u32 %v3169, 4294901760
    %8695 = vmatprep.mubr.f32.mxu0 %v8694
    %v8696 = vand.u32 %v2166, 4294901760
    %8697 = vmatmul.mubr.f32.gmra.mrb[0].mxu0 %v8696
    %v8698 = vpop.f32.mrb[0].mxu0
    %v8699 = vadd.f32 %v8485, %v8698
    %v8700 = vpop.f32.mrb[0].mxu0
    %v8701 = vand.u32 %v3171, 4294901760
    %8702 = vmatprep.mubr.f32.mxu0 %v8701
    %v8703 = vand.u32 %v2168, 4294901760
    %8704 = vmatmul.mubr.f32.gmra.mrb[0].mxu0 %v8703
    %v8705 = vpop.f32.mrb[0].mxu0
    %v8706 = vadd.f32 %v8500, %v8705
    %v8707 = vpop.f32.mrb[0].mxu0
    %v8708 = vand.u32 %v3173, 4294901760
    %8709 = vmatprep.mubr.f32.mxu0 %v8708
    %v8710 = vand.u32 %v2170, 4294901760
    %8711 = vmatmul.mubr.f32.gmra.mrb[0].mxu0 %v8710
    %v8712 = vpop.f32.mrb[0].mxu0
    %v8713 = vadd.f32 %v8515, %v8712
    %v8714 = vpop.f32.mrb[0].mxu0
    %v8715 = vand.u32 %v3175, 4294901760
    %8716 = vmatprep.mubr.f32.mxu0 %v8715
    %v8717 = vand.u32 %v2172, 4294901760
    %8718 = vmatmul.mubr.f32.gmra.mrb[0].mxu0 %v8717
    %v8719 = vpop.f32.mrb[0].mxu0
    %v8720 = vadd.f32 %v8530, %v8719
    %v8721 = vpop.f32.mrb[0].mxu0
    %8722 = vdwg.mxu0
    %8723 = vmatprep.subr.mxu0 0.0
    %v8724 = vand.u32 %v7434, 4294901760
    %v8725 = vsub.f32 %v7434, %v8724
    %8726 = vmatpush1.msra.mxu0 %v8725
    %8727 = vmatprep.subr.mxu0 0.0
    %v8728 = vand.u32 %v7435, 4294901760
    %v8729 = vsub.f32 %v7435, %v8728
    %8730 = vmatpush1.msra.mxu0 %v8729
    %8731 = vmatprep.subr.mxu0 0.0
    %v8732 = vand.u32 %v7436, 4294901760
    %v8733 = vsub.f32 %v7436, %v8732
    %8734 = vmatpush1.msra.mxu0 %v8733
    %8735 = vmatprep.subr.mxu0 0.0
    %v8736 = vand.u32 %v7437, 4294901760
    %v8737 = vsub.f32 %v7437, %v8736
    %8738 = vmatpush1.msra.mxu0 %v8737
    %8739 = vmatprep.subr.mxu0 0.0
    %v8740 = vand.u32 %v7438, 4294901760
    %v8741 = vsub.f32 %v7438, %v8740
    %8742 = vmatpush1.msra.mxu0 %v8741
    %8743 = vmatprep.subr.mxu0 0.0
    %v8744 = vand.u32 %v7439, 4294901760
    %v8745 = vsub.f32 %v7439, %v8744
    %8746 = vmatpush1.msra.mxu0 %v8745
    %8747 = vmatprep.subr.mxu0 0.0
    %v8748 = vand.u32 %v7440, 4294901760
    %v8749 = vsub.f32 %v7440, %v8748
    %8750 = vmatpush1.msra.mxu0 %v8749
    %8751 = vmatprep.subr.mxu0 0.0
    %v8752 = vand.u32 %v7441, 4294901760
    %v8753 = vsub.f32 %v7441, %v8752
    %8754 = vmatpush1.msra.mxu0 %v8753
    %8755 = vmatprep.subr.mxu0 0.0
    %v8756 = vand.u32 %v7442, 4294901760
    %v8757 = vsub.f32 %v7442, %v8756
    %8758 = vmatpush1.msra.mxu0 %v8757
    %8759 = vmatprep.subr.mxu0 0.0
    %v8760 = vand.u32 %v7443, 4294901760
    %v8761 = vsub.f32 %v7443, %v8760
    %8762 = vmatpush1.msra.mxu0 %v8761
    %8763 = vmatprep.subr.mxu0 0.0
    %v8764 = vand.u32 %v7444, 4294901760
    %v8765 = vsub.f32 %v7444, %v8764
    %8766 = vmatpush1.msra.mxu0 %v8765
    %8767 = vmatprep.subr.mxu0 0.0
    %v8768 = vand.u32 %v7445, 4294901760
    %v8769 = vsub.f32 %v7445, %v8768
    %8770 = vmatpush1.msra.mxu0 %v8769
    %8771 = vmatprep.subr.mxu0 0.0
    %v8772 = vand.u32 %v7446, 4294901760
    %v8773 = vsub.f32 %v7446, %v8772
    %8774 = vmatpush1.msra.mxu0 %v8773
    %8775 = vmatprep.subr.mxu0 0.0
    %v8776 = vand.u32 %v7447, 4294901760
    %v8777 = vsub.f32 %v7447, %v8776
    %8778 = vmatpush1.msra.mxu0 %v8777
    %8779 = vmatprep.subr.mxu0 0.0
    %v8780 = vand.u32 %v7448, 4294901760
    %v8781 = vsub.f32 %v7448, %v8780
    %8782 = vmatpush1.msra.mxu0 %v8781
    %8783 = vmatprep.subr.mxu0 0.0
    %v8784 = vand.u32 %v7449, 4294901760
    %v8785 = vsub.f32 %v7449, %v8784
    %8786 = vmatpush1.msra.mxu0 %v8785
    %8787 = vmatprep.subr.mxu0 0.0
    %v8788 = vand.u32 %v7450, 4294901760
    %v8789 = vsub.f32 %v7450, %v8788
    %8790 = vmatpush1.msra.mxu0 %v8789
    %8791 = vmatprep.subr.mxu0 0.0
    %v8792 = vand.u32 %v7451, 4294901760
    %v8793 = vsub.f32 %v7451, %v8792
    %8794 = vmatpush1.msra.mxu0 %v8793
    %8795 = vmatprep.subr.mxu0 0.0
    %8796 = vmatpush1.msra.mxu0 0.0
    %8797 = vmatprep.subr.mxu0 0.0
    %8798 = vmatpush1.msra.mxu0 0.0
    %8799 = vmatprep.subr.mxu0 0.0
    %8800 = vmatpush1.msra.mxu0 0.0
    %8801 = vmatprep.subr.mxu0 0.0
    %8802 = vmatpush1.msra.mxu0 0.0
    %8803 = vmatprep.subr.mxu0 0.0
    %8804 = vmatpush1.msra.mxu0 0.0
    %8805 = vmatprep.subr.mxu0 0.0
    %8806 = vmatpush1.msra.mxu0 0.0
    %8807 = vmatprep.subr.mxu0 0.0
    %8808 = vmatpush1.msra.mxu0 0.0
    %8809 = vmatprep.subr.mxu0 0.0
    %8810 = vmatpush1.msra.mxu0 0.0
    %8811 = vmatprep.subr.mxu0 0.0
    %8812 = vmatpush1.msra.mxu0 0.0
    %8813 = vmatprep.subr.mxu0 0.0
    %8814 = vmatpush1.msra.mxu0 0.0
    %8815 = vmatprep.subr.mxu0 0.0
    %8816 = vmatpush1.msra.mxu0 0.0
    %8817 = vmatprep.subr.mxu0 0.0
    %8818 = vmatpush1.msra.mxu0 0.0
    %8819 = vmatprep.subr.mxu0 0.0
    %8820 = vmatpush1.msra.mxu0 0.0
    %8821 = vmatprep.subr.mxu0 0.0
    %8822 = vmatpush1.msra.mxu0 0.0
    %v8823 = vand.u32 %v3167, 4294901760
    %v8824 = vsub.f32 %v3167, %v8823
    %8825 = vmatprep.mubr.f32.mxu0 %v8824
    %v8826 = vand.u32 %v2164, 4294901760
    %v8827 = vsub.f32 %v2164, %v8826
    %8828 = vmatmul.mubr.f32.gmra.mrb[0].mxu0 %v8827
    %v8829 = vpop.f32.mrb[0].mxu0
    %v8830 = vadd.f32 %v8692, %v8829
    %v8831 = vpop.f32.mrb[0].mxu0
    %v8832 = vand.u32 %v3169, 4294901760
    %v8833 = vsub.f32 %v3169, %v8832
    %8834 = vmatprep.mubr.f32.mxu0 %v8833
    %v8835 = vand.u32 %v2166, 4294901760
    %v8836 = vsub.f32 %v2166, %v8835
    %8837 = vmatmul.mubr.f32.gmra.mrb[0].mxu0 %v8836
    %v8838 = vpop.f32.mrb[0].mxu0
    %v8839 = vadd.f32 %v8699, %v8838
    %v8840 = vpop.f32.mrb[0].mxu0
    %v8841 = vand.u32 %v3171, 4294901760
    %v8842 = vsub.f32 %v3171, %v8841
    %8843 = vmatprep.mubr.f32.mxu0 %v8842
    %v8844 = vand.u32 %v2168, 4294901760
    %v8845 = vsub.f32 %v2168, %v8844
    %8846 = vmatmul.mubr.f32.gmra.mrb[0].mxu0 %v8845
    %v8847 = vpop.f32.mrb[0].mxu0
    %v8848 = vadd.f32 %v8706, %v8847
    %v8849 = vpop.f32.mrb[0].mxu0
    %v8850 = vand.u32 %v3173, 4294901760
    %v8851 = vsub.f32 %v3173, %v8850
    %8852 = vmatprep.mubr.f32.mxu0 %v8851
    %v8853 = vand.u32 %v2170, 4294901760
    %v8854 = vsub.f32 %v2170, %v8853
    %8855 = vmatmul.mubr.f32.gmra.mrb[0].mxu0 %v8854
    %v8856 = vpop.f32.mrb[0].mxu0
    %v8857 = vadd.f32 %v8713, %v8856
    %v8858 = vpop.f32.mrb[0].mxu0
    %v8859 = vand.u32 %v3175, 4294901760
    %v8860 = vsub.f32 %v3175, %v8859
    %8861 = vmatprep.mubr.f32.mxu0 %v8860
    %v8862 = vand.u32 %v2172, 4294901760
    %v8863 = vsub.f32 %v2172, %v8862
    %8864 = vmatmul.mubr.f32.gmra.mrb[0].mxu0 %v8863
    %v8865 = vpop.f32.mrb[0].mxu0
    %v8866 = vadd.f32 %v8720, %v8865
    %v8867 = vpop.f32.mrb[0].mxu0
    %8868 = vdwg.mxu0
    %8869 = vmatprep.subr.mxu0 0.0
    %v8870 = vand.u32 %v7434, 4294901760
    %8871 = vmatpush1.msra.mxu0 %v8870
    %8872 = vmatprep.subr.mxu0 0.0
    %v8873 = vand.u32 %v7435, 4294901760
    %8874 = vmatpush1.msra.mxu0 %v8873
    %8875 = vmatprep.subr.mxu0 0.0
    %v8876 = vand.u32 %v7436, 4294901760
    %8877 = vmatpush1.msra.mxu0 %v8876
    %8878 = vmatprep.subr.mxu0 0.0
    %v8879 = vand.u32 %v7437, 4294901760
    %8880 = vmatpush1.msra.mxu0 %v8879
    %8881 = vmatprep.subr.mxu0 0.0
    %v8882 = vand.u32 %v7438, 4294901760
    %8883 = vmatpush1.msra.mxu0 %v8882
    %8884 = vmatprep.subr.mxu0 0.0
    %v8885 = vand.u32 %v7439, 4294901760
    %8886 = vmatpush1.msra.mxu0 %v8885
    %8887 = vmatprep.subr.mxu0 0.0
    %v8888 = vand.u32 %v7440, 4294901760
    %8889 = vmatpush1.msra.mxu0 %v8888
    %8890 = vmatprep.subr.mxu0 0.0
    %v8891 = vand.u32 %v7441, 4294901760
    %8892 = vmatpush1.msra.mxu0 %v8891
    %8893 = vmatprep.subr.mxu0 0.0
    %v8894 = vand.u32 %v7442, 4294901760
    %8895 = vmatpush1.msra.mxu0 %v8894
    %8896 = vmatprep.subr.mxu0 0.0
    %v8897 = vand.u32 %v7443, 4294901760
    %8898 = vmatpush1.msra.mxu0 %v8897
    %8899 = vmatprep.subr.mxu0 0.0
    %v8900 = vand.u32 %v7444, 4294901760
    %8901 = vmatpush1.msra.mxu0 %v8900
    %8902 = vmatprep.subr.mxu0 0.0
    %v8903 = vand.u32 %v7445, 4294901760
    %8904 = vmatpush1.msra.mxu0 %v8903
    %8905 = vmatprep.subr.mxu0 0.0
    %v8906 = vand.u32 %v7446, 4294901760
    %8907 = vmatpush1.msra.mxu0 %v8906
    %8908 = vmatprep.subr.mxu0 0.0
    %v8909 = vand.u32 %v7447, 4294901760
    %8910 = vmatpush1.msra.mxu0 %v8909
    %8911 = vmatprep.subr.mxu0 0.0
    %v8912 = vand.u32 %v7448, 4294901760
    %8913 = vmatpush1.msra.mxu0 %v8912
    %8914 = vmatprep.subr.mxu0 0.0
    %v8915 = vand.u32 %v7449, 4294901760
    %8916 = vmatpush1.msra.mxu0 %v8915
    %8917 = vmatprep.subr.mxu0 0.0
    %v8918 = vand.u32 %v7450, 4294901760
    %8919 = vmatpush1.msra.mxu0 %v8918
    %8920 = vmatprep.subr.mxu0 0.0
    %v8921 = vand.u32 %v7451, 4294901760
    %8922 = vmatpush1.msra.mxu0 %v8921
    %8923 = vmatprep.subr.mxu0 0.0
    %8924 = vmatpush1.msra.mxu0 0.0
    %8925 = vmatprep.subr.mxu0 0.0
    %8926 = vmatpush1.msra.mxu0 0.0
    %8927 = vmatprep.subr.mxu0 0.0
    %8928 = vmatpush1.msra.mxu0 0.0
    %8929 = vmatprep.subr.mxu0 0.0
    %8930 = vmatpush1.msra.mxu0 0.0
    %8931 = vmatprep.subr.mxu0 0.0
    %8932 = vmatpush1.msra.mxu0 0.0
    %8933 = vmatprep.subr.mxu0 0.0
    %8934 = vmatpush1.msra.mxu0 0.0
    %8935 = vmatprep.subr.mxu0 0.0
    %8936 = vmatpush1.msra.mxu0 0.0
    %8937 = vmatprep.subr.mxu0 0.0
    %8938 = vmatpush1.msra.mxu0 0.0
    %8939 = vmatprep.subr.mxu0 0.0
    %8940 = vmatpush1.msra.mxu0 0.0
    %8941 = vmatprep.subr.mxu0 0.0
    %8942 = vmatpush1.msra.mxu0 0.0
    %8943 = vmatprep.subr.mxu0 0.0
    %8944 = vmatpush1.msra.mxu0 0.0
    %8945 = vmatprep.subr.mxu0 0.0
    %8946 = vmatpush1.msra.mxu0 0.0
    %8947 = vmatprep.subr.mxu0 0.0
    %8948 = vmatpush1.msra.mxu0 0.0
    %8949 = vmatprep.subr.mxu0 0.0
    %8950 = vmatpush1.msra.mxu0 0.0
    %v8951 = vand.u32 %v3167, 4294901760
    %v8952 = vsub.f32 %v3167, %v8951
    %v8953 = vand.u32 %v8952, 4294901760
    %8954 = vmatprep.mubr.f32.mxu0 %v8953
    %v8955 = vand.u32 %v2164, 4294901760
    %v8956 = vsub.f32 %v2164, %v8955
    %v8957 = vand.u32 %v8956, 4294901760
    %8958 = vmatmul.mubr.f32.gmra.mrb[0].mxu0 %v8957
    %v8959 = vpop.f32.mrb[0].mxu0
    %v8960 = vadd.f32 %v8830, %v8959
    %v8961 = vpop.f32.mrb[0].mxu0
    %v8962 = vand.u32 %v3169, 4294901760
    %v8963 = vsub.f32 %v3169, %v8962
    %v8964 = vand.u32 %v8963, 4294901760
    %8965 = vmatprep.mubr.f32.mxu0 %v8964
    %v8966 = vand.u32 %v2166, 4294901760
    %v8967 = vsub.f32 %v2166, %v8966
    %v8968 = vand.u32 %v8967, 4294901760
    %8969 = vmatmul.mubr.f32.gmra.mrb[0].mxu0 %v8968
    %v8970 = vpop.f32.mrb[0].mxu0
    %v8971 = vadd.f32 %v8839, %v8970
    %v8972 = vpop.f32.mrb[0].mxu0
    %v8973 = vand.u32 %v3171, 4294901760
    %v8974 = vsub.f32 %v3171, %v8973
    %v8975 = vand.u32 %v8974, 4294901760
    %8976 = vmatprep.mubr.f32.mxu0 %v8975
    %v8977 = vand.u32 %v2168, 4294901760
    %v8978 = vsub.f32 %v2168, %v8977
    %v8979 = vand.u32 %v8978, 4294901760
    %8980 = vmatmul.mubr.f32.gmra.mrb[0].mxu0 %v8979
    %v8981 = vpop.f32.mrb[0].mxu0
    %v8982 = vadd.f32 %v8848, %v8981
    %v8983 = vpop.f32.mrb[0].mxu0
    %v8984 = vand.u32 %v3173, 4294901760
    %v8985 = vsub.f32 %v3173, %v8984
    %v8986 = vand.u32 %v8985, 4294901760
    %8987 = vmatprep.mubr.f32.mxu0 %v8986
    %v8988 = vand.u32 %v2170, 4294901760
    %v8989 = vsub.f32 %v2170, %v8988
    %v8990 = vand.u32 %v8989, 4294901760
    %8991 = vmatmul.mubr.f32.gmra.mrb[0].mxu0 %v8990
    %v8992 = vpop.f32.mrb[0].mxu0
    %v8993 = vadd.f32 %v8857, %v8992
    %v8994 = vpop.f32.mrb[0].mxu0
    %v8995 = vand.u32 %v3175, 4294901760
    %v8996 = vsub.f32 %v3175, %v8995
    %v8997 = vand.u32 %v8996, 4294901760
    %8998 = vmatprep.mubr.f32.mxu0 %v8997
    %v8999 = vand.u32 %v2172, 4294901760
    %v9000 = vsub.f32 %v2172, %v8999
    %v9001 = vand.u32 %v9000, 4294901760
    %9002 = vmatmul.mubr.f32.gmra.mrb[0].mxu0 %v9001
    %v9003 = vpop.f32.mrb[0].mxu0
    %v9004 = vadd.f32 %v8866, %v9003
    %v9005 = vpop.f32.mrb[0].mxu0
    %9006 = vdwg.mxu0
    %9007 = vmatprep.subr.mxu0 0.0
    %v9008 = vand.u32 %v7434, 4294901760
    %v9009 = vsub.f32 %v7434, %v9008
    %v9010 = vand.u32 %v9009, 4294901760
    %9011 = vmatpush1.msra.mxu0 %v9010
    %9012 = vmatprep.subr.mxu0 0.0
    %v9013 = vand.u32 %v7435, 4294901760
    %v9014 = vsub.f32 %v7435, %v9013
    %v9015 = vand.u32 %v9014, 4294901760
    %9016 = vmatpush1.msra.mxu0 %v9015
    %9017 = vmatprep.subr.mxu0 0.0
    %v9018 = vand.u32 %v7436, 4294901760
    %v9019 = vsub.f32 %v7436, %v9018
    %v9020 = vand.u32 %v9019, 4294901760
    %9021 = vmatpush1.msra.mxu0 %v9020
    %9022 = vmatprep.subr.mxu0 0.0
    %v9023 = vand.u32 %v7437, 4294901760
    %v9024 = vsub.f32 %v7437, %v9023
    %v9025 = vand.u32 %v9024, 4294901760
    %9026 = vmatpush1.msra.mxu0 %v9025
    %9027 = vmatprep.subr.mxu0 0.0
    %v9028 = vand.u32 %v7438, 4294901760
    %v9029 = vsub.f32 %v7438, %v9028
    %v9030 = vand.u32 %v9029, 4294901760
    %9031 = vmatpush1.msra.mxu0 %v9030
    %9032 = vmatprep.subr.mxu0 0.0
    %v9033 = vand.u32 %v7439, 4294901760
    %v9034 = vsub.f32 %v7439, %v9033
    %v9035 = vand.u32 %v9034, 4294901760
    %9036 = vmatpush1.msra.mxu0 %v9035
    %9037 = vmatprep.subr.mxu0 0.0
    %v9038 = vand.u32 %v7440, 4294901760
    %v9039 = vsub.f32 %v7440, %v9038
    %v9040 = vand.u32 %v9039, 4294901760
    %9041 = vmatpush1.msra.mxu0 %v9040
    %9042 = vmatprep.subr.mxu0 0.0
    %v9043 = vand.u32 %v7441, 4294901760
    %v9044 = vsub.f32 %v7441, %v9043
    %v9045 = vand.u32 %v9044, 4294901760
    %9046 = vmatpush1.msra.mxu0 %v9045
    %9047 = vmatprep.subr.mxu0 0.0
    %v9048 = vand.u32 %v7442, 4294901760
    %v9049 = vsub.f32 %v7442, %v9048
    %v9050 = vand.u32 %v9049, 4294901760
    %9051 = vmatpush1.msra.mxu0 %v9050
    %9052 = vmatprep.subr.mxu0 0.0
    %v9053 = vand.u32 %v7443, 4294901760
    %v9054 = vsub.f32 %v7443, %v9053
    %v9055 = vand.u32 %v9054, 4294901760
    %9056 = vmatpush1.msra.mxu0 %v9055
    %9057 = vmatprep.subr.mxu0 0.0
    %v9058 = vand.u32 %v7444, 4294901760
    %v9059 = vsub.f32 %v7444, %v9058
    %v9060 = vand.u32 %v9059, 4294901760
    %9061 = vmatpush1.msra.mxu0 %v9060
    %9062 = vmatprep.subr.mxu0 0.0
    %v9063 = vand.u32 %v7445, 4294901760
    %v9064 = vsub.f32 %v7445, %v9063
    %v9065 = vand.u32 %v9064, 4294901760
    %9066 = vmatpush1.msra.mxu0 %v9065
    %9067 = vmatprep.subr.mxu0 0.0
    %v9068 = vand.u32 %v7446, 4294901760
    %v9069 = vsub.f32 %v7446, %v9068
    %v9070 = vand.u32 %v9069, 4294901760
    %9071 = vmatpush1.msra.mxu0 %v9070
    %9072 = vmatprep.subr.mxu0 0.0
    %v9073 = vand.u32 %v7447, 4294901760
    %v9074 = vsub.f32 %v7447, %v9073
    %v9075 = vand.u32 %v9074, 4294901760
    %9076 = vmatpush1.msra.mxu0 %v9075
    %9077 = vmatprep.subr.mxu0 0.0
    %v9078 = vand.u32 %v7448, 4294901760
    %v9079 = vsub.f32 %v7448, %v9078
    %v9080 = vand.u32 %v9079, 4294901760
    %9081 = vmatpush1.msra.mxu0 %v9080
    %9082 = vmatprep.subr.mxu0 0.0
    %v9083 = vand.u32 %v7449, 4294901760
    %v9084 = vsub.f32 %v7449, %v9083
    %v9085 = vand.u32 %v9084, 4294901760
    %9086 = vmatpush1.msra.mxu0 %v9085
    %9087 = vmatprep.subr.mxu0 0.0
    %v9088 = vand.u32 %v7450, 4294901760
    %v9089 = vsub.f32 %v7450, %v9088
    %v9090 = vand.u32 %v9089, 4294901760
    %9091 = vmatpush1.msra.mxu0 %v9090
    %9092 = vmatprep.subr.mxu0 0.0
    %v9093 = vand.u32 %v7451, 4294901760
    %v9094 = vsub.f32 %v7451, %v9093
    %v9095 = vand.u32 %v9094, 4294901760
    %9096 = vmatpush1.msra.mxu0 %v9095
    %9097 = vmatprep.subr.mxu0 0.0
    %9098 = vmatpush1.msra.mxu0 0.0
    %9099 = vmatprep.subr.mxu0 0.0
    %9100 = vmatpush1.msra.mxu0 0.0
    %9101 = vmatprep.subr.mxu0 0.0
    %9102 = vmatpush1.msra.mxu0 0.0
    %9103 = vmatprep.subr.mxu0 0.0
    %9104 = vmatpush1.msra.mxu0 0.0
    %9105 = vmatprep.subr.mxu0 0.0
    %9106 = vmatpush1.msra.mxu0 0.0
    %9107 = vmatprep.subr.mxu0 0.0
    %9108 = vmatpush1.msra.mxu0 0.0
    %9109 = vmatprep.subr.mxu0 0.0
    %9110 = vmatpush1.msra.mxu0 0.0
    %9111 = vmatprep.subr.mxu0 0.0
    %9112 = vmatpush1.msra.mxu0 0.0
    %9113 = vmatprep.subr.mxu0 0.0
    %9114 = vmatpush1.msra.mxu0 0.0
    %9115 = vmatprep.subr.mxu0 0.0
    %9116 = vmatpush1.msra.mxu0 0.0
    %9117 = vmatprep.subr.mxu0 0.0
    %9118 = vmatpush1.msra.mxu0 0.0
    %9119 = vmatprep.subr.mxu0 0.0
    %9120 = vmatpush1.msra.mxu0 0.0
    %9121 = vmatprep.subr.mxu0 0.0
    %9122 = vmatpush1.msra.mxu0 0.0
    %9123 = vmatprep.subr.mxu0 0.0
    %9124 = vmatpush1.msra.mxu0 0.0
    %v9125 = vand.u32 %v3167, 4294901760
    %9126 = vmatprep.mubr.f32.mxu0 %v9125
    %v9127 = vand.u32 %v2164, 4294901760
    %9128 = vmatmul.mubr.f32.gmra.mrb[0].mxu0 %v9127
    %v9129 = vpop.f32.mrb[0].mxu0
    %v9130 = vadd.f32 %v8960, %v9129
    %v9131 = vpop.f32.mrb[0].mxu0
    %v9132 = vand.u32 %v3169, 4294901760
    %9133 = vmatprep.mubr.f32.mxu0 %v9132
    %v9134 = vand.u32 %v2166, 4294901760
    %9135 = vmatmul.mubr.f32.gmra.mrb[0].mxu0 %v9134
    %v9136 = vpop.f32.mrb[0].mxu0
    %v9137 = vadd.f32 %v8971, %v9136
    %v9138 = vpop.f32.mrb[0].mxu0
    %v9139 = vand.u32 %v3171, 4294901760
    %9140 = vmatprep.mubr.f32.mxu0 %v9139
    %v9141 = vand.u32 %v2168, 4294901760
    %9142 = vmatmul.mubr.f32.gmra.mrb[0].mxu0 %v9141
    %v9143 = vpop.f32.mrb[0].mxu0
    %v9144 = vadd.f32 %v8982, %v9143
    %v9145 = vpop.f32.mrb[0].mxu0
    %v9146 = vand.u32 %v3173, 4294901760
    %9147 = vmatprep.mubr.f32.mxu0 %v9146
    %v9148 = vand.u32 %v2170, 4294901760
    %9149 = vmatmul.mubr.f32.gmra.mrb[0].mxu0 %v9148
    %v9150 = vpop.f32.mrb[0].mxu0
    %v9151 = vadd.f32 %v8993, %v9150
    %v9152 = vpop.f32.mrb[0].mxu0
    %v9153 = vand.u32 %v3175, 4294901760
    %9154 = vmatprep.mubr.f32.mxu0 %v9153
    %v9155 = vand.u32 %v2172, 4294901760
    %9156 = vmatmul.mubr.f32.gmra.mrb[0].mxu0 %v9155
    %v9157 = vpop.f32.mrb[0].mxu0
    %v9158 = vadd.f32 %v9004, %v9157
    %v9159 = vpop.f32.mrb[0].mxu0
    %9160 = vdwg.mxu0
    %9161 = vmatprep.subr.mxu0 0.0
    %v9162 = vand.u32 %v7434, 4294901760
    %9163 = vmatpush1.msra.mxu0 %v9162
    %9164 = vmatprep.subr.mxu0 0.0
    %v9165 = vand.u32 %v7435, 4294901760
    %9166 = vmatpush1.msra.mxu0 %v9165
    %9167 = vmatprep.subr.mxu0 0.0
    %v9168 = vand.u32 %v7436, 4294901760
    %9169 = vmatpush1.msra.mxu0 %v9168
    %9170 = vmatprep.subr.mxu0 0.0
    %v9171 = vand.u32 %v7437, 4294901760
    %9172 = vmatpush1.msra.mxu0 %v9171
    %9173 = vmatprep.subr.mxu0 0.0
    %v9174 = vand.u32 %v7438, 4294901760
    %9175 = vmatpush1.msra.mxu0 %v9174
    %9176 = vmatprep.subr.mxu0 0.0
    %v9177 = vand.u32 %v7439, 4294901760
    %9178 = vmatpush1.msra.mxu0 %v9177
    %9179 = vmatprep.subr.mxu0 0.0
    %v9180 = vand.u32 %v7440, 4294901760
    %9181 = vmatpush1.msra.mxu0 %v9180
    %9182 = vmatprep.subr.mxu0 0.0
    %v9183 = vand.u32 %v7441, 4294901760
    %9184 = vmatpush1.msra.mxu0 %v9183
    %9185 = vmatprep.subr.mxu0 0.0
    %v9186 = vand.u32 %v7442, 4294901760
    %9187 = vmatpush1.msra.mxu0 %v9186
    %9188 = vmatprep.subr.mxu0 0.0
    %v9189 = vand.u32 %v7443, 4294901760
    %9190 = vmatpush1.msra.mxu0 %v9189
    %9191 = vmatprep.subr.mxu0 0.0
    %v9192 = vand.u32 %v7444, 4294901760
    %9193 = vmatpush1.msra.mxu0 %v9192
    %9194 = vmatprep.subr.mxu0 0.0
    %v9195 = vand.u32 %v7445, 4294901760
    %9196 = vmatpush1.msra.mxu0 %v9195
    %9197 = vmatprep.subr.mxu0 0.0
    %v9198 = vand.u32 %v7446, 4294901760
    %9199 = vmatpush1.msra.mxu0 %v9198
    %9200 = vmatprep.subr.mxu0 0.0
    %v9201 = vand.u32 %v7447, 4294901760
    %9202 = vmatpush1.msra.mxu0 %v9201
    %9203 = vmatprep.subr.mxu0 0.0
    %v9204 = vand.u32 %v7448, 4294901760
    %9205 = vmatpush1.msra.mxu0 %v9204
    %9206 = vmatprep.subr.mxu0 0.0
    %v9207 = vand.u32 %v7449, 4294901760
    %9208 = vmatpush1.msra.mxu0 %v9207
    %9209 = vmatprep.subr.mxu0 0.0
    %v9210 = vand.u32 %v7450, 4294901760
    %9211 = vmatpush1.msra.mxu0 %v9210
    %9212 = vmatprep.subr.mxu0 0.0
    %v9213 = vand.u32 %v7451, 4294901760
    %9214 = vmatpush1.msra.mxu0 %v9213
    %9215 = vmatprep.subr.mxu0 0.0
    %9216 = vmatpush1.msra.mxu0 0.0
    %9217 = vmatprep.subr.mxu0 0.0
    %9218 = vmatpush1.msra.mxu0 0.0
    %9219 = vmatprep.subr.mxu0 0.0
    %9220 = vmatpush1.msra.mxu0 0.0
    %9221 = vmatprep.subr.mxu0 0.0
    %9222 = vmatpush1.msra.mxu0 0.0
    %9223 = vmatprep.subr.mxu0 0.0
    %9224 = vmatpush1.msra.mxu0 0.0
    %9225 = vmatprep.subr.mxu0 0.0
    %9226 = vmatpush1.msra.mxu0 0.0
    %9227 = vmatprep.subr.mxu0 0.0
    %9228 = vmatpush1.msra.mxu0 0.0
    %9229 = vmatprep.subr.mxu0 0.0
    %9230 = vmatpush1.msra.mxu0 0.0
    %9231 = vmatprep.subr.mxu0 0.0
    %9232 = vmatpush1.msra.mxu0 0.0
    %9233 = vmatprep.subr.mxu0 0.0
    %9234 = vmatpush1.msra.mxu0 0.0
    %9235 = vmatprep.subr.mxu0 0.0
    %9236 = vmatpush1.msra.mxu0 0.0
    %9237 = vmatprep.subr.mxu0 0.0
    %9238 = vmatpush1.msra.mxu0 0.0
    %9239 = vmatprep.subr.mxu0 0.0
    %9240 = vmatpush1.msra.mxu0 0.0
    %9241 = vmatprep.subr.mxu0 0.0
    %9242 = vmatpush1.msra.mxu0 0.0
    %v9243 = vand.u32 %v3167, 4294901760
    %9244 = vmatprep.mubr.f32.mxu0 %v9243
    %v9245 = vand.u32 %v2164, 4294901760
    %9246 = vmatmul.mubr.f32.gmra.mrb[0].mxu0 %v9245
    %v9247 = vpop.f32.mrb[0].mxu0
    %v9248 = vadd.f32 %v9130, %v9247
    %v9249 = vpop.f32.mrb[0].mxu0
    %v9250 = vand.u32 %v3169, 4294901760
    %9251 = vmatprep.mubr.f32.mxu0 %v9250
    %v9252 = vand.u32 %v2166, 4294901760
    %9253 = vmatmul.mubr.f32.gmra.mrb[0].mxu0 %v9252
    %v9254 = vpop.f32.mrb[0].mxu0
    %v9255 = vadd.f32 %v9137, %v9254
    %v9256 = vpop.f32.mrb[0].mxu0
    %v9257 = vand.u32 %v3171, 4294901760
    %9258 = vmatprep.mubr.f32.mxu0 %v9257
    %v9259 = vand.u32 %v2168, 4294901760
    %9260 = vmatmul.mubr.f32.gmra.mrb[0].mxu0 %v9259
    %v9261 = vpop.f32.mrb[0].mxu0
    %v9262 = vadd.f32 %v9144, %v9261
    %v9263 = vpop.f32.mrb[0].mxu0
    %v9264 = vand.u32 %v3173, 4294901760
    %9265 = vmatprep.mubr.f32.mxu0 %v9264
    %v9266 = vand.u32 %v2170, 4294901760
    %9267 = vmatmul.mubr.f32.gmra.mrb[0].mxu0 %v9266
    %v9268 = vpop.f32.mrb[0].mxu0
    %v9269 = vadd.f32 %v9151, %v9268
    %v9270 = vpop.f32.mrb[0].mxu0
    %v9271 = vand.u32 %v3175, 4294901760
    %9272 = vmatprep.mubr.f32.mxu0 %v9271
    %v9273 = vand.u32 %v2172, 4294901760
    %9274 = vmatmul.mubr.f32.gmra.mrb[0].mxu0 %v9273
    %v9275 = vpop.f32.mrb[0].mxu0
    %v9276 = vadd.f32 %v9158, %v9275
    %v9277 = vpop.f32.mrb[0].mxu0
    %9278 = vdwg.mxu0
    %s9279 = scalar_lea.vmem %s6, 160
    %v9280 = vld [vmem:[%s9279] sm:$0xff]
    %v9281 = vld [vmem:[%s9279 + $0x8] sm:$0xff]
    %v9282 = vld [vmem:[%s9279 + $0x10] sm:$0xff]
    %v9283 = vld [vmem:[%s9279 + $0x18] sm:$0xff]
    %v9284 = vld [vmem:[%s9279 + $0x20] sm:$0xff]
    %v9285 = vld [vmem:[%s9279 + $0x28] sm:$0xff]
    %v9286 = vld [vmem:[%s9279 + $0x30] sm:$0xff]
    %v9287 = vld [vmem:[%s9279 + $0x38] sm:$0xff]
    %v9288 = vld [vmem:[%s9279 + $0x40] sm:$0xff]
    %v9289 = vld [vmem:[%s9279 + $0x48] sm:$0xff]
    %9290 = vmatprep.subr.mxu0 0.0
    %v9291 = vand.u32 %v9280, 4294901760
    %9292 = vmatpush1.msra.mxu0 %v9291
    %9293 = vmatprep.subr.mxu0 0.0
    %v9294 = vand.u32 %v9281, 4294901760
    %9295 = vmatpush1.msra.mxu0 %v9294
    %9296 = vmatprep.subr.mxu0 0.0
    %v9297 = vand.u32 %v9282, 4294901760
    %9298 = vmatpush1.msra.mxu0 %v9297
    %9299 = vmatprep.subr.mxu0 0.0
    %v9300 = vand.u32 %v9283, 4294901760
    %9301 = vmatpush1.msra.mxu0 %v9300
    %9302 = vmatprep.subr.mxu0 0.0
    %v9303 = vand.u32 %v9284, 4294901760
    %9304 = vmatpush1.msra.mxu0 %v9303
    %9305 = vmatprep.subr.mxu0 0.0
    %v9306 = vand.u32 %v9285, 4294901760
    %9307 = vmatpush1.msra.mxu0 %v9306
    %9308 = vmatprep.subr.mxu0 0.0
    %v9309 = vand.u32 %v9286, 4294901760
    %9310 = vmatpush1.msra.mxu0 %v9309
    %9311 = vmatprep.subr.mxu0 0.0
    %v9312 = vand.u32 %v9287, 4294901760
    %9313 = vmatpush1.msra.mxu0 %v9312
    %9314 = vmatprep.subr.mxu0 0.0
    %v9315 = vand.u32 %v9288, 4294901760
    %9316 = vmatpush1.msra.mxu0 %v9315
    %9317 = vmatprep.subr.mxu0 0.0
    %v9318 = vand.u32 %v9289, 4294901760
    %9319 = vmatpush1.msra.mxu0 %v9318
    %9320 = vmatprep.subr.mxu0 0.0
    %9321 = vmatpush1.msra.mxu0 0.0
    %9322 = vmatprep.subr.mxu0 0.0
    %9323 = vmatpush1.msra.mxu0 0.0
    %9324 = vmatprep.subr.mxu0 0.0
    %9325 = vmatpush1.msra.mxu0 0.0
    %9326 = vmatprep.subr.mxu0 0.0
    %9327 = vmatpush1.msra.mxu0 0.0
    %9328 = vmatprep.subr.mxu0 0.0
    %9329 = vmatpush1.msra.mxu0 0.0
    %9330 = vmatprep.subr.mxu0 0.0
    %9331 = vmatpush1.msra.mxu0 0.0
    %9332 = vmatprep.subr.mxu0 0.0
    %9333 = vmatpush1.msra.mxu0 0.0
    %9334 = vmatprep.subr.mxu0 0.0
    %9335 = vmatpush1.msra.mxu0 0.0
    %9336 = vmatprep.subr.mxu0 0.0
    %9337 = vmatpush1.msra.mxu0 0.0
    %9338 = vmatprep.subr.mxu0 0.0
    %9339 = vmatpush1.msra.mxu0 0.0
    %9340 = vmatprep.subr.mxu0 0.0
    %9341 = vmatpush1.msra.mxu0 0.0
    %9342 = vmatprep.subr.mxu0 0.0
    %9343 = vmatpush1.msra.mxu0 0.0
    %9344 = vmatprep.subr.mxu0 0.0
    %9345 = vmatpush1.msra.mxu0 0.0
    %9346 = vmatprep.subr.mxu0 0.0
    %9347 = vmatpush1.msra.mxu0 0.0
    %9348 = vmatprep.subr.mxu0 0.0
    %9349 = vmatpush1.msra.mxu0 0.0
    %9350 = vmatprep.subr.mxu0 0.0
    %9351 = vmatpush1.msra.mxu0 0.0
    %9352 = vmatprep.subr.mxu0 0.0
    %9353 = vmatpush1.msra.mxu0 0.0
    %9354 = vmatprep.subr.mxu0 0.0
    %9355 = vmatpush1.msra.mxu0 0.0
    %9356 = vmatprep.subr.mxu0 0.0
    %9357 = vmatpush1.msra.mxu0 0.0
    %9358 = vmatprep.subr.mxu0 0.0
    %9359 = vmatpush1.msra.mxu0 0.0
    %9360 = vmatprep.subr.mxu0 0.0
    %9361 = vmatpush1.msra.mxu0 0.0
    %9362 = vmatprep.subr.mxu0 0.0
    %9363 = vmatpush1.msra.mxu0 0.0
    %9364 = vmatprep.mubr.f32.mxu0 0.0
    %v9365 = vand.u32 %v96, 4294901760
    %v9366 = vsub.f32 %v96, %v9365
    %v9367 = vand.u32 %v9366, 4294901760
    %v9368 = vsub.f32 %v9366, %v9367
    %v9369 = vand.u32 %v9368, 4294901760
    %9370 = vmatmul.mubr.f32.gmra.mrb[0].mxu0 %v9369
    %v9371 = vpop.f32.mrb[0].mxu0
    %v9372 = vadd.f32 0.0, %v9371
    %v9373 = vpop.f32.mrb[0].mxu0
    %9374 = vmatprep.mubr.f32.mxu0 0.0
    %v9375 = vand.u32 %v98, 4294901760
    %v9376 = vsub.f32 %v98, %v9375
    %v9377 = vand.u32 %v9376, 4294901760
    %v9378 = vsub.f32 %v9376, %v9377
    %v9379 = vand.u32 %v9378, 4294901760
    %9380 = vmatmul.mubr.f32.gmra.mrb[0].mxu0 %v9379
    %v9381 = vpop.f32.mrb[0].mxu0
    %v9382 = vadd.f32 0.0, %v9381
    %v9383 = vpop.f32.mrb[0].mxu0
    %9384 = vmatprep.mubr.f32.mxu0 0.0
    %v9385 = vand.u32 %v100, 4294901760
    %v9386 = vsub.f32 %v100, %v9385
    %v9387 = vand.u32 %v9386, 4294901760
    %v9388 = vsub.f32 %v9386, %v9387
    %v9389 = vand.u32 %v9388, 4294901760
    %9390 = vmatmul.mubr.f32.gmra.mrb[0].mxu0 %v9389
    %v9391 = vpop.f32.mrb[0].mxu0
    %v9392 = vadd.f32 0.0, %v9391
    %v9393 = vpop.f32.mrb[0].mxu0
    %9394 = vmatprep.mubr.f32.mxu0 0.0
    %v9395 = vand.u32 %v102, 4294901760
    %v9396 = vsub.f32 %v102, %v9395
    %v9397 = vand.u32 %v9396, 4294901760
    %v9398 = vsub.f32 %v9396, %v9397
    %v9399 = vand.u32 %v9398, 4294901760
    %9400 = vmatmul.mubr.f32.gmra.mrb[0].mxu0 %v9399
    %v9401 = vpop.f32.mrb[0].mxu0
    %v9402 = vadd.f32 0.0, %v9401
    %v9403 = vpop.f32.mrb[0].mxu0
    %9404 = vmatprep.mubr.f32.mxu0 0.0
    %v9405 = vand.u32 %v104, 4294901760
    %v9406 = vsub.f32 %v104, %v9405
    %v9407 = vand.u32 %v9406, 4294901760
    %v9408 = vsub.f32 %v9406, %v9407
    %v9409 = vand.u32 %v9408, 4294901760
    %9410 = vmatmul.mubr.f32.gmra.mrb[0].mxu0 %v9409
    %v9411 = vpop.f32.mrb[0].mxu0
    %v9412 = vadd.f32 0.0, %v9411
    %v9413 = vpop.f32.mrb[0].mxu0
    %9414 = vdwg.mxu0
    %9415 = vmatprep.subr.mxu0 0.0
    %v9416 = vand.u32 %v9280, 4294901760
    %v9417 = vsub.f32 %v9280, %v9416
    %v9418 = vand.u32 %v9417, 4294901760
    %v9419 = vsub.f32 %v9417, %v9418
    %v9420 = vand.u32 %v9419, 4294901760
    %9421 = vmatpush1.msra.mxu0 %v9420
    %9422 = vmatprep.subr.mxu0 0.0
    %v9423 = vand.u32 %v9281, 4294901760
    %v9424 = vsub.f32 %v9281, %v9423
    %v9425 = vand.u32 %v9424, 4294901760
    %v9426 = vsub.f32 %v9424, %v9425
    %v9427 = vand.u32 %v9426, 4294901760
    %9428 = vmatpush1.msra.mxu0 %v9427
    %9429 = vmatprep.subr.mxu0 0.0
    %v9430 = vand.u32 %v9282, 4294901760
    %v9431 = vsub.f32 %v9282, %v9430
    %v9432 = vand.u32 %v9431, 4294901760
    %v9433 = vsub.f32 %v9431, %v9432
    %v9434 = vand.u32 %v9433, 4294901760
    %9435 = vmatpush1.msra.mxu0 %v9434
    %9436 = vmatprep.subr.mxu0 0.0
    %v9437 = vand.u32 %v9283, 4294901760
    %v9438 = vsub.f32 %v9283, %v9437
    %v9439 = vand.u32 %v9438, 4294901760
    %v9440 = vsub.f32 %v9438, %v9439
    %v9441 = vand.u32 %v9440, 4294901760
    %9442 = vmatpush1.msra.mxu0 %v9441
    %9443 = vmatprep.subr.mxu0 0.0
    %v9444 = vand.u32 %v9284, 4294901760
    %v9445 = vsub.f32 %v9284, %v9444
    %v9446 = vand.u32 %v9445, 4294901760
    %v9447 = vsub.f32 %v9445, %v9446
    %v9448 = vand.u32 %v9447, 4294901760
    %9449 = vmatpush1.msra.mxu0 %v9448
    %9450 = vmatprep.subr.mxu0 0.0
    %v9451 = vand.u32 %v9285, 4294901760
    %v9452 = vsub.f32 %v9285, %v9451
    %v9453 = vand.u32 %v9452, 4294901760
    %v9454 = vsub.f32 %v9452, %v9453
    %v9455 = vand.u32 %v9454, 4294901760
    %9456 = vmatpush1.msra.mxu0 %v9455
    %9457 = vmatprep.subr.mxu0 0.0
    %v9458 = vand.u32 %v9286, 4294901760
    %v9459 = vsub.f32 %v9286, %v9458
    %v9460 = vand.u32 %v9459, 4294901760
    %v9461 = vsub.f32 %v9459, %v9460
    %v9462 = vand.u32 %v9461, 4294901760
    %9463 = vmatpush1.msra.mxu0 %v9462
    %9464 = vmatprep.subr.mxu0 0.0
    %v9465 = vand.u32 %v9287, 4294901760
    %v9466 = vsub.f32 %v9287, %v9465
    %v9467 = vand.u32 %v9466, 4294901760
    %v9468 = vsub.f32 %v9466, %v9467
    %v9469 = vand.u32 %v9468, 4294901760
    %9470 = vmatpush1.msra.mxu0 %v9469
    %9471 = vmatprep.subr.mxu0 0.0
    %v9472 = vand.u32 %v9288, 4294901760
    %v9473 = vsub.f32 %v9288, %v9472
    %v9474 = vand.u32 %v9473, 4294901760
    %v9475 = vsub.f32 %v9473, %v9474
    %v9476 = vand.u32 %v9475, 4294901760
    %9477 = vmatpush1.msra.mxu0 %v9476
    %9478 = vmatprep.subr.mxu0 0.0
    %v9479 = vand.u32 %v9289, 4294901760
    %v9480 = vsub.f32 %v9289, %v9479
    %v9481 = vand.u32 %v9480, 4294901760
    %v9482 = vsub.f32 %v9480, %v9481
    %v9483 = vand.u32 %v9482, 4294901760
    %9484 = vmatpush1.msra.mxu0 %v9483
    %9485 = vmatprep.subr.mxu0 0.0
    %9486 = vmatpush1.msra.mxu0 0.0
    %9487 = vmatprep.subr.mxu0 0.0
    %9488 = vmatpush1.msra.mxu0 0.0
    %9489 = vmatprep.subr.mxu0 0.0
    %9490 = vmatpush1.msra.mxu0 0.0
    %9491 = vmatprep.subr.mxu0 0.0
    %9492 = vmatpush1.msra.mxu0 0.0
    %9493 = vmatprep.subr.mxu0 0.0
    %9494 = vmatpush1.msra.mxu0 0.0
    %9495 = vmatprep.subr.mxu0 0.0
    %9496 = vmatpush1.msra.mxu0 0.0
    %9497 = vmatprep.subr.mxu0 0.0
    %9498 = vmatpush1.msra.mxu0 0.0
    %9499 = vmatprep.subr.mxu0 0.0
    %9500 = vmatpush1.msra.mxu0 0.0
    %9501 = vmatprep.subr.mxu0 0.0
    %9502 = vmatpush1.msra.mxu0 0.0
    %9503 = vmatprep.subr.mxu0 0.0
    %9504 = vmatpush1.msra.mxu0 0.0
    %9505 = vmatprep.subr.mxu0 0.0
    %9506 = vmatpush1.msra.mxu0 0.0
    %9507 = vmatprep.subr.mxu0 0.0
    %9508 = vmatpush1.msra.mxu0 0.0
    %9509 = vmatprep.subr.mxu0 0.0
    %9510 = vmatpush1.msra.mxu0 0.0
    %9511 = vmatprep.subr.mxu0 0.0
    %9512 = vmatpush1.msra.mxu0 0.0
    %9513 = vmatprep.subr.mxu0 0.0
    %9514 = vmatpush1.msra.mxu0 0.0
    %9515 = vmatprep.subr.mxu0 0.0
    %9516 = vmatpush1.msra.mxu0 0.0
    %9517 = vmatprep.subr.mxu0 0.0
    %9518 = vmatpush1.msra.mxu0 0.0
    %9519 = vmatprep.subr.mxu0 0.0
    %9520 = vmatpush1.msra.mxu0 0.0
    %9521 = vmatprep.subr.mxu0 0.0
    %9522 = vmatpush1.msra.mxu0 0.0
    %9523 = vmatprep.subr.mxu0 0.0
    %9524 = vmatpush1.msra.mxu0 0.0
    %9525 = vmatprep.subr.mxu0 0.0
    %9526 = vmatpush1.msra.mxu0 0.0
    %9527 = vmatprep.subr.mxu0 0.0
    %9528 = vmatpush1.msra.mxu0 0.0
    %9529 = vmatprep.mubr.f32.mxu0 0.0
    %v9530 = vand.u32 %v96, 4294901760
    %9531 = vmatmul.mubr.f32.gmra.mrb[0].mxu0 %v9530
    %v9532 = vpop.f32.mrb[0].mxu0
    %v9533 = vadd.f32 %v9372, %v9532
    %v9534 = vpop.f32.mrb[0].mxu0
    %9535 = vmatprep.mubr.f32.mxu0 0.0
    %v9536 = vand.u32 %v98, 4294901760
    %9537 = vmatmul.mubr.f32.gmra.mrb[0].mxu0 %v9536
    %v9538 = vpop.f32.mrb[0].mxu0
    %v9539 = vadd.f32 %v9382, %v9538
    %v9540 = vpop.f32.mrb[0].mxu0
    %9541 = vmatprep.mubr.f32.mxu0 0.0
    %v9542 = vand.u32 %v100, 4294901760
    %9543 = vmatmul.mubr.f32.gmra.mrb[0].mxu0 %v9542
    %v9544 = vpop.f32.mrb[0].mxu0
    %v9545 = vadd.f32 %v9392, %v9544
    %v9546 = vpop.f32.mrb[0].mxu0
    %9547 = vmatprep.mubr.f32.mxu0 0.0
    %v9548 = vand.u32 %v102, 4294901760
    %9549 = vmatmul.mubr.f32.gmra.mrb[0].mxu0 %v9548
    %v9550 = vpop.f32.mrb[0].mxu0
    %v9551 = vadd.f32 %v9402, %v9550
    %v9552 = vpop.f32.mrb[0].mxu0
    %9553 = vmatprep.mubr.f32.mxu0 0.0
    %v9554 = vand.u32 %v104, 4294901760
    %9555 = vmatmul.mubr.f32.gmra.mrb[0].mxu0 %v9554
    %v9556 = vpop.f32.mrb[0].mxu0
    %v9557 = vadd.f32 %v9412, %v9556
    %v9558 = vpop.f32.mrb[0].mxu0
    %9559 = vdwg.mxu0
    %9560 = vmatprep.subr.mxu0 0.0
    %v9561 = vand.u32 %v9280, 4294901760
    %v9562 = vsub.f32 %v9280, %v9561
    %9563 = vmatpush1.msra.mxu0 %v9562
    %9564 = vmatprep.subr.mxu0 0.0
    %v9565 = vand.u32 %v9281, 4294901760
    %v9566 = vsub.f32 %v9281, %v9565
    %9567 = vmatpush1.msra.mxu0 %v9566
    %9568 = vmatprep.subr.mxu0 0.0
    %v9569 = vand.u32 %v9282, 4294901760
    %v9570 = vsub.f32 %v9282, %v9569
    %9571 = vmatpush1.msra.mxu0 %v9570
    %9572 = vmatprep.subr.mxu0 0.0
    %v9573 = vand.u32 %v9283, 4294901760
    %v9574 = vsub.f32 %v9283, %v9573
    %9575 = vmatpush1.msra.mxu0 %v9574
    %9576 = vmatprep.subr.mxu0 0.0
    %v9577 = vand.u32 %v9284, 4294901760
    %v9578 = vsub.f32 %v9284, %v9577
    %9579 = vmatpush1.msra.mxu0 %v9578
    %9580 = vmatprep.subr.mxu0 0.0
    %v9581 = vand.u32 %v9285, 4294901760
    %v9582 = vsub.f32 %v9285, %v9581
    %9583 = vmatpush1.msra.mxu0 %v9582
    %9584 = vmatprep.subr.mxu0 0.0
    %v9585 = vand.u32 %v9286, 4294901760
    %v9586 = vsub.f32 %v9286, %v9585
    %9587 = vmatpush1.msra.mxu0 %v9586
    %9588 = vmatprep.subr.mxu0 0.0
    %v9589 = vand.u32 %v9287, 4294901760
    %v9590 = vsub.f32 %v9287, %v9589
    %9591 = vmatpush1.msra.mxu0 %v9590
    %9592 = vmatprep.subr.mxu0 0.0
    %v9593 = vand.u32 %v9288, 4294901760
    %v9594 = vsub.f32 %v9288, %v9593
    %9595 = vmatpush1.msra.mxu0 %v9594
    %9596 = vmatprep.subr.mxu0 0.0
    %v9597 = vand.u32 %v9289, 4294901760
    %v9598 = vsub.f32 %v9289, %v9597
    %9599 = vmatpush1.msra.mxu0 %v9598
    %9600 = vmatprep.subr.mxu0 0.0
    %9601 = vmatpush1.msra.mxu0 0.0
    %9602 = vmatprep.subr.mxu0 0.0
    %9603 = vmatpush1.msra.mxu0 0.0
    %9604 = vmatprep.subr.mxu0 0.0
    %9605 = vmatpush1.msra.mxu0 0.0
    %9606 = vmatprep.subr.mxu0 0.0
    %9607 = vmatpush1.msra.mxu0 0.0
    %9608 = vmatprep.subr.mxu0 0.0
    %9609 = vmatpush1.msra.mxu0 0.0
    %9610 = vmatprep.subr.mxu0 0.0
    %9611 = vmatpush1.msra.mxu0 0.0
    %9612 = vmatprep.subr.mxu0 0.0
    %9613 = vmatpush1.msra.mxu0 0.0
    %9614 = vmatprep.subr.mxu0 0.0
    %9615 = vmatpush1.msra.mxu0 0.0
    %9616 = vmatprep.subr.mxu0 0.0
    %9617 = vmatpush1.msra.mxu0 0.0
    %9618 = vmatprep.subr.mxu0 0.0
    %9619 = vmatpush1.msra.mxu0 0.0
    %9620 = vmatprep.subr.mxu0 0.0
    %9621 = vmatpush1.msra.mxu0 0.0
    %9622 = vmatprep.subr.mxu0 0.0
    %9623 = vmatpush1.msra.mxu0 0.0
    %9624 = vmatprep.subr.mxu0 0.0
    %9625 = vmatpush1.msra.mxu0 0.0
    %9626 = vmatprep.subr.mxu0 0.0
    %9627 = vmatpush1.msra.mxu0 0.0
    %9628 = vmatprep.subr.mxu0 0.0
    %9629 = vmatpush1.msra.mxu0 0.0
    %9630 = vmatprep.subr.mxu0 0.0
    %9631 = vmatpush1.msra.mxu0 0.0
    %9632 = vmatprep.subr.mxu0 0.0
    %9633 = vmatpush1.msra.mxu0 0.0
    %9634 = vmatprep.subr.mxu0 0.0
    %9635 = vmatpush1.msra.mxu0 0.0
    %9636 = vmatprep.subr.mxu0 0.0
    %9637 = vmatpush1.msra.mxu0 0.0
    %9638 = vmatprep.subr.mxu0 0.0
    %9639 = vmatpush1.msra.mxu0 0.0
    %9640 = vmatprep.subr.mxu0 0.0
    %9641 = vmatpush1.msra.mxu0 0.0
    %9642 = vmatprep.subr.mxu0 0.0
    %9643 = vmatpush1.msra.mxu0 0.0
    %9644 = vmatprep.mubr.f32.mxu0 0.0
    %v9645 = vand.u32 %v96, 4294901760
    %v9646 = vsub.f32 %v96, %v9645
    %9647 = vmatmul.mubr.f32.gmra.mrb[0].mxu0 %v9646
    %v9648 = vpop.f32.mrb[0].mxu0
    %v9649 = vadd.f32 %v9533, %v9648
    %v9650 = vpop.f32.mrb[0].mxu0
    %9651 = vmatprep.mubr.f32.mxu0 0.0
    %v9652 = vand.u32 %v98, 4294901760
    %v9653 = vsub.f32 %v98, %v9652
    %9654 = vmatmul.mubr.f32.gmra.mrb[0].mxu0 %v9653
    %v9655 = vpop.f32.mrb[0].mxu0
    %v9656 = vadd.f32 %v9539, %v9655
    %v9657 = vpop.f32.mrb[0].mxu0
    %9658 = vmatprep.mubr.f32.mxu0 0.0
    %v9659 = vand.u32 %v100, 4294901760
    %v9660 = vsub.f32 %v100, %v9659
    %9661 = vmatmul.mubr.f32.gmra.mrb[0].mxu0 %v9660
    %v9662 = vpop.f32.mrb[0].mxu0
    %v9663 = vadd.f32 %v9545, %v9662
    %v9664 = vpop.f32.mrb[0].mxu0
    %9665 = vmatprep.mubr.f32.mxu0 0.0
    %v9666 = vand.u32 %v102, 4294901760
    %v9667 = vsub.f32 %v102, %v9666
    %9668 = vmatmul.mubr.f32.gmra.mrb[0].mxu0 %v9667
    %v9669 = vpop.f32.mrb[0].mxu0
    %v9670 = vadd.f32 %v9551, %v9669
    %v9671 = vpop.f32.mrb[0].mxu0
    %9672 = vmatprep.mubr.f32.mxu0 0.0
    %v9673 = vand.u32 %v104, 4294901760
    %v9674 = vsub.f32 %v104, %v9673
    %9675 = vmatmul.mubr.f32.gmra.mrb[0].mxu0 %v9674
    %v9676 = vpop.f32.mrb[0].mxu0
    %v9677 = vadd.f32 %v9557, %v9676
    %v9678 = vpop.f32.mrb[0].mxu0
    %9679 = vdwg.mxu0
    %9680 = vmatprep.subr.mxu0 0.0
    %v9681 = vand.u32 %v9280, 4294901760
    %9682 = vmatpush1.msra.mxu0 %v9681
    %9683 = vmatprep.subr.mxu0 0.0
    %v9684 = vand.u32 %v9281, 4294901760
    %9685 = vmatpush1.msra.mxu0 %v9684
    %9686 = vmatprep.subr.mxu0 0.0
    %v9687 = vand.u32 %v9282, 4294901760
    %9688 = vmatpush1.msra.mxu0 %v9687
    %9689 = vmatprep.subr.mxu0 0.0
    %v9690 = vand.u32 %v9283, 4294901760
    %9691 = vmatpush1.msra.mxu0 %v9690
    %9692 = vmatprep.subr.mxu0 0.0
    %v9693 = vand.u32 %v9284, 4294901760
    %9694 = vmatpush1.msra.mxu0 %v9693
    %9695 = vmatprep.subr.mxu0 0.0
    %v9696 = vand.u32 %v9285, 4294901760
    %9697 = vmatpush1.msra.mxu0 %v9696
    %9698 = vmatprep.subr.mxu0 0.0
    %v9699 = vand.u32 %v9286, 4294901760
    %9700 = vmatpush1.msra.mxu0 %v9699
    %9701 = vmatprep.subr.mxu0 0.0
    %v9702 = vand.u32 %v9287, 4294901760
    %9703 = vmatpush1.msra.mxu0 %v9702
    %9704 = vmatprep.subr.mxu0 0.0
    %v9705 = vand.u32 %v9288, 4294901760
    %9706 = vmatpush1.msra.mxu0 %v9705
    %9707 = vmatprep.subr.mxu0 0.0
    %v9708 = vand.u32 %v9289, 4294901760
    %9709 = vmatpush1.msra.mxu0 %v9708
    %9710 = vmatprep.subr.mxu0 0.0
    %9711 = vmatpush1.msra.mxu0 0.0
    %9712 = vmatprep.subr.mxu0 0.0
    %9713 = vmatpush1.msra.mxu0 0.0
    %9714 = vmatprep.subr.mxu0 0.0
    %9715 = vmatpush1.msra.mxu0 0.0
    %9716 = vmatprep.subr.mxu0 0.0
    %9717 = vmatpush1.msra.mxu0 0.0
    %9718 = vmatprep.subr.mxu0 0.0
    %9719 = vmatpush1.msra.mxu0 0.0
    %9720 = vmatprep.subr.mxu0 0.0
    %9721 = vmatpush1.msra.mxu0 0.0
    %9722 = vmatprep.subr.mxu0 0.0
    %9723 = vmatpush1.msra.mxu0 0.0
    %9724 = vmatprep.subr.mxu0 0.0
    %9725 = vmatpush1.msra.mxu0 0.0
    %9726 = vmatprep.subr.mxu0 0.0
    %9727 = vmatpush1.msra.mxu0 0.0
    %9728 = vmatprep.subr.mxu0 0.0
    %9729 = vmatpush1.msra.mxu0 0.0
    %9730 = vmatprep.subr.mxu0 0.0
    %9731 = vmatpush1.msra.mxu0 0.0
    %9732 = vmatprep.subr.mxu0 0.0
    %9733 = vmatpush1.msra.mxu0 0.0
    %9734 = vmatprep.subr.mxu0 0.0
    %9735 = vmatpush1.msra.mxu0 0.0
    %9736 = vmatprep.subr.mxu0 0.0
    %9737 = vmatpush1.msra.mxu0 0.0
    %9738 = vmatprep.subr.mxu0 0.0
    %9739 = vmatpush1.msra.mxu0 0.0
    %9740 = vmatprep.subr.mxu0 0.0
    %9741 = vmatpush1.msra.mxu0 0.0
    %9742 = vmatprep.subr.mxu0 0.0
    %9743 = vmatpush1.msra.mxu0 0.0
    %9744 = vmatprep.subr.mxu0 0.0
    %9745 = vmatpush1.msra.mxu0 0.0
    %9746 = vmatprep.subr.mxu0 0.0
    %9747 = vmatpush1.msra.mxu0 0.0
    %9748 = vmatprep.subr.mxu0 0.0
    %9749 = vmatpush1.msra.mxu0 0.0
    %9750 = vmatprep.subr.mxu0 0.0
    %9751 = vmatpush1.msra.mxu0 0.0
    %9752 = vmatprep.subr.mxu0 0.0
    %9753 = vmatpush1.msra.mxu0 0.0
    %9754 = vmatprep.mubr.f32.mxu0 0.0
    %v9755 = vand.u32 %v96, 4294901760
    %v9756 = vsub.f32 %v96, %v9755
    %v9757 = vand.u32 %v9756, 4294901760
    %9758 = vmatmul.mubr.f32.gmra.mrb[0].mxu0 %v9757
    %v9759 = vpop.f32.mrb[0].mxu0
    %v9760 = vadd.f32 %v9649, %v9759
    %v9761 = vpop.f32.mrb[0].mxu0
    %9762 = vmatprep.mubr.f32.mxu0 0.0
    %v9763 = vand.u32 %v98, 4294901760
    %v9764 = vsub.f32 %v98, %v9763
    %v9765 = vand.u32 %v9764, 4294901760
    %9766 = vmatmul.mubr.f32.gmra.mrb[0].mxu0 %v9765
    %v9767 = vpop.f32.mrb[0].mxu0
    %v9768 = vadd.f32 %v9656, %v9767
    %v9769 = vpop.f32.mrb[0].mxu0
    %9770 = vmatprep.mubr.f32.mxu0 0.0
    %v9771 = vand.u32 %v100, 4294901760
    %v9772 = vsub.f32 %v100, %v9771
    %v9773 = vand.u32 %v9772, 4294901760
    %9774 = vmatmul.mubr.f32.gmra.mrb[0].mxu0 %v9773
    %v9775 = vpop.f32.mrb[0].mxu0
    %v9776 = vadd.f32 %v9663, %v9775
    %v9777 = vpop.f32.mrb[0].mxu0
    %9778 = vmatprep.mubr.f32.mxu0 0.0
    %v9779 = vand.u32 %v102, 4294901760
    %v9780 = vsub.f32 %v102, %v9779
    %v9781 = vand.u32 %v9780, 4294901760
    %9782 = vmatmul.mubr.f32.gmra.mrb[0].mxu0 %v9781
    %v9783 = vpop.f32.mrb[0].mxu0
    %v9784 = vadd.f32 %v9670, %v9783
    %v9785 = vpop.f32.mrb[0].mxu0
    %9786 = vmatprep.mubr.f32.mxu0 0.0
    %v9787 = vand.u32 %v104, 4294901760
    %v9788 = vsub.f32 %v104, %v9787
    %v9789 = vand.u32 %v9788, 4294901760
    %9790 = vmatmul.mubr.f32.gmra.mrb[0].mxu0 %v9789
    %v9791 = vpop.f32.mrb[0].mxu0
    %v9792 = vadd.f32 %v9677, %v9791
    %v9793 = vpop.f32.mrb[0].mxu0
    %9794 = vdwg.mxu0
    %9795 = vmatprep.subr.mxu0 0.0
    %v9796 = vand.u32 %v9280, 4294901760
    %v9797 = vsub.f32 %v9280, %v9796
    %v9798 = vand.u32 %v9797, 4294901760
    %9799 = vmatpush1.msra.mxu0 %v9798
    %9800 = vmatprep.subr.mxu0 0.0
    %v9801 = vand.u32 %v9281, 4294901760
    %v9802 = vsub.f32 %v9281, %v9801
    %v9803 = vand.u32 %v9802, 4294901760
    %9804 = vmatpush1.msra.mxu0 %v9803
    %9805 = vmatprep.subr.mxu0 0.0
    %v9806 = vand.u32 %v9282, 4294901760
    %v9807 = vsub.f32 %v9282, %v9806
    %v9808 = vand.u32 %v9807, 4294901760
    %9809 = vmatpush1.msra.mxu0 %v9808
    %9810 = vmatprep.subr.mxu0 0.0
    %v9811 = vand.u32 %v9283, 4294901760
    %v9812 = vsub.f32 %v9283, %v9811
    %v9813 = vand.u32 %v9812, 4294901760
    %9814 = vmatpush1.msra.mxu0 %v9813
    %9815 = vmatprep.subr.mxu0 0.0
    %v9816 = vand.u32 %v9284, 4294901760
    %v9817 = vsub.f32 %v9284, %v9816
    %v9818 = vand.u32 %v9817, 4294901760
    %9819 = vmatpush1.msra.mxu0 %v9818
    %9820 = vmatprep.subr.mxu0 0.0
    %v9821 = vand.u32 %v9285, 4294901760
    %v9822 = vsub.f32 %v9285, %v9821
    %v9823 = vand.u32 %v9822, 4294901760
    %9824 = vmatpush1.msra.mxu0 %v9823
    %9825 = vmatprep.subr.mxu0 0.0
    %v9826 = vand.u32 %v9286, 4294901760
    %v9827 = vsub.f32 %v9286, %v9826
    %v9828 = vand.u32 %v9827, 4294901760
    %9829 = vmatpush1.msra.mxu0 %v9828
    %9830 = vmatprep.subr.mxu0 0.0
    %v9831 = vand.u32 %v9287, 4294901760
    %v9832 = vsub.f32 %v9287, %v9831
    %v9833 = vand.u32 %v9832, 4294901760
    %9834 = vmatpush1.msra.mxu0 %v9833
    %9835 = vmatprep.subr.mxu0 0.0
    %v9836 = vand.u32 %v9288, 4294901760
    %v9837 = vsub.f32 %v9288, %v9836
    %v9838 = vand.u32 %v9837, 4294901760
    %9839 = vmatpush1.msra.mxu0 %v9838
    %9840 = vmatprep.subr.mxu0 0.0
    %v9841 = vand.u32 %v9289, 4294901760
    %v9842 = vsub.f32 %v9289, %v9841
    %v9843 = vand.u32 %v9842, 4294901760
    %9844 = vmatpush1.msra.mxu0 %v9843
    %9845 = vmatprep.subr.mxu0 0.0
    %9846 = vmatpush1.msra.mxu0 0.0
    %9847 = vmatprep.subr.mxu0 0.0
    %9848 = vmatpush1.msra.mxu0 0.0
    %9849 = vmatprep.subr.mxu0 0.0
    %9850 = vmatpush1.msra.mxu0 0.0
    %9851 = vmatprep.subr.mxu0 0.0
    %9852 = vmatpush1.msra.mxu0 0.0
    %9853 = vmatprep.subr.mxu0 0.0
    %9854 = vmatpush1.msra.mxu0 0.0
    %9855 = vmatprep.subr.mxu0 0.0
    %9856 = vmatpush1.msra.mxu0 0.0
    %9857 = vmatprep.subr.mxu0 0.0
    %9858 = vmatpush1.msra.mxu0 0.0
    %9859 = vmatprep.subr.mxu0 0.0
    %9860 = vmatpush1.msra.mxu0 0.0
    %9861 = vmatprep.subr.mxu0 0.0
    %9862 = vmatpush1.msra.mxu0 0.0
    %9863 = vmatprep.subr.mxu0 0.0
    %9864 = vmatpush1.msra.mxu0 0.0
    %9865 = vmatprep.subr.mxu0 0.0
    %9866 = vmatpush1.msra.mxu0 0.0
    %9867 = vmatprep.subr.mxu0 0.0
    %9868 = vmatpush1.msra.mxu0 0.0
    %9869 = vmatprep.subr.mxu0 0.0
    %9870 = vmatpush1.msra.mxu0 0.0
    %9871 = vmatprep.subr.mxu0 0.0
    %9872 = vmatpush1.msra.mxu0 0.0
    %9873 = vmatprep.subr.mxu0 0.0
    %9874 = vmatpush1.msra.mxu0 0.0
    %9875 = vmatprep.subr.mxu0 0.0
    %9876 = vmatpush1.msra.mxu0 0.0
    %9877 = vmatprep.subr.mxu0 0.0
    %9878 = vmatpush1.msra.mxu0 0.0
    %9879 = vmatprep.subr.mxu0 0.0
    %9880 = vmatpush1.msra.mxu0 0.0
    %9881 = vmatprep.subr.mxu0 0.0
    %9882 = vmatpush1.msra.mxu0 0.0
    %9883 = vmatprep.subr.mxu0 0.0
    %9884 = vmatpush1.msra.mxu0 0.0
    %9885 = vmatprep.subr.mxu0 0.0
    %9886 = vmatpush1.msra.mxu0 0.0
    %9887 = vmatprep.subr.mxu0 0.0
    %9888 = vmatpush1.msra.mxu0 0.0
    %9889 = vmatprep.mubr.f32.mxu0 0.0
    %v9890 = vand.u32 %v96, 4294901760
    %9891 = vmatmul.mubr.f32.gmra.mrb[0].mxu0 %v9890
    %v9892 = vpop.f32.mrb[0].mxu0
    %v9893 = vadd.f32 %v9760, %v9892
    %v9894 = vpop.f32.mrb[0].mxu0
    %9895 = vmatprep.mubr.f32.mxu0 0.0
    %v9896 = vand.u32 %v98, 4294901760
    %9897 = vmatmul.mubr.f32.gmra.mrb[0].mxu0 %v9896
    %v9898 = vpop.f32.mrb[0].mxu0
    %v9899 = vadd.f32 %v9768, %v9898
    %v9900 = vpop.f32.mrb[0].mxu0
    %9901 = vmatprep.mubr.f32.mxu0 0.0
    %v9902 = vand.u32 %v100, 4294901760
    %9903 = vmatmul.mubr.f32.gmra.mrb[0].mxu0 %v9902
    %v9904 = vpop.f32.mrb[0].mxu0
    %v9905 = vadd.f32 %v9776, %v9904
    %v9906 = vpop.f32.mrb[0].mxu0
    %9907 = vmatprep.mubr.f32.mxu0 0.0
    %v9908 = vand.u32 %v102, 4294901760
    %9909 = vmatmul.mubr.f32.gmra.mrb[0].mxu0 %v9908
    %v9910 = vpop.f32.mrb[0].mxu0
    %v9911 = vadd.f32 %v9784, %v9910
    %v9912 = vpop.f32.mrb[0].mxu0
    %9913 = vmatprep.mubr.f32.mxu0 0.0
    %v9914 = vand.u32 %v104, 4294901760
    %9915 = vmatmul.mubr.f32.gmra.mrb[0].mxu0 %v9914
    %v9916 = vpop.f32.mrb[0].mxu0
    %v9917 = vadd.f32 %v9792, %v9916
    %v9918 = vpop.f32.mrb[0].mxu0
    %9919 = vdwg.mxu0
    %9920 = vmatprep.subr.mxu0 0.0
    %v9921 = vand.u32 %v9280, 4294901760
    %9922 = vmatpush1.msra.mxu0 %v9921
    %9923 = vmatprep.subr.mxu0 0.0
    %v9924 = vand.u32 %v9281, 4294901760
    %9925 = vmatpush1.msra.mxu0 %v9924
    %9926 = vmatprep.subr.mxu0 0.0
    %v9927 = vand.u32 %v9282, 4294901760
    %9928 = vmatpush1.msra.mxu0 %v9927
    %9929 = vmatprep.subr.mxu0 0.0
    %v9930 = vand.u32 %v9283, 4294901760
    %9931 = vmatpush1.msra.mxu0 %v9930
    %9932 = vmatprep.subr.mxu0 0.0
    %v9933 = vand.u32 %v9284, 4294901760
    %9934 = vmatpush1.msra.mxu0 %v9933
    %9935 = vmatprep.subr.mxu0 0.0
    %v9936 = vand.u32 %v9285, 4294901760
    %9937 = vmatpush1.msra.mxu0 %v9936
    %9938 = vmatprep.subr.mxu0 0.0
    %v9939 = vand.u32 %v9286, 4294901760
    %9940 = vmatpush1.msra.mxu0 %v9939
    %9941 = vmatprep.subr.mxu0 0.0
    %v9942 = vand.u32 %v9287, 4294901760
    %9943 = vmatpush1.msra.mxu0 %v9942
    %9944 = vmatprep.subr.mxu0 0.0
    %v9945 = vand.u32 %v9288, 4294901760
    %9946 = vmatpush1.msra.mxu0 %v9945
    %9947 = vmatprep.subr.mxu0 0.0
    %v9948 = vand.u32 %v9289, 4294901760
    %9949 = vmatpush1.msra.mxu0 %v9948
    %9950 = vmatprep.subr.mxu0 0.0
    %9951 = vmatpush1.msra.mxu0 0.0
    %9952 = vmatprep.subr.mxu0 0.0
    %9953 = vmatpush1.msra.mxu0 0.0
    %9954 = vmatprep.subr.mxu0 0.0
    %9955 = vmatpush1.msra.mxu0 0.0
    %9956 = vmatprep.subr.mxu0 0.0
    %9957 = vmatpush1.msra.mxu0 0.0
    %9958 = vmatprep.subr.mxu0 0.0
    %9959 = vmatpush1.msra.mxu0 0.0
    %9960 = vmatprep.subr.mxu0 0.0
    %9961 = vmatpush1.msra.mxu0 0.0
    %9962 = vmatprep.subr.mxu0 0.0
    %9963 = vmatpush1.msra.mxu0 0.0
    %9964 = vmatprep.subr.mxu0 0.0
    %9965 = vmatpush1.msra.mxu0 0.0
    %9966 = vmatprep.subr.mxu0 0.0
    %9967 = vmatpush1.msra.mxu0 0.0
    %9968 = vmatprep.subr.mxu0 0.0
    %9969 = vmatpush1.msra.mxu0 0.0
    %9970 = vmatprep.subr.mxu0 0.0
    %9971 = vmatpush1.msra.mxu0 0.0
    %9972 = vmatprep.subr.mxu0 0.0
    %9973 = vmatpush1.msra.mxu0 0.0
    %9974 = vmatprep.subr.mxu0 0.0
    %9975 = vmatpush1.msra.mxu0 0.0
    %9976 = vmatprep.subr.mxu0 0.0
    %9977 = vmatpush1.msra.mxu0 0.0
    %9978 = vmatprep.subr.mxu0 0.0
    %9979 = vmatpush1.msra.mxu0 0.0
    %9980 = vmatprep.subr.mxu0 0.0
    %9981 = vmatpush1.msra.mxu0 0.0
    %9982 = vmatprep.subr.mxu0 0.0
    %9983 = vmatpush1.msra.mxu0 0.0
    %9984 = vmatprep.subr.mxu0 0.0
    %9985 = vmatpush1.msra.mxu0 0.0
    %9986 = vmatprep.subr.mxu0 0.0
    %9987 = vmatpush1.msra.mxu0 0.0
    %9988 = vmatprep.subr.mxu0 0.0
    %9989 = vmatpush1.msra.mxu0 0.0
    %9990 = vmatprep.subr.mxu0 0.0
    %9991 = vmatpush1.msra.mxu0 0.0
    %9992 = vmatprep.subr.mxu0 0.0
    %9993 = vmatpush1.msra.mxu0 0.0
    %9994 = vmatprep.mubr.f32.mxu0 0.0
    %v9995 = vand.u32 %v96, 4294901760
    %9996 = vmatmul.mubr.f32.gmra.mrb[0].mxu0 %v9995
    %v9997 = vpop.f32.mrb[0].mxu0
    %v9998 = vadd.f32 %v9893, %v9997
    %v9999 = vpop.f32.mrb[0].mxu0
    %10000 = vmatprep.mubr.f32.mxu0 0.0
    %v10001 = vand.u32 %v98, 4294901760
    %10002 = vmatmul.mubr.f32.gmra.mrb[0].mxu0 %v10001
    %v10003 = vpop.f32.mrb[0].mxu0
    %v10004 = vadd.f32 %v9899, %v10003
    %v10005 = vpop.f32.mrb[0].mxu0
    %10006 = vmatprep.mubr.f32.mxu0 0.0
    %v10007 = vand.u32 %v100, 4294901760
    %10008 = vmatmul.mubr.f32.gmra.mrb[0].mxu0 %v10007
    %v10009 = vpop.f32.mrb[0].mxu0
    %v10010 = vadd.f32 %v9905, %v10009
    %v10011 = vpop.f32.mrb[0].mxu0
    %10012 = vmatprep.mubr.f32.mxu0 0.0
    %v10013 = vand.u32 %v102, 4294901760
    %10014 = vmatmul.mubr.f32.gmra.mrb[0].mxu0 %v10013
    %v10015 = vpop.f32.mrb[0].mxu0
    %v10016 = vadd.f32 %v9911, %v10015
    %v10017 = vpop.f32.mrb[0].mxu0
    %10018 = vmatprep.mubr.f32.mxu0 0.0
    %v10019 = vand.u32 %v104, 4294901760
    %10020 = vmatmul.mubr.f32.gmra.mrb[0].mxu0 %v10019
    %v10021 = vpop.f32.mrb[0].mxu0
    %v10022 = vadd.f32 %v9917, %v10021
    %v10023 = vpop.f32.mrb[0].mxu0
    %10024 = vdwg.mxu0
    %v10025 = vadd.f32 %v9248, %v9998
    %v10026 = vadd.f32 %v9255, %v10004
    %v10027 = vadd.f32 %v9262, %v10010
    %v10028 = vadd.f32 %v9269, %v10016
    %v10029 = vadd.f32 %v9276, %v10022
    %v10030 = vmax.f32 %v7428, %v10025
    %v10031 = vmax.f32 %v7429, %v10026
    %v10032 = vmax.f32 %v7430, %v10027
    %v10033 = vmax.f32 %v7431, %v10028
    %v10034 = vmax.f32 %v7432, %v10029
    %v10035 = vld [vmem:[%s7] sm:$0x1]
    %v10037 = vlaneseq
    %v10038 = vshrl.u32 %v10037, 7
    %v10039 = vsub.s32 0, %v10038
    %v10040 = vrot.slane %v10035, %v10039
    %v10042 = vadd.f32 %v10030, %v10040
    %v10043 = vadd.f32 %v10031, %v10040
    %v10044 = vadd.f32 %v10032, %v10040
    %v10045 = vadd.f32 %v10033, %v10040
    %v10046 = vadd.f32 %v10034, %v10040
    %vm10047 = vcmask 392192
    %10048 = vst.msk [vmem:[#allocation2] sm:$0xff] %vm10047, %v10042
    %10049 = vst.msk [vmem:[#allocation2 + $0x8] sm:$0xff] %vm10047, %v10043
    %10050 = vst.msk [vmem:[#allocation2 + $0x10] sm:$0xff] %vm10047, %v10044
    %10051 = vst.msk [vmem:[#allocation2 + $0x18] sm:$0xff] %vm10047, %v10045
    %10052 = vst.msk [vmem:[#allocation2 + $0x20] sm:$0xff] %vm10047, %v10046
    // Predicated region
    $region34: #{tpu_custom_call.1} parent=1 // pred_check
      _
    $region35: #{tpu_custom_call.1} parent=1 // pred_check_branch
      %10054 = sbr.rel (0) target = $region37
    $region36: #{tpu_custom_call.1} parent=1 // pred_region
      %s10056 = ssub.s32 640, 640
      %10057 = vsyncadd [#allocation3], %s10056
      %s10058 = sshll.u32 [#allocation2], 4
      %s10059 = int_to_ptr.vmem [resolvable:$true] %s10058
      %10064 = dma.vmem_to_hbm [thread:$0]  %s10059, 640, %s8, [#allocation3], 128, 128, 8
    $region37: #{tpu_custom_call.1} parent=1 // pred_fallthru
      _
    // Predicated region
    $region38: #{tpu_custom_call.1} parent=1 // pred_check
      _
    $region39: #{tpu_custom_call.1} parent=1 // pred_check_branch
      %10066 = sbr.rel (0) target = $region41
    $region40: #{tpu_custom_call.1} parent=1 // pred_region
      %10067 = dma.done [#allocation3], 640
    $region41: #{tpu_custom_call.1} parent=1 // pred_fallthru
      _
    %10068 = vsyncpa [#allocation3], 1

</llo_original>
